<compile_context>
chip_gen: v5e
topology: v5e:2x2
jax: 0.10.0
libtpu: 0.0.40
codegen_flags: <defaults>
</compile_context>

<pallas_src>
import functools

import jax
import jax.numpy as jnp
from jax.experimental import pallas as pl
from jax.experimental.pallas import tpu as pltpu

EPS = 1e-5


# ---------------------------------------------------------------------------
# Kernels
# ---------------------------------------------------------------------------
def attn_logits_kernel(q_ref, wT_ref, b_ref, out_ref):
    # sigmoid fused here (elementwise, commutes with the later .view reinterp).
    out_ref[0] = jax.nn.sigmoid(
        jnp.dot(q_ref[0], wT_ref[...], preferred_element_type=jnp.float32)
        + b_ref[...]
    )


def make_sample_kernel(V, H, W, hw_t, q_t, n_qt, n_hwt, feat_dtype,
                       use_attn_weights, has_prev):
    """One grid step = (batch b, view v, HW chunk hw, query tile qt).

    Builds a transposed bilinear sampling matrix S_T (hw_t, q_t) with the
    attention weight / frustum mask / tap validity folded into four per-query
    row weights, and does feat(C, hw_t) @ S_T -> (C, q_t) on the MXU,
    accumulated into an (n_qt, C, q_t) f32 VMEM scratch.  Steps whose chunk is
    not touched by any query (SMEM hit table) skip all of that.
    """

    def kernel(*refs):
        proj_ref = refs[0]                    # SMEM (B*V*12,) f32, rows 0/1 pre-scaled
        hit_ref = refs[1]                     # SMEM (B*V*n_hwt*n_qt,) int32
        idx = 2
        prev_ref = None
        w_ref = None
        if has_prev:
            prev_ref = refs[idx]; idx += 1    # (1, C, Q_pad) running level sum
        if use_attn_weights:
            w_ref = refs[idx]; idx += 1       # (1, 1, 1, q_t) sigmoid weights
        ref_ref, feat_ref, out_ref, acc_ref = refs[idx:idx + 4]

        b = pl.program_id(0)
        v = pl.program_id(1)
        hw = pl.program_id(2)
        qt = pl.program_id(3)
        last_v = pl.num_programs(1) - 1
        last_hw = pl.num_programs(2) - 1
        last_qt = pl.num_programs(3) - 1

        @pl.when((v == 0) & (hw == 0) & (qt == 0))
        def _init():
            acc_ref[...] = jnp.zeros_like(acc_ref)

        hit = hit_ref[((b * V + v) * n_hwt + hw) * n_qt + qt]

        @pl.when(hit != 0)
        def _sample():
            # --- projection: all (1, q_t) row-vector math -------------------
            xw = ref_ref[0, 0:1, :]
            yw = ref_ref[0, 1:2, :]
            zw = ref_ref[0, 2:3, :]
            pbase = (b * V + v) * 12          # 12 scalars per (batch, view)
            p = [proj_ref[pbase + k] for k in range(12)]

            px = xw * p[0] + yw * p[1] + zw * p[2] + p[3]   # row0 /= W_img folded
            py = xw * p[4] + yw * p[5] + zw * p[6] + p[7]   # row1 /= H_img folded
            pz = xw * p[8] + yw * p[9] + zw * p[10] + p[11]

            vis = pz >= EPS
            rinv = pl.reciprocal(jnp.maximum(pz, EPS), approx=True)  # EUP slot
            xn = px * rinv                                           # in [0, 1]
            yn = py * rinv
            vis = vis & (xn > 0.0) & (xn < 1.0) & (yn > 0.0) & (yn < 1.0)

            # grid_sample: bilinear, align_corners=False, zero padding.
            ix = jnp.clip(xn * W - 0.5, -2.0, W + 2.0)
            iy = jnp.clip(yn * H - 0.5, -2.0, H + 2.0)
            x0f = jnp.floor(ix)
            y0f = jnp.floor(iy)
            fx = ix - x0f
            fy = iy - y0f
            x0 = x0f.astype(jnp.int32)
            y0 = y0f.astype(jnp.int32)

            # frustum mask (and sigmoid attention weight) folded into the four
            # bilinear tap weights -> no extra (C, Q) multiply afterwards.
            wq = vis.astype(jnp.float32)
            if use_attn_weights:
                wq = wq * w_ref[0, 0]         # (1, q_t)

            vx0 = (x0 >= 0) & (x0 < W)
            vx1 = (x0 >= -1) & (x0 < W - 1)
            vy0 = (y0 >= 0) & (y0 < H)
            vy1 = (y0 >= -1) & (y0 < H - 1)
            w00 = jnp.where(vy0 & vx0, (1.0 - fy) * (1.0 - fx), 0.0) * wq
            w01 = jnp.where(vy0 & vx1, (1.0 - fy) * fx, 0.0) * wq
            w10 = jnp.where(vy1 & vx0, fy * (1.0 - fx), 0.0) * wq
            w11 = jnp.where(vy1 & vx1, fy * fx, 0.0) * wq

            # flat tap base (local to this HW chunk); the four taps sit at
            # offsets {0, 1, W, W+1}, so one (hw_t, q_t) subtraction + four
            # compares/selects build the whole sampling matrix.
            base_l = y0 * W + x0 - hw * hw_t                 # (1, q_t) int32
            row = jax.lax.broadcasted_iota(jnp.int32, (hw_t, q_t), 0)
            d = row - base_l                                  # (hw_t, q_t)
            s_t = (jnp.where(d == 0, w00, 0.0)
                   + jnp.where(d == 1, w01, 0.0)
                   + jnp.where(d == W, w10, 0.0)
                   + jnp.where(d == W + 1, w11, 0.0))

            # bf16 feat @ bf16 S_T, f32 accumulation on the MXU.
            acc_ref[qt] += jnp.dot(feat_ref[0, 0], s_t.astype(feat_dtype),
                                   preferred_element_type=jnp.float32)

        @pl.when((v == last_v) & (hw == last_hw) & (qt == last_qt))
        def _finalize():
            # TODO(synk): torch applies nan_to_num per sampled feature before
            # weighting; hoisted to once per level (identical for finite feats).
            for j in range(n_qt):             # static unroll, static lane slices
                res = jnp.nan_to_num(acc_ref[j])
                if has_prev:
                    res = res + prev_ref[0, :, j * q_t:(j + 1) * q_t]
                out_ref[0, :, j * q_t:(j + 1) * q_t] = res

    return kernel


def _layer_norm(x, gamma, beta, eps=1e-5):
    mu = jnp.mean(x, axis=-1, keepdims=True)
    var = jnp.mean(jnp.square(x - mu), axis=-1, keepdims=True)
    return (x - mu) * jax.lax.rsqrt(var + eps) * gamma + beta


def final_kernel(sum_ref, ref_ref, woT_ref, bo_ref,
                 w1T_ref, b1_ref, g1_ref, bt1_ref,
                 w2T_ref, b2_ref, g2_ref, bt2_ref, out_ref):
    # output_proj
    x = sum_ref[0]                                           # (q_t, E)
    proj = (jnp.dot(x, woT_ref[...], preferred_element_type=jnp.float32)
            + bo_ref[...])
    # position encoder: Linear(3,E) -> LN -> ReLU -> Linear(E,E) -> LN -> ReLU
    r = ref_ref[0]                                           # (q_t, 3)
    w1T = w1T_ref[...]                                       # (3, E)
    h = (r[:, 0:1] * w1T[0:1, :] + r[:, 1:2] * w1T[1:2, :]
         + r[:, 2:3] * w1T[2:3, :] + b1_ref[...])
    h = _layer_norm(h, g1_ref[...], bt1_ref[...])
    h = jnp.maximum(h, 0.0)
    h = (jnp.dot(h, w2T_ref[...], preferred_element_type=jnp.float32)
         + b2_ref[...])
    h = _layer_norm(h, g2_ref[...], bt2_ref[...])
    h = jnp.maximum(h, 0.0)
    out_ref[0] = proj + h


# ---------------------------------------------------------------------------
# Tiling / wrapper helpers
# ---------------------------------------------------------------------------
def _round_up(x, m):
    return ((x + m - 1) // m) * m


def _hw_tile(hw, max_lanes=512):
    # lane dim of the feature chunk: a 128-multiple divisor of H*W, else full.
    # TODO(synk): pad HW to a 128 multiple for production maps (e.g. 116x200)
    # whose H*W has no 128-multiple divisor, instead of falling back to full.
    if hw <= max_lanes:
        return hw
    t = (max_lanes // 128) * 128
    while t >= 128:
        if hw % t == 0:
            return t
        t -= 128
    return hw


def _hit_table(proj_scaled, ref_pad, q_valid, H, W, hw_t, n_hwt, q_t, n_qt):
    """(B, V, n_hwt, n_qt) int32 table: does any query of tile qt touch chunk hw
    in view v?  Computed with relaxed thresholds and a +-(W+1) tap-span margin
    so it can never under-mark relative to the in-kernel math (approx
    reciprocal / FMA-order differences shift coordinates by << 1 pixel)."""
    B, V = proj_scaled.shape[:2]
    Qp = ref_pad.shape[1]
    hom = jnp.concatenate(
        [ref_pad, jnp.ones((B, Qp, 1), ref_pad.dtype)], axis=-1)
    cam = jnp.einsum("bvij,bqj->bvqi", proj_scaled, hom)      # (B, V, Qp, 3)
    z = cam[..., 2]
    inv = 1.0 / jnp.maximum(z, EPS)
    xn = cam[..., 0] * inv
    yn = cam[..., 1] * inv
    vis = ((z >= 0.5 * EPS)
           & (xn > -1e-3) & (xn < 1.0 + 1e-3)
           & (yn > -1e-3) & (yn < 1.0 + 1e-3)
           & q_valid[None, None, :])
    x0 = jnp.floor(jnp.clip(xn * W - 0.5, -2.0, W + 2.0)).astype(jnp.int32)
    y0 = jnp.floor(jnp.clip(yn * H - 0.5, -2.0, H + 2.0)).astype(jnp.int32)
    base = y0 * W + x0
    lo = base - (W + 1)
    hi = base + 2 * (W + 1)
    starts = jnp.arange(n_hwt, dtype=jnp.int32) * hw_t        # (n_hwt,)
    touch = ((hi[..., None] >= starts) & (lo[..., None] < starts + hw_t)
             & vis[..., None])                                 # (B,V,Qp,n_hwt)
    touch = touch.reshape(B, V, n_qt, q_t, n_hwt)
    hit = jnp.any(touch, axis=3)                               # (B,V,n_qt,n_hwt)
    hit = jnp.transpose(hit, (0, 1, 3, 2))                     # (B,V,n_hwt,n_qt)
    return hit.astype(jnp.int32).reshape(-1)


# ---------------------------------------------------------------------------
# Wrapper
# ---------------------------------------------------------------------------
def detr3d_cross_attn(params, query, feature_pyramid, reference_position,
                      camera_projection_matrices, img_size,
                      num_views, num_levels, use_attn_weights=True,
                      feature_dtype=jnp.bfloat16, hw_max_lanes=512):
    B, Q, E = query.shape
    V, L = num_views, num_levels

    # q_t = 128 is MXU-matched on v5e and safe on 256-wide MXU parts; pad Q so
    # every query tile is full (aligned lane-dense stores, bounded vregs, and
    # B * n_qt >= 2 units of parallel grid work for v7x megacore when B == 1).
    q_t = 128
    Q_pad = max(q_t, _round_up(Q, q_t))
    n_qt = Q_pad // q_t

    # ---- attention weights: Linear + sigmoid fused (Pallas) ----------------
    if use_attn_weights:
        awT = params["aw_W"].T                   # (E, L*V)
        awb = params["aw_b"][None, :]            # (1, L*V)
        sig = pl.pallas_call(
            attn_logits_kernel,
            out_shape=jax.ShapeDtypeStruct((B, Q, L * V), jnp.float32),
            grid=(B,),
            in_specs=[
                pl.BlockSpec((1, Q, E), lambda b: (b, 0, 0)),
                pl.BlockSpec((E, L * V), lambda b: (0, 0)),
                pl.BlockSpec((1, L * V), lambda b: (0, 0)),
            ],
            out_specs=pl.BlockSpec((1, Q, L * V), lambda b: (b, 0, 0)),
            compiler_params=pltpu.CompilerParams(
                dimension_semantics=("parallel",)),
        )(query, awT, awb)
        # torch: .view(B, L, V, Q, 1) on the contiguous (B, Q, L*V) tensor is a
        # raw C-order reinterpretation (it scrambles query and (level, view)
        # indices); reshape reproduces it exactly.  The relayout + zero pad of
        # this tiny tensor is accepted (off the critical path).
        sig_lvq = sig.reshape(B, L, V, Q)
        sig_lvq = jnp.pad(sig_lvq, ((0, 0), (0, 0), (0, 0), (0, Q_pad - Q)))
    else:
        sig_lvq = None

    # Fold 1/W_img (row 0) and 1/H_img (row 1) into the projection matrices and
    # flatten to a 1-D SMEM scalar-prefetch table: 12 scalars per (b, v).
    inv = jnp.stack([1.0 / img_size[:, 1], 1.0 / img_size[:, 0],
                     jnp.ones_like(img_size[:, 0])], axis=-1)       # (B, 3)
    proj_scaled = (camera_projection_matrices
                   * inv[:, None, :, None]).astype(jnp.float32)
    proj_flat = proj_scaled.reshape(-1)

    # padded reference positions, both (B, Q_pad, 3) and lane-major (B, 3, Q_pad)
    ref_pad = jnp.pad(reference_position.astype(jnp.float32),
                      ((0, 0), (0, Q_pad - Q), (0, 0)))
    refT_pad = jnp.transpose(ref_pad, (0, 2, 1))
    q_valid = jnp.arange(Q_pad) < Q

    # ---- per-level projection + grid_sample + weighting, summed in VMEM -----
    summed_cq = None                             # (B, C, Q_pad) running level sum
    lvl = 0
    for name, feat in feature_pyramid.items():
        if name == "pool":                       # skipped, as in torch
            continue
        _, _, C, H, Wd = feat.shape
        HW = H * Wd
        hw_t = _hw_tile(HW, hw_max_lanes)
        n_hwt = HW // hw_t

        # native NCHW layout, metadata-only reshape; single bf16 cast pass.
        feat_r = feat.reshape(B, V, C, HW).astype(feature_dtype)

        hit_tbl = _hit_table(proj_scaled, ref_pad, q_valid, H, Wd,
                             hw_t, n_hwt, q_t, n_qt)

        has_prev = summed_cq is not None
        kern = make_sample_kernel(V, H, Wd, hw_t, q_t, n_qt, n_hwt,
                                  feature_dtype, use_attn_weights, has_prev)

        in_specs = []
        args = [proj_flat, hit_tbl]
        if has_prev:
            in_specs.append(pl.BlockSpec(
                (1, C, Q_pad), lambda b, v, hw, qt, pj, ht: (b, 0, 0)))
            args.append(summed_cq)
        if use_attn_weights:
            w_lv = sig_lvq[:, lvl][:, :, None, :]            # (B, V, 1, Q_pad)
            in_specs.append(pl.BlockSpec(
                (1, 1, 1, q_t), lambda b, v, hw, qt, pj, ht: (b, v, 0, qt)))
            args.append(w_lv)
        in_specs.append(pl.BlockSpec(
            (1, 3, q_t), lambda b, v, hw, qt, pj, ht: (b, 0, qt)))
        args.append(refT_pad)
        in_specs.append(pl.BlockSpec(
            (1, 1, C, hw_t), lambda b, v, hw, qt, pj, ht: (b, v, 0, hw)))
        args.append(feat_r)

        # VMEM: double-buffered feature chunk + out/prev blocks + accumulator
        # + (hw_t, q_t) S_T intermediates.  Cap at 48 MiB so there is headroom
        # on v7x (64 MiB physical); v5e/v6e can raise hw_max_lanes further.
        need = (2 * C * hw_t * 4 + (4 if has_prev else 2) * C * Q_pad * 4
                + n_qt * C * q_t * 4 + 8 * hw_t * q_t * 4 + (1 << 20))
        vmem_limit = int(max(32 << 20, min(48 << 20, 2 * need)))

        summed_cq = pl.pallas_call(
            kern,
            out_shape=jax.ShapeDtypeStruct((B, C, Q_pad), jnp.float32),
            grid_spec=pltpu.PrefetchScalarGridSpec(
                num_scalar_prefetch=2,
                # qt innermost: the feature block index does not depend on qt,
                # so each feature chunk is DMA'd once per (b, v) and reused for
                # every query tile.
                grid=(B, V, n_hwt, n_qt),
                in_specs=in_specs,
                out_specs=pl.BlockSpec(
                    (1, C, Q_pad), lambda b, v, hw, qt, pj, ht: (b, 0, 0)),
                scratch_shapes=[pltpu.VMEM((n_qt, C, q_t), jnp.float32)]),
            compiler_params=pltpu.CompilerParams(
                dimension_semantics=("parallel", "arbitrary",
                                     "arbitrary", "arbitrary"),
                vmem_limit_bytes=vmem_limit),
        )(*args)
        lvl += 1

    # (B, C, Q_pad) -> (B, Q_pad, C): tiny relayout of the level sum only.
    # TODO(synk): could be folded into the sampling finalize (in-kernel
    # transpose) to keep everything lane-dense end to end.
    summed = jnp.transpose(summed_cq, (0, 2, 1))

    # ---- output_proj + position_encoder + add (Pallas) ---------------------
    woT = params["out_W"].T                      # (E, E)
    bo = params["out_b"][None, :]
    w1T = params["pe1_W"].T                      # (3, E)
    b1 = params["pe1_b"][None, :]
    g1 = params["ln1_g"][None, :]
    bt1 = params["ln1_b"][None, :]
    w2T = params["pe2_W"].T                      # (E, E)
    b2 = params["pe2_b"][None, :]
    g2 = params["ln2_g"][None, :]
    bt2 = params["ln2_b"][None, :]

    full = lambda shape: pl.BlockSpec(shape, lambda b, qt: (0,) * len(shape))
    out = pl.pallas_call(
        final_kernel,
        out_shape=jax.ShapeDtypeStruct((B, Q_pad, E), jnp.float32),
        grid=(B, n_qt),
        in_specs=[
            pl.BlockSpec((1, q_t, E), lambda b, qt: (b, qt, 0)),
            pl.BlockSpec((1, q_t, 3), lambda b, qt: (b, qt, 0)),
            full((E, E)), full((1, E)),
            full((3, E)), full((1, E)), full((1, E)), full((1, E)),
            full((E, E)), full((1, E)), full((1, E)), full((1, E)),
        ],
        out_specs=pl.BlockSpec((1, q_t, E), lambda b, qt: (b, qt, 0)),
        compiler_params=pltpu.CompilerParams(
            dimension_semantics=("parallel", "parallel")),
    )(summed, ref_pad, woT, bo, w1T, b1, g1, bt1, w2T, b2, g2, bt2)
    return out[:, :Q, :]


# ---------------------------------------------------------------------------
# Deterministic parameter init (matches nn.Module shapes, not a checkpoint)
# ---------------------------------------------------------------------------
def init_params(key, embed_dims, num_views, num_levels):
    E = embed_dims
    ks = jax.random.split(key, 4)

    def lin(k, fan_in, fan_out):
        kw, kb = jax.random.split(k)
        bound = 1.0 / (fan_in ** 0.5)
        W = jax.random.uniform(kw, (fan_out, fan_in), jnp.float32, -bound, bound)
        b = jax.random.uniform(kb, (fan_out,), jnp.float32, -bound, bound)
        return W, b

    p = {}
    p["aw_W"], p["aw_b"] = lin(ks[0], E, num_views * num_levels)
    p["out_W"], p["out_b"] = lin(ks[1], E, E)
    p["pe1_W"], p["pe1_b"] = lin(ks[2], 3, E)
    p["ln1_g"] = jnp.ones((E,), jnp.float32)
    p["ln1_b"] = jnp.zeros((E,), jnp.float32)
    p["pe2_W"], p["pe2_b"] = lin(ks[3], E, E)
    p["ln2_g"] = jnp.ones((E,), jnp.float32)
    p["ln2_b"] = jnp.zeros((E,), jnp.float32)
    return p


# ---------------------------------------------------------------------------
if __name__ == "__main__":
    B, V, L, Q, E = 2, 3, 2, 200, 32
    C = E

    key = jax.random.PRNGKey(0)
    kparam, kq, kr, kp, kf0, kf1 = jax.random.split(key, 6)
    params = init_params(kparam, E, V, L)

    query = jax.random.normal(kq, (B, Q, E), jnp.float32)

    ref_pos = jax.random.uniform(kr, (B, Q, 3), jnp.float32, -2.0, 2.0)
    ref_pos = ref_pos.at[..., 2].set(jnp.abs(ref_pos[..., 2]) + 1.0)

    base_proj = jnp.array([[20.0, 0.0, 32.0, 0.0],
                           [0.0, 20.0, 32.0, 0.0],
                           [0.0, 0.0, 1.0, 0.0]], jnp.float32)
    proj_mats = (base_proj[None, None]
                 + 0.01 * jax.random.normal(kp, (B, V, 3, 4), jnp.float32))

    img_size = jnp.full((B, 2), 64.0, jnp.float32)           # (H, W) per batch

    # keys chosen so sorted (pytree) order == insertion order.
    feature_pyramid = {
        "p0": jax.random.normal(kf0, (B, V, C, 32, 32), jnp.float32),
        "p1": jax.random.normal(kf1, (B, V, C, 16, 16), jnp.float32),
        # a 'pool' entry, if present, would be skipped (as in the torch module)
    }

    fwd = jax.jit(functools.partial(detr3d_cross_attn, num_views=V,
                                    num_levels=L, use_attn_weights=True))
    out = fwd(params, query, feature_pyramid, ref_pos, proj_mats, img_size)
    out = jax.block_until_ready(out)
    assert out.shape == (B, Q, E) and out.dtype == jnp.float32
    print("KERNEL_OK")
</pallas_src>

<mosaic_0001>
module attributes {stable_mosaic.version = 11 : i64} {
  func.func @attn_logits_kernel(%arg0: i32, %arg1: memref<1x200x32xf32, #tpu.memory_space<vmem>>, %arg2: memref<32x6xf32, #tpu.memory_space<vmem>>, %arg3: memref<1x6xf32, #tpu.memory_space<vmem>>, %arg4: memref<1x200x6xf32, #tpu.memory_space<vmem>>) attributes {dimension_semantics = [#tpu.dimension_semantics<parallel>], iteration_bounds = array<i64: 2>, scalar_prefetch = 0 : i64, scratch_operands = 0 : i64, tpu.core_type = #tpu.core_type<tc>, window_params = [{transform_indices = @transform_0, window_bounds = array<i64: 1, 200, 32>}, {pipeline_mode = #tpu.pipeline_mode<synchronous>, transform_indices = @transform_1, window_bounds = array<i64: 32, 6>}, {pipeline_mode = #tpu.pipeline_mode<synchronous>, transform_indices = @transform_2, window_bounds = array<i64: 1, 6>}, {transform_indices = @transform_3, window_bounds = array<i64: 1, 200, 6>}]} {
    %c0 = arith.constant 0 : index
    %c0_0 = arith.constant 0 : index
    %c0_1 = arith.constant 0 : index
    %0 = vector.load %arg1[%c0, %c0_0, %c0_1] : memref<1x200x32xf32, #tpu.memory_space<vmem>>, vector<1x200x32xf32>
    %1 = vector.shape_cast %0 : vector<1x200x32xf32> to vector<200x32xf32>
    %c0_2 = arith.constant 0 : index
    %c0_3 = arith.constant 0 : index
    %2 = vector.load %arg2[%c0_2, %c0_3] : memref<32x6xf32, #tpu.memory_space<vmem>>, vector<32x6xf32>
    %cst = arith.constant dense<0.000000e+00> : vector<200x6xf32>
    %3 = tpu.matmul %1, %2, %cst {dimension_numbers = #tpu.dot_dimension_numbers<[1], [0], [0], [1], [0, 0, 1, 1], [], []>} : vector<200x32xf32>, vector<32x6xf32>, vector<200x6xf32> -> vector<200x6xf32>
    %c0_4 = arith.constant 0 : index
    %c0_5 = arith.constant 0 : index
    %4 = vector.load %arg3[%c0_4, %c0_5] : memref<1x6xf32, #tpu.memory_space<vmem>>, vector<1x6xf32>
    %5 = vector.broadcast %4 : vector<1x6xf32> to vector<200x6xf32>
    %6 = arith.addf %3, %5 : vector<200x6xf32>
    %7 = arith.negf %6 : vector<200x6xf32>
    %8 = math.exp %7 : vector<200x6xf32>
    %cst_6 = arith.constant 1.000000e+00 : f32
    %9 = vector.broadcast %cst_6 : f32 to vector<200x6xf32>
    %10 = arith.addf %9, %8 : vector<200x6xf32>
    %11 = arith.divf %9, %10 : vector<200x6xf32>
    %c0_7 = arith.constant 0 : index
    %c0_8 = arith.constant 0 : index
    %c0_9 = arith.constant 0 : index
    %12 = vector.load %arg4[%c0_7, %c0_8, %c0_9] : memref<1x200x6xf32, #tpu.memory_space<vmem>>, vector<1x200x6xf32>
    %13 = vector.shape_cast %12 : vector<1x200x6xf32> to vector<200x6xf32>
    %14 = vector.shape_cast %11 : vector<200x6xf32> to vector<1x200x6xf32>
    tpu.vector_store %arg4[%c0_7, %c0_8, %c0_9], %14 {strides = array<i32>} : memref<1x200x6xf32, #tpu.memory_space<vmem>>, vector<1x200x6xf32>,
    return
  }
  func.func @transform_0(%arg0: i32) -> (i32, i32, i32) {
    %c0_i32 = arith.constant 0 : i32
    %c0_i32_0 = arith.constant 0 : i32
    %c0_i32_1 = arith.constant 0 : i32
    return %arg0, %c0_i32, %c0_i32_0 : i32, i32, i32
  }
  func.func @transform_1(%arg0: i32) -> (i32, i32) {
    %c0_i32 = arith.constant 0 : i32
    %c0_i32_0 = arith.constant 0 : i32
    %c0_i32_1 = arith.constant 0 : i32
    return %c0_i32, %c0_i32_0 : i32, i32
  }
  func.func @transform_2(%arg0: i32) -> (i32, i32) {
    %c0_i32 = arith.constant 0 : i32
    %c0_i32_0 = arith.constant 0 : i32
    %c0_i32_1 = arith.constant 0 : i32
    return %c0_i32, %c0_i32_0 : i32, i32
  }
  func.func @transform_3(%arg0: i32) -> (i32, i32, i32) {
    %c0_i32 = arith.constant 0 : i32
    %c0_i32_0 = arith.constant 0 : i32
    %c0_i32_1 = arith.constant 0 : i32
    return %arg0, %c0_i32, %c0_i32_0 : i32, i32, i32
  }
}

module attributes {stable_mosaic.version = 11 : i64} {
  func.func @kernel(%arg0: i32, %arg1: i32, %arg2: i32, %arg3: i32, %arg4: memref<72xf32, #tpu.memory_space<smem>>, %arg5: memref<24xi32, #tpu.memory_space<smem>>, %arg6: memref<1x1x1x128xf32, #tpu.memory_space<vmem>>, %arg7: memref<1x3x128xf32, #tpu.memory_space<vmem>>, %arg8: memref<1x1x32x512xbf16, #tpu.memory_space<vmem>>, %arg9: memref<1x32x256xf32, #tpu.memory_space<vmem>>, %arg10: memref<2x32x128xf32, #tpu.memory_space<vmem>>) attributes {dimension_semantics = [#tpu.dimension_semantics<parallel>, #tpu.dimension_semantics<arbitrary>, #tpu.dimension_semantics<arbitrary>, #tpu.dimension_semantics<arbitrary>], iteration_bounds = array<i64: 2, 3, 2, 2>, scalar_prefetch = 2 : i64, scratch_operands = 1 : i64, tpu.core_type = #tpu.core_type<tc>, window_params = [{transform_indices = @transform_0, window_bounds = array<i64: 1, 1, 1, 128>}, {transform_indices = @transform_1, window_bounds = array<i64: 1, 3, 128>}, {transform_indices = @transform_2, window_bounds = array<i64: 1, 1, 32, 512>}, {transform_indices = @transform_3, window_bounds = array<i64: 1, 32, 256>}]} {
    %c0_i32 = arith.constant 0 : i32
    %0 = arith.cmpi eq, %arg1, %c0_i32 : i32
    %c0_i32_0 = arith.constant 0 : i32
    %1 = arith.cmpi eq, %arg2, %c0_i32_0 : i32
    %2 = arith.andi %0, %1 : i1
    %c0_i32_1 = arith.constant 0 : i32
    %3 = arith.cmpi eq, %arg3, %c0_i32_1 : i32
    %4 = arith.andi %2, %3 : i1
    %5 = arith.extui %4 : i1 to i32
    %c0_i32_2 = arith.constant 0 : i32
    %6 = arith.cmpi ne, %5, %c0_i32_2 : i32
    scf.if %6 {
      %cst = arith.constant 0.000000e+00 : f32
      %25 = vector.broadcast %cst : f32 to vector<2x32x128xf32>
      %c0 = arith.constant 0 : index
      %c0_9 = arith.constant 0 : index
      %c0_10 = arith.constant 0 : index
      %26 = vector.load %arg10[%c0, %c0_9, %c0_10] : memref<2x32x128xf32, #tpu.memory_space<vmem>>, vector<2x32x128xf32>
      tpu.vector_store %arg10[%c0, %c0_9, %c0_10], %25 {strides = array<i32>} : memref<2x32x128xf32, #tpu.memory_space<vmem>>, vector<2x32x128xf32>,
    } else {
    }
    %c3_i32 = arith.constant 3 : i32
    %7 = arith.muli %arg0, %c3_i32 : i32
    %8 = arith.addi %7, %arg1 : i32
    %c2_i32 = arith.constant 2 : i32
    %9 = arith.muli %8, %c2_i32 : i32
    %10 = arith.addi %9, %arg2 : i32
    %c2_i32_3 = arith.constant 2 : i32
    %11 = arith.muli %10, %c2_i32_3 : i32
    %12 = arith.addi %11, %arg3 : i32
    %13 = arith.index_cast %12 : i32 to index
    %14 = memref.load %arg5[%13] : memref<24xi32, #tpu.memory_space<smem>>
    %c0_i32_4 = arith.constant 0 : i32
    %15 = arith.cmpi ne, %14, %c0_i32_4 : i32
    %16 = arith.extui %15 : i1 to i32
    %c0_i32_5 = arith.constant 0 : i32
    %17 = arith.cmpi ne, %16, %c0_i32_5 : i32
    scf.if %17 {
      %c0 = arith.constant 0 : index
      %c0_9 = arith.constant 0 : index
      %c0_10 = arith.constant 0 : index
      %25 = vector.load %arg7[%c0, %c0_9, %c0_10] : memref<1x3x128xf32, #tpu.memory_space<vmem>>, vector<1x1x128xf32>
      %26 = vector.shape_cast %25 : vector<1x1x128xf32> to vector<1x128xf32>
      %c0_11 = arith.constant 0 : index
      %c1 = arith.constant 1 : index
      %c0_12 = arith.constant 0 : index
      %27 = vector.load %arg7[%c0_11, %c1, %c0_12] : memref<1x3x128xf32, #tpu.memory_space<vmem>>, vector<1x1x128xf32>
      %28 = vector.shape_cast %27 : vector<1x1x128xf32> to vector<1x128xf32>
      %c0_13 = arith.constant 0 : index
      %c2 = arith.constant 2 : index
      %c0_14 = arith.constant 0 : index
      %29 = vector.load %arg7[%c0_13, %c2, %c0_14] : memref<1x3x128xf32, #tpu.memory_space<vmem>>, vector<1x1x128xf32>
      %30 = vector.shape_cast %29 : vector<1x1x128xf32> to vector<1x128xf32>
      %c3_i32_15 = arith.constant 3 : i32
      %31 = arith.muli %arg0, %c3_i32_15 : i32
      %32 = arith.addi %31, %arg1 : i32
      %c12_i32 = arith.constant 12 : i32
      %33 = arith.muli %32, %c12_i32 : i32
      %c0_i32_16 = arith.constant 0 : i32
      %34 = arith.addi %33, %c0_i32_16 : i32
      %35 = arith.index_cast %34 : i32 to index
      %36 = memref.load %arg4[%35] : memref<72xf32, #tpu.memory_space<smem>>
      %c1_i32_17 = arith.constant 1 : i32
      %37 = arith.addi %33, %c1_i32_17 : i32
      %38 = arith.index_cast %37 : i32 to index
      %39 = memref.load %arg4[%38] : memref<72xf32, #tpu.memory_space<smem>>
      %c2_i32_18 = arith.constant 2 : i32
      %40 = arith.addi %33, %c2_i32_18 : i32
      %41 = arith.index_cast %40 : i32 to index
      %42 = memref.load %arg4[%41] : memref<72xf32, #tpu.memory_space<smem>>
      %c3_i32_19 = arith.constant 3 : i32
      %43 = arith.addi %33, %c3_i32_19 : i32
      %44 = arith.index_cast %43 : i32 to index
      %45 = memref.load %arg4[%44] : memref<72xf32, #tpu.memory_space<smem>>
      %c4_i32 = arith.constant 4 : i32
      %46 = arith.addi %33, %c4_i32 : i32
      %47 = arith.index_cast %46 : i32 to index
      %48 = memref.load %arg4[%47] : memref<72xf32, #tpu.memory_space<smem>>
      %c5_i32 = arith.constant 5 : i32
      %49 = arith.addi %33, %c5_i32 : i32
      %50 = arith.index_cast %49 : i32 to index
      %51 = memref.load %arg4[%50] : memref<72xf32, #tpu.memory_space<smem>>
      %c6_i32 = arith.constant 6 : i32
      %52 = arith.addi %33, %c6_i32 : i32
      %53 = arith.index_cast %52 : i32 to index
      %54 = memref.load %arg4[%53] : memref<72xf32, #tpu.memory_space<smem>>
      %c7_i32 = arith.constant 7 : i32
      %55 = arith.addi %33, %c7_i32 : i32
      %56 = arith.index_cast %55 : i32 to index
      %57 = memref.load %arg4[%56] : memref<72xf32, #tpu.memory_space<smem>>
      %c8_i32 = arith.constant 8 : i32
      %58 = arith.addi %33, %c8_i32 : i32
      %59 = arith.index_cast %58 : i32 to index
      %60 = memref.load %arg4[%59] : memref<72xf32, #tpu.memory_space<smem>>
      %c9_i32 = arith.constant 9 : i32
      %61 = arith.addi %33, %c9_i32 : i32
      %62 = arith.index_cast %61 : i32 to index
      %63 = memref.load %arg4[%62] : memref<72xf32, #tpu.memory_space<smem>>
      %c10_i32 = arith.constant 10 : i32
      %64 = arith.addi %33, %c10_i32 : i32
      %65 = arith.index_cast %64 : i32 to index
      %66 = memref.load %arg4[%65] : memref<72xf32, #tpu.memory_space<smem>>
      %c11_i32 = arith.constant 11 : i32
      %67 = arith.addi %33, %c11_i32 : i32
      %68 = arith.index_cast %67 : i32 to index
      %69 = memref.load %arg4[%68] : memref<72xf32, #tpu.memory_space<smem>>
      %70 = vector.broadcast %36 : f32 to vector<1x128xf32>
      %71 = arith.mulf %26, %70 : vector<1x128xf32>
      %72 = vector.broadcast %39 : f32 to vector<1x128xf32>
      %73 = arith.mulf %28, %72 : vector<1x128xf32>
      %74 = arith.addf %71, %73 : vector<1x128xf32>
      %75 = vector.broadcast %42 : f32 to vector<1x128xf32>
      %76 = arith.mulf %30, %75 : vector<1x128xf32>
      %77 = arith.addf %74, %76 : vector<1x128xf32>
      %78 = vector.broadcast %45 : f32 to vector<1x128xf32>
      %79 = arith.addf %77, %78 : vector<1x128xf32>
      %80 = vector.broadcast %48 : f32 to vector<1x128xf32>
      %81 = arith.mulf %26, %80 : vector<1x128xf32>
      %82 = vector.broadcast %51 : f32 to vector<1x128xf32>
      %83 = arith.mulf %28, %82 : vector<1x128xf32>
      %84 = arith.addf %81, %83 : vector<1x128xf32>
      %85 = vector.broadcast %54 : f32 to vector<1x128xf32>
      %86 = arith.mulf %30, %85 : vector<1x128xf32>
      %87 = arith.addf %84, %86 : vector<1x128xf32>
      %88 = vector.broadcast %57 : f32 to vector<1x128xf32>
      %89 = arith.addf %87, %88 : vector<1x128xf32>
      %90 = vector.broadcast %60 : f32 to vector<1x128xf32>
      %91 = arith.mulf %26, %90 : vector<1x128xf32>
      %92 = vector.broadcast %63 : f32 to vector<1x128xf32>
      %93 = arith.mulf %28, %92 : vector<1x128xf32>
      %94 = arith.addf %91, %93 : vector<1x128xf32>
      %95 = vector.broadcast %66 : f32 to vector<1x128xf32>
      %96 = arith.mulf %30, %95 : vector<1x128xf32>
      %97 = arith.addf %94, %96 : vector<1x128xf32>
      %98 = vector.broadcast %69 : f32 to vector<1x128xf32>
      %99 = arith.addf %97, %98 : vector<1x128xf32>
      %cst = arith.constant 9.99999974E-6 : f32
      %100 = vector.broadcast %cst : f32 to vector<1x128xf32>
      %101 = arith.cmpf oge, %99, %100 : vector<1x128xf32>
      %cst_20 = arith.constant 9.99999974E-6 : f32
      %102 = vector.broadcast %cst_20 : f32 to vector<1x128xf32>
      %103 = arith.maximumf %99, %102 : vector<1x128xf32>
      %104 = tpu.reciprocal %103 {approx = true} : vector<1x128xf32> -> vector<1x128xf32>
      %105 = arith.mulf %79, %104 : vector<1x128xf32>
      %106 = arith.mulf %89, %104 : vector<1x128xf32>
      %cst_21 = arith.constant 0.000000e+00 : f32
      %107 = vector.broadcast %cst_21 : f32 to vector<1x128xf32>
      %108 = arith.cmpf ogt, %105, %107 : vector<1x128xf32>
      %109 = arith.andi %101, %108 : vector<1x128xi1>
      %cst_22 = arith.constant 1.000000e+00 : f32
      %110 = vector.broadcast %cst_22 : f32 to vector<1x128xf32>
      %111 = arith.cmpf olt, %105, %110 : vector<1x128xf32>
      %112 = arith.andi %109, %111 : vector<1x128xi1>
      %cst_23 = arith.constant 0.000000e+00 : f32
      %113 = vector.broadcast %cst_23 : f32 to vector<1x128xf32>
      %114 = arith.cmpf ogt, %106, %113 : vector<1x128xf32>
      %115 = arith.andi %112, %114 : vector<1x128xi1>
      %cst_24 = arith.constant 1.000000e+00 : f32
      %116 = vector.broadcast %cst_24 : f32 to vector<1x128xf32>
      %117 = arith.cmpf olt, %106, %116 : vector<1x128xf32>
      %118 = arith.andi %115, %117 : vector<1x128xi1>
      %cst_25 = arith.constant 3.200000e+01 : f32
      %119 = vector.broadcast %cst_25 : f32 to vector<1x128xf32>
      %120 = arith.mulf %105, %119 : vector<1x128xf32>
      %cst_26 = arith.constant 5.000000e-01 : f32
      %121 = vector.broadcast %cst_26 : f32 to vector<1x128xf32>
      %122 = arith.subf %120, %121 : vector<1x128xf32>
      %cst_27 = arith.constant -2.000000e+00 : f32
      %cst_28 = arith.constant 3.400000e+01 : f32
      %123 = vector.broadcast %cst_27 : f32 to vector<1x128xf32>
      %124 = arith.maximumf %123, %122 : vector<1x128xf32>
      %125 = vector.broadcast %cst_28 : f32 to vector<1x128xf32>
      %126 = arith.minimumf %125, %124 : vector<1x128xf32>
      %cst_29 = arith.constant 3.200000e+01 : f32
      %127 = vector.broadcast %cst_29 : f32 to vector<1x128xf32>
      %128 = arith.mulf %106, %127 : vector<1x128xf32>
      %cst_30 = arith.constant 5.000000e-01 : f32
      %129 = vector.broadcast %cst_30 : f32 to vector<1x128xf32>
      %130 = arith.subf %128, %129 : vector<1x128xf32>
      %cst_31 = arith.constant -2.000000e+00 : f32
      %cst_32 = arith.constant 3.400000e+01 : f32
      %131 = vector.broadcast %cst_31 : f32 to vector<1x128xf32>
      %132 = arith.maximumf %131, %130 : vector<1x128xf32>
      %133 = vector.broadcast %cst_32 : f32 to vector<1x128xf32>
      %134 = arith.minimumf %133, %132 : vector<1x128xf32>
      %135 = math.floor %126 : vector<1x128xf32>
      %136 = math.floor %134 : vector<1x128xf32>
      %137 = arith.subf %126, %135 : vector<1x128xf32>
      %138 = arith.subf %134, %136 : vector<1x128xf32>
      %139 = arith.fptosi %135 : vector<1x128xf32> to vector<1x128xi32>
      %140 = arith.fptosi %136 : vector<1x128xf32> to vector<1x128xi32>
      %141 = arith.extui %118 : vector<1x128xi1> to vector<1x128xi32>
      %142 = arith.sitofp %141 : vector<1x128xi32> to vector<1x128xf32>
      %c0_33 = arith.constant 0 : index
      %c0_34 = arith.constant 0 : index
      %c0_35 = arith.constant 0 : index
      %c0_36 = arith.constant 0 : index
      %143 = vector.load %arg6[%c0_33, %c0_34, %c0_35, %c0_36] : memref<1x1x1x128xf32, #tpu.memory_space<vmem>>, vector<1x1x1x128xf32>
      %144 = vector.shape_cast %143 : vector<1x1x1x128xf32> to vector<1x128xf32>
      %145 = arith.mulf %142, %144 : vector<1x128xf32>
      %c0_i32_37 = arith.constant 0 : i32
      %146 = vector.broadcast %c0_i32_37 : i32 to vector<1x128xi32>
      %147 = arith.cmpi sge, %139, %146 : vector<1x128xi32>
      %c32_i32 = arith.constant 32 : i32
      %148 = vector.broadcast %c32_i32 : i32 to vector<1x128xi32>
      %149 = arith.cmpi slt, %139, %148 : vector<1x128xi32>
      %150 = arith.andi %147, %149 : vector<1x128xi1>
      %c-1_i32 = arith.constant -1 : i32
      %151 = vector.broadcast %c-1_i32 : i32 to vector<1x128xi32>
      %152 = arith.cmpi sge, %139, %151 : vector<1x128xi32>
      %c31_i32 = arith.constant 31 : i32
      %153 = vector.broadcast %c31_i32 : i32 to vector<1x128xi32>
      %154 = arith.cmpi slt, %139, %153 : vector<1x128xi32>
      %155 = arith.andi %152, %154 : vector<1x128xi1>
      %c0_i32_38 = arith.constant 0 : i32
      %156 = vector.broadcast %c0_i32_38 : i32 to vector<1x128xi32>
      %157 = arith.cmpi sge, %140, %156 : vector<1x128xi32>
      %c32_i32_39 = arith.constant 32 : i32
      %158 = vector.broadcast %c32_i32_39 : i32 to vector<1x128xi32>
      %159 = arith.cmpi slt, %140, %158 : vector<1x128xi32>
      %160 = arith.andi %157, %159 : vector<1x128xi1>
      %c-1_i32_40 = arith.constant -1 : i32
      %161 = vector.broadcast %c-1_i32_40 : i32 to vector<1x128xi32>
      %162 = arith.cmpi sge, %140, %161 : vector<1x128xi32>
      %c31_i32_41 = arith.constant 31 : i32
      %163 = vector.broadcast %c31_i32_41 : i32 to vector<1x128xi32>
      %164 = arith.cmpi slt, %140, %163 : vector<1x128xi32>
      %165 = arith.andi %162, %164 : vector<1x128xi1>
      %166 = arith.andi %160, %150 : vector<1x128xi1>
      %cst_42 = arith.constant 1.000000e+00 : f32
      %167 = vector.broadcast %cst_42 : f32 to vector<1x128xf32>
      %168 = arith.subf %167, %138 : vector<1x128xf32>
      %cst_43 = arith.constant 1.000000e+00 : f32
      %169 = vector.broadcast %cst_43 : f32 to vector<1x128xf32>
      %170 = arith.subf %169, %137 : vector<1x128xf32>
      %171 = arith.mulf %168, %170 : vector<1x128xf32>
      %cst_44 = arith.constant 0.000000e+00 : f32
      %172 = vector.broadcast %cst_44 : f32 to vector<1x128xf32>
      %173 = arith.select %166, %171, %172 : vector<1x128xi1>, vector<1x128xf32>
      %174 = arith.mulf %173, %145 : vector<1x128xf32>
      %175 = arith.andi %160, %155 : vector<1x128xi1>
      %cst_45 = arith.constant 1.000000e+00 : f32
      %176 = vector.broadcast %cst_45 : f32 to vector<1x128xf32>
      %177 = arith.subf %176, %138 : vector<1x128xf32>
      %178 = arith.mulf %177, %137 : vector<1x128xf32>
      %cst_46 = arith.constant 0.000000e+00 : f32
      %179 = vector.broadcast %cst_46 : f32 to vector<1x128xf32>
      %180 = arith.select %175, %178, %179 : vector<1x128xi1>, vector<1x128xf32>
      %181 = arith.mulf %180, %145 : vector<1x128xf32>
      %182 = arith.andi %165, %150 : vector<1x128xi1>
      %cst_47 = arith.constant 1.000000e+00 : f32
      %183 = vector.broadcast %cst_47 : f32 to vector<1x128xf32>
      %184 = arith.subf %183, %137 : vector<1x128xf32>
      %185 = arith.mulf %138, %184 : vector<1x128xf32>
      %cst_48 = arith.constant 0.000000e+00 : f32
      %186 = vector.broadcast %cst_48 : f32 to vector<1x128xf32>
      %187 = arith.select %182, %185, %186 : vector<1x128xi1>, vector<1x128xf32>
      %188 = arith.mulf %187, %145 : vector<1x128xf32>
      %189 = arith.andi %165, %155 : vector<1x128xi1>
      %190 = arith.mulf %138, %137 : vector<1x128xf32>
      %cst_49 = arith.constant 0.000000e+00 : f32
      %191 = vector.broadcast %cst_49 : f32 to vector<1x128xf32>
      %192 = arith.select %189, %190, %191 : vector<1x128xi1>, vector<1x128xf32>
      %193 = arith.mulf %192, %145 : vector<1x128xf32>
      %c32_i32_50 = arith.constant 32 : i32
      %194 = vector.broadcast %c32_i32_50 : i32 to vector<1x128xi32>
      %195 = arith.muli %140, %194 : vector<1x128xi32>
      %196 = arith.addi %195, %139 : vector<1x128xi32>
      %c512_i32 = arith.constant 512 : i32
      %197 = arith.muli %arg2, %c512_i32 : i32
      %198 = vector.broadcast %197 : i32 to vector<1x128xi32>
      %199 = arith.subi %196, %198 : vector<1x128xi32>
      %200 = tpu.iota {dimensions = array<i32: 0>} : vector<512x128xi32>
      %201 = vector.broadcast %199 : vector<1x128xi32> to vector<512x128xi32>
      %202 = arith.subi %200, %201 : vector<512x128xi32>
      %c0_i32_51 = arith.constant 0 : i32
      %203 = vector.broadcast %c0_i32_51 : i32 to vector<512x128xi32>
      %204 = arith.cmpi eq, %202, %203 : vector<512x128xi32>
      %cst_52 = arith.constant 0.000000e+00 : f32
      %205 = vector.shape_cast %174 : vector<1x128xf32> to vector<1x128xf32>
      %206 = vector.broadcast %205 : vector<1x128xf32> to vector<512x128xf32>
      %207 = vector.broadcast %cst_52 : f32 to vector<512x128xf32>
      %208 = arith.select %204, %206, %207 : vector<512x128xi1>, vector<512x128xf32>
      %c1_i32_53 = arith.constant 1 : i32
      %209 = vector.broadcast %c1_i32_53 : i32 to vector<512x128xi32>
      %210 = arith.cmpi eq, %202, %209 : vector<512x128xi32>
      %cst_54 = arith.constant 0.000000e+00 : f32
      %211 = vector.shape_cast %181 : vector<1x128xf32> to vector<1x128xf32>
      %212 = vector.broadcast %211 : vector<1x128xf32> to vector<512x128xf32>
      %213 = vector.broadcast %cst_54 : f32 to vector<512x128xf32>
      %214 = arith.select %210, %212, %213 : vector<512x128xi1>, vector<512x128xf32>
      %215 = arith.addf %208, %214 : vector<512x128xf32>
      %c32_i32_55 = arith.constant 32 : i32
      %216 = vector.broadcast %c32_i32_55 : i32 to vector<512x128xi32>
      %217 = arith.cmpi eq, %202, %216 : vector<512x128xi32>
      %cst_56 = arith.constant 0.000000e+00 : f32
      %218 = vector.shape_cast %188 : vector<1x128xf32> to vector<1x128xf32>
      %219 = vector.broadcast %218 : vector<1x128xf32> to vector<512x128xf32>
      %220 = vector.broadcast %cst_56 : f32 to vector<512x128xf32>
      %221 = arith.select %217, %219, %220 : vector<512x128xi1>, vector<512x128xf32>
      %222 = arith.addf %215, %221 : vector<512x128xf32>
      %c33_i32 = arith.constant 33 : i32
      %223 = vector.broadcast %c33_i32 : i32 to vector<512x128xi32>
      %224 = arith.cmpi eq, %202, %223 : vector<512x128xi32>
      %cst_57 = arith.constant 0.000000e+00 : f32
      %225 = vector.shape_cast %193 : vector<1x128xf32> to vector<1x128xf32>
      %226 = vector.broadcast %225 : vector<1x128xf32> to vector<512x128xf32>
      %227 = vector.broadcast %cst_57 : f32 to vector<512x128xf32>
      %228 = arith.select %224, %226, %227 : vector<512x128xi1>, vector<512x128xf32>
      %229 = arith.addf %222, %228 : vector<512x128xf32>
      %230 = arith.index_cast %arg3 : i32 to index
      %c0_58 = arith.constant 0 : index
      %c0_59 = arith.constant 0 : index
      %231 = vector.load %arg10[%230, %c0_58, %c0_59] : memref<2x32x128xf32, #tpu.memory_space<vmem>>, vector<1x32x128xf32>
      %232 = vector.shape_cast %231 : vector<1x32x128xf32> to vector<32x128xf32>
      %c0_60 = arith.constant 0 : index
      %c0_61 = arith.constant 0 : index
      %c0_62 = arith.constant 0 : index
      %c0_63 = arith.constant 0 : index
      %233 = vector.load %arg8[%c0_60, %c0_61, %c0_62, %c0_63] : memref<1x1x32x512xbf16, #tpu.memory_space<vmem>>, vector<1x1x32x512xbf16>
      %234 = vector.shape_cast %233 : vector<1x1x32x512xbf16> to vector<32x512xbf16>
      %235 = arith.truncf %229 : vector<512x128xf32> to vector<512x128xbf16>
      %cst_64 = arith.constant dense<0.000000e+00> : vector<32x128xf32>
      %236 = tpu.matmul %234, %235, %cst_64 {dimension_numbers = #tpu.dot_dimension_numbers<[1], [0], [0], [1], [0, 0, 1, 1], [], []>} : vector<32x512xbf16>, vector<512x128xbf16>, vector<32x128xf32> -> vector<32x128xf32>
      %237 = arith.addf %232, %236 : vector<32x128xf32>
      %238 = arith.index_cast %arg3 : i32 to index
      %c0_65 = arith.constant 0 : index
      %c0_66 = arith.constant 0 : index
      %239 = vector.load %arg10[%238, %c0_65, %c0_66] : memref<2x32x128xf32, #tpu.memory_space<vmem>>, vector<1x32x128xf32>
      %240 = vector.shape_cast %239 : vector<1x32x128xf32> to vector<32x128xf32>
      %241 = vector.shape_cast %237 : vector<32x128xf32> to vector<1x32x128xf32>
      tpu.vector_store %arg10[%238, %c0_65, %c0_66], %241 {strides = array<i32>} : memref<2x32x128xf32, #tpu.memory_space<vmem>>, vector<1x32x128xf32>,
    } else {
    }
    %c2_i32_6 = arith.constant 2 : i32
    %18 = arith.cmpi eq, %arg1, %c2_i32_6 : i32
    %c1_i32 = arith.constant 1 : i32
    %19 = arith.cmpi eq, %arg2, %c1_i32 : i32
    %20 = arith.andi %18, %19 : i1
    %c1_i32_7 = arith.constant 1 : i32
    %21 = arith.cmpi eq, %arg3, %c1_i32_7 : i32
    %22 = arith.andi %20, %21 : i1
    %23 = arith.extui %22 : i1 to i32
    %c0_i32_8 = arith.constant 0 : i32
    %24 = arith.cmpi ne, %23, %c0_i32_8 : i32
    scf.if %24 {
      %c0 = arith.constant 0 : index
      %c0_9 = arith.constant 0 : index
      %c0_10 = arith.constant 0 : index
      %25 = vector.load %arg10[%c0, %c0_9, %c0_10] : memref<2x32x128xf32, #tpu.memory_space<vmem>>, vector<1x32x128xf32>
      %26 = vector.shape_cast %25 : vector<1x32x128xf32> to vector<32x128xf32>
      %27 = arith.cmpf one, %26, %26 : vector<32x128xf32>
      %cst = arith.constant 0.000000e+00 : f32
      %28 = vector.broadcast %cst : f32 to vector<32x128xf32>
      %29 = arith.select %27, %28, %26 : vector<32x128xi1>, vector<32x128xf32>
      %cst_11 = arith.constant 0x7F800000 : f32
      %30 = vector.broadcast %cst_11 : f32 to vector<32x128xf32>
      %31 = arith.cmpf oeq, %29, %30 : vector<32x128xf32>
      %cst_12 = arith.constant 3.40282347E+38 : f32
      %32 = vector.broadcast %cst_12 : f32 to vector<32x128xf32>
      %33 = arith.select %31, %32, %29 : vector<32x128xi1>, vector<32x128xf32>
      %cst_13 = arith.constant 0xFF800000 : f32
      %34 = vector.broadcast %cst_13 : f32 to vector<32x128xf32>
      %35 = arith.cmpf oeq, %33, %34 : vector<32x128xf32>
      %cst_14 = arith.constant -3.40282347E+38 : f32
      %36 = vector.broadcast %cst_14 : f32 to vector<32x128xf32>
      %37 = arith.select %35, %36, %33 : vector<32x128xi1>, vector<32x128xf32>
      %c0_15 = arith.constant 0 : index
      %c0_16 = arith.constant 0 : index
      %c0_17 = arith.constant 0 : index
      %38 = vector.load %arg9[%c0_15, %c0_16, %c0_17] : memref<1x32x256xf32, #tpu.memory_space<vmem>>, vector<1x32x128xf32>
      %39 = vector.shape_cast %38 : vector<1x32x128xf32> to vector<32x128xf32>
      %40 = vector.shape_cast %37 : vector<32x128xf32> to vector<1x32x128xf32>
      tpu.vector_store %arg9[%c0_15, %c0_16, %c0_17], %40 {strides = array<i32>} : memref<1x32x256xf32, #tpu.memory_space<vmem>>, vector<1x32x128xf32>,
      %c1 = arith.constant 1 : index
      %c0_18 = arith.constant 0 : index
      %c0_19 = arith.constant 0 : index
      %41 = vector.load %arg10[%c1, %c0_18, %c0_19] : memref<2x32x128xf32, #tpu.memory_space<vmem>>, vector<1x32x128xf32>
      %42 = vector.shape_cast %41 : vector<1x32x128xf32> to vector<32x128xf32>
      %43 = arith.cmpf one, %42, %42 : vector<32x128xf32>
      %cst_20 = arith.constant 0.000000e+00 : f32
      %44 = vector.broadcast %cst_20 : f32 to vector<32x128xf32>
      %45 = arith.select %43, %44, %42 : vector<32x128xi1>, vector<32x128xf32>
      %cst_21 = arith.constant 0x7F800000 : f32
      %46 = vector.broadcast %cst_21 : f32 to vector<32x128xf32>
      %47 = arith.cmpf oeq, %45, %46 : vector<32x128xf32>
      %cst_22 = arith.constant 3.40282347E+38 : f32
      %48 = vector.broadcast %cst_22 : f32 to vector<32x128xf32>
      %49 = arith.select %47, %48, %45 : vector<32x128xi1>, vector<32x128xf32>
      %cst_23 = arith.constant 0xFF800000 : f32
      %50 = vector.broadcast %cst_23 : f32 to vector<32x128xf32>
      %51 = arith.cmpf oeq, %49, %50 : vector<32x128xf32>
      %cst_24 = arith.constant -3.40282347E+38 : f32
      %52 = vector.broadcast %cst_24 : f32 to vector<32x128xf32>
      %53 = arith.select %51, %52, %49 : vector<32x128xi1>, vector<32x128xf32>
      %c0_25 = arith.constant 0 : index
      %c0_26 = arith.constant 0 : index
      %c128 = arith.constant 128 : index
      %54 = vector.load %arg9[%c0_25, %c0_26, %c128] : memref<1x32x256xf32, #tpu.memory_space<vmem>>, vector<1x32x128xf32>
      %55 = vector.shape_cast %54 : vector<1x32x128xf32> to vector<32x128xf32>
      %56 = vector.shape_cast %53 : vector<32x128xf32> to vector<1x32x128xf32>
      tpu.vector_store %arg9[%c0_25, %c0_26, %c128], %56 {strides = array<i32>} : memref<1x32x256xf32, #tpu.memory_space<vmem>>, vector<1x32x128xf32>,
    } else {
    }
    return
  }
  func.func @transform_0(%arg0: i32, %arg1: i32, %arg2: i32, %arg3: i32, %arg4: memref<72xf32, #tpu.memory_space<smem>>, %arg5: memref<24xi32, #tpu.memory_space<smem>>) -> (i32, i32, i32, i32) {
    %c0_i32 = arith.constant 0 : i32
    %c0_i32_0 = arith.constant 0 : i32
    return %arg0, %arg1, %c0_i32, %arg3 : i32, i32, i32, i32
  }
  func.func @transform_1(%arg0: i32, %arg1: i32, %arg2: i32, %arg3: i32, %arg4: memref<72xf32, #tpu.memory_space<smem>>, %arg5: memref<24xi32, #tpu.memory_space<smem>>) -> (i32, i32, i32) {
    %c0_i32 = arith.constant 0 : i32
    %c0_i32_0 = arith.constant 0 : i32
    return %arg0, %c0_i32, %arg3 : i32, i32, i32
  }
  func.func @transform_2(%arg0: i32, %arg1: i32, %arg2: i32, %arg3: i32, %arg4: memref<72xf32, #tpu.memory_space<smem>>, %arg5: memref<24xi32, #tpu.memory_space<smem>>) -> (i32, i32, i32, i32) {
    %c0_i32 = arith.constant 0 : i32
    %c0_i32_0 = arith.constant 0 : i32
    return %arg0, %arg1, %c0_i32, %arg2 : i32, i32, i32, i32
  }
  func.func @transform_3(%arg0: i32, %arg1: i32, %arg2: i32, %arg3: i32, %arg4: memref<72xf32, #tpu.memory_space<smem>>, %arg5: memref<24xi32, #tpu.memory_space<smem>>) -> (i32, i32, i32) {
    %c0_i32 = arith.constant 0 : i32
    %c0_i32_0 = arith.constant 0 : i32
    %c0_i32_1 = arith.constant 0 : i32
    return %arg0, %c0_i32, %c0_i32_0 : i32, i32, i32
  }
}

module attributes {stable_mosaic.version = 11 : i64} {
  func.func @kernel(%arg0: i32, %arg1: i32, %arg2: i32, %arg3: i32, %arg4: memref<72xf32, #tpu.memory_space<smem>>, %arg5: memref<12xi32, #tpu.memory_space<smem>>, %arg6: memref<1x32x256xf32, #tpu.memory_space<vmem>>, %arg7: memref<1x1x1x128xf32, #tpu.memory_space<vmem>>, %arg8: memref<1x3x128xf32, #tpu.memory_space<vmem>>, %arg9: memref<1x1x32x256xbf16, #tpu.memory_space<vmem>>, %arg10: memref<1x32x256xf32, #tpu.memory_space<vmem>>, %arg11: memref<2x32x128xf32, #tpu.memory_space<vmem>>) attributes {dimension_semantics = [#tpu.dimension_semantics<parallel>, #tpu.dimension_semantics<arbitrary>, #tpu.dimension_semantics<arbitrary>, #tpu.dimension_semantics<arbitrary>], iteration_bounds = array<i64: 2, 3, 1, 2>, scalar_prefetch = 2 : i64, scratch_operands = 1 : i64, tpu.core_type = #tpu.core_type<tc>, window_params = [{transform_indices = @transform_0, window_bounds = array<i64: 1, 32, 256>}, {transform_indices = @transform_1, window_bounds = array<i64: 1, 1, 1, 128>}, {transform_indices = @transform_2, window_bounds = array<i64: 1, 3, 128>}, {transform_indices = @transform_3, window_bounds = array<i64: 1, 1, 32, 256>}, {transform_indices = @transform_4, window_bounds = array<i64: 1, 32, 256>}]} {
    %c0_i32 = arith.constant 0 : i32
    %0 = arith.cmpi eq, %arg1, %c0_i32 : i32
    %c0_i32_0 = arith.constant 0 : i32
    %1 = arith.cmpi eq, %arg2, %c0_i32_0 : i32
    %2 = arith.andi %0, %1 : i1
    %c0_i32_1 = arith.constant 0 : i32
    %3 = arith.cmpi eq, %arg3, %c0_i32_1 : i32
    %4 = arith.andi %2, %3 : i1
    %5 = arith.extui %4 : i1 to i32
    %c0_i32_2 = arith.constant 0 : i32
    %6 = arith.cmpi ne, %5, %c0_i32_2 : i32
    scf.if %6 {
      %cst = arith.constant 0.000000e+00 : f32
      %25 = vector.broadcast %cst : f32 to vector<2x32x128xf32>
      %c0 = arith.constant 0 : index
      %c0_9 = arith.constant 0 : index
      %c0_10 = arith.constant 0 : index
      %26 = vector.load %arg11[%c0, %c0_9, %c0_10] : memref<2x32x128xf32, #tpu.memory_space<vmem>>, vector<2x32x128xf32>
      tpu.vector_store %arg11[%c0, %c0_9, %c0_10], %25 {strides = array<i32>} : memref<2x32x128xf32, #tpu.memory_space<vmem>>, vector<2x32x128xf32>,
    } else {
    }
    %c3_i32 = arith.constant 3 : i32
    %7 = arith.muli %arg0, %c3_i32 : i32
    %8 = arith.addi %7, %arg1 : i32
    %c1_i32 = arith.constant 1 : i32
    %9 = arith.muli %8, %c1_i32 : i32
    %10 = arith.addi %9, %arg2 : i32
    %c2_i32 = arith.constant 2 : i32
    %11 = arith.muli %10, %c2_i32 : i32
    %12 = arith.addi %11, %arg3 : i32
    %13 = arith.index_cast %12 : i32 to index
    %14 = memref.load %arg5[%13] : memref<12xi32, #tpu.memory_space<smem>>
    %c0_i32_3 = arith.constant 0 : i32
    %15 = arith.cmpi ne, %14, %c0_i32_3 : i32
    %16 = arith.extui %15 : i1 to i32
    %c0_i32_4 = arith.constant 0 : i32
    %17 = arith.cmpi ne, %16, %c0_i32_4 : i32
    scf.if %17 {
      %c0 = arith.constant 0 : index
      %c0_9 = arith.constant 0 : index
      %c0_10 = arith.constant 0 : index
      %25 = vector.load %arg8[%c0, %c0_9, %c0_10] : memref<1x3x128xf32, #tpu.memory_space<vmem>>, vector<1x1x128xf32>
      %26 = vector.shape_cast %25 : vector<1x1x128xf32> to vector<1x128xf32>
      %c0_11 = arith.constant 0 : index
      %c1 = arith.constant 1 : index
      %c0_12 = arith.constant 0 : index
      %27 = vector.load %arg8[%c0_11, %c1, %c0_12] : memref<1x3x128xf32, #tpu.memory_space<vmem>>, vector<1x1x128xf32>
      %28 = vector.shape_cast %27 : vector<1x1x128xf32> to vector<1x128xf32>
      %c0_13 = arith.constant 0 : index
      %c2 = arith.constant 2 : index
      %c0_14 = arith.constant 0 : index
      %29 = vector.load %arg8[%c0_13, %c2, %c0_14] : memref<1x3x128xf32, #tpu.memory_space<vmem>>, vector<1x1x128xf32>
      %30 = vector.shape_cast %29 : vector<1x1x128xf32> to vector<1x128xf32>
      %c3_i32_15 = arith.constant 3 : i32
      %31 = arith.muli %arg0, %c3_i32_15 : i32
      %32 = arith.addi %31, %arg1 : i32
      %c12_i32 = arith.constant 12 : i32
      %33 = arith.muli %32, %c12_i32 : i32
      %c0_i32_16 = arith.constant 0 : i32
      %34 = arith.addi %33, %c0_i32_16 : i32
      %35 = arith.index_cast %34 : i32 to index
      %36 = memref.load %arg4[%35] : memref<72xf32, #tpu.memory_space<smem>>
      %c1_i32_17 = arith.constant 1 : i32
      %37 = arith.addi %33, %c1_i32_17 : i32
      %38 = arith.index_cast %37 : i32 to index
      %39 = memref.load %arg4[%38] : memref<72xf32, #tpu.memory_space<smem>>
      %c2_i32_18 = arith.constant 2 : i32
      %40 = arith.addi %33, %c2_i32_18 : i32
      %41 = arith.index_cast %40 : i32 to index
      %42 = memref.load %arg4[%41] : memref<72xf32, #tpu.memory_space<smem>>
      %c3_i32_19 = arith.constant 3 : i32
      %43 = arith.addi %33, %c3_i32_19 : i32
      %44 = arith.index_cast %43 : i32 to index
      %45 = memref.load %arg4[%44] : memref<72xf32, #tpu.memory_space<smem>>
      %c4_i32 = arith.constant 4 : i32
      %46 = arith.addi %33, %c4_i32 : i32
      %47 = arith.index_cast %46 : i32 to index
      %48 = memref.load %arg4[%47] : memref<72xf32, #tpu.memory_space<smem>>
      %c5_i32 = arith.constant 5 : i32
      %49 = arith.addi %33, %c5_i32 : i32
      %50 = arith.index_cast %49 : i32 to index
      %51 = memref.load %arg4[%50] : memref<72xf32, #tpu.memory_space<smem>>
      %c6_i32 = arith.constant 6 : i32
      %52 = arith.addi %33, %c6_i32 : i32
      %53 = arith.index_cast %52 : i32 to index
      %54 = memref.load %arg4[%53] : memref<72xf32, #tpu.memory_space<smem>>
      %c7_i32 = arith.constant 7 : i32
      %55 = arith.addi %33, %c7_i32 : i32
      %56 = arith.index_cast %55 : i32 to index
      %57 = memref.load %arg4[%56] : memref<72xf32, #tpu.memory_space<smem>>
      %c8_i32 = arith.constant 8 : i32
      %58 = arith.addi %33, %c8_i32 : i32
      %59 = arith.index_cast %58 : i32 to index
      %60 = memref.load %arg4[%59] : memref<72xf32, #tpu.memory_space<smem>>
      %c9_i32 = arith.constant 9 : i32
      %61 = arith.addi %33, %c9_i32 : i32
      %62 = arith.index_cast %61 : i32 to index
      %63 = memref.load %arg4[%62] : memref<72xf32, #tpu.memory_space<smem>>
      %c10_i32 = arith.constant 10 : i32
      %64 = arith.addi %33, %c10_i32 : i32
      %65 = arith.index_cast %64 : i32 to index
      %66 = memref.load %arg4[%65] : memref<72xf32, #tpu.memory_space<smem>>
      %c11_i32 = arith.constant 11 : i32
      %67 = arith.addi %33, %c11_i32 : i32
      %68 = arith.index_cast %67 : i32 to index
      %69 = memref.load %arg4[%68] : memref<72xf32, #tpu.memory_space<smem>>
      %70 = vector.broadcast %36 : f32 to vector<1x128xf32>
      %71 = arith.mulf %26, %70 : vector<1x128xf32>
      %72 = vector.broadcast %39 : f32 to vector<1x128xf32>
      %73 = arith.mulf %28, %72 : vector<1x128xf32>
      %74 = arith.addf %71, %73 : vector<1x128xf32>
      %75 = vector.broadcast %42 : f32 to vector<1x128xf32>
      %76 = arith.mulf %30, %75 : vector<1x128xf32>
      %77 = arith.addf %74, %76 : vector<1x128xf32>
      %78 = vector.broadcast %45 : f32 to vector<1x128xf32>
      %79 = arith.addf %77, %78 : vector<1x128xf32>
      %80 = vector.broadcast %48 : f32 to vector<1x128xf32>
      %81 = arith.mulf %26, %80 : vector<1x128xf32>
      %82 = vector.broadcast %51 : f32 to vector<1x128xf32>
      %83 = arith.mulf %28, %82 : vector<1x128xf32>
      %84 = arith.addf %81, %83 : vector<1x128xf32>
      %85 = vector.broadcast %54 : f32 to vector<1x128xf32>
      %86 = arith.mulf %30, %85 : vector<1x128xf32>
      %87 = arith.addf %84, %86 : vector<1x128xf32>
      %88 = vector.broadcast %57 : f32 to vector<1x128xf32>
      %89 = arith.addf %87, %88 : vector<1x128xf32>
      %90 = vector.broadcast %60 : f32 to vector<1x128xf32>
      %91 = arith.mulf %26, %90 : vector<1x128xf32>
      %92 = vector.broadcast %63 : f32 to vector<1x128xf32>
      %93 = arith.mulf %28, %92 : vector<1x128xf32>
      %94 = arith.addf %91, %93 : vector<1x128xf32>
      %95 = vector.broadcast %66 : f32 to vector<1x128xf32>
      %96 = arith.mulf %30, %95 : vector<1x128xf32>
      %97 = arith.addf %94, %96 : vector<1x128xf32>
      %98 = vector.broadcast %69 : f32 to vector<1x128xf32>
      %99 = arith.addf %97, %98 : vector<1x128xf32>
      %cst = arith.constant 9.99999974E-6 : f32
      %100 = vector.broadcast %cst : f32 to vector<1x128xf32>
      %101 = arith.cmpf oge, %99, %100 : vector<1x128xf32>
      %cst_20 = arith.constant 9.99999974E-6 : f32
      %102 = vector.broadcast %cst_20 : f32 to vector<1x128xf32>
      %103 = arith.maximumf %99, %102 : vector<1x128xf32>
      %104 = tpu.reciprocal %103 {approx = true} : vector<1x128xf32> -> vector<1x128xf32>
      %105 = arith.mulf %79, %104 : vector<1x128xf32>
      %106 = arith.mulf %89, %104 : vector<1x128xf32>
      %cst_21 = arith.constant 0.000000e+00 : f32
      %107 = vector.broadcast %cst_21 : f32 to vector<1x128xf32>
      %108 = arith.cmpf ogt, %105, %107 : vector<1x128xf32>
      %109 = arith.andi %101, %108 : vector<1x128xi1>
      %cst_22 = arith.constant 1.000000e+00 : f32
      %110 = vector.broadcast %cst_22 : f32 to vector<1x128xf32>
      %111 = arith.cmpf olt, %105, %110 : vector<1x128xf32>
      %112 = arith.andi %109, %111 : vector<1x128xi1>
      %cst_23 = arith.constant 0.000000e+00 : f32
      %113 = vector.broadcast %cst_23 : f32 to vector<1x128xf32>
      %114 = arith.cmpf ogt, %106, %113 : vector<1x128xf32>
      %115 = arith.andi %112, %114 : vector<1x128xi1>
      %cst_24 = arith.constant 1.000000e+00 : f32
      %116 = vector.broadcast %cst_24 : f32 to vector<1x128xf32>
      %117 = arith.cmpf olt, %106, %116 : vector<1x128xf32>
      %118 = arith.andi %115, %117 : vector<1x128xi1>
      %cst_25 = arith.constant 1.600000e+01 : f32
      %119 = vector.broadcast %cst_25 : f32 to vector<1x128xf32>
      %120 = arith.mulf %105, %119 : vector<1x128xf32>
      %cst_26 = arith.constant 5.000000e-01 : f32
      %121 = vector.broadcast %cst_26 : f32 to vector<1x128xf32>
      %122 = arith.subf %120, %121 : vector<1x128xf32>
      %cst_27 = arith.constant -2.000000e+00 : f32
      %cst_28 = arith.constant 1.800000e+01 : f32
      %123 = vector.broadcast %cst_27 : f32 to vector<1x128xf32>
      %124 = arith.maximumf %123, %122 : vector<1x128xf32>
      %125 = vector.broadcast %cst_28 : f32 to vector<1x128xf32>
      %126 = arith.minimumf %125, %124 : vector<1x128xf32>
      %cst_29 = arith.constant 1.600000e+01 : f32
      %127 = vector.broadcast %cst_29 : f32 to vector<1x128xf32>
      %128 = arith.mulf %106, %127 : vector<1x128xf32>
      %cst_30 = arith.constant 5.000000e-01 : f32
      %129 = vector.broadcast %cst_30 : f32 to vector<1x128xf32>
      %130 = arith.subf %128, %129 : vector<1x128xf32>
      %cst_31 = arith.constant -2.000000e+00 : f32
      %cst_32 = arith.constant 1.800000e+01 : f32
      %131 = vector.broadcast %cst_31 : f32 to vector<1x128xf32>
      %132 = arith.maximumf %131, %130 : vector<1x128xf32>
      %133 = vector.broadcast %cst_32 : f32 to vector<1x128xf32>
      %134 = arith.minimumf %133, %132 : vector<1x128xf32>
      %135 = math.floor %126 : vector<1x128xf32>
      %136 = math.floor %134 : vector<1x128xf32>
      %137 = arith.subf %126, %135 : vector<1x128xf32>
      %138 = arith.subf %134, %136 : vector<1x128xf32>
      %139 = arith.fptosi %135 : vector<1x128xf32> to vector<1x128xi32>
      %140 = arith.fptosi %136 : vector<1x128xf32> to vector<1x128xi32>
      %141 = arith.extui %118 : vector<1x128xi1> to vector<1x128xi32>
      %142 = arith.sitofp %141 : vector<1x128xi32> to vector<1x128xf32>
      %c0_33 = arith.constant 0 : index
      %c0_34 = arith.constant 0 : index
      %c0_35 = arith.constant 0 : index
      %c0_36 = arith.constant 0 : index
      %143 = vector.load %arg7[%c0_33, %c0_34, %c0_35, %c0_36] : memref<1x1x1x128xf32, #tpu.memory_space<vmem>>, vector<1x1x1x128xf32>
      %144 = vector.shape_cast %143 : vector<1x1x1x128xf32> to vector<1x128xf32>
      %145 = arith.mulf %142, %144 : vector<1x128xf32>
      %c0_i32_37 = arith.constant 0 : i32
      %146 = vector.broadcast %c0_i32_37 : i32 to vector<1x128xi32>
      %147 = arith.cmpi sge, %139, %146 : vector<1x128xi32>
      %c16_i32 = arith.constant 16 : i32
      %148 = vector.broadcast %c16_i32 : i32 to vector<1x128xi32>
      %149 = arith.cmpi slt, %139, %148 : vector<1x128xi32>
      %150 = arith.andi %147, %149 : vector<1x128xi1>
      %c-1_i32 = arith.constant -1 : i32
      %151 = vector.broadcast %c-1_i32 : i32 to vector<1x128xi32>
      %152 = arith.cmpi sge, %139, %151 : vector<1x128xi32>
      %c15_i32 = arith.constant 15 : i32
      %153 = vector.broadcast %c15_i32 : i32 to vector<1x128xi32>
      %154 = arith.cmpi slt, %139, %153 : vector<1x128xi32>
      %155 = arith.andi %152, %154 : vector<1x128xi1>
      %c0_i32_38 = arith.constant 0 : i32
      %156 = vector.broadcast %c0_i32_38 : i32 to vector<1x128xi32>
      %157 = arith.cmpi sge, %140, %156 : vector<1x128xi32>
      %c16_i32_39 = arith.constant 16 : i32
      %158 = vector.broadcast %c16_i32_39 : i32 to vector<1x128xi32>
      %159 = arith.cmpi slt, %140, %158 : vector<1x128xi32>
      %160 = arith.andi %157, %159 : vector<1x128xi1>
      %c-1_i32_40 = arith.constant -1 : i32
      %161 = vector.broadcast %c-1_i32_40 : i32 to vector<1x128xi32>
      %162 = arith.cmpi sge, %140, %161 : vector<1x128xi32>
      %c15_i32_41 = arith.constant 15 : i32
      %163 = vector.broadcast %c15_i32_41 : i32 to vector<1x128xi32>
      %164 = arith.cmpi slt, %140, %163 : vector<1x128xi32>
      %165 = arith.andi %162, %164 : vector<1x128xi1>
      %166 = arith.andi %160, %150 : vector<1x128xi1>
      %cst_42 = arith.constant 1.000000e+00 : f32
      %167 = vector.broadcast %cst_42 : f32 to vector<1x128xf32>
      %168 = arith.subf %167, %138 : vector<1x128xf32>
      %cst_43 = arith.constant 1.000000e+00 : f32
      %169 = vector.broadcast %cst_43 : f32 to vector<1x128xf32>
      %170 = arith.subf %169, %137 : vector<1x128xf32>
      %171 = arith.mulf %168, %170 : vector<1x128xf32>
      %cst_44 = arith.constant 0.000000e+00 : f32
      %172 = vector.broadcast %cst_44 : f32 to vector<1x128xf32>
      %173 = arith.select %166, %171, %172 : vector<1x128xi1>, vector<1x128xf32>
      %174 = arith.mulf %173, %145 : vector<1x128xf32>
      %175 = arith.andi %160, %155 : vector<1x128xi1>
      %cst_45 = arith.constant 1.000000e+00 : f32
      %176 = vector.broadcast %cst_45 : f32 to vector<1x128xf32>
      %177 = arith.subf %176, %138 : vector<1x128xf32>
      %178 = arith.mulf %177, %137 : vector<1x128xf32>
      %cst_46 = arith.constant 0.000000e+00 : f32
      %179 = vector.broadcast %cst_46 : f32 to vector<1x128xf32>
      %180 = arith.select %175, %178, %179 : vector<1x128xi1>, vector<1x128xf32>
      %181 = arith.mulf %180, %145 : vector<1x128xf32>
      %182 = arith.andi %165, %150 : vector<1x128xi1>
      %cst_47 = arith.constant 1.000000e+00 : f32
      %183 = vector.broadcast %cst_47 : f32 to vector<1x128xf32>
      %184 = arith.subf %183, %137 : vector<1x128xf32>
      %185 = arith.mulf %138, %184 : vector<1x128xf32>
      %cst_48 = arith.constant 0.000000e+00 : f32
      %186 = vector.broadcast %cst_48 : f32 to vector<1x128xf32>
      %187 = arith.select %182, %185, %186 : vector<1x128xi1>, vector<1x128xf32>
      %188 = arith.mulf %187, %145 : vector<1x128xf32>
      %189 = arith.andi %165, %155 : vector<1x128xi1>
      %190 = arith.mulf %138, %137 : vector<1x128xf32>
      %cst_49 = arith.constant 0.000000e+00 : f32
      %191 = vector.broadcast %cst_49 : f32 to vector<1x128xf32>
      %192 = arith.select %189, %190, %191 : vector<1x128xi1>, vector<1x128xf32>
      %193 = arith.mulf %192, %145 : vector<1x128xf32>
      %c16_i32_50 = arith.constant 16 : i32
      %194 = vector.broadcast %c16_i32_50 : i32 to vector<1x128xi32>
      %195 = arith.muli %140, %194 : vector<1x128xi32>
      %196 = arith.addi %195, %139 : vector<1x128xi32>
      %c256_i32 = arith.constant 256 : i32
      %197 = arith.muli %arg2, %c256_i32 : i32
      %198 = vector.broadcast %197 : i32 to vector<1x128xi32>
      %199 = arith.subi %196, %198 : vector<1x128xi32>
      %200 = tpu.iota {dimensions = array<i32: 0>} : vector<256x128xi32>
      %201 = vector.broadcast %199 : vector<1x128xi32> to vector<256x128xi32>
      %202 = arith.subi %200, %201 : vector<256x128xi32>
      %c0_i32_51 = arith.constant 0 : i32
      %203 = vector.broadcast %c0_i32_51 : i32 to vector<256x128xi32>
      %204 = arith.cmpi eq, %202, %203 : vector<256x128xi32>
      %cst_52 = arith.constant 0.000000e+00 : f32
      %205 = vector.shape_cast %174 : vector<1x128xf32> to vector<1x128xf32>
      %206 = vector.broadcast %205 : vector<1x128xf32> to vector<256x128xf32>
      %207 = vector.broadcast %cst_52 : f32 to vector<256x128xf32>
      %208 = arith.select %204, %206, %207 : vector<256x128xi1>, vector<256x128xf32>
      %c1_i32_53 = arith.constant 1 : i32
      %209 = vector.broadcast %c1_i32_53 : i32 to vector<256x128xi32>
      %210 = arith.cmpi eq, %202, %209 : vector<256x128xi32>
      %cst_54 = arith.constant 0.000000e+00 : f32
      %211 = vector.shape_cast %181 : vector<1x128xf32> to vector<1x128xf32>
      %212 = vector.broadcast %211 : vector<1x128xf32> to vector<256x128xf32>
      %213 = vector.broadcast %cst_54 : f32 to vector<256x128xf32>
      %214 = arith.select %210, %212, %213 : vector<256x128xi1>, vector<256x128xf32>
      %215 = arith.addf %208, %214 : vector<256x128xf32>
      %c16_i32_55 = arith.constant 16 : i32
      %216 = vector.broadcast %c16_i32_55 : i32 to vector<256x128xi32>
      %217 = arith.cmpi eq, %202, %216 : vector<256x128xi32>
      %cst_56 = arith.constant 0.000000e+00 : f32
      %218 = vector.shape_cast %188 : vector<1x128xf32> to vector<1x128xf32>
      %219 = vector.broadcast %218 : vector<1x128xf32> to vector<256x128xf32>
      %220 = vector.broadcast %cst_56 : f32 to vector<256x128xf32>
      %221 = arith.select %217, %219, %220 : vector<256x128xi1>, vector<256x128xf32>
      %222 = arith.addf %215, %221 : vector<256x128xf32>
      %c17_i32 = arith.constant 17 : i32
      %223 = vector.broadcast %c17_i32 : i32 to vector<256x128xi32>
      %224 = arith.cmpi eq, %202, %223 : vector<256x128xi32>
      %cst_57 = arith.constant 0.000000e+00 : f32
      %225 = vector.shape_cast %193 : vector<1x128xf32> to vector<1x128xf32>
      %226 = vector.broadcast %225 : vector<1x128xf32> to vector<256x128xf32>
      %227 = vector.broadcast %cst_57 : f32 to vector<256x128xf32>
      %228 = arith.select %224, %226, %227 : vector<256x128xi1>, vector<256x128xf32>
      %229 = arith.addf %222, %228 : vector<256x128xf32>
      %230 = arith.index_cast %arg3 : i32 to index
      %c0_58 = arith.constant 0 : index
      %c0_59 = arith.constant 0 : index
      %231 = vector.load %arg11[%230, %c0_58, %c0_59] : memref<2x32x128xf32, #tpu.memory_space<vmem>>, vector<1x32x128xf32>
      %232 = vector.shape_cast %231 : vector<1x32x128xf32> to vector<32x128xf32>
      %c0_60 = arith.constant 0 : index
      %c0_61 = arith.constant 0 : index
      %c0_62 = arith.constant 0 : index
      %c0_63 = arith.constant 0 : index
      %233 = vector.load %arg9[%c0_60, %c0_61, %c0_62, %c0_63] : memref<1x1x32x256xbf16, #tpu.memory_space<vmem>>, vector<1x1x32x256xbf16>
      %234 = vector.shape_cast %233 : vector<1x1x32x256xbf16> to vector<32x256xbf16>
      %235 = arith.truncf %229 : vector<256x128xf32> to vector<256x128xbf16>
      %cst_64 = arith.constant dense<0.000000e+00> : vector<32x128xf32>
      %236 = tpu.matmul %234, %235, %cst_64 {dimension_numbers = #tpu.dot_dimension_numbers<[1], [0], [0], [1], [0, 0, 1, 1], [], []>} : vector<32x256xbf16>, vector<256x128xbf16>, vector<32x128xf32> -> vector<32x128xf32>
      %237 = arith.addf %232, %236 : vector<32x128xf32>
      %238 = arith.index_cast %arg3 : i32 to index
      %c0_65 = arith.constant 0 : index
      %c0_66 = arith.constant 0 : index
      %239 = vector.load %arg11[%238, %c0_65, %c0_66] : memref<2x32x128xf32, #tpu.memory_space<vmem>>, vector<1x32x128xf32>
      %240 = vector.shape_cast %239 : vector<1x32x128xf32> to vector<32x128xf32>
      %241 = vector.shape_cast %237 : vector<32x128xf32> to vector<1x32x128xf32>
      tpu.vector_store %arg11[%238, %c0_65, %c0_66], %241 {strides = array<i32>} : memref<2x32x128xf32, #tpu.memory_space<vmem>>, vector<1x32x128xf32>,
    } else {
    }
    %c2_i32_5 = arith.constant 2 : i32
    %18 = arith.cmpi eq, %arg1, %c2_i32_5 : i32
    %c0_i32_6 = arith.constant 0 : i32
    %19 = arith.cmpi eq, %arg2, %c0_i32_6 : i32
    %20 = arith.andi %18, %19 : i1
    %c1_i32_7 = arith.constant 1 : i32
    %21 = arith.cmpi eq, %arg3, %c1_i32_7 : i32
    %22 = arith.andi %20, %21 : i1
    %23 = arith.extui %22 : i1 to i32
    %c0_i32_8 = arith.constant 0 : i32
    %24 = arith.cmpi ne, %23, %c0_i32_8 : i32
    scf.if %24 {
      %c0 = arith.constant 0 : index
      %c0_9 = arith.constant 0 : index
      %c0_10 = arith.constant 0 : index
      %25 = vector.load %arg11[%c0, %c0_9, %c0_10] : memref<2x32x128xf32, #tpu.memory_space<vmem>>, vector<1x32x128xf32>
      %26 = vector.shape_cast %25 : vector<1x32x128xf32> to vector<32x128xf32>
      %27 = arith.cmpf one, %26, %26 : vector<32x128xf32>
      %cst = arith.constant 0.000000e+00 : f32
      %28 = vector.broadcast %cst : f32 to vector<32x128xf32>
      %29 = arith.select %27, %28, %26 : vector<32x128xi1>, vector<32x128xf32>
      %cst_11 = arith.constant 0x7F800000 : f32
      %30 = vector.broadcast %cst_11 : f32 to vector<32x128xf32>
      %31 = arith.cmpf oeq, %29, %30 : vector<32x128xf32>
      %cst_12 = arith.constant 3.40282347E+38 : f32
      %32 = vector.broadcast %cst_12 : f32 to vector<32x128xf32>
      %33 = arith.select %31, %32, %29 : vector<32x128xi1>, vector<32x128xf32>
      %cst_13 = arith.constant 0xFF800000 : f32
      %34 = vector.broadcast %cst_13 : f32 to vector<32x128xf32>
      %35 = arith.cmpf oeq, %33, %34 : vector<32x128xf32>
      %cst_14 = arith.constant -3.40282347E+38 : f32
      %36 = vector.broadcast %cst_14 : f32 to vector<32x128xf32>
      %37 = arith.select %35, %36, %33 : vector<32x128xi1>, vector<32x128xf32>
      %c0_15 = arith.constant 0 : index
      %c0_16 = arith.constant 0 : index
      %c0_17 = arith.constant 0 : index
      %38 = vector.load %arg6[%c0_15, %c0_16, %c0_17] : memref<1x32x256xf32, #tpu.memory_space<vmem>>, vector<1x32x128xf32>
      %39 = vector.shape_cast %38 : vector<1x32x128xf32> to vector<32x128xf32>
      %40 = arith.addf %37, %39 : vector<32x128xf32>
      %c0_18 = arith.constant 0 : index
      %c0_19 = arith.constant 0 : index
      %c0_20 = arith.constant 0 : index
      %41 = vector.load %arg10[%c0_18, %c0_19, %c0_20] : memref<1x32x256xf32, #tpu.memory_space<vmem>>, vector<1x32x128xf32>
      %42 = vector.shape_cast %41 : vector<1x32x128xf32> to vector<32x128xf32>
      %43 = vector.shape_cast %40 : vector<32x128xf32> to vector<1x32x128xf32>
      tpu.vector_store %arg10[%c0_18, %c0_19, %c0_20], %43 {strides = array<i32>} : memref<1x32x256xf32, #tpu.memory_space<vmem>>, vector<1x32x128xf32>,
      %c1 = arith.constant 1 : index
      %c0_21 = arith.constant 0 : index
      %c0_22 = arith.constant 0 : index
      %44 = vector.load %arg11[%c1, %c0_21, %c0_22] : memref<2x32x128xf32, #tpu.memory_space<vmem>>, vector<1x32x128xf32>
      %45 = vector.shape_cast %44 : vector<1x32x128xf32> to vector<32x128xf32>
      %46 = arith.cmpf one, %45, %45 : vector<32x128xf32>
      %cst_23 = arith.constant 0.000000e+00 : f32
      %47 = vector.broadcast %cst_23 : f32 to vector<32x128xf32>
      %48 = arith.select %46, %47, %45 : vector<32x128xi1>, vector<32x128xf32>
      %cst_24 = arith.constant 0x7F800000 : f32
      %49 = vector.broadcast %cst_24 : f32 to vector<32x128xf32>
      %50 = arith.cmpf oeq, %48, %49 : vector<32x128xf32>
      %cst_25 = arith.constant 3.40282347E+38 : f32
      %51 = vector.broadcast %cst_25 : f32 to vector<32x128xf32>
      %52 = arith.select %50, %51, %48 : vector<32x128xi1>, vector<32x128xf32>
      %cst_26 = arith.constant 0xFF800000 : f32
      %53 = vector.broadcast %cst_26 : f32 to vector<32x128xf32>
      %54 = arith.cmpf oeq, %52, %53 : vector<32x128xf32>
      %cst_27 = arith.constant -3.40282347E+38 : f32
      %55 = vector.broadcast %cst_27 : f32 to vector<32x128xf32>
      %56 = arith.select %54, %55, %52 : vector<32x128xi1>, vector<32x128xf32>
      %c0_28 = arith.constant 0 : index
      %c0_29 = arith.constant 0 : index
      %c128 = arith.constant 128 : index
      %57 = vector.load %arg6[%c0_28, %c0_29, %c128] : memref<1x32x256xf32, #tpu.memory_space<vmem>>, vector<1x32x128xf32>
      %58 = vector.shape_cast %57 : vector<1x32x128xf32> to vector<32x128xf32>
      %59 = arith.addf %56, %58 : vector<32x128xf32>
      %c0_30 = arith.constant 0 : index
      %c0_31 = arith.constant 0 : index
      %c128_32 = arith.constant 128 : index
      %60 = vector.load %arg10[%c0_30, %c0_31, %c128_32] : memref<1x32x256xf32, #tpu.memory_space<vmem>>, vector<1x32x128xf32>
      %61 = vector.shape_cast %60 : vector<1x32x128xf32> to vector<32x128xf32>
      %62 = vector.shape_cast %59 : vector<32x128xf32> to vector<1x32x128xf32>
      tpu.vector_store %arg10[%c0_30, %c0_31, %c128_32], %62 {strides = array<i32>} : memref<1x32x256xf32, #tpu.memory_space<vmem>>, vector<1x32x128xf32>,
    } else {
    }
    return
  }
  func.func @transform_0(%arg0: i32, %arg1: i32, %arg2: i32, %arg3: i32, %arg4: memref<72xf32, #tpu.memory_space<smem>>, %arg5: memref<12xi32, #tpu.memory_space<smem>>) -> (i32, i32, i32) {
    %c0_i32 = arith.constant 0 : i32
    %c0_i32_0 = arith.constant 0 : i32
    %c0_i32_1 = arith.constant 0 : i32
    return %arg0, %c0_i32, %c0_i32_0 : i32, i32, i32
  }
  func.func @transform_1(%arg0: i32, %arg1: i32, %arg2: i32, %arg3: i32, %arg4: memref<72xf32, #tpu.memory_space<smem>>, %arg5: memref<12xi32, #tpu.memory_space<smem>>) -> (i32, i32, i32, i32) {
    %c0_i32 = arith.constant 0 : i32
    %c0_i32_0 = arith.constant 0 : i32
    return %arg0, %arg1, %c0_i32, %arg3 : i32, i32, i32, i32
  }
  func.func @transform_2(%arg0: i32, %arg1: i32, %arg2: i32, %arg3: i32, %arg4: memref<72xf32, #tpu.memory_space<smem>>, %arg5: memref<12xi32, #tpu.memory_space<smem>>) -> (i32, i32, i32) {
    %c0_i32 = arith.constant 0 : i32
    %c0_i32_0 = arith.constant 0 : i32
    return %arg0, %c0_i32, %arg3 : i32, i32, i32
  }
  func.func @transform_3(%arg0: i32, %arg1: i32, %arg2: i32, %arg3: i32, %arg4: memref<72xf32, #tpu.memory_space<smem>>, %arg5: memref<12xi32, #tpu.memory_space<smem>>) -> (i32, i32, i32, i32) {
    %c0_i32 = arith.constant 0 : i32
    %c0_i32_0 = arith.constant 0 : i32
    return %arg0, %arg1, %c0_i32, %arg2 : i32, i32, i32, i32
  }
  func.func @transform_4(%arg0: i32, %arg1: i32, %arg2: i32, %arg3: i32, %arg4: memref<72xf32, #tpu.memory_space<smem>>, %arg5: memref<12xi32, #tpu.memory_space<smem>>) -> (i32, i32, i32) {
    %c0_i32 = arith.constant 0 : i32
    %c0_i32_0 = arith.constant 0 : i32
    %c0_i32_1 = arith.constant 0 : i32
    return %arg0, %c0_i32, %c0_i32_0 : i32, i32, i32
  }
}

module attributes {stable_mosaic.version = 11 : i64} {
  func.func @final_kernel(%arg0: i32, %arg1: i32, %arg2: memref<1x128x32xf32, #tpu.memory_space<vmem>>, %arg3: memref<1x128x3xf32, #tpu.memory_space<vmem>>, %arg4: memref<32x32xf32, #tpu.memory_space<vmem>>, %arg5: memref<1x32xf32, #tpu.memory_space<vmem>>, %arg6: memref<3x32xf32, #tpu.memory_space<vmem>>, %arg7: memref<1x32xf32, #tpu.memory_space<vmem>>, %arg8: memref<1x32xf32, #tpu.memory_space<vmem>>, %arg9: memref<1x32xf32, #tpu.memory_space<vmem>>, %arg10: memref<32x32xf32, #tpu.memory_space<vmem>>, %arg11: memref<1x32xf32, #tpu.memory_space<vmem>>, %arg12: memref<1x32xf32, #tpu.memory_space<vmem>>, %arg13: memref<1x32xf32, #tpu.memory_space<vmem>>, %arg14: memref<1x128x32xf32, #tpu.memory_space<vmem>>) attributes {dimension_semantics = [#tpu.dimension_semantics<parallel>, #tpu.dimension_semantics<parallel>], iteration_bounds = array<i64: 2, 2>, scalar_prefetch = 0 : i64, scratch_operands = 0 : i64, tpu.core_type = #tpu.core_type<tc>, window_params = [{transform_indices = @transform_0, window_bounds = array<i64: 1, 128, 32>}, {transform_indices = @transform_1, window_bounds = array<i64: 1, 128, 3>}, {pipeline_mode = #tpu.pipeline_mode<synchronous>, transform_indices = @transform_2, window_bounds = array<i64: 32, 32>}, {pipeline_mode = #tpu.pipeline_mode<synchronous>, transform_indices = @transform_3, window_bounds = array<i64: 1, 32>}, {pipeline_mode = #tpu.pipeline_mode<synchronous>, transform_indices = @transform_4, window_bounds = array<i64: 3, 32>}, {pipeline_mode = #tpu.pipeline_mode<synchronous>, transform_indices = @transform_5, window_bounds = array<i64: 1, 32>}, {pipeline_mode = #tpu.pipeline_mode<synchronous>, transform_indices = @transform_6, window_bounds = array<i64: 1, 32>}, {pipeline_mode = #tpu.pipeline_mode<synchronous>, transform_indices = @transform_7, window_bounds = array<i64: 1, 32>}, {pipeline_mode = #tpu.pipeline_mode<synchronous>, transform_indices = @transform_8, window_bounds = array<i64: 32, 32>}, {pipeline_mode = #tpu.pipeline_mode<synchronous>, transform_indices = @transform_9, window_bounds = array<i64: 1, 32>}, {pipeline_mode = #tpu.pipeline_mode<synchronous>, transform_indices = @transform_10, window_bounds = array<i64: 1, 32>}, {pipeline_mode = #tpu.pipeline_mode<synchronous>, transform_indices = @transform_11, window_bounds = array<i64: 1, 32>}, {transform_indices = @transform_12, window_bounds = array<i64: 1, 128, 32>}]} {
    %c0 = arith.constant 0 : index
    %c0_0 = arith.constant 0 : index
    %c0_1 = arith.constant 0 : index
    %0 = vector.load %arg2[%c0, %c0_0, %c0_1] : memref<1x128x32xf32, #tpu.memory_space<vmem>>, vector<1x128x32xf32>
    %1 = vector.shape_cast %0 : vector<1x128x32xf32> to vector<128x32xf32>
    %c0_2 = arith.constant 0 : index
    %c0_3 = arith.constant 0 : index
    %2 = vector.load %arg4[%c0_2, %c0_3] : memref<32x32xf32, #tpu.memory_space<vmem>>, vector<32x32xf32>
    %cst = arith.constant dense<0.000000e+00> : vector<128x32xf32>
    %3 = tpu.matmul %1, %2, %cst {dimension_numbers = #tpu.dot_dimension_numbers<[1], [0], [0], [1], [0, 0, 1, 1], [], []>} : vector<128x32xf32>, vector<32x32xf32>, vector<128x32xf32> -> vector<128x32xf32>
    %c0_4 = arith.constant 0 : index
    %c0_5 = arith.constant 0 : index
    %4 = vector.load %arg5[%c0_4, %c0_5] : memref<1x32xf32, #tpu.memory_space<vmem>>, vector<1x32xf32>
    %5 = vector.broadcast %4 : vector<1x32xf32> to vector<128x32xf32>
    %6 = arith.addf %3, %5 : vector<128x32xf32>
    %c0_6 = arith.constant 0 : index
    %c0_7 = arith.constant 0 : index
    %c0_8 = arith.constant 0 : index
    %7 = vector.load %arg3[%c0_6, %c0_7, %c0_8] : memref<1x128x3xf32, #tpu.memory_space<vmem>>, vector<1x128x3xf32>
    %8 = vector.shape_cast %7 : vector<1x128x3xf32> to vector<128x3xf32>
    %c0_9 = arith.constant 0 : index
    %c0_10 = arith.constant 0 : index
    %9 = vector.load %arg6[%c0_9, %c0_10] : memref<3x32xf32, #tpu.memory_space<vmem>>, vector<3x32xf32>
    %10 = vector.extract_strided_slice %8 {offsets = [0, 0], sizes = [128, 1], strides = [1, 1]} : vector<128x3xf32> to vector<128x1xf32>
    %11 = vector.extract_strided_slice %9 {offsets = [0, 0], sizes = [1, 32], strides = [1, 1]} : vector<3x32xf32> to vector<1x32xf32>
    %12 = vector.broadcast %10 : vector<128x1xf32> to vector<128x32xf32>
    %13 = vector.broadcast %11 : vector<1x32xf32> to vector<128x32xf32>
    %14 = arith.mulf %12, %13 : vector<128x32xf32>
    %15 = vector.extract_strided_slice %8 {offsets = [0, 1], sizes = [128, 1], strides = [1, 1]} : vector<128x3xf32> to vector<128x1xf32>
    %16 = vector.extract_strided_slice %9 {offsets = [1, 0], sizes = [1, 32], strides = [1, 1]} : vector<3x32xf32> to vector<1x32xf32>
    %17 = vector.broadcast %15 : vector<128x1xf32> to vector<128x32xf32>
    %18 = vector.broadcast %16 : vector<1x32xf32> to vector<128x32xf32>
    %19 = arith.mulf %17, %18 : vector<128x32xf32>
    %20 = arith.addf %14, %19 : vector<128x32xf32>
    %21 = vector.extract_strided_slice %8 {offsets = [0, 2], sizes = [128, 1], strides = [1, 1]} : vector<128x3xf32> to vector<128x1xf32>
    %22 = vector.extract_strided_slice %9 {offsets = [2, 0], sizes = [1, 32], strides = [1, 1]} : vector<3x32xf32> to vector<1x32xf32>
    %23 = vector.broadcast %21 : vector<128x1xf32> to vector<128x32xf32>
    %24 = vector.broadcast %22 : vector<1x32xf32> to vector<128x32xf32>
    %25 = arith.mulf %23, %24 : vector<128x32xf32>
    %26 = arith.addf %20, %25 : vector<128x32xf32>
    %c0_11 = arith.constant 0 : index
    %c0_12 = arith.constant 0 : index
    %27 = vector.load %arg7[%c0_11, %c0_12] : memref<1x32xf32, #tpu.memory_space<vmem>>, vector<1x32xf32>
    %28 = vector.broadcast %27 : vector<1x32xf32> to vector<128x32xf32>
    %29 = arith.addf %26, %28 : vector<128x32xf32>
    %c0_13 = arith.constant 0 : index
    %c0_14 = arith.constant 0 : index
    %30 = vector.load %arg8[%c0_13, %c0_14] : memref<1x32xf32, #tpu.memory_space<vmem>>, vector<1x32xf32>
    %c0_15 = arith.constant 0 : index
    %c0_16 = arith.constant 0 : index
    %31 = vector.load %arg9[%c0_15, %c0_16] : memref<1x32xf32, #tpu.memory_space<vmem>>, vector<1x32xf32>
    %cst_17 = arith.constant dense<0.000000e+00> : vector<128xf32>
    %32 = vector.multi_reduction <add>, %29, %cst_17 [1] : vector<128x32xf32> to vector<128xf32>
    %33 = vector.shape_cast %32 : vector<128xf32> to vector<128x1xf32>
    %cst_18 = arith.constant 3.200000e+01 : f32
    %34 = vector.broadcast %cst_18 : f32 to vector<128x1xf32>
    %35 = arith.divf %33, %34 : vector<128x1xf32>
    %36 = vector.broadcast %35 : vector<128x1xf32> to vector<128x32xf32>
    %37 = arith.subf %29, %36 : vector<128x32xf32>
    %38 = arith.mulf %37, %37 : vector<128x32xf32>
    %cst_19 = arith.constant dense<0.000000e+00> : vector<128xf32>
    %39 = vector.multi_reduction <add>, %38, %cst_19 [1] : vector<128x32xf32> to vector<128xf32>
    %40 = vector.shape_cast %39 : vector<128xf32> to vector<128x1xf32>
    %cst_20 = arith.constant 3.200000e+01 : f32
    %41 = vector.broadcast %cst_20 : f32 to vector<128x1xf32>
    %42 = arith.divf %40, %41 : vector<128x1xf32>
    %43 = vector.broadcast %35 : vector<128x1xf32> to vector<128x32xf32>
    %44 = arith.subf %29, %43 : vector<128x32xf32>
    %cst_21 = arith.constant 9.99999974E-6 : f32
    %45 = vector.broadcast %cst_21 : f32 to vector<128x1xf32>
    %46 = arith.addf %42, %45 : vector<128x1xf32>
    %47 = math.rsqrt %46 : vector<128x1xf32>
    %48 = vector.broadcast %47 : vector<128x1xf32> to vector<128x32xf32>
    %49 = arith.mulf %44, %48 : vector<128x32xf32>
    %50 = vector.broadcast %30 : vector<1x32xf32> to vector<128x32xf32>
    %51 = arith.mulf %49, %50 : vector<128x32xf32>
    %52 = vector.broadcast %31 : vector<1x32xf32> to vector<128x32xf32>
    %53 = arith.addf %51, %52 : vector<128x32xf32>
    %cst_22 = arith.constant 0.000000e+00 : f32
    %54 = vector.broadcast %cst_22 : f32 to vector<128x32xf32>
    %55 = arith.maximumf %53, %54 : vector<128x32xf32>
    %c0_23 = arith.constant 0 : index
    %c0_24 = arith.constant 0 : index
    %56 = vector.load %arg10[%c0_23, %c0_24] : memref<32x32xf32, #tpu.memory_space<vmem>>, vector<32x32xf32>
    %cst_25 = arith.constant dense<0.000000e+00> : vector<128x32xf32>
    %57 = tpu.matmul %55, %56, %cst_25 {dimension_numbers = #tpu.dot_dimension_numbers<[1], [0], [0], [1], [0, 0, 1, 1], [], []>} : vector<128x32xf32>, vector<32x32xf32>, vector<128x32xf32> -> vector<128x32xf32>
    %c0_26 = arith.constant 0 : index
    %c0_27 = arith.constant 0 : index
    %58 = vector.load %arg11[%c0_26, %c0_27] : memref<1x32xf32, #tpu.memory_space<vmem>>, vector<1x32xf32>
    %59 = vector.broadcast %58 : vector<1x32xf32> to vector<128x32xf32>
    %60 = arith.addf %57, %59 : vector<128x32xf32>
    %c0_28 = arith.constant 0 : index
    %c0_29 = arith.constant 0 : index
    %61 = vector.load %arg12[%c0_28, %c0_29] : memref<1x32xf32, #tpu.memory_space<vmem>>, vector<1x32xf32>
    %c0_30 = arith.constant 0 : index
    %c0_31 = arith.constant 0 : index
    %62 = vector.load %arg13[%c0_30, %c0_31] : memref<1x32xf32, #tpu.memory_space<vmem>>, vector<1x32xf32>
    %cst_32 = arith.constant dense<0.000000e+00> : vector<128xf32>
    %63 = vector.multi_reduction <add>, %60, %cst_32 [1] : vector<128x32xf32> to vector<128xf32>
    %64 = vector.shape_cast %63 : vector<128xf32> to vector<128x1xf32>
    %cst_33 = arith.constant 3.200000e+01 : f32
    %65 = vector.broadcast %cst_33 : f32 to vector<128x1xf32>
    %66 = arith.divf %64, %65 : vector<128x1xf32>
    %67 = vector.broadcast %66 : vector<128x1xf32> to vector<128x32xf32>
    %68 = arith.subf %60, %67 : vector<128x32xf32>
    %69 = arith.mulf %68, %68 : vector<128x32xf32>
    %cst_34 = arith.constant dense<0.000000e+00> : vector<128xf32>
    %70 = vector.multi_reduction <add>, %69, %cst_34 [1] : vector<128x32xf32> to vector<128xf32>
    %71 = vector.shape_cast %70 : vector<128xf32> to vector<128x1xf32>
    %cst_35 = arith.constant 3.200000e+01 : f32
    %72 = vector.broadcast %cst_35 : f32 to vector<128x1xf32>
    %73 = arith.divf %71, %72 : vector<128x1xf32>
    %74 = vector.broadcast %66 : vector<128x1xf32> to vector<128x32xf32>
    %75 = arith.subf %60, %74 : vector<128x32xf32>
    %cst_36 = arith.constant 9.99999974E-6 : f32
    %76 = vector.broadcast %cst_36 : f32 to vector<128x1xf32>
    %77 = arith.addf %73, %76 : vector<128x1xf32>
    %78 = math.rsqrt %77 : vector<128x1xf32>
    %79 = vector.broadcast %78 : vector<128x1xf32> to vector<128x32xf32>
    %80 = arith.mulf %75, %79 : vector<128x32xf32>
    %81 = vector.broadcast %61 : vector<1x32xf32> to vector<128x32xf32>
    %82 = arith.mulf %80, %81 : vector<128x32xf32>
    %83 = vector.broadcast %62 : vector<1x32xf32> to vector<128x32xf32>
    %84 = arith.addf %82, %83 : vector<128x32xf32>
    %cst_37 = arith.constant 0.000000e+00 : f32
    %85 = vector.broadcast %cst_37 : f32 to vector<128x32xf32>
    %86 = arith.maximumf %84, %85 : vector<128x32xf32>
    %87 = arith.addf %6, %86 : vector<128x32xf32>
    %c0_38 = arith.constant 0 : index
    %c0_39 = arith.constant 0 : index
    %c0_40 = arith.constant 0 : index
    %88 = vector.load %arg14[%c0_38, %c0_39, %c0_40] : memref<1x128x32xf32, #tpu.memory_space<vmem>>, vector<1x128x32xf32>
    %89 = vector.shape_cast %88 : vector<1x128x32xf32> to vector<128x32xf32>
    %90 = vector.shape_cast %87 : vector<128x32xf32> to vector<1x128x32xf32>
    tpu.vector_store %arg14[%c0_38, %c0_39, %c0_40], %90 {strides = array<i32>} : memref<1x128x32xf32, #tpu.memory_space<vmem>>, vector<1x128x32xf32>,
    return
  }
  func.func @transform_0(%arg0: i32, %arg1: i32) -> (i32, i32, i32) {
    %c0_i32 = arith.constant 0 : i32
    %c0_i32_0 = arith.constant 0 : i32
    return %arg0, %arg1, %c0_i32 : i32, i32, i32
  }
  func.func @transform_1(%arg0: i32, %arg1: i32) -> (i32, i32, i32) {
    %c0_i32 = arith.constant 0 : i32
    %c0_i32_0 = arith.constant 0 : i32
    return %arg0, %arg1, %c0_i32 : i32, i32, i32
  }
  func.func @transform_2(%arg0: i32, %arg1: i32) -> (i32, i32) {
    %c0_i32 = arith.constant 0 : i32
    %c0_i32_0 = arith.constant 0 : i32
    %c0_i32_1 = arith.constant 0 : i32
    return %c0_i32, %c0_i32_0 : i32, i32
  }
  func.func @transform_3(%arg0: i32, %arg1: i32) -> (i32, i32) {
    %c0_i32 = arith.constant 0 : i32
    %c0_i32_0 = arith.constant 0 : i32
    %c0_i32_1 = arith.constant 0 : i32
    return %c0_i32, %c0_i32_0 : i32, i32
  }
  func.func @transform_4(%arg0: i32, %arg1: i32) -> (i32, i32) {
    %c0_i32 = arith.constant 0 : i32
    %c0_i32_0 = arith.constant 0 : i32
    %c0_i32_1 = arith.constant 0 : i32
    return %c0_i32, %c0_i32_0 : i32, i32
  }
  func.func @transform_5(%arg0: i32, %arg1: i32) -> (i32, i32) {
    %c0_i32 = arith.constant 0 : i32
    %c0_i32_0 = arith.constant 0 : i32
    %c0_i32_1 = arith.constant 0 : i32
    return %c0_i32, %c0_i32_0 : i32, i32
  }
  func.func @transform_6(%arg0: i32, %arg1: i32) -> (i32, i32) {
    %c0_i32 = arith.constant 0 : i32
    %c0_i32_0 = arith.constant 0 : i32
    %c0_i32_1 = arith.constant 0 : i32
    return %c0_i32, %c0_i32_0 : i32, i32
  }
  func.func @transform_7(%arg0: i32, %arg1: i32) -> (i32, i32) {
    %c0_i32 = arith.constant 0 : i32
    %c0_i32_0 = arith.constant 0 : i32
    %c0_i32_1 = arith.constant 0 : i32
    return %c0_i32, %c0_i32_0 : i32, i32
  }
  func.func @transform_8(%arg0: i32, %arg1: i32) -> (i32, i32) {
    %c0_i32 = arith.constant 0 : i32
    %c0_i32_0 = arith.constant 0 : i32
    %c0_i32_1 = arith.constant 0 : i32
    return %c0_i32, %c0_i32_0 : i32, i32
  }
  func.func @transform_9(%arg0: i32, %arg1: i32) -> (i32, i32) {
    %c0_i32 = arith.constant 0 : i32
    %c0_i32_0 = arith.constant 0 : i32
    %c0_i32_1 = arith.constant 0 : i32
    return %c0_i32, %c0_i32_0 : i32, i32
  }
  func.func @transform_10(%arg0: i32, %arg1: i32) -> (i32, i32) {
    %c0_i32 = arith.constant 0 : i32
    %c0_i32_0 = arith.constant 0 : i32
    %c0_i32_1 = arith.constant 0 : i32
    return %c0_i32, %c0_i32_0 : i32, i32
  }
  func.func @transform_11(%arg0: i32, %arg1: i32) -> (i32, i32) {
    %c0_i32 = arith.constant 0 : i32
    %c0_i32_0 = arith.constant 0 : i32
    %c0_i32_1 = arith.constant 0 : i32
    return %c0_i32, %c0_i32_0 : i32, i32
  }
  func.func @transform_12(%arg0: i32, %arg1: i32) -> (i32, i32, i32) {
    %c0_i32 = arith.constant 0 : i32
    %c0_i32_0 = arith.constant 0 : i32
    return %arg0, %arg1, %c0_i32 : i32, i32, i32
  }
}

</mosaic_0001>

<llo_original>
// kernel: detr3d_cross_attn.4
$region0: #{detr3d_cross_attn.4}
  #allocation0 [shape = 'u32[]', space=smem, size = 0x4, offset = 0x4, fixed_abs, tag = 'smem constant byte address 0x4 - core index']
  #allocation1 [shape = 'u32[72,128]{1,0:T(1,128)}', space=vmem, size = 0x9000, scoped, tag = 'internal scratch']
  %s0 = inlined_call_operand.vmem [shape: f32[2,200,32], index: 0, kind: input, shape index: {}]
  %s1 = inlined_call_operand.vmem [shape: f32[32,6], index: 1, kind: input, shape index: {}]
  %s2 = inlined_call_operand.hbm [shape: f32[1,6], index: 2, kind: input, shape index: {}]
  %s3 = inlined_call_operand.vmem [shape: f32[2,200,6], index: 3, kind: output, shape index: {}]
  %s4 = sld [smem:[#allocation0]]
  $region49: #{detr3d_cross_attn.4} parent=0
    _
  %s6 = ssub.s32 1, %s4
  %s7 = scalar_select 0, %s6, %s4
  $region1: #{detr3d_cross_attn.4} parent=0
    #allocation2 [shape = 'u8[512]{0}', space=vmem, size = 0x400, scoped, tag = 'input window, operand 2, single buffered']
    #allocation3 [shape = 's32[2]{0}', space=sflag, size = 0x8, scoped, tag = 'scoped memory for detr3d_cross_attn.4']
    %8 = vsyncpa [#allocation3], 0
    loop: start=0, step=1, limit=4
    $region2: #{detr3d_cross_attn.4} parent=1 // loop_pre_header
      _
    $region3: #{detr3d_cross_attn.4} parent=1 // loop_header
      %s10 = sphi 0, %s14
      %p11 = scmp.ge.s32.totalorder %s10, 4
      %s20 = sphi 0, %s22
      %s23 = sphi 0, %s20
      %s24 = sphi 0, %s23
      %s40 = sphi 0, %s24
      %s44 = sphi 0, %s44
      %s46 = sphi 0, %s44
      %s47 = sphi 0, %s46
      %s61 = sphi 0, %s47
      %s65 = sphi 0, %s65
      %s67 = sphi 0, %s65
      %s68 = sphi 0, %s67
      %s82 = sphi 0, %s68
      %s88 = sphi 0, %s90
      %s91 = sphi 0, %s88
      %s92 = sphi 0, %s91
      %s108 = sphi 0, %s92
    $region4: #{detr3d_cross_attn.4} parent=1 // loop_header_branch
      %13 = sbr.rel (%p11) target = $region8
    $region5: #{detr3d_cross_attn.4} parent=1 // loop_body
      %s15 = ssub.s32 %s10, 1
      %s16 = ssub.s32 %s10, 2
      %s17 = sadd.s32 %s10, 1
      %s18 = ssub.s32 %s10, %s17
      %p19 = scmp.eq.s32.totalorder %s18, 0
      %s21 = sadd.s32 %s20, 1
      %s22 = scalar_select %p19, %s20, %s21
      %p25 = pneg %p19
      %p26 = scmp.eq.s32.totalorder %s10, 1
      %p27 = por %p25, %p26
      %p28 = scmp.ne.s32.totalorder %s20, %s23
      %p29 = scmp.eq.s32.totalorder %s10, 0
      %p30 = por %p28, %p29
      %p31 = scmp.ne.s32.totalorder %s20, %s23
      %p32 = scmp.eq.s32.totalorder %s15, 1
      %p33 = por %p31, %p32
      %p34 = scmp.ne.s32.totalorder %s23, %s24
      %p35 = scmp.eq.s32.totalorder %s15, 0
      %p36 = por %p34, %p35
      %p37 = scmp.ne.s32.totalorder %s23, %s24
      %p38 = scmp.eq.s32.totalorder %s16, 1
      %p39 = por %p37, %p38
      %p41 = scmp.ne.s32.totalorder %s24, %s40
      %p42 = scmp.eq.s32.totalorder %s16, 0
      %p43 = por %p41, %p42
      %s45 = sadd.s32 %s44, 1
      %p48 = scmp.eq.s32.totalorder %s10, 1
      %p49 = scmp.ne.s32.totalorder %s44, %s46
      %p50 = scmp.eq.s32.totalorder %s10, 0
      %p51 = por %p49, %p50
      %p52 = scmp.ne.s32.totalorder %s44, %s46
      %p53 = scmp.eq.s32.totalorder %s15, 1
      %p54 = por %p52, %p53
      %p55 = scmp.ne.s32.totalorder %s46, %s47
      %p56 = scmp.eq.s32.totalorder %s15, 0
      %p57 = por %p55, %p56
      %p58 = scmp.ne.s32.totalorder %s46, %s47
      %p59 = scmp.eq.s32.totalorder %s16, 1
      %p60 = por %p58, %p59
      %p62 = scmp.ne.s32.totalorder %s47, %s61
      %p63 = scmp.eq.s32.totalorder %s16, 0
      %p64 = por %p62, %p63
      %s66 = sadd.s32 %s65, 1
      %p69 = scmp.eq.s32.totalorder %s10, 1
      %p70 = scmp.ne.s32.totalorder %s65, %s67
      %p71 = scmp.eq.s32.totalorder %s10, 0
      %p72 = por %p70, %p71
      %p73 = scmp.ne.s32.totalorder %s65, %s67
      %p74 = scmp.eq.s32.totalorder %s15, 1
      %p75 = por %p73, %p74
      %p76 = scmp.ne.s32.totalorder %s67, %s68
      %p77 = scmp.eq.s32.totalorder %s15, 0
      %p78 = por %p76, %p77
      %p79 = scmp.ne.s32.totalorder %s67, %s68
      %p80 = scmp.eq.s32.totalorder %s16, 1
      %p81 = por %p79, %p80
      %p83 = scmp.ne.s32.totalorder %s68, %s82
      %p84 = scmp.eq.s32.totalorder %s16, 0
      %p85 = por %p83, %p84
      %s86 = ssub.s32 %s10, %s17
      %p87 = scmp.eq.s32.totalorder %s86, 0
      %s89 = sadd.s32 %s88, 1
      %s90 = scalar_select %p87, %s88, %s89
      %p93 = pneg %p87
      %p94 = scmp.eq.s32.totalorder %s10, 1
      %p95 = por %p93, %p94
      %p96 = scmp.ne.s32.totalorder %s88, %s91
      %p97 = scmp.eq.s32.totalorder %s10, 0
      %p98 = por %p96, %p97
      %p99 = scmp.ne.s32.totalorder %s88, %s91
      %p100 = scmp.eq.s32.totalorder %s15, 1
      %p101 = por %p99, %p100
      %p102 = scmp.ne.s32.totalorder %s91, %s92
      %p103 = scmp.eq.s32.totalorder %s15, 0
      %p104 = por %p102, %p103
      %p105 = scmp.ne.s32.totalorder %s91, %s92
      %p106 = scmp.eq.s32.totalorder %s16, 1
      %p107 = por %p105, %p106
      %p109 = scmp.ne.s32.totalorder %s92, %s108
      %p110 = scmp.eq.s32.totalorder %s16, 0
      %p111 = por %p109, %p110
      %p112 = scmp.le.s32.totalorder 1, %s10
      %p113 = scmp.lt.s32.totalorder %s10, 3
      %p114 = pnand %p112, %p113
      %p115 = pneg %p114
      // Predicated region
      $region9: #{detr3d_cross_attn.4} parent=5 // pred_check
        _
      $region10: #{detr3d_cross_attn.4} parent=5 // pred_check_branch
        %117 = sbr.rel (%p114) target = $region12
      $region11: #{detr3d_cross_attn.4} parent=5 // pred_region
        %s118 = ssub.s32 %s10, 1
        // Predicated region
        $region13: #{detr3d_cross_attn.4} parent=11 // pred_check
          %p119 = pneg %p57
        $region14: #{detr3d_cross_attn.4} parent=11 // pred_check_branch
          %121 = sbr.rel (%p119) target = $region16
        $region15: #{detr3d_cross_attn.4} parent=11 // pred_region
          _
        $region16: #{detr3d_cross_attn.4} parent=11 // pred_fallthru
          _
        // Predicated region
        $region17: #{detr3d_cross_attn.4} parent=11 // pred_check
          %p122 = pneg %p78
        $region18: #{detr3d_cross_attn.4} parent=11 // pred_check_branch
          %124 = sbr.rel (%p122) target = $region20
        $region19: #{detr3d_cross_attn.4} parent=11 // pred_region
          %126 = vsyncadd [#allocation3], 0
          %s128 = sshll.u32 %s2, 4
          %s129 = int_to_ptr.hbm [resolvable:$true] %s128
          %s130 = sshll.u32 [#allocation2], 4
          %s131 = int_to_ptr.vmem [resolvable:$true] %s130
          %133 = dma.hbm_to_vmem [thread:$0]  %s129, 16, %s131, [#allocation3]
        $region20: #{detr3d_cross_attn.4} parent=11 // pred_fallthru
          _
      $region12: #{detr3d_cross_attn.4} parent=5 // pred_fallthru
        _
      %p134 = scmp.lt.s32.totalorder %s10, 2
      // Predicated region
      $region21: #{detr3d_cross_attn.4} parent=5 // pred_check
        %p135 = pneg %p134
      $region22: #{detr3d_cross_attn.4} parent=5 // pred_check_branch
        %137 = sbr.rel (%p135) target = $region24
      $region23: #{detr3d_cross_attn.4} parent=5 // pred_region
        // Predicated region
        $region25: #{detr3d_cross_attn.4} parent=23 // pred_check
          %p138 = pneg %p30
        $region26: #{detr3d_cross_attn.4} parent=23 // pred_check_branch
          %140 = sbr.rel (%p138) target = $region28
        $region27: #{detr3d_cross_attn.4} parent=23 // pred_region
          %p141 = scmp.lt.s32.totalorder %s10, 1
          %s142 = scalar_select %p141, %s10, 1
          %s143 = smul.addr %s142, 25
          %s144 = smul.addr %s143, 8
          %s145 = scalar_lea.vmem %s0, %s144
        $region28: #{detr3d_cross_attn.4} parent=23 // pred_fallthru
          _
      $region24: #{detr3d_cross_attn.4} parent=5 // pred_fallthru
        _
      %p146 = scmp.le.s32.totalorder 1, %s10
      %p147 = scmp.lt.s32.totalorder %s10, 3
      %p148 = pnand %p146, %p147
      %p149 = pneg %p148
      // Predicated region
      $region29: #{detr3d_cross_attn.4} parent=5 // pred_check
        _
      $region30: #{detr3d_cross_attn.4} parent=5 // pred_check_branch
        %151 = sbr.rel (%p148) target = $region32
      $region31: #{detr3d_cross_attn.4} parent=5 // pred_region
        %s152 = ssub.s32 %s10, 1
        // Predicated region
        $region33: #{detr3d_cross_attn.4} parent=31 // pred_check
          %p153 = pneg %p78
        $region34: #{detr3d_cross_attn.4} parent=31 // pred_check_branch
          %155 = sbr.rel (%p153) target = $region36
        $region35: #{detr3d_cross_attn.4} parent=31 // pred_region
          %157 = dma.done [#allocation3], 16
        $region36: #{detr3d_cross_attn.4} parent=31 // pred_fallthru
          _
        %p158 = scmp.lt.s32.totalorder %s15, 1
        %s159 = scalar_select %p158, %s15, 1
        %s160 = smul.addr %s159, 25
        %s161 = smul.addr %s160, 8
        %s162 = scalar_lea.vmem %s0, %s161
        %p163 = pneg %p36
        %p164 = pneg %p33
        %p165 = pneg %p57
        %p166 = pneg %p54
        %p167 = pneg %p78
        %p168 = pneg %p75
        %p169 = pneg %p104
        %p170 = pneg %p101
        %p171 = scmp.lt.s32.totalorder %s15, 1
        %s172 = scalar_select %p171, %s15, 1
        %s173 = smul.addr %s172, 25
        %s174 = smul.addr %s173, 8
        %s175 = scalar_lea.vmem %s3, %s174
        %p176 = scmp.lt.s32.totalorder %s15, 1
        %s177 = scalar_select %p176, %s15, 1
        %s178 = smul.addr %s177, 25
        %s179 = smul.addr %s178, 8
        %s180 = scalar_lea.vmem %s0, %s179
        %p181 = scmp.lt.s32.totalorder %s15, 1
        %s182 = scalar_select %p181, %s15, 1
        %s183 = smul.addr %s182, 25
        %s184 = smul.addr %s183, 8
        %s185 = scalar_lea.vmem %s3, %s184
        %v186 = vld [vmem:[%s180] sm:$0xff]
        %v187 = vld [vmem:[%s180 + $0x8] sm:$0xff]
        %v188 = vld [vmem:[%s180 + $0x10] sm:$0xff]
        %v189 = vld [vmem:[%s180 + $0x18] sm:$0xff]
        %v190 = vld [vmem:[%s180 + $0x20] sm:$0xff]
        %v191 = vld [vmem:[%s180 + $0x28] sm:$0xff]
        %v192 = vld [vmem:[%s180 + $0x30] sm:$0xff]
        %v193 = vld [vmem:[%s180 + $0x38] sm:$0xff]
        %v194 = vld [vmem:[%s180 + $0x40] sm:$0xff]
        %v195 = vld [vmem:[%s180 + $0x48] sm:$0xff]
        %v196 = vld [vmem:[%s180 + $0x50] sm:$0xff]
        %v197 = vld [vmem:[%s180 + $0x58] sm:$0xff]
        %v198 = vld [vmem:[%s180 + $0x60] sm:$0xff]
        %v199 = vld [vmem:[%s180 + $0x68] sm:$0xff]
        %v200 = vld [vmem:[%s180 + $0x70] sm:$0xff]
        %v201 = vld [vmem:[%s180 + $0x78] sm:$0xff]
        %v202 = vld [vmem:[%s180 + $0x80] sm:$0xff]
        %v203 = vld [vmem:[%s180 + $0x88] sm:$0xff]
        %v204 = vld [vmem:[%s180 + $0x90] sm:$0xff]
        %v205 = vld [vmem:[%s180 + $0x98] sm:$0xff]
        %v206 = vld [vmem:[%s180 + $0xa0] sm:$0xff]
        %v207 = vld [vmem:[%s180 + $0xa8] sm:$0xff]
        %v208 = vld [vmem:[%s180 + $0xb0] sm:$0xff]
        %v209 = vld [vmem:[%s180 + $0xb8] sm:$0xff]
        %v210 = vld [vmem:[%s180 + $0xc0] sm:$0xff]
        %v211 = vld [vmem:[%s1] sm:$0xff]
        %v212 = vld [vmem:[%s1 + $0x8] sm:$0xff]
        %v213 = vld [vmem:[%s1 + $0x10] sm:$0xff]
        %v214 = vld [vmem:[%s1 + $0x18] sm:$0xff]
        %v215 = vld [vmem:[#allocation2] sm:$0x1]
        %v217 = vperm.slane %v215, 0
        %vm219 = vcmask 261120
        %v221 = vsel %vm219, %v186, 0
        %v224 = vsel %vm219, %v187, 0
        %v227 = vsel %vm219, %v188, 0
        %v230 = vsel %vm219, %v189, 0
        %v233 = vsel %vm219, %v190, 0
        %v236 = vsel %vm219, %v191, 0
        %v239 = vsel %vm219, %v192, 0
        %v242 = vsel %vm219, %v193, 0
        %v245 = vsel %vm219, %v194, 0
        %v248 = vsel %vm219, %v195, 0
        %v251 = vsel %vm219, %v196, 0
        %v254 = vsel %vm219, %v197, 0
        %v257 = vsel %vm219, %v198, 0
        %v260 = vsel %vm219, %v199, 0
        %v263 = vsel %vm219, %v200, 0
        %v266 = vsel %vm219, %v201, 0
        %v269 = vsel %vm219, %v202, 0
        %v272 = vsel %vm219, %v203, 0
        %v275 = vsel %vm219, %v204, 0
        %v278 = vsel %vm219, %v205, 0
        %v281 = vsel %vm219, %v206, 0
        %v284 = vsel %vm219, %v207, 0
        %v287 = vsel %vm219, %v208, 0
        %v290 = vsel %vm219, %v209, 0
        %v293 = vsel %vm219, %v210, 0
        %295 = vmatpush.msra.mxu0 0.0
        %296 = vmatpush.msra.mxu0 0.0
        %297 = vmatpush.msra.mxu0 0.0
        %298 = vmatpush.msra.mxu0 0.0
        %299 = vmatpush.msra.mxu0 0.0
        %300 = vmatpush.msra.mxu0 0.0
        %301 = vmatpush.msra.mxu0 0.0
        %302 = vmatpush.msra.mxu0 0.0
        %303 = vmatpush.msra.mxu0 0.0
        %304 = vmatpush.msra.mxu0 0.0
        %305 = vmatpush.msra.mxu0 0.0
        %306 = vmatpush.msra.mxu0 0.0
        %307 = vmatpush.msra.mxu0 %v214
        %308 = vmatpush.msra.mxu0 %v213
        %309 = vmatpush.msra.mxu0 %v212
        %310 = vmatpush.msra.mxu0 %v211
        %311 = vmatmul.f32.gmra.mxu0 %v221
        %v312 = vpop.f32.mrf.mxu0
        %v313 = vadd.f32 %v217, %v312
        %314 = vmatmul.f32.gmra.mxu0 %v224
        %v315 = vpop.f32.mrf.mxu0
        %v316 = vadd.f32 %v217, %v315
        %317 = vmatmul.f32.gmra.mxu0 %v227
        %v318 = vpop.f32.mrf.mxu0
        %v319 = vadd.f32 %v217, %v318
        %320 = vmatmul.f32.gmra.mxu0 %v230
        %v321 = vpop.f32.mrf.mxu0
        %v322 = vadd.f32 %v217, %v321
        %323 = vmatmul.f32.gmra.mxu0 %v233
        %v324 = vpop.f32.mrf.mxu0
        %v325 = vadd.f32 %v217, %v324
        %326 = vmatmul.f32.gmra.mxu0 %v236
        %v327 = vpop.f32.mrf.mxu0
        %v328 = vadd.f32 %v217, %v327
        %329 = vmatmul.f32.gmra.mxu0 %v239
        %v330 = vpop.f32.mrf.mxu0
        %v331 = vadd.f32 %v217, %v330
        %332 = vmatmul.f32.gmra.mxu0 %v242
        %v333 = vpop.f32.mrf.mxu0
        %v334 = vadd.f32 %v217, %v333
        %335 = vmatmul.f32.gmra.mxu0 %v245
        %v336 = vpop.f32.mrf.mxu0
        %v337 = vadd.f32 %v217, %v336
        %338 = vmatmul.f32.gmra.mxu0 %v248
        %v339 = vpop.f32.mrf.mxu0
        %v340 = vadd.f32 %v217, %v339
        %341 = vmatmul.f32.gmra.mxu0 %v251
        %v342 = vpop.f32.mrf.mxu0
        %v343 = vadd.f32 %v217, %v342
        %344 = vmatmul.f32.gmra.mxu0 %v254
        %v345 = vpop.f32.mrf.mxu0
        %v346 = vadd.f32 %v217, %v345
        %347 = vmatmul.f32.gmra.mxu0 %v257
        %v348 = vpop.f32.mrf.mxu0
        %v349 = vadd.f32 %v217, %v348
        %350 = vmatmul.f32.gmra.mxu0 %v260
        %v351 = vpop.f32.mrf.mxu0
        %v352 = vadd.f32 %v217, %v351
        %353 = vmatmul.f32.gmra.mxu0 %v263
        %v354 = vpop.f32.mrf.mxu0
        %v355 = vadd.f32 %v217, %v354
        %356 = vmatmul.f32.gmra.mxu0 %v266
        %v357 = vpop.f32.mrf.mxu0
        %v358 = vadd.f32 %v217, %v357
        %359 = vmatmul.f32.gmra.mxu0 %v269
        %v360 = vpop.f32.mrf.mxu0
        %v361 = vadd.f32 %v217, %v360
        %362 = vmatmul.f32.gmra.mxu0 %v272
        %v363 = vpop.f32.mrf.mxu0
        %v364 = vadd.f32 %v217, %v363
        %365 = vmatmul.f32.gmra.mxu0 %v275
        %v366 = vpop.f32.mrf.mxu0
        %v367 = vadd.f32 %v217, %v366
        %368 = vmatmul.f32.gmra.mxu0 %v278
        %v369 = vpop.f32.mrf.mxu0
        %v370 = vadd.f32 %v217, %v369
        %371 = vmatmul.f32.gmra.mxu0 %v281
        %v372 = vpop.f32.mrf.mxu0
        %v373 = vadd.f32 %v217, %v372
        %374 = vmatmul.f32.gmra.mxu0 %v284
        %v375 = vpop.f32.mrf.mxu0
        %v376 = vadd.f32 %v217, %v375
        %377 = vmatmul.f32.gmra.mxu0 %v287
        %v378 = vpop.f32.mrf.mxu0
        %v379 = vadd.f32 %v217, %v378
        %380 = vmatmul.f32.gmra.mxu0 %v290
        %v381 = vpop.f32.mrf.mxu0
        %v382 = vadd.f32 %v217, %v381
        %383 = vmatmul.f32.gmra.mxu0 %v293
        %v384 = vpop.f32.mrf.mxu0
        %v385 = vadd.f32 %v217, %v384
        %386 = vdwg.mxu0
        %v387 = vxor.u32 %v313, 2147483648
        %v388 = vxor.u32 %v316, 2147483648
        %v389 = vxor.u32 %v319, 2147483648
        %v390 = vxor.u32 %v322, 2147483648
        %v391 = vxor.u32 %v325, 2147483648
        %v392 = vxor.u32 %v328, 2147483648
        %v393 = vxor.u32 %v331, 2147483648
        %v394 = vxor.u32 %v334, 2147483648
        %v395 = vxor.u32 %v337, 2147483648
        %v396 = vxor.u32 %v340, 2147483648
        %v397 = vxor.u32 %v343, 2147483648
        %v398 = vxor.u32 %v346, 2147483648
        %v399 = vxor.u32 %v349, 2147483648
        %v400 = vxor.u32 %v352, 2147483648
        %v401 = vxor.u32 %v355, 2147483648
        %v402 = vxor.u32 %v358, 2147483648
        %v403 = vxor.u32 %v361, 2147483648
        %v404 = vxor.u32 %v364, 2147483648
        %v405 = vxor.u32 %v367, 2147483648
        %v406 = vxor.u32 %v370, 2147483648
        %v407 = vxor.u32 %v373, 2147483648
        %v408 = vxor.u32 %v376, 2147483648
        %v409 = vxor.u32 %v379, 2147483648
        %v410 = vxor.u32 %v382, 2147483648
        %v411 = vxor.u32 %v385, 2147483648
        %v412 = vmul.f32 %v387, 1.442695
        %v413 = vpow.pop %v412
        %v414 = vmul.f32 %v388, 1.442695
        %v415 = vpow.pop %v414
        %v416 = vmul.f32 %v389, 1.442695
        %v417 = vpow.pop %v416
        %v418 = vmul.f32 %v390, 1.442695
        %v419 = vpow.pop %v418
        %v420 = vmul.f32 %v391, 1.442695
        %v421 = vpow.pop %v420
        %v422 = vmul.f32 %v392, 1.442695
        %v423 = vpow.pop %v422
        %v424 = vmul.f32 %v393, 1.442695
        %v425 = vpow.pop %v424
        %v426 = vmul.f32 %v394, 1.442695
        %v427 = vpow.pop %v426
        %v428 = vmul.f32 %v395, 1.442695
        %v429 = vpow.pop %v428
        %v430 = vmul.f32 %v396, 1.442695
        %v431 = vpow.pop %v430
        %v432 = vmul.f32 %v397, 1.442695
        %v433 = vpow.pop %v432
        %v434 = vmul.f32 %v398, 1.442695
        %v435 = vpow.pop %v434
        %v436 = vmul.f32 %v399, 1.442695
        %v437 = vpow.pop %v436
        %v438 = vmul.f32 %v400, 1.442695
        %v439 = vpow.pop %v438
        %v440 = vmul.f32 %v401, 1.442695
        %v441 = vpow.pop %v440
        %v442 = vmul.f32 %v402, 1.442695
        %v443 = vpow.pop %v442
        %v444 = vmul.f32 %v403, 1.442695
        %v445 = vpow.pop %v444
        %v446 = vmul.f32 %v404, 1.442695
        %v447 = vpow.pop %v446
        %v448 = vmul.f32 %v405, 1.442695
        %v449 = vpow.pop %v448
        %v450 = vmul.f32 %v406, 1.442695
        %v451 = vpow.pop %v450
        %v452 = vmul.f32 %v407, 1.442695
        %v453 = vpow.pop %v452
        %v454 = vmul.f32 %v408, 1.442695
        %v455 = vpow.pop %v454
        %v456 = vmul.f32 %v409, 1.442695
        %v457 = vpow.pop %v456
        %v458 = vmul.f32 %v410, 1.442695
        %v459 = vpow.pop %v458
        %v460 = vmul.f32 %v411, 1.442695
        %v461 = vpow.pop %v460
        %v462 = vadd.f32 %v413, 1.0
        %v463 = vadd.f32 %v415, 1.0
        %v464 = vadd.f32 %v417, 1.0
        %v465 = vadd.f32 %v419, 1.0
        %v466 = vadd.f32 %v421, 1.0
        %v467 = vadd.f32 %v423, 1.0
        %v468 = vadd.f32 %v425, 1.0
        %v469 = vadd.f32 %v427, 1.0
        %v470 = vadd.f32 %v429, 1.0
        %v471 = vadd.f32 %v431, 1.0
        %v472 = vadd.f32 %v433, 1.0
        %v473 = vadd.f32 %v435, 1.0
        %v474 = vadd.f32 %v437, 1.0
        %v475 = vadd.f32 %v439, 1.0
        %v476 = vadd.f32 %v441, 1.0
        %v477 = vadd.f32 %v443, 1.0
        %v478 = vadd.f32 %v445, 1.0
        %v479 = vadd.f32 %v447, 1.0
        %v480 = vadd.f32 %v449, 1.0
        %v481 = vadd.f32 %v451, 1.0
        %v482 = vadd.f32 %v453, 1.0
        %v483 = vadd.f32 %v455, 1.0
        %v484 = vadd.f32 %v457, 1.0
        %v485 = vadd.f32 %v459, 1.0
        %v486 = vadd.f32 %v461, 1.0
        %v487 = vrcp.pop %v462
        %v488 = vmul.f32 %v462, %v487
        %v489 = vsub.f32 1.0, %v488
        %v490 = vmul.f32 %v487, %v489
        %v491 = vadd.f32 %v487, %v490
        %vm492 = vweird.f32 %v462
        %vm493 = vweird.f32 %v487
        %vm494 = vmor %vm492, %vm493
        %v495 = vsel %vm494, %v487, %v491
        %v496 = vand.u32 2147483647, %v462
        %vm497 = vcmp.eq.f32.partialorder %v496, 8.507059e+37
        %v498 = vand.u32 %v462, 2147483648
        %v499 = vor.u32 1.1754944e-38, %v498
        %v500 = vsel %vm497, %v499, %v495
        %v501 = vmul.f32 1.0, %v500
        %v502 = vrcp.pop %v463
        %v503 = vmul.f32 %v463, %v502
        %v504 = vsub.f32 1.0, %v503
        %v505 = vmul.f32 %v502, %v504
        %v506 = vadd.f32 %v502, %v505
        %vm507 = vweird.f32 %v463
        %vm508 = vweird.f32 %v502
        %vm509 = vmor %vm507, %vm508
        %v510 = vsel %vm509, %v502, %v506
        %v511 = vand.u32 2147483647, %v463
        %vm512 = vcmp.eq.f32.partialorder %v511, 8.507059e+37
        %v513 = vand.u32 %v463, 2147483648
        %v514 = vor.u32 1.1754944e-38, %v513
        %v515 = vsel %vm512, %v514, %v510
        %v516 = vmul.f32 1.0, %v515
        %v517 = vrcp.pop %v464
        %v518 = vmul.f32 %v464, %v517
        %v519 = vsub.f32 1.0, %v518
        %v520 = vmul.f32 %v517, %v519
        %v521 = vadd.f32 %v517, %v520
        %vm522 = vweird.f32 %v464
        %vm523 = vweird.f32 %v517
        %vm524 = vmor %vm522, %vm523
        %v525 = vsel %vm524, %v517, %v521
        %v526 = vand.u32 2147483647, %v464
        %vm527 = vcmp.eq.f32.partialorder %v526, 8.507059e+37
        %v528 = vand.u32 %v464, 2147483648
        %v529 = vor.u32 1.1754944e-38, %v528
        %v530 = vsel %vm527, %v529, %v525
        %v531 = vmul.f32 1.0, %v530
        %v532 = vrcp.pop %v465
        %v533 = vmul.f32 %v465, %v532
        %v534 = vsub.f32 1.0, %v533
        %v535 = vmul.f32 %v532, %v534
        %v536 = vadd.f32 %v532, %v535
        %vm537 = vweird.f32 %v465
        %vm538 = vweird.f32 %v532
        %vm539 = vmor %vm537, %vm538
        %v540 = vsel %vm539, %v532, %v536
        %v541 = vand.u32 2147483647, %v465
        %vm542 = vcmp.eq.f32.partialorder %v541, 8.507059e+37
        %v543 = vand.u32 %v465, 2147483648
        %v544 = vor.u32 1.1754944e-38, %v543
        %v545 = vsel %vm542, %v544, %v540
        %v546 = vmul.f32 1.0, %v545
        %v547 = vrcp.pop %v466
        %v548 = vmul.f32 %v466, %v547
        %v549 = vsub.f32 1.0, %v548
        %v550 = vmul.f32 %v547, %v549
        %v551 = vadd.f32 %v547, %v550
        %vm552 = vweird.f32 %v466
        %vm553 = vweird.f32 %v547
        %vm554 = vmor %vm552, %vm553
        %v555 = vsel %vm554, %v547, %v551
        %v556 = vand.u32 2147483647, %v466
        %vm557 = vcmp.eq.f32.partialorder %v556, 8.507059e+37
        %v558 = vand.u32 %v466, 2147483648
        %v559 = vor.u32 1.1754944e-38, %v558
        %v560 = vsel %vm557, %v559, %v555
        %v561 = vmul.f32 1.0, %v560
        %v562 = vrcp.pop %v467
        %v563 = vmul.f32 %v467, %v562
        %v564 = vsub.f32 1.0, %v563
        %v565 = vmul.f32 %v562, %v564
        %v566 = vadd.f32 %v562, %v565
        %vm567 = vweird.f32 %v467
        %vm568 = vweird.f32 %v562
        %vm569 = vmor %vm567, %vm568
        %v570 = vsel %vm569, %v562, %v566
        %v571 = vand.u32 2147483647, %v467
        %vm572 = vcmp.eq.f32.partialorder %v571, 8.507059e+37
        %v573 = vand.u32 %v467, 2147483648
        %v574 = vor.u32 1.1754944e-38, %v573
        %v575 = vsel %vm572, %v574, %v570
        %v576 = vmul.f32 1.0, %v575
        %v577 = vrcp.pop %v468
        %v578 = vmul.f32 %v468, %v577
        %v579 = vsub.f32 1.0, %v578
        %v580 = vmul.f32 %v577, %v579
        %v581 = vadd.f32 %v577, %v580
        %vm582 = vweird.f32 %v468
        %vm583 = vweird.f32 %v577
        %vm584 = vmor %vm582, %vm583
        %v585 = vsel %vm584, %v577, %v581
        %v586 = vand.u32 2147483647, %v468
        %vm587 = vcmp.eq.f32.partialorder %v586, 8.507059e+37
        %v588 = vand.u32 %v468, 2147483648
        %v589 = vor.u32 1.1754944e-38, %v588
        %v590 = vsel %vm587, %v589, %v585
        %v591 = vmul.f32 1.0, %v590
        %v592 = vrcp.pop %v469
        %v593 = vmul.f32 %v469, %v592
        %v594 = vsub.f32 1.0, %v593
        %v595 = vmul.f32 %v592, %v594
        %v596 = vadd.f32 %v592, %v595
        %vm597 = vweird.f32 %v469
        %vm598 = vweird.f32 %v592
        %vm599 = vmor %vm597, %vm598
        %v600 = vsel %vm599, %v592, %v596
        %v601 = vand.u32 2147483647, %v469
        %vm602 = vcmp.eq.f32.partialorder %v601, 8.507059e+37
        %v603 = vand.u32 %v469, 2147483648
        %v604 = vor.u32 1.1754944e-38, %v603
        %v605 = vsel %vm602, %v604, %v600
        %v606 = vmul.f32 1.0, %v605
        %v607 = vrcp.pop %v470
        %v608 = vmul.f32 %v470, %v607
        %v609 = vsub.f32 1.0, %v608
        %v610 = vmul.f32 %v607, %v609
        %v611 = vadd.f32 %v607, %v610
        %vm612 = vweird.f32 %v470
        %vm613 = vweird.f32 %v607
        %vm614 = vmor %vm612, %vm613
        %v615 = vsel %vm614, %v607, %v611
        %v616 = vand.u32 2147483647, %v470
        %vm617 = vcmp.eq.f32.partialorder %v616, 8.507059e+37
        %v618 = vand.u32 %v470, 2147483648
        %v619 = vor.u32 1.1754944e-38, %v618
        %v620 = vsel %vm617, %v619, %v615
        %v621 = vmul.f32 1.0, %v620
        %v622 = vrcp.pop %v471
        %v623 = vmul.f32 %v471, %v622
        %v624 = vsub.f32 1.0, %v623
        %v625 = vmul.f32 %v622, %v624
        %v626 = vadd.f32 %v622, %v625
        %vm627 = vweird.f32 %v471
        %vm628 = vweird.f32 %v622
        %vm629 = vmor %vm627, %vm628
        %v630 = vsel %vm629, %v622, %v626
        %v631 = vand.u32 2147483647, %v471
        %vm632 = vcmp.eq.f32.partialorder %v631, 8.507059e+37
        %v633 = vand.u32 %v471, 2147483648
        %v634 = vor.u32 1.1754944e-38, %v633
        %v635 = vsel %vm632, %v634, %v630
        %v636 = vmul.f32 1.0, %v635
        %v637 = vrcp.pop %v472
        %v638 = vmul.f32 %v472, %v637
        %v639 = vsub.f32 1.0, %v638
        %v640 = vmul.f32 %v637, %v639
        %v641 = vadd.f32 %v637, %v640
        %vm642 = vweird.f32 %v472
        %vm643 = vweird.f32 %v637
        %vm644 = vmor %vm642, %vm643
        %v645 = vsel %vm644, %v637, %v641
        %v646 = vand.u32 2147483647, %v472
        %vm647 = vcmp.eq.f32.partialorder %v646, 8.507059e+37
        %v648 = vand.u32 %v472, 2147483648
        %v649 = vor.u32 1.1754944e-38, %v648
        %v650 = vsel %vm647, %v649, %v645
        %v651 = vmul.f32 1.0, %v650
        %v652 = vrcp.pop %v473
        %v653 = vmul.f32 %v473, %v652
        %v654 = vsub.f32 1.0, %v653
        %v655 = vmul.f32 %v652, %v654
        %v656 = vadd.f32 %v652, %v655
        %vm657 = vweird.f32 %v473
        %vm658 = vweird.f32 %v652
        %vm659 = vmor %vm657, %vm658
        %v660 = vsel %vm659, %v652, %v656
        %v661 = vand.u32 2147483647, %v473
        %vm662 = vcmp.eq.f32.partialorder %v661, 8.507059e+37
        %v663 = vand.u32 %v473, 2147483648
        %v664 = vor.u32 1.1754944e-38, %v663
        %v665 = vsel %vm662, %v664, %v660
        %v666 = vmul.f32 1.0, %v665
        %v667 = vrcp.pop %v474
        %v668 = vmul.f32 %v474, %v667
        %v669 = vsub.f32 1.0, %v668
        %v670 = vmul.f32 %v667, %v669
        %v671 = vadd.f32 %v667, %v670
        %vm672 = vweird.f32 %v474
        %vm673 = vweird.f32 %v667
        %vm674 = vmor %vm672, %vm673
        %v675 = vsel %vm674, %v667, %v671
        %v676 = vand.u32 2147483647, %v474
        %vm677 = vcmp.eq.f32.partialorder %v676, 8.507059e+37
        %v678 = vand.u32 %v474, 2147483648
        %v679 = vor.u32 1.1754944e-38, %v678
        %v680 = vsel %vm677, %v679, %v675
        %v681 = vmul.f32 1.0, %v680
        %v682 = vrcp.pop %v475
        %v683 = vmul.f32 %v475, %v682
        %v684 = vsub.f32 1.0, %v683
        %v685 = vmul.f32 %v682, %v684
        %v686 = vadd.f32 %v682, %v685
        %vm687 = vweird.f32 %v475
        %vm688 = vweird.f32 %v682
        %vm689 = vmor %vm687, %vm688
        %v690 = vsel %vm689, %v682, %v686
        %v691 = vand.u32 2147483647, %v475
        %vm692 = vcmp.eq.f32.partialorder %v691, 8.507059e+37
        %v693 = vand.u32 %v475, 2147483648
        %v694 = vor.u32 1.1754944e-38, %v693
        %v695 = vsel %vm692, %v694, %v690
        %v696 = vmul.f32 1.0, %v695
        %v697 = vrcp.pop %v476
        %v698 = vmul.f32 %v476, %v697
        %v699 = vsub.f32 1.0, %v698
        %v700 = vmul.f32 %v697, %v699
        %v701 = vadd.f32 %v697, %v700
        %vm702 = vweird.f32 %v476
        %vm703 = vweird.f32 %v697
        %vm704 = vmor %vm702, %vm703
        %v705 = vsel %vm704, %v697, %v701
        %v706 = vand.u32 2147483647, %v476
        %vm707 = vcmp.eq.f32.partialorder %v706, 8.507059e+37
        %v708 = vand.u32 %v476, 2147483648
        %v709 = vor.u32 1.1754944e-38, %v708
        %v710 = vsel %vm707, %v709, %v705
        %v711 = vmul.f32 1.0, %v710
        %v712 = vrcp.pop %v477
        %v713 = vmul.f32 %v477, %v712
        %v714 = vsub.f32 1.0, %v713
        %v715 = vmul.f32 %v712, %v714
        %v716 = vadd.f32 %v712, %v715
        %vm717 = vweird.f32 %v477
        %vm718 = vweird.f32 %v712
        %vm719 = vmor %vm717, %vm718
        %v720 = vsel %vm719, %v712, %v716
        %v721 = vand.u32 2147483647, %v477
        %vm722 = vcmp.eq.f32.partialorder %v721, 8.507059e+37
        %v723 = vand.u32 %v477, 2147483648
        %v724 = vor.u32 1.1754944e-38, %v723
        %v725 = vsel %vm722, %v724, %v720
        %v726 = vmul.f32 1.0, %v725
        %v727 = vrcp.pop %v478
        %v728 = vmul.f32 %v478, %v727
        %v729 = vsub.f32 1.0, %v728
        %v730 = vmul.f32 %v727, %v729
        %v731 = vadd.f32 %v727, %v730
        %vm732 = vweird.f32 %v478
        %vm733 = vweird.f32 %v727
        %vm734 = vmor %vm732, %vm733
        %v735 = vsel %vm734, %v727, %v731
        %v736 = vand.u32 2147483647, %v478
        %vm737 = vcmp.eq.f32.partialorder %v736, 8.507059e+37
        %v738 = vand.u32 %v478, 2147483648
        %v739 = vor.u32 1.1754944e-38, %v738
        %v740 = vsel %vm737, %v739, %v735
        %v741 = vmul.f32 1.0, %v740
        %v742 = vrcp.pop %v479
        %v743 = vmul.f32 %v479, %v742
        %v744 = vsub.f32 1.0, %v743
        %v745 = vmul.f32 %v742, %v744
        %v746 = vadd.f32 %v742, %v745
        %vm747 = vweird.f32 %v479
        %vm748 = vweird.f32 %v742
        %vm749 = vmor %vm747, %vm748
        %v750 = vsel %vm749, %v742, %v746
        %v751 = vand.u32 2147483647, %v479
        %vm752 = vcmp.eq.f32.partialorder %v751, 8.507059e+37
        %v753 = vand.u32 %v479, 2147483648
        %v754 = vor.u32 1.1754944e-38, %v753
        %v755 = vsel %vm752, %v754, %v750
        %v756 = vmul.f32 1.0, %v755
        %v757 = vrcp.pop %v480
        %v758 = vmul.f32 %v480, %v757
        %v759 = vsub.f32 1.0, %v758
        %v760 = vmul.f32 %v757, %v759
        %v761 = vadd.f32 %v757, %v760
        %vm762 = vweird.f32 %v480
        %vm763 = vweird.f32 %v757
        %vm764 = vmor %vm762, %vm763
        %v765 = vsel %vm764, %v757, %v761
        %v766 = vand.u32 2147483647, %v480
        %vm767 = vcmp.eq.f32.partialorder %v766, 8.507059e+37
        %v768 = vand.u32 %v480, 2147483648
        %v769 = vor.u32 1.1754944e-38, %v768
        %v770 = vsel %vm767, %v769, %v765
        %v771 = vmul.f32 1.0, %v770
        %v772 = vrcp.pop %v481
        %v773 = vmul.f32 %v481, %v772
        %v774 = vsub.f32 1.0, %v773
        %v775 = vmul.f32 %v772, %v774
        %v776 = vadd.f32 %v772, %v775
        %vm777 = vweird.f32 %v481
        %vm778 = vweird.f32 %v772
        %vm779 = vmor %vm777, %vm778
        %v780 = vsel %vm779, %v772, %v776
        %v781 = vand.u32 2147483647, %v481
        %vm782 = vcmp.eq.f32.partialorder %v781, 8.507059e+37
        %v783 = vand.u32 %v481, 2147483648
        %v784 = vor.u32 1.1754944e-38, %v783
        %v785 = vsel %vm782, %v784, %v780
        %v786 = vmul.f32 1.0, %v785
        %v787 = vrcp.pop %v482
        %v788 = vmul.f32 %v482, %v787
        %v789 = vsub.f32 1.0, %v788
        %v790 = vmul.f32 %v787, %v789
        %v791 = vadd.f32 %v787, %v790
        %vm792 = vweird.f32 %v482
        %vm793 = vweird.f32 %v787
        %vm794 = vmor %vm792, %vm793
        %v795 = vsel %vm794, %v787, %v791
        %v796 = vand.u32 2147483647, %v482
        %vm797 = vcmp.eq.f32.partialorder %v796, 8.507059e+37
        %v798 = vand.u32 %v482, 2147483648
        %v799 = vor.u32 1.1754944e-38, %v798
        %v800 = vsel %vm797, %v799, %v795
        %v801 = vmul.f32 1.0, %v800
        %v802 = vrcp.pop %v483
        %v803 = vmul.f32 %v483, %v802
        %v804 = vsub.f32 1.0, %v803
        %v805 = vmul.f32 %v802, %v804
        %v806 = vadd.f32 %v802, %v805
        %vm807 = vweird.f32 %v483
        %vm808 = vweird.f32 %v802
        %vm809 = vmor %vm807, %vm808
        %v810 = vsel %vm809, %v802, %v806
        %v811 = vand.u32 2147483647, %v483
        %vm812 = vcmp.eq.f32.partialorder %v811, 8.507059e+37
        %v813 = vand.u32 %v483, 2147483648
        %v814 = vor.u32 1.1754944e-38, %v813
        %v815 = vsel %vm812, %v814, %v810
        %v816 = vmul.f32 1.0, %v815
        %v817 = vrcp.pop %v484
        %v818 = vmul.f32 %v484, %v817
        %v819 = vsub.f32 1.0, %v818
        %v820 = vmul.f32 %v817, %v819
        %v821 = vadd.f32 %v817, %v820
        %vm822 = vweird.f32 %v484
        %vm823 = vweird.f32 %v817
        %vm824 = vmor %vm822, %vm823
        %v825 = vsel %vm824, %v817, %v821
        %v826 = vand.u32 2147483647, %v484
        %vm827 = vcmp.eq.f32.partialorder %v826, 8.507059e+37
        %v828 = vand.u32 %v484, 2147483648
        %v829 = vor.u32 1.1754944e-38, %v828
        %v830 = vsel %vm827, %v829, %v825
        %v831 = vmul.f32 1.0, %v830
        %v832 = vrcp.pop %v485
        %v833 = vmul.f32 %v485, %v832
        %v834 = vsub.f32 1.0, %v833
        %v835 = vmul.f32 %v832, %v834
        %v836 = vadd.f32 %v832, %v835
        %vm837 = vweird.f32 %v485
        %vm838 = vweird.f32 %v832
        %vm839 = vmor %vm837, %vm838
        %v840 = vsel %vm839, %v832, %v836
        %v841 = vand.u32 2147483647, %v485
        %vm842 = vcmp.eq.f32.partialorder %v841, 8.507059e+37
        %v843 = vand.u32 %v485, 2147483648
        %v844 = vor.u32 1.1754944e-38, %v843
        %v845 = vsel %vm842, %v844, %v840
        %v846 = vmul.f32 1.0, %v845
        %v847 = vrcp.pop %v486
        %v848 = vmul.f32 %v486, %v847
        %v849 = vsub.f32 1.0, %v848
        %v850 = vmul.f32 %v847, %v849
        %v851 = vadd.f32 %v847, %v850
        %vm852 = vweird.f32 %v486
        %vm853 = vweird.f32 %v847
        %vm854 = vmor %vm852, %vm853
        %v855 = vsel %vm854, %v847, %v851
        %v856 = vand.u32 2147483647, %v486
        %vm857 = vcmp.eq.f32.partialorder %v856, 8.507059e+37
        %v858 = vand.u32 %v486, 2147483648
        %v859 = vor.u32 1.1754944e-38, %v858
        %v860 = vsel %vm857, %v859, %v855
        %v861 = vmul.f32 1.0, %v860
        %vm862 = vcmask 48128
        %863 = vst.msk [vmem:[%s185] sm:$0xff] %vm862, %v501
        %864 = vst.msk [vmem:[%s185 + $0x8] sm:$0xff] %vm862, %v516
        %865 = vst.msk [vmem:[%s185 + $0x10] sm:$0xff] %vm862, %v531
        %866 = vst.msk [vmem:[%s185 + $0x18] sm:$0xff] %vm862, %v546
        %867 = vst.msk [vmem:[%s185 + $0x20] sm:$0xff] %vm862, %v561
        %868 = vst.msk [vmem:[%s185 + $0x28] sm:$0xff] %vm862, %v576
        %869 = vst.msk [vmem:[%s185 + $0x30] sm:$0xff] %vm862, %v591
        %870 = vst.msk [vmem:[%s185 + $0x38] sm:$0xff] %vm862, %v606
        %871 = vst.msk [vmem:[%s185 + $0x40] sm:$0xff] %vm862, %v621
        %872 = vst.msk [vmem:[%s185 + $0x48] sm:$0xff] %vm862, %v636
        %873 = vst.msk [vmem:[%s185 + $0x50] sm:$0xff] %vm862, %v651
        %874 = vst.msk [vmem:[%s185 + $0x58] sm:$0xff] %vm862, %v666
        %875 = vst.msk [vmem:[%s185 + $0x60] sm:$0xff] %vm862, %v681
        %876 = vst.msk [vmem:[%s185 + $0x68] sm:$0xff] %vm862, %v696
        %877 = vst.msk [vmem:[%s185 + $0x70] sm:$0xff] %vm862, %v711
        %878 = vst.msk [vmem:[%s185 + $0x78] sm:$0xff] %vm862, %v726
        %879 = vst.msk [vmem:[%s185 + $0x80] sm:$0xff] %vm862, %v741
        %880 = vst.msk [vmem:[%s185 + $0x88] sm:$0xff] %vm862, %v756
        %881 = vst.msk [vmem:[%s185 + $0x90] sm:$0xff] %vm862, %v771
        %882 = vst.msk [vmem:[%s185 + $0x98] sm:$0xff] %vm862, %v786
        %883 = vst.msk [vmem:[%s185 + $0xa0] sm:$0xff] %vm862, %v801
        %884 = vst.msk [vmem:[%s185 + $0xa8] sm:$0xff] %vm862, %v816
        %885 = vst.msk [vmem:[%s185 + $0xb0] sm:$0xff] %vm862, %v831
        %886 = vst.msk [vmem:[%s185 + $0xb8] sm:$0xff] %vm862, %v846
        %887 = vst.msk [vmem:[%s185 + $0xc0] sm:$0xff] %vm862, %v861
        %p888 = scmp.lt.s32.totalorder %s15, 1
        %s889 = scalar_select %p888, %s15, 1
        %s890 = smul.addr %s889, 25
        %s891 = smul.addr %s890, 8
        %s892 = scalar_lea.vmem %s3, %s891
        // Predicated region
        $region37: #{detr3d_cross_attn.4} parent=31 // pred_check
          %p893 = pneg %p101
        $region38: #{detr3d_cross_attn.4} parent=31 // pred_check_branch
          %895 = sbr.rel (%p893) target = $region40
        $region39: #{detr3d_cross_attn.4} parent=31 // pred_region
          _
        $region40: #{detr3d_cross_attn.4} parent=31 // pred_fallthru
          _
      $region32: #{detr3d_cross_attn.4} parent=5 // pred_fallthru
        _
      %p896 = scmp.le.s32.totalorder 2, %s10
      // Predicated region
      $region41: #{detr3d_cross_attn.4} parent=5 // pred_check
        %p897 = pneg %p896
      $region42: #{detr3d_cross_attn.4} parent=5 // pred_check_branch
        %899 = sbr.rel (%p897) target = $region44
      $region43: #{detr3d_cross_attn.4} parent=5 // pred_region
        %s900 = ssub.s32 %s10, 2
        // Predicated region
        $region45: #{detr3d_cross_attn.4} parent=43 // pred_check
          %p901 = pneg %p107
        $region46: #{detr3d_cross_attn.4} parent=43 // pred_check_branch
          %903 = sbr.rel (%p901) target = $region48
        $region47: #{detr3d_cross_attn.4} parent=43 // pred_region
          %p904 = scmp.lt.s32.totalorder %s16, 1
          %s905 = scalar_select %p904, %s16, 1
          %s906 = smul.addr %s905, 25
          %s907 = smul.addr %s906, 8
          %s908 = scalar_lea.vmem %s3, %s907
        $region48: #{detr3d_cross_attn.4} parent=43 // pred_fallthru
          _
      $region44: #{detr3d_cross_attn.4} parent=5 // pred_fallthru
        _
    $region6: #{detr3d_cross_attn.4} parent=1 // loop_footer
      %s14 = sadd.s32 1, %s10
    $region7: #{detr3d_cross_attn.4} parent=1 // loop_footer_branch
      %9 = sbr.rel target = $region3
    $region8: #{detr3d_cross_attn.4} parent=1 // loop_exit
      _
    %909 = vsyncpa [#allocation3], 1
    %s910 = scalar_lea.sflag [#allocation3], 1
    %911 = vsyncpa %s910, 1

// kernel: detr3d_cross_attn.5
$region0: #{detr3d_cross_attn.5}
  #allocation0 [shape = 'u32[]', space=smem, size = 0x4, offset = 0x4, fixed_abs, tag = 'smem constant byte address 0x4 - core index']
  #allocation1 [shape = 'u32[72,128]{1,0:T(1,128)}', space=vmem, size = 0x9000, scoped, tag = 'internal scratch']
  #allocation2 [shape = 'f32[2,32,128]{2,1,0:T(8,128)}', space=vmem, size = 0x8000, scoped, tag = 'scratch operand']
  #allocation3 [shape = 's32[1]{0}', space=sflag, size = 0x4, scoped, tag = 'scoped memory for detr3d_cross_attn.5']
  #allocation4 [shape = 'u8[512]{0}', space=smem, size = 0x200, scoped, tag = 'prefetched SMEM operand 0']
  #allocation5 [shape = 'u8[512]{0}', space=smem, size = 0x200, scoped, tag = 'prefetched SMEM operand 1']
  %s0 = inlined_call_operand.vmem [shape: f32[72], index: 0, kind: input, shape index: {}]
  %s1 = inlined_call_operand.vmem [shape: s32[24], index: 1, kind: input, shape index: {}]
  %s2 = inlined_call_operand.vmem [shape: f32[2,3,1,256], index: 2, kind: input, shape index: {}]
  %s3 = inlined_call_operand.vmem [shape: f32[2,3,256], index: 3, kind: input, shape index: {}]
  %s4 = inlined_call_operand.vmem [shape: bf16[2,3,32,1024], index: 4, kind: input, shape index: {}]
  %s5 = inlined_call_operand.vmem [shape: f32[2,32,256], index: 5, kind: output, shape index: {}]
  %s6 = sld [smem:[#allocation0]]
  $region80: #{detr3d_cross_attn.5} parent=0
    _
  %s8 = ssub.s32 1, %s6
  %s9 = scalar_select 0, %s8, %s6
  %s11 = sshll.u32 %s0, 4
  %s12 = int_to_ptr.vmem [resolvable:$true] %s11
  %14 = dma.vmem_to_smem %s12, 16, [#allocation4], [#allocation3]
  %s16 = sshll.u32 %s1, 4
  %s17 = int_to_ptr.vmem [resolvable:$true] %s16
  %19 = dma.vmem_to_smem %s17, 16, [#allocation5], [#allocation3]
  %21 = dma.done [#allocation3], 32
  %22 = sfence
  $region1: #{detr3d_cross_attn.5} parent=0
    #allocation6 [shape = 'u8[65536]{0}', space=vmem, size = 0x10000, scoped, tag = 'input window, operand 4']
    loop: start=0, step=1, limit=26
    $region2: #{detr3d_cross_attn.5} parent=1 // loop_pre_header
      _
    $region3: #{detr3d_cross_attn.5} parent=1 // loop_header
      %s24 = sphi 0, %s28
      %p25 = scmp.ge.s32.totalorder %s24, 26
      %s31 = sphi 0, %s57
      %s32 = sphi 0, %s53
      %s33 = sphi 0, %s49
      %s34 = sphi 0, %s45
      %s35 = sphi 0, %s31
      %s36 = sphi 0, %s32
      %s37 = sphi 0, %s33
      %s38 = sphi 0, %s34
      %s39 = sphi 0, %s35
      %s40 = sphi 0, %s36
      %s41 = sphi 0, %s37
      %s42 = sphi 0, %s38
      %s64 = sphi 0, %s66
      %s67 = sphi 0, %s64
      %s68 = sphi 0, %s67
      %s84 = sphi 0, %s68
      %s92 = sphi 0, %s94
      %s95 = sphi 0, %s92
      %s96 = sphi 0, %s95
      %s112 = sphi 0, %s96
      %s122 = sphi 0, %s124
      %s125 = sphi 0, %s122
      %s126 = sphi 0, %s125
      %s142 = sphi 0, %s126
      %s148 = sphi 0, %s150
      %s151 = sphi 0, %s148
      %s152 = sphi 0, %s151
      %s168 = sphi 0, %s152
    $region4: #{detr3d_cross_attn.5} parent=1 // loop_header_branch
      %27 = sbr.rel (%p25) target = $region8
    $region5: #{detr3d_cross_attn.5} parent=1 // loop_body
      %s29 = ssub.s32 %s24, 1
      %s30 = ssub.s32 %s24, 2
      %s43 = sadd.s32 1, %s34
      %p44 = scmp.ge.s32.totalorder %s43, 2
      %s45 = scalar_select %p44, 0, %s43
      %s46 = sadd.s32 1, %s33
      %s47 = scalar_select %p44, %s46, %s33
      %p48 = scmp.ge.s32.totalorder %s47, 2
      %s49 = scalar_select %p48, 0, %s47
      %s50 = sadd.s32 1, %s32
      %s51 = scalar_select %p48, %s50, %s32
      %p52 = scmp.ge.s32.totalorder %s51, 3
      %s53 = scalar_select %p52, 0, %s51
      %s54 = sadd.s32 1, %s31
      %s55 = scalar_select %p52, %s54, %s31
      %p56 = scmp.ge.s32.totalorder %s55, 2
      %s57 = scalar_select %p56, 0, %s55
      %s58 = ssub.s32 %s31, %s57
      %s59 = ssub.s32 %s32, %s53
      %s60 = sor.u32 %s58, %s59
      %s61 = ssub.s32 %s34, %s45
      %s62 = sor.u32 %s60, %s61
      %p63 = scmp.eq.s32.totalorder %s62, 0
      %s65 = sadd.s32 %s64, 1
      %s66 = scalar_select %p63, %s64, %s65
      %p69 = pneg %p63
      %p70 = scmp.eq.s32.totalorder %s24, 23
      %p71 = por %p69, %p70
      %p72 = scmp.ne.s32.totalorder %s64, %s67
      %p73 = scmp.eq.s32.totalorder %s24, 0
      %p74 = por %p72, %p73
      %p75 = scmp.ne.s32.totalorder %s64, %s67
      %p76 = scmp.eq.s32.totalorder %s29, 23
      %p77 = por %p75, %p76
      %p78 = scmp.ne.s32.totalorder %s67, %s68
      %p79 = scmp.eq.s32.totalorder %s29, 0
      %p80 = por %p78, %p79
      %p81 = scmp.ne.s32.totalorder %s67, %s68
      %p82 = scmp.eq.s32.totalorder %s30, 23
      %p83 = por %p81, %p82
      %p85 = scmp.ne.s32.totalorder %s68, %s84
      %p86 = scmp.eq.s32.totalorder %s30, 0
      %p87 = por %p85, %p86
      %s88 = ssub.s32 %s31, %s57
      %s89 = ssub.s32 %s34, %s45
      %s90 = sor.u32 %s88, %s89
      %p91 = scmp.eq.s32.totalorder %s90, 0
      %s93 = sadd.s32 %s92, 1
      %s94 = scalar_select %p91, %s92, %s93
      %p97 = pneg %p91
      %p98 = scmp.eq.s32.totalorder %s24, 23
      %p99 = por %p97, %p98
      %p100 = scmp.ne.s32.totalorder %s92, %s95
      %p101 = scmp.eq.s32.totalorder %s24, 0
      %p102 = por %p100, %p101
      %p103 = scmp.ne.s32.totalorder %s92, %s95
      %p104 = scmp.eq.s32.totalorder %s29, 23
      %p105 = por %p103, %p104
      %p106 = scmp.ne.s32.totalorder %s95, %s96
      %p107 = scmp.eq.s32.totalorder %s29, 0
      %p108 = por %p106, %p107
      %p109 = scmp.ne.s32.totalorder %s95, %s96
      %p110 = scmp.eq.s32.totalorder %s30, 23
      %p111 = por %p109, %p110
      %p113 = scmp.ne.s32.totalorder %s96, %s112
      %p114 = scmp.eq.s32.totalorder %s30, 0
      %p115 = por %p113, %p114
      %s116 = ssub.s32 %s31, %s57
      %s117 = ssub.s32 %s32, %s53
      %s118 = sor.u32 %s116, %s117
      %s119 = ssub.s32 %s33, %s49
      %s120 = sor.u32 %s118, %s119
      %p121 = scmp.eq.s32.totalorder %s120, 0
      %s123 = sadd.s32 %s122, 1
      %s124 = scalar_select %p121, %s122, %s123
      %p127 = pneg %p121
      %p128 = scmp.eq.s32.totalorder %s24, 23
      %p129 = por %p127, %p128
      %p130 = scmp.ne.s32.totalorder %s122, %s125
      %p131 = scmp.eq.s32.totalorder %s24, 0
      %p132 = por %p130, %p131
      %p133 = scmp.ne.s32.totalorder %s122, %s125
      %p134 = scmp.eq.s32.totalorder %s29, 23
      %p135 = por %p133, %p134
      %p136 = scmp.ne.s32.totalorder %s125, %s126
      %p137 = scmp.eq.s32.totalorder %s29, 0
      %p138 = por %p136, %p137
      %p139 = scmp.ne.s32.totalorder %s125, %s126
      %p140 = scmp.eq.s32.totalorder %s30, 23
      %p141 = por %p139, %p140
      %p143 = scmp.ne.s32.totalorder %s126, %s142
      %p144 = scmp.eq.s32.totalorder %s30, 0
      %p145 = por %p143, %p144
      %s146 = ssub.s32 %s31, %s57
      %p147 = scmp.eq.s32.totalorder %s146, 0
      %s149 = sadd.s32 %s148, 1
      %s150 = scalar_select %p147, %s148, %s149
      %p153 = pneg %p147
      %p154 = scmp.eq.s32.totalorder %s24, 23
      %p155 = por %p153, %p154
      %p156 = scmp.ne.s32.totalorder %s148, %s151
      %p157 = scmp.eq.s32.totalorder %s24, 0
      %p158 = por %p156, %p157
      %p159 = scmp.ne.s32.totalorder %s148, %s151
      %p160 = scmp.eq.s32.totalorder %s29, 23
      %p161 = por %p159, %p160
      %p162 = scmp.ne.s32.totalorder %s151, %s152
      %p163 = scmp.eq.s32.totalorder %s29, 0
      %p164 = por %p162, %p163
      %p165 = scmp.ne.s32.totalorder %s151, %s152
      %p166 = scmp.eq.s32.totalorder %s30, 23
      %p167 = por %p165, %p166
      %p169 = scmp.ne.s32.totalorder %s152, %s168
      %p170 = scmp.eq.s32.totalorder %s30, 0
      %p171 = por %p169, %p170
      %p172 = scmp.le.s32.totalorder 1, %s24
      %p173 = scmp.lt.s32.totalorder %s24, 25
      %p174 = pnand %p172, %p173
      %p175 = pneg %p174
      // Predicated region
      $region9: #{detr3d_cross_attn.5} parent=5 // pred_check
        _
      $region10: #{detr3d_cross_attn.5} parent=5 // pred_check_branch
        %177 = sbr.rel (%p174) target = $region12
      $region11: #{detr3d_cross_attn.5} parent=5 // pred_region
        %s178 = ssub.s32 %s24, 1
      $region12: #{detr3d_cross_attn.5} parent=5 // pred_fallthru
        _
      %p179 = scmp.lt.s32.totalorder %s24, 24
      // Predicated region
      $region13: #{detr3d_cross_attn.5} parent=5 // pred_check
        %p180 = pneg %p179
      $region14: #{detr3d_cross_attn.5} parent=5 // pred_check_branch
        %182 = sbr.rel (%p180) target = $region16
      $region15: #{detr3d_cross_attn.5} parent=5 // pred_region
        // Predicated region
        $region17: #{detr3d_cross_attn.5} parent=15 // pred_check
          %p183 = pneg %p74
        $region18: #{detr3d_cross_attn.5} parent=15 // pred_check_branch
          %185 = sbr.rel (%p183) target = $region20
        $region19: #{detr3d_cross_attn.5} parent=15 // pred_region
          %p186 = scmp.lt.s32.totalorder %s31, 1
          %s187 = scalar_select %p186, %s31, 1
          %p188 = scmp.lt.s32.totalorder %s32, 2
          %s189 = scalar_select %p188, %s32, 2
          %p190 = scmp.lt.s32.totalorder %s34, 1
          %s191 = scalar_select %p190, %s34, 1
          %s192 = smul.addr %s189, 2
          %s193 = sadd.s32 %s191, %s192
          %s194 = smul.addr %s187, 6
          %s195 = sadd.s32 %s193, %s194
          %s196 = scalar_lea.vmem %s2, %s195
        $region20: #{detr3d_cross_attn.5} parent=15 // pred_fallthru
          _
        // Predicated region
        $region21: #{detr3d_cross_attn.5} parent=15 // pred_check
          %p197 = pneg %p102
        $region22: #{detr3d_cross_attn.5} parent=15 // pred_check_branch
          %199 = sbr.rel (%p197) target = $region24
        $region23: #{detr3d_cross_attn.5} parent=15 // pred_region
          %p200 = scmp.lt.s32.totalorder %s31, 1
          %s201 = scalar_select %p200, %s31, 1
          %p202 = scmp.lt.s32.totalorder %s34, 1
          %s203 = scalar_select %p202, %s34, 1
          %s204 = smul.addr %s201, 2
          %s205 = sadd.s32 %s203, %s204
          %s206 = smul.addr %s205, 4
          %s207 = scalar_lea.vmem %s3, %s206
        $region24: #{detr3d_cross_attn.5} parent=15 // pred_fallthru
          _
        // Predicated region
        $region25: #{detr3d_cross_attn.5} parent=15 // pred_check
          %p208 = pneg %p132
        $region26: #{detr3d_cross_attn.5} parent=15 // pred_check_branch
          %210 = sbr.rel (%p208) target = $region28
        $region27: #{detr3d_cross_attn.5} parent=15 // pred_region
          %s211 = sand.u32 %s122, 1
          %s212 = sand.u32 %s122, 1
          %s213 = smul.addr %s212, 64
          %s214 = scalar_lea.vmem [#allocation6], %s213
          %s215 = smul.u32 4, %s33
          %s216 = smul.addr %s32, 32
          %s217 = sadd.s32 %s215, %s216
          %s218 = smul.addr %s31, 96
          %s219 = sadd.s32 %s217, %s218
          %s220 = smul.addr %s219, 4
          %s221 = scalar_lea.vmem %s4, %s220
          // Predicated region
          $region29: #{detr3d_cross_attn.5} parent=27 // pred_check
            _
          $region30: #{detr3d_cross_attn.5} parent=27 // pred_check_branch
            %223 = sbr.rel (0) target = $region32
          $region31: #{detr3d_cross_attn.5} parent=27 // pred_region
            // Predicated region
            $region33: #{detr3d_cross_attn.5} parent=31 // pred_check
              _
            $region34: #{detr3d_cross_attn.5} parent=31 // pred_check_branch
              %225 = sbr.rel (0) target = $region36
            $region35: #{detr3d_cross_attn.5} parent=31 // pred_region
              loop: start=0, step=1, limit=1
              $region37: #{detr3d_cross_attn.5} parent=35 // loop_pre_header
                _
              $region38: #{detr3d_cross_attn.5} parent=35 // loop_header
                %s227 = sphi 0, %s231
                %p228 = scmp.ge.s32.totalorder %s227, 1
                %s232 = sphi %s221, %s221
                %s233 = sphi %s214, %s214
              $region39: #{detr3d_cross_attn.5} parent=35 // loop_header_branch
                %230 = sbr.rel (%p228) target = $region43
              $region40: #{detr3d_cross_attn.5} parent=35 // loop_body
                %v234 = vld [vmem:[%s232] sm:$0xff]
                %235 = vst [vmem:[%s233] sm:$0xff] %v234
                %v236 = vld [vmem:[%s232 + $0x8] sm:$0xff]
                %237 = vst [vmem:[%s233 + $0x8] sm:$0xff] %v236
                %v238 = vld [vmem:[%s232 + $0x20] sm:$0xff]
                %239 = vst [vmem:[%s233 + $0x10] sm:$0xff] %v238
                %v240 = vld [vmem:[%s232 + $0x28] sm:$0xff]
                %241 = vst [vmem:[%s233 + $0x18] sm:$0xff] %v240
                %v242 = vld [vmem:[%s232 + $0x40] sm:$0xff]
                %243 = vst [vmem:[%s233 + $0x20] sm:$0xff] %v242
                %v244 = vld [vmem:[%s232 + $0x48] sm:$0xff]
                %245 = vst [vmem:[%s233 + $0x28] sm:$0xff] %v244
                %v246 = vld [vmem:[%s232 + $0x60] sm:$0xff]
                %247 = vst [vmem:[%s233 + $0x30] sm:$0xff] %v246
                %v248 = vld [vmem:[%s232 + $0x68] sm:$0xff]
                %249 = vst [vmem:[%s233 + $0x38] sm:$0xff] %v248
              $region41: #{detr3d_cross_attn.5} parent=35 // loop_footer
                %s231 = sadd.s32 1, %s227
              $region42: #{detr3d_cross_attn.5} parent=35 // loop_footer_branch
                %226 = sbr.rel target = $region38
              $region43: #{detr3d_cross_attn.5} parent=35 // loop_exit
                _
            $region36: #{detr3d_cross_attn.5} parent=31 // pred_fallthru
              _
            // Predicated region
            $region44: #{detr3d_cross_attn.5} parent=31 // pred_check
              _
            $region45: #{detr3d_cross_attn.5} parent=31 // pred_check_branch
              %251 = sbr.rel target = $region47
            $region46: #{detr3d_cross_attn.5} parent=31 // pred_region
              _
            $region47: #{detr3d_cross_attn.5} parent=31 // pred_fallthru
              _
          $region32: #{detr3d_cross_attn.5} parent=27 // pred_fallthru
            _
          %252 = vnop
        $region28: #{detr3d_cross_attn.5} parent=15 // pred_fallthru
          _
      $region16: #{detr3d_cross_attn.5} parent=5 // pred_fallthru
        _
      %p253 = scmp.le.s32.totalorder 1, %s24
      %p254 = scmp.lt.s32.totalorder %s24, 25
      %p255 = pnand %p253, %p254
      %p256 = pneg %p255
      // Predicated region
      $region48: #{detr3d_cross_attn.5} parent=5 // pred_check
        _
      $region49: #{detr3d_cross_attn.5} parent=5 // pred_check_branch
        %258 = sbr.rel (%p255) target = $region51
      $region50: #{detr3d_cross_attn.5} parent=5 // pred_region
        %s259 = ssub.s32 %s24, 1
        %s260 = sand.u32 %s125, 1
        %s261 = sand.u32 %s125, 1
        %s262 = smul.addr %s261, 64
        %s263 = scalar_lea.vmem [#allocation6], %s262
        // Predicated region
        $region52: #{detr3d_cross_attn.5} parent=50 // pred_check
          %p264 = pneg %p138
        $region53: #{detr3d_cross_attn.5} parent=50 // pred_check_branch
          %266 = sbr.rel (%p264) target = $region55
        $region54: #{detr3d_cross_attn.5} parent=50 // pred_region
          _
        $region55: #{detr3d_cross_attn.5} parent=50 // pred_fallthru
          _
        %p267 = scmp.lt.s32.totalorder %s35, 1
        %s268 = scalar_select %p267, %s35, 1
        %p269 = scmp.lt.s32.totalorder %s36, 2
        %s270 = scalar_select %p269, %s36, 2
        %p271 = scmp.lt.s32.totalorder %s38, 1
        %s272 = scalar_select %p271, %s38, 1
        %s273 = smul.addr %s270, 2
        %s274 = sadd.s32 %s272, %s273
        %s275 = smul.addr %s268, 6
        %s276 = sadd.s32 %s274, %s275
        %s277 = scalar_lea.vmem %s2, %s276
        %p278 = pneg %p80
        %p279 = pneg %p77
        %p280 = scmp.lt.s32.totalorder %s35, 1
        %s281 = scalar_select %p280, %s35, 1
        %p282 = scmp.lt.s32.totalorder %s38, 1
        %s283 = scalar_select %p282, %s38, 1
        %s284 = smul.addr %s281, 2
        %s285 = sadd.s32 %s283, %s284
        %s286 = smul.addr %s285, 4
        %s287 = scalar_lea.vmem %s3, %s286
        %p288 = pneg %p108
        %p289 = pneg %p105
        %s290 = sand.u32 %s125, 1
        %s291 = sand.u32 %s125, 1
        %s292 = smul.addr %s291, 64
        %s293 = scalar_lea.vmem [#allocation6], %s292
        %p294 = pneg %p138
        %p295 = pneg %p135
        %p296 = pneg %p164
        %p297 = pneg %p161
        %p298 = scmp.lt.s32.totalorder %s35, 1
        %s299 = scalar_select %p298, %s35, 1
        %s300 = smul.addr %s299, 8
        %s301 = smul.addr %s300, 8
        %s302 = scalar_lea.vmem %s5, %s301
        %p303 = scmp.lt.s32.totalorder %s35, 1
        %s304 = scalar_select %p303, %s35, 1
        %p305 = scmp.lt.s32.totalorder %s36, 2
        %s306 = scalar_select %p305, %s36, 2
        %p307 = scmp.lt.s32.totalorder %s38, 1
        %s308 = scalar_select %p307, %s38, 1
        %s309 = smul.addr %s306, 2
        %s310 = sadd.s32 %s308, %s309
        %s311 = smul.addr %s304, 6
        %s312 = sadd.s32 %s310, %s311
        %s313 = scalar_lea.vmem %s2, %s312
        %p314 = scmp.lt.s32.totalorder %s35, 1
        %s315 = scalar_select %p314, %s35, 1
        %p316 = scmp.lt.s32.totalorder %s38, 1
        %s317 = scalar_select %p316, %s38, 1
        %s318 = smul.addr %s315, 2
        %s319 = sadd.s32 %s317, %s318
        %s320 = smul.addr %s319, 4
        %s321 = scalar_lea.vmem %s3, %s320
        %s322 = smul.u32 4, %s37
        %p323 = scmp.lt.s32.totalorder %s35, 1
        %s324 = scalar_select %p323, %s35, 1
        %s325 = smul.addr %s324, 8
        %s326 = smul.addr %s325, 8
        %s327 = scalar_lea.vmem %s5, %s326
        %p328 = scmp.eq.s32.totalorder %s36, 0
        %p329 = scmp.eq.s32.totalorder %s37, 0
        %p330 = pnand %p328, %p329
        %p331 = pneg %p330
        %p332 = scmp.eq.s32.totalorder %s38, 0
        %p333 = pnand %p331, %p332
        %p334 = pneg %p333
        // Predicated region
        $region56: #{detr3d_cross_attn.5} parent=50 // pred_check
          _
        $region57: #{detr3d_cross_attn.5} parent=50 // pred_check_branch
          %336 = sbr.rel (%p333) target = $region59
        $region58: #{detr3d_cross_attn.5} parent=50 // pred_region
          %337 = vst [vmem:[#allocation2] sm:$0xff] 0.0
          %338 = vst [vmem:[#allocation2 + $0x8] sm:$0xff] 0.0
          %339 = vst [vmem:[#allocation2 + $0x10] sm:$0xff] 0.0
          %340 = vst [vmem:[#allocation2 + $0x18] sm:$0xff] 0.0
          %341 = vst [vmem:[#allocation2 + $0x20] sm:$0xff] 0.0
          %342 = vst [vmem:[#allocation2 + $0x28] sm:$0xff] 0.0
          %343 = vst [vmem:[#allocation2 + $0x30] sm:$0xff] 0.0
          %344 = vst [vmem:[#allocation2 + $0x38] sm:$0xff] 0.0
        $region59: #{detr3d_cross_attn.5} parent=50 // pred_fallthru
          _
        %s345 = smul.u32 %s35, 3
        %s346 = sadd.s32 %s345, %s36
        %s347 = smul.u32 %s346, 2
        %s348 = sadd.s32 %s347, %s37
        %s349 = smul.u32 %s348, 2
        %s350 = sadd.s32 %s349, %s38
        %s351 = sld [smem:[#allocation5 + %s350]]
        %p352 = scmp.ne.s32.totalorder %s351, 0
        // Predicated region
        $region60: #{detr3d_cross_attn.5} parent=50 // pred_check
          %p353 = pneg %p352
        $region61: #{detr3d_cross_attn.5} parent=50 // pred_check_branch
          %355 = sbr.rel (%p353) target = $region63
        $region62: #{detr3d_cross_attn.5} parent=50 // pred_region
          %v356 = vld [vmem:[%s321] sm:$0x1]
          %v357 = vld [vmem:[%s321 + $0x1] sm:$0x1]
          %v358 = vld [vmem:[%s321 + $0x2] sm:$0x1]
          %s359 = smul.u32 %s346, 12
          %s360 = sld [smem:[#allocation4 + %s359]]
          %s361 = sadd.s32 %s359, 1
          %s362 = sld [smem:[#allocation4 + %s361]]
          %s363 = sadd.s32 %s359, 2
          %s364 = sld [smem:[#allocation4 + %s363]]
          %s365 = sadd.s32 %s359, 3
          %s366 = sld [smem:[#allocation4 + %s365]]
          %s367 = sadd.s32 %s359, 4
          %s368 = sld [smem:[#allocation4 + %s367]]
          %s369 = sadd.s32 %s359, 5
          %s370 = sld [smem:[#allocation4 + %s369]]
          %s371 = sadd.s32 %s359, 6
          %s372 = sld [smem:[#allocation4 + %s371]]
          %s373 = sadd.s32 %s359, 7
          %s374 = sld [smem:[#allocation4 + %s373]]
          %s375 = sadd.s32 %s359, 8
          %s376 = sld [smem:[#allocation4 + %s375]]
          %s377 = sadd.s32 %s359, 9
          %s378 = sld [smem:[#allocation4 + %s377]]
          %s379 = sadd.s32 %s359, 10
          %s380 = sld [smem:[#allocation4 + %s379]]
          %s381 = sadd.s32 %s359, 11
          %s382 = sld [smem:[#allocation4 + %s381]]
          %v383 = vstv %s360
          %v384 = vmul.f32 %v356, %v383
          %v385 = vstv %s362
          %v386 = vmul.f32 %v357, %v385
          %v387 = vadd.f32 %v384, %v386
          %v388 = vstv %s364
          %v389 = vmul.f32 %v358, %v388
          %v390 = vadd.f32 %v387, %v389
          %v391 = vstv %s366
          %v392 = vadd.f32 %v390, %v391
          %v393 = vstv %s368
          %v394 = vmul.f32 %v356, %v393
          %v395 = vstv %s370
          %v396 = vmul.f32 %v357, %v395
          %v397 = vadd.f32 %v394, %v396
          %v398 = vstv %s372
          %v399 = vmul.f32 %v358, %v398
          %v400 = vadd.f32 %v397, %v399
          %v401 = vstv %s374
          %v402 = vadd.f32 %v400, %v401
          %v403 = vstv %s376
          %v404 = vmul.f32 %v356, %v403
          %v405 = vstv %s378
          %v406 = vmul.f32 %v357, %v405
          %v407 = vadd.f32 %v404, %v406
          %v408 = vstv %s380
          %v409 = vmul.f32 %v358, %v408
          %v410 = vadd.f32 %v407, %v409
          %v411 = vstv %s382
          %v412 = vadd.f32 %v410, %v411
          %vm413 = vcmp.ge.f32.partialorder %v412, 1e-05
          %v414 = vmax.f32 %v412, 1e-05
          %v415 = vrcp.pop %v414
          %v416 = vmul.f32 %v392, %v415
          %v417 = vmul.f32 %v402, %v415
          %vm418 = vcmp.gt.f32.partialorder %v416, 0.0
          %vm419 = vmand %vm413, %vm418
          %vm420 = vcmp.lt.f32.partialorder %v416, 1.0
          %vm421 = vmand %vm419, %vm420
          %vm422 = vcmp.gt.f32.partialorder %v417, 0.0
          %vm423 = vmand %vm421, %vm422
          %vm424 = vcmp.lt.f32.partialorder %v417, 1.0
          %vm425 = vmand %vm423, %vm424
          %v426 = vmul.f32 %v416, 32.0
          %v427 = vsub.f32 %v426, 0.5
          %v428 = vmax.f32 %v427, -2.0
          %v429 = vmin.f32 %v428, 34.0
          %v430 = vmul.f32 %v417, 32.0
          %v431 = vsub.f32 %v430, 0.5
          %v432 = vmax.f32 %v431, -2.0
          %v433 = vmin.f32 %v432, 34.0
          %v434 = vfloor.f32 %v429
          %v435 = vfloor.f32 %v433
          %v436 = vsub.f32 %v429, %v434
          %v437 = vsub.f32 %v433, %v435
          %v438 = vcvt.f32.s32.to.zero.pseudo %v434
          %v439 = vcvt.f32.s32.to.zero.pseudo %v435
          %v440 = vsel %vm425, 1, 0
          %v441 = vcvt.s32.f32 %v440
          %v442 = vld [vmem:[%s313] sm:$0x1]
          %v443 = vmul.f32 %v441, %v442
          %vm444 = vcmp.ge.s32.totalorder %v438, 0
          %vm445 = vcmp.lt.s32.totalorder %v438, 32
          %vm446 = vmand %vm444, %vm445
          %vm447 = vcmp.ge.s32.totalorder %v438, 4294967295
          %vm448 = vcmp.lt.s32.totalorder %v438, 31
          %vm449 = vmand %vm447, %vm448
          %vm450 = vcmp.ge.s32.totalorder %v439, 0
          %vm451 = vcmp.lt.s32.totalorder %v439, 32
          %vm452 = vmand %vm450, %vm451
          %vm453 = vcmp.ge.s32.totalorder %v439, 4294967295
          %vm454 = vcmp.lt.s32.totalorder %v439, 31
          %vm455 = vmand %vm453, %vm454
          %vm456 = vmand %vm452, %vm446
          %v457 = vsub.f32 1.0, %v437
          %v458 = vsub.f32 1.0, %v436
          %v459 = vmul.f32 %v457, %v458
          %v460 = vsel %vm456, %v459, 0.0
          %v461 = vmul.f32 %v460, %v443
          %vm462 = vmand %vm452, %vm449
          %v463 = vmul.f32 %v457, %v436
          %v464 = vsel %vm462, %v463, 0.0
          %v465 = vmul.f32 %v464, %v443
          %vm466 = vmand %vm455, %vm446
          %v467 = vmul.f32 %v437, %v458
          %v468 = vsel %vm466, %v467, 0.0
          %v469 = vmul.f32 %v468, %v443
          %vm470 = vmand %vm455, %vm449
          %v471 = vmul.f32 %v437, %v436
          %v472 = vsel %vm470, %v471, 0.0
          %v473 = vmul.f32 %v472, %v443
          %v474 = vmul.u32 %v439, 32
          %v475 = vadd.s32 %v474, %v438
          %s476 = smul.u32 %s37, 512
          %v477 = vstv %s476
          %v478 = vsub.s32 %v475, %v477
          %v479 = vlaneseq
          %v480 = vshrl.u32 %v479, 7
          %v481 = vadd.s32 %v480, 8
          %v482 = vadd.s32 %v480, 16
          %v483 = vadd.s32 %v480, 24
          %v484 = vadd.s32 %v480, 32
          %v485 = vadd.s32 %v480, 40
          %v486 = vadd.s32 %v480, 48
          %v487 = vadd.s32 %v480, 56
          %v488 = vadd.s32 %v480, 64
          %v489 = vadd.s32 %v480, 72
          %v490 = vadd.s32 %v480, 80
          %v491 = vadd.s32 %v480, 88
          %v492 = vadd.s32 %v480, 96
          %v493 = vadd.s32 %v480, 104
          %v494 = vadd.s32 %v480, 112
          %v495 = vadd.s32 %v480, 120
          %v496 = vadd.s32 %v480, 128
          %v497 = vadd.s32 %v480, 136
          %v498 = vadd.s32 %v480, 144
          %v499 = vadd.s32 %v480, 152
          %v500 = vadd.s32 %v480, 160
          %v501 = vadd.s32 %v480, 168
          %v502 = vadd.s32 %v480, 176
          %v503 = vadd.s32 %v480, 184
          %v504 = vadd.s32 %v480, 192
          %v505 = vadd.s32 %v480, 200
          %v506 = vadd.s32 %v480, 208
          %v507 = vadd.s32 %v480, 216
          %v508 = vadd.s32 %v480, 224
          %v509 = vadd.s32 %v480, 232
          %v510 = vadd.s32 %v480, 240
          %v511 = vadd.s32 %v480, 248
          %v512 = vadd.s32 %v480, 256
          %v513 = vadd.s32 %v480, 264
          %v514 = vadd.s32 %v480, 272
          %v515 = vadd.s32 %v480, 280
          %v516 = vadd.s32 %v480, 288
          %v517 = vadd.s32 %v480, 296
          %v518 = vadd.s32 %v480, 304
          %v519 = vadd.s32 %v480, 312
          %v520 = vadd.s32 %v480, 320
          %v521 = vadd.s32 %v480, 328
          %v522 = vadd.s32 %v480, 336
          %v523 = vadd.s32 %v480, 344
          %v524 = vadd.s32 %v480, 352
          %v525 = vadd.s32 %v480, 360
          %v526 = vadd.s32 %v480, 368
          %v527 = vadd.s32 %v480, 376
          %v528 = vadd.s32 %v480, 384
          %v529 = vadd.s32 %v480, 392
          %v530 = vadd.s32 %v480, 400
          %v531 = vadd.s32 %v480, 408
          %v532 = vadd.s32 %v480, 416
          %v533 = vadd.s32 %v480, 424
          %v534 = vadd.s32 %v480, 432
          %v535 = vadd.s32 %v480, 440
          %v536 = vadd.s32 %v480, 448
          %v537 = vadd.s32 %v480, 456
          %v538 = vadd.s32 %v480, 464
          %v539 = vadd.s32 %v480, 472
          %v540 = vadd.s32 %v480, 480
          %v541 = vadd.s32 %v480, 488
          %v542 = vadd.s32 %v480, 496
          %v543 = vadd.s32 %v480, 504
          %v544 = vperm.slane %v478, 0
          %v545 = vsub.s32 %v480, %v544
          %v546 = vsub.s32 %v481, %v544
          %v547 = vsub.s32 %v482, %v544
          %v548 = vsub.s32 %v483, %v544
          %v549 = vsub.s32 %v484, %v544
          %v550 = vsub.s32 %v485, %v544
          %v551 = vsub.s32 %v486, %v544
          %v552 = vsub.s32 %v487, %v544
          %v553 = vsub.s32 %v488, %v544
          %v554 = vsub.s32 %v489, %v544
          %v555 = vsub.s32 %v490, %v544
          %v556 = vsub.s32 %v491, %v544
          %v557 = vsub.s32 %v492, %v544
          %v558 = vsub.s32 %v493, %v544
          %v559 = vsub.s32 %v494, %v544
          %v560 = vsub.s32 %v495, %v544
          %v561 = vsub.s32 %v496, %v544
          %v562 = vsub.s32 %v497, %v544
          %v563 = vsub.s32 %v498, %v544
          %v564 = vsub.s32 %v499, %v544
          %v565 = vsub.s32 %v500, %v544
          %v566 = vsub.s32 %v501, %v544
          %v567 = vsub.s32 %v502, %v544
          %v568 = vsub.s32 %v503, %v544
          %v569 = vsub.s32 %v504, %v544
          %v570 = vsub.s32 %v505, %v544
          %v571 = vsub.s32 %v506, %v544
          %v572 = vsub.s32 %v507, %v544
          %v573 = vsub.s32 %v508, %v544
          %v574 = vsub.s32 %v509, %v544
          %v575 = vsub.s32 %v510, %v544
          %v576 = vsub.s32 %v511, %v544
          %v577 = vsub.s32 %v512, %v544
          %v578 = vsub.s32 %v513, %v544
          %v579 = vsub.s32 %v514, %v544
          %v580 = vsub.s32 %v515, %v544
          %v581 = vsub.s32 %v516, %v544
          %v582 = vsub.s32 %v517, %v544
          %v583 = vsub.s32 %v518, %v544
          %v584 = vsub.s32 %v519, %v544
          %v585 = vsub.s32 %v520, %v544
          %v586 = vsub.s32 %v521, %v544
          %v587 = vsub.s32 %v522, %v544
          %v588 = vsub.s32 %v523, %v544
          %v589 = vsub.s32 %v524, %v544
          %v590 = vsub.s32 %v525, %v544
          %v591 = vsub.s32 %v526, %v544
          %v592 = vsub.s32 %v527, %v544
          %v593 = vsub.s32 %v528, %v544
          %v594 = vsub.s32 %v529, %v544
          %v595 = vsub.s32 %v530, %v544
          %v596 = vsub.s32 %v531, %v544
          %v597 = vsub.s32 %v532, %v544
          %v598 = vsub.s32 %v533, %v544
          %v599 = vsub.s32 %v534, %v544
          %v600 = vsub.s32 %v535, %v544
          %v601 = vsub.s32 %v536, %v544
          %v602 = vsub.s32 %v537, %v544
          %v603 = vsub.s32 %v538, %v544
          %v604 = vsub.s32 %v539, %v544
          %v605 = vsub.s32 %v540, %v544
          %v606 = vsub.s32 %v541, %v544
          %v607 = vsub.s32 %v542, %v544
          %v608 = vsub.s32 %v543, %v544
          %vm609 = vcmp.eq.s32.totalorder %v545, 0
          %vm610 = vcmp.eq.s32.totalorder %v546, 0
          %vm611 = vcmp.eq.s32.totalorder %v547, 0
          %vm612 = vcmp.eq.s32.totalorder %v548, 0
          %vm613 = vcmp.eq.s32.totalorder %v549, 0
          %vm614 = vcmp.eq.s32.totalorder %v550, 0
          %vm615 = vcmp.eq.s32.totalorder %v551, 0
          %vm616 = vcmp.eq.s32.totalorder %v552, 0
          %vm617 = vcmp.eq.s32.totalorder %v553, 0
          %vm618 = vcmp.eq.s32.totalorder %v554, 0
          %vm619 = vcmp.eq.s32.totalorder %v555, 0
          %vm620 = vcmp.eq.s32.totalorder %v556, 0
          %vm621 = vcmp.eq.s32.totalorder %v557, 0
          %vm622 = vcmp.eq.s32.totalorder %v558, 0
          %vm623 = vcmp.eq.s32.totalorder %v559, 0
          %vm624 = vcmp.eq.s32.totalorder %v560, 0
          %vm625 = vcmp.eq.s32.totalorder %v561, 0
          %vm626 = vcmp.eq.s32.totalorder %v562, 0
          %vm627 = vcmp.eq.s32.totalorder %v563, 0
          %vm628 = vcmp.eq.s32.totalorder %v564, 0
          %vm629 = vcmp.eq.s32.totalorder %v565, 0
          %vm630 = vcmp.eq.s32.totalorder %v566, 0
          %vm631 = vcmp.eq.s32.totalorder %v567, 0
          %vm632 = vcmp.eq.s32.totalorder %v568, 0
          %vm633 = vcmp.eq.s32.totalorder %v569, 0
          %vm634 = vcmp.eq.s32.totalorder %v570, 0
          %vm635 = vcmp.eq.s32.totalorder %v571, 0
          %vm636 = vcmp.eq.s32.totalorder %v572, 0
          %vm637 = vcmp.eq.s32.totalorder %v573, 0
          %vm638 = vcmp.eq.s32.totalorder %v574, 0
          %vm639 = vcmp.eq.s32.totalorder %v575, 0
          %vm640 = vcmp.eq.s32.totalorder %v576, 0
          %vm641 = vcmp.eq.s32.totalorder %v577, 0
          %vm642 = vcmp.eq.s32.totalorder %v578, 0
          %vm643 = vcmp.eq.s32.totalorder %v579, 0
          %vm644 = vcmp.eq.s32.totalorder %v580, 0
          %vm645 = vcmp.eq.s32.totalorder %v581, 0
          %vm646 = vcmp.eq.s32.totalorder %v582, 0
          %vm647 = vcmp.eq.s32.totalorder %v583, 0
          %vm648 = vcmp.eq.s32.totalorder %v584, 0
          %vm649 = vcmp.eq.s32.totalorder %v585, 0
          %vm650 = vcmp.eq.s32.totalorder %v586, 0
          %vm651 = vcmp.eq.s32.totalorder %v587, 0
          %vm652 = vcmp.eq.s32.totalorder %v588, 0
          %vm653 = vcmp.eq.s32.totalorder %v589, 0
          %vm654 = vcmp.eq.s32.totalorder %v590, 0
          %vm655 = vcmp.eq.s32.totalorder %v591, 0
          %vm656 = vcmp.eq.s32.totalorder %v592, 0
          %vm657 = vcmp.eq.s32.totalorder %v593, 0
          %vm658 = vcmp.eq.s32.totalorder %v594, 0
          %vm659 = vcmp.eq.s32.totalorder %v595, 0
          %vm660 = vcmp.eq.s32.totalorder %v596, 0
          %vm661 = vcmp.eq.s32.totalorder %v597, 0
          %vm662 = vcmp.eq.s32.totalorder %v598, 0
          %vm663 = vcmp.eq.s32.totalorder %v599, 0
          %vm664 = vcmp.eq.s32.totalorder %v600, 0
          %vm665 = vcmp.eq.s32.totalorder %v601, 0
          %vm666 = vcmp.eq.s32.totalorder %v602, 0
          %vm667 = vcmp.eq.s32.totalorder %v603, 0
          %vm668 = vcmp.eq.s32.totalorder %v604, 0
          %vm669 = vcmp.eq.s32.totalorder %v605, 0
          %vm670 = vcmp.eq.s32.totalorder %v606, 0
          %vm671 = vcmp.eq.s32.totalorder %v607, 0
          %vm672 = vcmp.eq.s32.totalorder %v608, 0
          %v673 = vperm.slane %v461, 0
          %v674 = vsel %vm609, %v673, 0.0
          %v675 = vsel %vm610, %v673, 0.0
          %v676 = vsel %vm611, %v673, 0.0
          %v677 = vsel %vm612, %v673, 0.0
          %v678 = vsel %vm613, %v673, 0.0
          %v679 = vsel %vm614, %v673, 0.0
          %v680 = vsel %vm615, %v673, 0.0
          %v681 = vsel %vm616, %v673, 0.0
          %v682 = vsel %vm617, %v673, 0.0
          %v683 = vsel %vm618, %v673, 0.0
          %v684 = vsel %vm619, %v673, 0.0
          %v685 = vsel %vm620, %v673, 0.0
          %v686 = vsel %vm621, %v673, 0.0
          %v687 = vsel %vm622, %v673, 0.0
          %v688 = vsel %vm623, %v673, 0.0
          %v689 = vsel %vm624, %v673, 0.0
          %v690 = vsel %vm625, %v673, 0.0
          %v691 = vsel %vm626, %v673, 0.0
          %v692 = vsel %vm627, %v673, 0.0
          %v693 = vsel %vm628, %v673, 0.0
          %v694 = vsel %vm629, %v673, 0.0
          %v695 = vsel %vm630, %v673, 0.0
          %v696 = vsel %vm631, %v673, 0.0
          %v697 = vsel %vm632, %v673, 0.0
          %v698 = vsel %vm633, %v673, 0.0
          %v699 = vsel %vm634, %v673, 0.0
          %v700 = vsel %vm635, %v673, 0.0
          %v701 = vsel %vm636, %v673, 0.0
          %v702 = vsel %vm637, %v673, 0.0
          %v703 = vsel %vm638, %v673, 0.0
          %v704 = vsel %vm639, %v673, 0.0
          %v705 = vsel %vm640, %v673, 0.0
          %v706 = vsel %vm641, %v673, 0.0
          %v707 = vsel %vm642, %v673, 0.0
          %v708 = vsel %vm643, %v673, 0.0
          %v709 = vsel %vm644, %v673, 0.0
          %v710 = vsel %vm645, %v673, 0.0
          %v711 = vsel %vm646, %v673, 0.0
          %v712 = vsel %vm647, %v673, 0.0
          %v713 = vsel %vm648, %v673, 0.0
          %v714 = vsel %vm649, %v673, 0.0
          %v715 = vsel %vm650, %v673, 0.0
          %v716 = vsel %vm651, %v673, 0.0
          %v717 = vsel %vm652, %v673, 0.0
          %v718 = vsel %vm653, %v673, 0.0
          %v719 = vsel %vm654, %v673, 0.0
          %v720 = vsel %vm655, %v673, 0.0
          %v721 = vsel %vm656, %v673, 0.0
          %v722 = vsel %vm657, %v673, 0.0
          %v723 = vsel %vm658, %v673, 0.0
          %v724 = vsel %vm659, %v673, 0.0
          %v725 = vsel %vm660, %v673, 0.0
          %v726 = vsel %vm661, %v673, 0.0
          %v727 = vsel %vm662, %v673, 0.0
          %v728 = vsel %vm663, %v673, 0.0
          %v729 = vsel %vm664, %v673, 0.0
          %v730 = vsel %vm665, %v673, 0.0
          %v731 = vsel %vm666, %v673, 0.0
          %v732 = vsel %vm667, %v673, 0.0
          %v733 = vsel %vm668, %v673, 0.0
          %v734 = vsel %vm669, %v673, 0.0
          %v735 = vsel %vm670, %v673, 0.0
          %v736 = vsel %vm671, %v673, 0.0
          %v737 = vsel %vm672, %v673, 0.0
          %vm738 = vcmp.eq.s32.totalorder %v545, 1
          %vm739 = vcmp.eq.s32.totalorder %v546, 1
          %vm740 = vcmp.eq.s32.totalorder %v547, 1
          %vm741 = vcmp.eq.s32.totalorder %v548, 1
          %vm742 = vcmp.eq.s32.totalorder %v549, 1
          %vm743 = vcmp.eq.s32.totalorder %v550, 1
          %vm744 = vcmp.eq.s32.totalorder %v551, 1
          %vm745 = vcmp.eq.s32.totalorder %v552, 1
          %vm746 = vcmp.eq.s32.totalorder %v553, 1
          %vm747 = vcmp.eq.s32.totalorder %v554, 1
          %vm748 = vcmp.eq.s32.totalorder %v555, 1
          %vm749 = vcmp.eq.s32.totalorder %v556, 1
          %vm750 = vcmp.eq.s32.totalorder %v557, 1
          %vm751 = vcmp.eq.s32.totalorder %v558, 1
          %vm752 = vcmp.eq.s32.totalorder %v559, 1
          %vm753 = vcmp.eq.s32.totalorder %v560, 1
          %vm754 = vcmp.eq.s32.totalorder %v561, 1
          %vm755 = vcmp.eq.s32.totalorder %v562, 1
          %vm756 = vcmp.eq.s32.totalorder %v563, 1
          %vm757 = vcmp.eq.s32.totalorder %v564, 1
          %vm758 = vcmp.eq.s32.totalorder %v565, 1
          %vm759 = vcmp.eq.s32.totalorder %v566, 1
          %vm760 = vcmp.eq.s32.totalorder %v567, 1
          %vm761 = vcmp.eq.s32.totalorder %v568, 1
          %vm762 = vcmp.eq.s32.totalorder %v569, 1
          %vm763 = vcmp.eq.s32.totalorder %v570, 1
          %vm764 = vcmp.eq.s32.totalorder %v571, 1
          %vm765 = vcmp.eq.s32.totalorder %v572, 1
          %vm766 = vcmp.eq.s32.totalorder %v573, 1
          %vm767 = vcmp.eq.s32.totalorder %v574, 1
          %vm768 = vcmp.eq.s32.totalorder %v575, 1
          %vm769 = vcmp.eq.s32.totalorder %v576, 1
          %vm770 = vcmp.eq.s32.totalorder %v577, 1
          %vm771 = vcmp.eq.s32.totalorder %v578, 1
          %vm772 = vcmp.eq.s32.totalorder %v579, 1
          %vm773 = vcmp.eq.s32.totalorder %v580, 1
          %vm774 = vcmp.eq.s32.totalorder %v581, 1
          %vm775 = vcmp.eq.s32.totalorder %v582, 1
          %vm776 = vcmp.eq.s32.totalorder %v583, 1
          %vm777 = vcmp.eq.s32.totalorder %v584, 1
          %vm778 = vcmp.eq.s32.totalorder %v585, 1
          %vm779 = vcmp.eq.s32.totalorder %v586, 1
          %vm780 = vcmp.eq.s32.totalorder %v587, 1
          %vm781 = vcmp.eq.s32.totalorder %v588, 1
          %vm782 = vcmp.eq.s32.totalorder %v589, 1
          %vm783 = vcmp.eq.s32.totalorder %v590, 1
          %vm784 = vcmp.eq.s32.totalorder %v591, 1
          %vm785 = vcmp.eq.s32.totalorder %v592, 1
          %vm786 = vcmp.eq.s32.totalorder %v593, 1
          %vm787 = vcmp.eq.s32.totalorder %v594, 1
          %vm788 = vcmp.eq.s32.totalorder %v595, 1
          %vm789 = vcmp.eq.s32.totalorder %v596, 1
          %vm790 = vcmp.eq.s32.totalorder %v597, 1
          %vm791 = vcmp.eq.s32.totalorder %v598, 1
          %vm792 = vcmp.eq.s32.totalorder %v599, 1
          %vm793 = vcmp.eq.s32.totalorder %v600, 1
          %vm794 = vcmp.eq.s32.totalorder %v601, 1
          %vm795 = vcmp.eq.s32.totalorder %v602, 1
          %vm796 = vcmp.eq.s32.totalorder %v603, 1
          %vm797 = vcmp.eq.s32.totalorder %v604, 1
          %vm798 = vcmp.eq.s32.totalorder %v605, 1
          %vm799 = vcmp.eq.s32.totalorder %v606, 1
          %vm800 = vcmp.eq.s32.totalorder %v607, 1
          %vm801 = vcmp.eq.s32.totalorder %v608, 1
          %v802 = vperm.slane %v465, 0
          %v803 = vsel %vm738, %v802, 0.0
          %v804 = vsel %vm739, %v802, 0.0
          %v805 = vsel %vm740, %v802, 0.0
          %v806 = vsel %vm741, %v802, 0.0
          %v807 = vsel %vm742, %v802, 0.0
          %v808 = vsel %vm743, %v802, 0.0
          %v809 = vsel %vm744, %v802, 0.0
          %v810 = vsel %vm745, %v802, 0.0
          %v811 = vsel %vm746, %v802, 0.0
          %v812 = vsel %vm747, %v802, 0.0
          %v813 = vsel %vm748, %v802, 0.0
          %v814 = vsel %vm749, %v802, 0.0
          %v815 = vsel %vm750, %v802, 0.0
          %v816 = vsel %vm751, %v802, 0.0
          %v817 = vsel %vm752, %v802, 0.0
          %v818 = vsel %vm753, %v802, 0.0
          %v819 = vsel %vm754, %v802, 0.0
          %v820 = vsel %vm755, %v802, 0.0
          %v821 = vsel %vm756, %v802, 0.0
          %v822 = vsel %vm757, %v802, 0.0
          %v823 = vsel %vm758, %v802, 0.0
          %v824 = vsel %vm759, %v802, 0.0
          %v825 = vsel %vm760, %v802, 0.0
          %v826 = vsel %vm761, %v802, 0.0
          %v827 = vsel %vm762, %v802, 0.0
          %v828 = vsel %vm763, %v802, 0.0
          %v829 = vsel %vm764, %v802, 0.0
          %v830 = vsel %vm765, %v802, 0.0
          %v831 = vsel %vm766, %v802, 0.0
          %v832 = vsel %vm767, %v802, 0.0
          %v833 = vsel %vm768, %v802, 0.0
          %v834 = vsel %vm769, %v802, 0.0
          %v835 = vsel %vm770, %v802, 0.0
          %v836 = vsel %vm771, %v802, 0.0
          %v837 = vsel %vm772, %v802, 0.0
          %v838 = vsel %vm773, %v802, 0.0
          %v839 = vsel %vm774, %v802, 0.0
          %v840 = vsel %vm775, %v802, 0.0
          %v841 = vsel %vm776, %v802, 0.0
          %v842 = vsel %vm777, %v802, 0.0
          %v843 = vsel %vm778, %v802, 0.0
          %v844 = vsel %vm779, %v802, 0.0
          %v845 = vsel %vm780, %v802, 0.0
          %v846 = vsel %vm781, %v802, 0.0
          %v847 = vsel %vm782, %v802, 0.0
          %v848 = vsel %vm783, %v802, 0.0
          %v849 = vsel %vm784, %v802, 0.0
          %v850 = vsel %vm785, %v802, 0.0
          %v851 = vsel %vm786, %v802, 0.0
          %v852 = vsel %vm787, %v802, 0.0
          %v853 = vsel %vm788, %v802, 0.0
          %v854 = vsel %vm789, %v802, 0.0
          %v855 = vsel %vm790, %v802, 0.0
          %v856 = vsel %vm791, %v802, 0.0
          %v857 = vsel %vm792, %v802, 0.0
          %v858 = vsel %vm793, %v802, 0.0
          %v859 = vsel %vm794, %v802, 0.0
          %v860 = vsel %vm795, %v802, 0.0
          %v861 = vsel %vm796, %v802, 0.0
          %v862 = vsel %vm797, %v802, 0.0
          %v863 = vsel %vm798, %v802, 0.0
          %v864 = vsel %vm799, %v802, 0.0
          %v865 = vsel %vm800, %v802, 0.0
          %v866 = vsel %vm801, %v802, 0.0
          %v867 = vadd.f32 %v674, %v803
          %v868 = vadd.f32 %v675, %v804
          %v869 = vadd.f32 %v676, %v805
          %v870 = vadd.f32 %v677, %v806
          %v871 = vadd.f32 %v678, %v807
          %v872 = vadd.f32 %v679, %v808
          %v873 = vadd.f32 %v680, %v809
          %v874 = vadd.f32 %v681, %v810
          %v875 = vadd.f32 %v682, %v811
          %v876 = vadd.f32 %v683, %v812
          %v877 = vadd.f32 %v684, %v813
          %v878 = vadd.f32 %v685, %v814
          %v879 = vadd.f32 %v686, %v815
          %v880 = vadd.f32 %v687, %v816
          %v881 = vadd.f32 %v688, %v817
          %v882 = vadd.f32 %v689, %v818
          %v883 = vadd.f32 %v690, %v819
          %v884 = vadd.f32 %v691, %v820
          %v885 = vadd.f32 %v692, %v821
          %v886 = vadd.f32 %v693, %v822
          %v887 = vadd.f32 %v694, %v823
          %v888 = vadd.f32 %v695, %v824
          %v889 = vadd.f32 %v696, %v825
          %v890 = vadd.f32 %v697, %v826
          %v891 = vadd.f32 %v698, %v827
          %v892 = vadd.f32 %v699, %v828
          %v893 = vadd.f32 %v700, %v829
          %v894 = vadd.f32 %v701, %v830
          %v895 = vadd.f32 %v702, %v831
          %v896 = vadd.f32 %v703, %v832
          %v897 = vadd.f32 %v704, %v833
          %v898 = vadd.f32 %v705, %v834
          %v899 = vadd.f32 %v706, %v835
          %v900 = vadd.f32 %v707, %v836
          %v901 = vadd.f32 %v708, %v837
          %v902 = vadd.f32 %v709, %v838
          %v903 = vadd.f32 %v710, %v839
          %v904 = vadd.f32 %v711, %v840
          %v905 = vadd.f32 %v712, %v841
          %v906 = vadd.f32 %v713, %v842
          %v907 = vadd.f32 %v714, %v843
          %v908 = vadd.f32 %v715, %v844
          %v909 = vadd.f32 %v716, %v845
          %v910 = vadd.f32 %v717, %v846
          %v911 = vadd.f32 %v718, %v847
          %v912 = vadd.f32 %v719, %v848
          %v913 = vadd.f32 %v720, %v849
          %v914 = vadd.f32 %v721, %v850
          %v915 = vadd.f32 %v722, %v851
          %v916 = vadd.f32 %v723, %v852
          %v917 = vadd.f32 %v724, %v853
          %v918 = vadd.f32 %v725, %v854
          %v919 = vadd.f32 %v726, %v855
          %v920 = vadd.f32 %v727, %v856
          %v921 = vadd.f32 %v728, %v857
          %v922 = vadd.f32 %v729, %v858
          %v923 = vadd.f32 %v730, %v859
          %v924 = vadd.f32 %v731, %v860
          %v925 = vadd.f32 %v732, %v861
          %v926 = vadd.f32 %v733, %v862
          %v927 = vadd.f32 %v734, %v863
          %v928 = vadd.f32 %v735, %v864
          %v929 = vadd.f32 %v736, %v865
          %v930 = vadd.f32 %v737, %v866
          %vm931 = vcmp.eq.s32.totalorder %v545, 32
          %vm932 = vcmp.eq.s32.totalorder %v546, 32
          %vm933 = vcmp.eq.s32.totalorder %v547, 32
          %vm934 = vcmp.eq.s32.totalorder %v548, 32
          %vm935 = vcmp.eq.s32.totalorder %v549, 32
          %vm936 = vcmp.eq.s32.totalorder %v550, 32
          %vm937 = vcmp.eq.s32.totalorder %v551, 32
          %vm938 = vcmp.eq.s32.totalorder %v552, 32
          %vm939 = vcmp.eq.s32.totalorder %v553, 32
          %vm940 = vcmp.eq.s32.totalorder %v554, 32
          %vm941 = vcmp.eq.s32.totalorder %v555, 32
          %vm942 = vcmp.eq.s32.totalorder %v556, 32
          %vm943 = vcmp.eq.s32.totalorder %v557, 32
          %vm944 = vcmp.eq.s32.totalorder %v558, 32
          %vm945 = vcmp.eq.s32.totalorder %v559, 32
          %vm946 = vcmp.eq.s32.totalorder %v560, 32
          %vm947 = vcmp.eq.s32.totalorder %v561, 32
          %vm948 = vcmp.eq.s32.totalorder %v562, 32
          %vm949 = vcmp.eq.s32.totalorder %v563, 32
          %vm950 = vcmp.eq.s32.totalorder %v564, 32
          %vm951 = vcmp.eq.s32.totalorder %v565, 32
          %vm952 = vcmp.eq.s32.totalorder %v566, 32
          %vm953 = vcmp.eq.s32.totalorder %v567, 32
          %vm954 = vcmp.eq.s32.totalorder %v568, 32
          %vm955 = vcmp.eq.s32.totalorder %v569, 32
          %vm956 = vcmp.eq.s32.totalorder %v570, 32
          %vm957 = vcmp.eq.s32.totalorder %v571, 32
          %vm958 = vcmp.eq.s32.totalorder %v572, 32
          %vm959 = vcmp.eq.s32.totalorder %v573, 32
          %vm960 = vcmp.eq.s32.totalorder %v574, 32
          %vm961 = vcmp.eq.s32.totalorder %v575, 32
          %vm962 = vcmp.eq.s32.totalorder %v576, 32
          %vm963 = vcmp.eq.s32.totalorder %v577, 32
          %vm964 = vcmp.eq.s32.totalorder %v578, 32
          %vm965 = vcmp.eq.s32.totalorder %v579, 32
          %vm966 = vcmp.eq.s32.totalorder %v580, 32
          %vm967 = vcmp.eq.s32.totalorder %v581, 32
          %vm968 = vcmp.eq.s32.totalorder %v582, 32
          %vm969 = vcmp.eq.s32.totalorder %v583, 32
          %vm970 = vcmp.eq.s32.totalorder %v584, 32
          %vm971 = vcmp.eq.s32.totalorder %v585, 32
          %vm972 = vcmp.eq.s32.totalorder %v586, 32
          %vm973 = vcmp.eq.s32.totalorder %v587, 32
          %vm974 = vcmp.eq.s32.totalorder %v588, 32
          %vm975 = vcmp.eq.s32.totalorder %v589, 32
          %vm976 = vcmp.eq.s32.totalorder %v590, 32
          %vm977 = vcmp.eq.s32.totalorder %v591, 32
          %vm978 = vcmp.eq.s32.totalorder %v592, 32
          %vm979 = vcmp.eq.s32.totalorder %v593, 32
          %vm980 = vcmp.eq.s32.totalorder %v594, 32
          %vm981 = vcmp.eq.s32.totalorder %v595, 32
          %vm982 = vcmp.eq.s32.totalorder %v596, 32
          %vm983 = vcmp.eq.s32.totalorder %v597, 32
          %vm984 = vcmp.eq.s32.totalorder %v598, 32
          %vm985 = vcmp.eq.s32.totalorder %v599, 32
          %vm986 = vcmp.eq.s32.totalorder %v600, 32
          %vm987 = vcmp.eq.s32.totalorder %v601, 32
          %vm988 = vcmp.eq.s32.totalorder %v602, 32
          %vm989 = vcmp.eq.s32.totalorder %v603, 32
          %vm990 = vcmp.eq.s32.totalorder %v604, 32
          %vm991 = vcmp.eq.s32.totalorder %v605, 32
          %vm992 = vcmp.eq.s32.totalorder %v606, 32
          %vm993 = vcmp.eq.s32.totalorder %v607, 32
          %vm994 = vcmp.eq.s32.totalorder %v608, 32
          %v995 = vperm.slane %v469, 0
          %v996 = vsel %vm931, %v995, 0.0
          %v997 = vsel %vm932, %v995, 0.0
          %v998 = vsel %vm933, %v995, 0.0
          %v999 = vsel %vm934, %v995, 0.0
          %v1000 = vsel %vm935, %v995, 0.0
          %v1001 = vsel %vm936, %v995, 0.0
          %v1002 = vsel %vm937, %v995, 0.0
          %v1003 = vsel %vm938, %v995, 0.0
          %v1004 = vsel %vm939, %v995, 0.0
          %v1005 = vsel %vm940, %v995, 0.0
          %v1006 = vsel %vm941, %v995, 0.0
          %v1007 = vsel %vm942, %v995, 0.0
          %v1008 = vsel %vm943, %v995, 0.0
          %v1009 = vsel %vm944, %v995, 0.0
          %v1010 = vsel %vm945, %v995, 0.0
          %v1011 = vsel %vm946, %v995, 0.0
          %v1012 = vsel %vm947, %v995, 0.0
          %v1013 = vsel %vm948, %v995, 0.0
          %v1014 = vsel %vm949, %v995, 0.0
          %v1015 = vsel %vm950, %v995, 0.0
          %v1016 = vsel %vm951, %v995, 0.0
          %v1017 = vsel %vm952, %v995, 0.0
          %v1018 = vsel %vm953, %v995, 0.0
          %v1019 = vsel %vm954, %v995, 0.0
          %v1020 = vsel %vm955, %v995, 0.0
          %v1021 = vsel %vm956, %v995, 0.0
          %v1022 = vsel %vm957, %v995, 0.0
          %v1023 = vsel %vm958, %v995, 0.0
          %v1024 = vsel %vm959, %v995, 0.0
          %v1025 = vsel %vm960, %v995, 0.0
          %v1026 = vsel %vm961, %v995, 0.0
          %v1027 = vsel %vm962, %v995, 0.0
          %v1028 = vsel %vm963, %v995, 0.0
          %v1029 = vsel %vm964, %v995, 0.0
          %v1030 = vsel %vm965, %v995, 0.0
          %v1031 = vsel %vm966, %v995, 0.0
          %v1032 = vsel %vm967, %v995, 0.0
          %v1033 = vsel %vm968, %v995, 0.0
          %v1034 = vsel %vm969, %v995, 0.0
          %v1035 = vsel %vm970, %v995, 0.0
          %v1036 = vsel %vm971, %v995, 0.0
          %v1037 = vsel %vm972, %v995, 0.0
          %v1038 = vsel %vm973, %v995, 0.0
          %v1039 = vsel %vm974, %v995, 0.0
          %v1040 = vsel %vm975, %v995, 0.0
          %v1041 = vsel %vm976, %v995, 0.0
          %v1042 = vsel %vm977, %v995, 0.0
          %v1043 = vsel %vm978, %v995, 0.0
          %v1044 = vsel %vm979, %v995, 0.0
          %v1045 = vsel %vm980, %v995, 0.0
          %v1046 = vsel %vm981, %v995, 0.0
          %v1047 = vsel %vm982, %v995, 0.0
          %v1048 = vsel %vm983, %v995, 0.0
          %v1049 = vsel %vm984, %v995, 0.0
          %v1050 = vsel %vm985, %v995, 0.0
          %v1051 = vsel %vm986, %v995, 0.0
          %v1052 = vsel %vm987, %v995, 0.0
          %v1053 = vsel %vm988, %v995, 0.0
          %v1054 = vsel %vm989, %v995, 0.0
          %v1055 = vsel %vm990, %v995, 0.0
          %v1056 = vsel %vm991, %v995, 0.0
          %v1057 = vsel %vm992, %v995, 0.0
          %v1058 = vsel %vm993, %v995, 0.0
          %v1059 = vsel %vm994, %v995, 0.0
          %v1060 = vadd.f32 %v867, %v996
          %v1061 = vadd.f32 %v868, %v997
          %v1062 = vadd.f32 %v869, %v998
          %v1063 = vadd.f32 %v870, %v999
          %v1064 = vadd.f32 %v871, %v1000
          %v1065 = vadd.f32 %v872, %v1001
          %v1066 = vadd.f32 %v873, %v1002
          %v1067 = vadd.f32 %v874, %v1003
          %v1068 = vadd.f32 %v875, %v1004
          %v1069 = vadd.f32 %v876, %v1005
          %v1070 = vadd.f32 %v877, %v1006
          %v1071 = vadd.f32 %v878, %v1007
          %v1072 = vadd.f32 %v879, %v1008
          %v1073 = vadd.f32 %v880, %v1009
          %v1074 = vadd.f32 %v881, %v1010
          %v1075 = vadd.f32 %v882, %v1011
          %v1076 = vadd.f32 %v883, %v1012
          %v1077 = vadd.f32 %v884, %v1013
          %v1078 = vadd.f32 %v885, %v1014
          %v1079 = vadd.f32 %v886, %v1015
          %v1080 = vadd.f32 %v887, %v1016
          %v1081 = vadd.f32 %v888, %v1017
          %v1082 = vadd.f32 %v889, %v1018
          %v1083 = vadd.f32 %v890, %v1019
          %v1084 = vadd.f32 %v891, %v1020
          %v1085 = vadd.f32 %v892, %v1021
          %v1086 = vadd.f32 %v893, %v1022
          %v1087 = vadd.f32 %v894, %v1023
          %v1088 = vadd.f32 %v895, %v1024
          %v1089 = vadd.f32 %v896, %v1025
          %v1090 = vadd.f32 %v897, %v1026
          %v1091 = vadd.f32 %v898, %v1027
          %v1092 = vadd.f32 %v899, %v1028
          %v1093 = vadd.f32 %v900, %v1029
          %v1094 = vadd.f32 %v901, %v1030
          %v1095 = vadd.f32 %v902, %v1031
          %v1096 = vadd.f32 %v903, %v1032
          %v1097 = vadd.f32 %v904, %v1033
          %v1098 = vadd.f32 %v905, %v1034
          %v1099 = vadd.f32 %v906, %v1035
          %v1100 = vadd.f32 %v907, %v1036
          %v1101 = vadd.f32 %v908, %v1037
          %v1102 = vadd.f32 %v909, %v1038
          %v1103 = vadd.f32 %v910, %v1039
          %v1104 = vadd.f32 %v911, %v1040
          %v1105 = vadd.f32 %v912, %v1041
          %v1106 = vadd.f32 %v913, %v1042
          %v1107 = vadd.f32 %v914, %v1043
          %v1108 = vadd.f32 %v915, %v1044
          %v1109 = vadd.f32 %v916, %v1045
          %v1110 = vadd.f32 %v917, %v1046
          %v1111 = vadd.f32 %v918, %v1047
          %v1112 = vadd.f32 %v919, %v1048
          %v1113 = vadd.f32 %v920, %v1049
          %v1114 = vadd.f32 %v921, %v1050
          %v1115 = vadd.f32 %v922, %v1051
          %v1116 = vadd.f32 %v923, %v1052
          %v1117 = vadd.f32 %v924, %v1053
          %v1118 = vadd.f32 %v925, %v1054
          %v1119 = vadd.f32 %v926, %v1055
          %v1120 = vadd.f32 %v927, %v1056
          %v1121 = vadd.f32 %v928, %v1057
          %v1122 = vadd.f32 %v929, %v1058
          %v1123 = vadd.f32 %v930, %v1059
          %vm1124 = vcmp.eq.s32.totalorder %v545, 33
          %vm1125 = vcmp.eq.s32.totalorder %v546, 33
          %vm1126 = vcmp.eq.s32.totalorder %v547, 33
          %vm1127 = vcmp.eq.s32.totalorder %v548, 33
          %vm1128 = vcmp.eq.s32.totalorder %v549, 33
          %vm1129 = vcmp.eq.s32.totalorder %v550, 33
          %vm1130 = vcmp.eq.s32.totalorder %v551, 33
          %vm1131 = vcmp.eq.s32.totalorder %v552, 33
          %vm1132 = vcmp.eq.s32.totalorder %v553, 33
          %vm1133 = vcmp.eq.s32.totalorder %v554, 33
          %vm1134 = vcmp.eq.s32.totalorder %v555, 33
          %vm1135 = vcmp.eq.s32.totalorder %v556, 33
          %vm1136 = vcmp.eq.s32.totalorder %v557, 33
          %vm1137 = vcmp.eq.s32.totalorder %v558, 33
          %vm1138 = vcmp.eq.s32.totalorder %v559, 33
          %vm1139 = vcmp.eq.s32.totalorder %v560, 33
          %vm1140 = vcmp.eq.s32.totalorder %v561, 33
          %vm1141 = vcmp.eq.s32.totalorder %v562, 33
          %vm1142 = vcmp.eq.s32.totalorder %v563, 33
          %vm1143 = vcmp.eq.s32.totalorder %v564, 33
          %vm1144 = vcmp.eq.s32.totalorder %v565, 33
          %vm1145 = vcmp.eq.s32.totalorder %v566, 33
          %vm1146 = vcmp.eq.s32.totalorder %v567, 33
          %vm1147 = vcmp.eq.s32.totalorder %v568, 33
          %vm1148 = vcmp.eq.s32.totalorder %v569, 33
          %vm1149 = vcmp.eq.s32.totalorder %v570, 33
          %vm1150 = vcmp.eq.s32.totalorder %v571, 33
          %vm1151 = vcmp.eq.s32.totalorder %v572, 33
          %vm1152 = vcmp.eq.s32.totalorder %v573, 33
          %vm1153 = vcmp.eq.s32.totalorder %v574, 33
          %vm1154 = vcmp.eq.s32.totalorder %v575, 33
          %vm1155 = vcmp.eq.s32.totalorder %v576, 33
          %vm1156 = vcmp.eq.s32.totalorder %v577, 33
          %vm1157 = vcmp.eq.s32.totalorder %v578, 33
          %vm1158 = vcmp.eq.s32.totalorder %v579, 33
          %vm1159 = vcmp.eq.s32.totalorder %v580, 33
          %vm1160 = vcmp.eq.s32.totalorder %v581, 33
          %vm1161 = vcmp.eq.s32.totalorder %v582, 33
          %vm1162 = vcmp.eq.s32.totalorder %v583, 33
          %vm1163 = vcmp.eq.s32.totalorder %v584, 33
          %vm1164 = vcmp.eq.s32.totalorder %v585, 33
          %vm1165 = vcmp.eq.s32.totalorder %v586, 33
          %vm1166 = vcmp.eq.s32.totalorder %v587, 33
          %vm1167 = vcmp.eq.s32.totalorder %v588, 33
          %vm1168 = vcmp.eq.s32.totalorder %v589, 33
          %vm1169 = vcmp.eq.s32.totalorder %v590, 33
          %vm1170 = vcmp.eq.s32.totalorder %v591, 33
          %vm1171 = vcmp.eq.s32.totalorder %v592, 33
          %vm1172 = vcmp.eq.s32.totalorder %v593, 33
          %vm1173 = vcmp.eq.s32.totalorder %v594, 33
          %vm1174 = vcmp.eq.s32.totalorder %v595, 33
          %vm1175 = vcmp.eq.s32.totalorder %v596, 33
          %vm1176 = vcmp.eq.s32.totalorder %v597, 33
          %vm1177 = vcmp.eq.s32.totalorder %v598, 33
          %vm1178 = vcmp.eq.s32.totalorder %v599, 33
          %vm1179 = vcmp.eq.s32.totalorder %v600, 33
          %vm1180 = vcmp.eq.s32.totalorder %v601, 33
          %vm1181 = vcmp.eq.s32.totalorder %v602, 33
          %vm1182 = vcmp.eq.s32.totalorder %v603, 33
          %vm1183 = vcmp.eq.s32.totalorder %v604, 33
          %vm1184 = vcmp.eq.s32.totalorder %v605, 33
          %vm1185 = vcmp.eq.s32.totalorder %v606, 33
          %vm1186 = vcmp.eq.s32.totalorder %v607, 33
          %vm1187 = vcmp.eq.s32.totalorder %v608, 33
          %v1188 = vperm.slane %v473, 0
          %v1189 = vsel %vm1124, %v1188, 0.0
          %v1190 = vsel %vm1125, %v1188, 0.0
          %v1191 = vsel %vm1126, %v1188, 0.0
          %v1192 = vsel %vm1127, %v1188, 0.0
          %v1193 = vsel %vm1128, %v1188, 0.0
          %v1194 = vsel %vm1129, %v1188, 0.0
          %v1195 = vsel %vm1130, %v1188, 0.0
          %v1196 = vsel %vm1131, %v1188, 0.0
          %v1197 = vsel %vm1132, %v1188, 0.0
          %v1198 = vsel %vm1133, %v1188, 0.0
          %v1199 = vsel %vm1134, %v1188, 0.0
          %v1200 = vsel %vm1135, %v1188, 0.0
          %v1201 = vsel %vm1136, %v1188, 0.0
          %v1202 = vsel %vm1137, %v1188, 0.0
          %v1203 = vsel %vm1138, %v1188, 0.0
          %v1204 = vsel %vm1139, %v1188, 0.0
          %v1205 = vsel %vm1140, %v1188, 0.0
          %v1206 = vsel %vm1141, %v1188, 0.0
          %v1207 = vsel %vm1142, %v1188, 0.0
          %v1208 = vsel %vm1143, %v1188, 0.0
          %v1209 = vsel %vm1144, %v1188, 0.0
          %v1210 = vsel %vm1145, %v1188, 0.0
          %v1211 = vsel %vm1146, %v1188, 0.0
          %v1212 = vsel %vm1147, %v1188, 0.0
          %v1213 = vsel %vm1148, %v1188, 0.0
          %v1214 = vsel %vm1149, %v1188, 0.0
          %v1215 = vsel %vm1150, %v1188, 0.0
          %v1216 = vsel %vm1151, %v1188, 0.0
          %v1217 = vsel %vm1152, %v1188, 0.0
          %v1218 = vsel %vm1153, %v1188, 0.0
          %v1219 = vsel %vm1154, %v1188, 0.0
          %v1220 = vsel %vm1155, %v1188, 0.0
          %v1221 = vsel %vm1156, %v1188, 0.0
          %v1222 = vsel %vm1157, %v1188, 0.0
          %v1223 = vsel %vm1158, %v1188, 0.0
          %v1224 = vsel %vm1159, %v1188, 0.0
          %v1225 = vsel %vm1160, %v1188, 0.0
          %v1226 = vsel %vm1161, %v1188, 0.0
          %v1227 = vsel %vm1162, %v1188, 0.0
          %v1228 = vsel %vm1163, %v1188, 0.0
          %v1229 = vsel %vm1164, %v1188, 0.0
          %v1230 = vsel %vm1165, %v1188, 0.0
          %v1231 = vsel %vm1166, %v1188, 0.0
          %v1232 = vsel %vm1167, %v1188, 0.0
          %v1233 = vsel %vm1168, %v1188, 0.0
          %v1234 = vsel %vm1169, %v1188, 0.0
          %v1235 = vsel %vm1170, %v1188, 0.0
          %v1236 = vsel %vm1171, %v1188, 0.0
          %v1237 = vsel %vm1172, %v1188, 0.0
          %v1238 = vsel %vm1173, %v1188, 0.0
          %v1239 = vsel %vm1174, %v1188, 0.0
          %v1240 = vsel %vm1175, %v1188, 0.0
          %v1241 = vsel %vm1176, %v1188, 0.0
          %v1242 = vsel %vm1177, %v1188, 0.0
          %v1243 = vsel %vm1178, %v1188, 0.0
          %v1244 = vsel %vm1179, %v1188, 0.0
          %v1245 = vsel %vm1180, %v1188, 0.0
          %v1246 = vsel %vm1181, %v1188, 0.0
          %v1247 = vsel %vm1182, %v1188, 0.0
          %v1248 = vsel %vm1183, %v1188, 0.0
          %v1249 = vsel %vm1184, %v1188, 0.0
          %v1250 = vsel %vm1185, %v1188, 0.0
          %v1251 = vsel %vm1186, %v1188, 0.0
          %v1252 = vsel %vm1187, %v1188, 0.0
          %v1253 = vadd.f32 %v1060, %v1189
          %v1254 = vadd.f32 %v1061, %v1190
          %v1255 = vadd.f32 %v1062, %v1191
          %v1256 = vadd.f32 %v1063, %v1192
          %v1257 = vadd.f32 %v1064, %v1193
          %v1258 = vadd.f32 %v1065, %v1194
          %v1259 = vadd.f32 %v1066, %v1195
          %v1260 = vadd.f32 %v1067, %v1196
          %v1261 = vadd.f32 %v1068, %v1197
          %v1262 = vadd.f32 %v1069, %v1198
          %v1263 = vadd.f32 %v1070, %v1199
          %v1264 = vadd.f32 %v1071, %v1200
          %v1265 = vadd.f32 %v1072, %v1201
          %v1266 = vadd.f32 %v1073, %v1202
          %v1267 = vadd.f32 %v1074, %v1203
          %v1268 = vadd.f32 %v1075, %v1204
          %v1269 = vadd.f32 %v1076, %v1205
          %v1270 = vadd.f32 %v1077, %v1206
          %v1271 = vadd.f32 %v1078, %v1207
          %v1272 = vadd.f32 %v1079, %v1208
          %v1273 = vadd.f32 %v1080, %v1209
          %v1274 = vadd.f32 %v1081, %v1210
          %v1275 = vadd.f32 %v1082, %v1211
          %v1276 = vadd.f32 %v1083, %v1212
          %v1277 = vadd.f32 %v1084, %v1213
          %v1278 = vadd.f32 %v1085, %v1214
          %v1279 = vadd.f32 %v1086, %v1215
          %v1280 = vadd.f32 %v1087, %v1216
          %v1281 = vadd.f32 %v1088, %v1217
          %v1282 = vadd.f32 %v1089, %v1218
          %v1283 = vadd.f32 %v1090, %v1219
          %v1284 = vadd.f32 %v1091, %v1220
          %v1285 = vadd.f32 %v1092, %v1221
          %v1286 = vadd.f32 %v1093, %v1222
          %v1287 = vadd.f32 %v1094, %v1223
          %v1288 = vadd.f32 %v1095, %v1224
          %v1289 = vadd.f32 %v1096, %v1225
          %v1290 = vadd.f32 %v1097, %v1226
          %v1291 = vadd.f32 %v1098, %v1227
          %v1292 = vadd.f32 %v1099, %v1228
          %v1293 = vadd.f32 %v1100, %v1229
          %v1294 = vadd.f32 %v1101, %v1230
          %v1295 = vadd.f32 %v1102, %v1231
          %v1296 = vadd.f32 %v1103, %v1232
          %v1297 = vadd.f32 %v1104, %v1233
          %v1298 = vadd.f32 %v1105, %v1234
          %v1299 = vadd.f32 %v1106, %v1235
          %v1300 = vadd.f32 %v1107, %v1236
          %v1301 = vadd.f32 %v1108, %v1237
          %v1302 = vadd.f32 %v1109, %v1238
          %v1303 = vadd.f32 %v1110, %v1239
          %v1304 = vadd.f32 %v1111, %v1240
          %v1305 = vadd.f32 %v1112, %v1241
          %v1306 = vadd.f32 %v1113, %v1242
          %v1307 = vadd.f32 %v1114, %v1243
          %v1308 = vadd.f32 %v1115, %v1244
          %v1309 = vadd.f32 %v1116, %v1245
          %v1310 = vadd.f32 %v1117, %v1246
          %v1311 = vadd.f32 %v1118, %v1247
          %v1312 = vadd.f32 %v1119, %v1248
          %v1313 = vadd.f32 %v1120, %v1249
          %v1314 = vadd.f32 %v1121, %v1250
          %v1315 = vadd.f32 %v1122, %v1251
          %v1316 = vadd.f32 %v1123, %v1252
          %s1317 = smul.u32 %s38, 32
          %s1318 = scalar_lea.vmem [#allocation2], %s1317
          %v1319 = vld [vmem:[%s1318] sm:$0xff]
          %v1320 = vld [vmem:[%s1318 + $0x8] sm:$0xff]
          %v1321 = vld [vmem:[%s1318 + $0x10] sm:$0xff]
          %v1322 = vld [vmem:[%s1318 + $0x18] sm:$0xff]
          %v1323 = vld [vmem:[%s263] sm:$0xff]
          %v1324 = vld [vmem:[%s263 + $0x8] sm:$0xff]
          %v1325 = vld [vmem:[%s263 + $0x10] sm:$0xff]
          %v1326 = vld [vmem:[%s263 + $0x18] sm:$0xff]
          %v1327 = vld [vmem:[%s263 + $0x20] sm:$0xff]
          %v1328 = vld [vmem:[%s263 + $0x28] sm:$0xff]
          %v1329 = vld [vmem:[%s263 + $0x30] sm:$0xff]
          %v1330 = vld [vmem:[%s263 + $0x38] sm:$0xff]
          %v1331 = vpack.c.bf16 %v1254, %v1253
          %v1332 = vpack.c.bf16 %v1256, %v1255
          %v1333 = vpack.c.bf16 %v1258, %v1257
          %v1334 = vpack.c.bf16 %v1260, %v1259
          %v1335 = vpack.c.bf16 %v1262, %v1261
          %v1336 = vpack.c.bf16 %v1264, %v1263
          %v1337 = vpack.c.bf16 %v1266, %v1265
          %v1338 = vpack.c.bf16 %v1268, %v1267
          %v1339 = vpack.c.bf16 %v1270, %v1269
          %v1340 = vpack.c.bf16 %v1272, %v1271
          %v1341 = vpack.c.bf16 %v1274, %v1273
          %v1342 = vpack.c.bf16 %v1276, %v1275
          %v1343 = vpack.c.bf16 %v1278, %v1277
          %v1344 = vpack.c.bf16 %v1280, %v1279
          %v1345 = vpack.c.bf16 %v1282, %v1281
          %v1346 = vpack.c.bf16 %v1284, %v1283
          %v1347 = vpack.c.bf16 %v1286, %v1285
          %v1348 = vpack.c.bf16 %v1288, %v1287
          %v1349 = vpack.c.bf16 %v1290, %v1289
          %v1350 = vpack.c.bf16 %v1292, %v1291
          %v1351 = vpack.c.bf16 %v1294, %v1293
          %v1352 = vpack.c.bf16 %v1296, %v1295
          %v1353 = vpack.c.bf16 %v1298, %v1297
          %v1354 = vpack.c.bf16 %v1300, %v1299
          %v1355 = vpack.c.bf16 %v1302, %v1301
          %v1356 = vpack.c.bf16 %v1304, %v1303
          %v1357 = vpack.c.bf16 %v1306, %v1305
          %v1358 = vpack.c.bf16 %v1308, %v1307
          %v1359 = vpack.c.bf16 %v1310, %v1309
          %v1360 = vpack.c.bf16 %v1312, %v1311
          %v1361 = vpack.c.bf16 %v1314, %v1313
          %v1362 = vpack.c.bf16 %v1316, %v1315
          %v1371 = vunpack.c.l.b16 %v1323
          %v1372 = vunpack.c.h.b16 %v1323
          %v1373 = vunpack.c.l.b16 %v1324
          %v1374 = vunpack.c.h.b16 %v1324
          %v1375 = vunpack.c.l.b16 %v1325
          %v1376 = vunpack.c.h.b16 %v1325
          %v1377 = vunpack.c.l.b16 %v1326
          %v1378 = vunpack.c.h.b16 %v1326
          %v1379 = vunpack.c.l.b16 %v1327
          %v1380 = vunpack.c.h.b16 %v1327
          %v1381 = vunpack.c.l.b16 %v1328
          %v1382 = vunpack.c.h.b16 %v1328
          %v1383 = vunpack.c.l.b16 %v1329
          %v1384 = vunpack.c.h.b16 %v1329
          %v1385 = vunpack.c.l.b16 %v1330
          %v1386 = vunpack.c.h.b16 %v1330
          %v1387 = vpack.c.b16 %v1375, %v1371
          %v1388 = vpack.c.b16 %v1376, %v1372
          %v1389 = vpack.c.b16 %v1377, %v1373
          %v1390 = vpack.c.b16 %v1378, %v1374
          %v1391 = vpack.c.b16 %v1383, %v1379
          %v1392 = vpack.c.b16 %v1384, %v1380
          %v1393 = vpack.c.b16 %v1385, %v1381
          %v1394 = vpack.c.b16 %v1386, %v1382
          %1403 = vmatpush.bf16.msra.mxu0 %v1338
          %1404 = vmatpush.bf16.msra.mxu0 %v1337
          %1405 = vmatpush.bf16.msra.mxu0 %v1336
          %1406 = vmatpush.bf16.msra.mxu0 %v1335
          %1407 = vmatpush.bf16.msra.mxu0 %v1334
          %1408 = vmatpush.bf16.msra.mxu0 %v1333
          %1409 = vmatpush.bf16.msra.mxu0 %v1332
          %1410 = vmatpush.bf16.msra.mxu0 %v1331
          %1411 = vmatmul.bf16.gmra.mxu0 %v1387
          %v1412 = vpop.f32.mrf.mxu0
          %v1413 = vadd.f32 0.0, %v1412
          %v1414 = vpop.f32.mrf.mxu0
          %v1415 = vadd.f32 0.0, %v1414
          %1416 = vmatmul.bf16.gmra.mxu0 %v1391
          %v1417 = vpop.f32.mrf.mxu0
          %v1418 = vadd.f32 0.0, %v1417
          %v1419 = vpop.f32.mrf.mxu0
          %v1420 = vadd.f32 0.0, %v1419
          %1421 = vdwg.mxu0
          %1422 = vmatpush.bf16.msra.mxu0 %v1346
          %1423 = vmatpush.bf16.msra.mxu0 %v1345
          %1424 = vmatpush.bf16.msra.mxu0 %v1344
          %1425 = vmatpush.bf16.msra.mxu0 %v1343
          %1426 = vmatpush.bf16.msra.mxu0 %v1342
          %1427 = vmatpush.bf16.msra.mxu0 %v1341
          %1428 = vmatpush.bf16.msra.mxu0 %v1340
          %1429 = vmatpush.bf16.msra.mxu0 %v1339
          %1430 = vmatmul.bf16.gmra.mxu0 %v1388
          %v1431 = vpop.f32.mrf.mxu0
          %v1432 = vadd.f32 %v1413, %v1431
          %v1433 = vpop.f32.mrf.mxu0
          %v1434 = vadd.f32 %v1415, %v1433
          %1435 = vmatmul.bf16.gmra.mxu0 %v1392
          %v1436 = vpop.f32.mrf.mxu0
          %v1437 = vadd.f32 %v1418, %v1436
          %v1438 = vpop.f32.mrf.mxu0
          %v1439 = vadd.f32 %v1420, %v1438
          %1440 = vdwg.mxu0
          %1441 = vmatpush.bf16.msra.mxu0 %v1354
          %1442 = vmatpush.bf16.msra.mxu0 %v1353
          %1443 = vmatpush.bf16.msra.mxu0 %v1352
          %1444 = vmatpush.bf16.msra.mxu0 %v1351
          %1445 = vmatpush.bf16.msra.mxu0 %v1350
          %1446 = vmatpush.bf16.msra.mxu0 %v1349
          %1447 = vmatpush.bf16.msra.mxu0 %v1348
          %1448 = vmatpush.bf16.msra.mxu0 %v1347
          %1449 = vmatmul.bf16.gmra.mxu0 %v1389
          %v1450 = vpop.f32.mrf.mxu0
          %v1451 = vadd.f32 %v1432, %v1450
          %v1452 = vpop.f32.mrf.mxu0
          %v1453 = vadd.f32 %v1434, %v1452
          %1454 = vmatmul.bf16.gmra.mxu0 %v1393
          %v1455 = vpop.f32.mrf.mxu0
          %v1456 = vadd.f32 %v1437, %v1455
          %v1457 = vpop.f32.mrf.mxu0
          %v1458 = vadd.f32 %v1439, %v1457
          %1459 = vdwg.mxu0
          %1460 = vmatpush.bf16.msra.mxu0 %v1362
          %1461 = vmatpush.bf16.msra.mxu0 %v1361
          %1462 = vmatpush.bf16.msra.mxu0 %v1360
          %1463 = vmatpush.bf16.msra.mxu0 %v1359
          %1464 = vmatpush.bf16.msra.mxu0 %v1358
          %1465 = vmatpush.bf16.msra.mxu0 %v1357
          %1466 = vmatpush.bf16.msra.mxu0 %v1356
          %1467 = vmatpush.bf16.msra.mxu0 %v1355
          %1468 = vmatmul.bf16.gmra.mxu0 %v1390
          %v1469 = vpop.f32.mrf.mxu0
          %v1470 = vadd.f32 %v1451, %v1469
          %v1471 = vpop.f32.mrf.mxu0
          %v1472 = vadd.f32 %v1453, %v1471
          %1473 = vmatmul.bf16.gmra.mxu0 %v1394
          %v1474 = vpop.f32.mrf.mxu0
          %v1475 = vadd.f32 %v1456, %v1474
          %v1476 = vpop.f32.mrf.mxu0
          %v1477 = vadd.f32 %v1458, %v1476
          %1478 = vdwg.mxu0
          %v1479 = vadd.f32 %v1319, %v1470
          %v1480 = vadd.f32 %v1320, %v1472
          %v1481 = vadd.f32 %v1321, %v1475
          %v1482 = vadd.f32 %v1322, %v1477
          %1483 = vst [vmem:[%s1318] sm:$0xff] %v1479
          %1484 = vst [vmem:[%s1318 + $0x8] sm:$0xff] %v1480
          %1485 = vst [vmem:[%s1318 + $0x10] sm:$0xff] %v1481
          %1486 = vst [vmem:[%s1318 + $0x18] sm:$0xff] %v1482
        $region63: #{detr3d_cross_attn.5} parent=50 // pred_fallthru
          _
        %p1487 = scmp.eq.s32.totalorder %s36, 2
        %p1488 = scmp.eq.s32.totalorder %s37, 1
        %p1489 = pnand %p1487, %p1488
        %p1490 = pneg %p1489
        %p1491 = scmp.eq.s32.totalorder %s38, 1
        %p1492 = pnand %p1490, %p1491
        %p1493 = pneg %p1492
        // Predicated region
        $region64: #{detr3d_cross_attn.5} parent=50 // pred_check
          _
        $region65: #{detr3d_cross_attn.5} parent=50 // pred_check_branch
          %1495 = sbr.rel (%p1492) target = $region67
        $region66: #{detr3d_cross_attn.5} parent=50 // pred_region
          %v1496 = vld [vmem:[#allocation2] sm:$0xff]
          %v1497 = vld [vmem:[#allocation2 + $0x8] sm:$0xff]
          %v1498 = vld [vmem:[#allocation2 + $0x10] sm:$0xff]
          %v1499 = vld [vmem:[#allocation2 + $0x18] sm:$0xff]
          %vm1500 = vcmp.ne.f32.partialorder %v1496, %v1496
          %vm1501 = vcmp.ne.f32.partialorder %v1497, %v1497
          %vm1502 = vcmp.ne.f32.partialorder %v1498, %v1498
          %vm1503 = vcmp.ne.f32.partialorder %v1499, %v1499
          %v1504 = vsel %vm1500, 0.0, %v1496
          %v1505 = vsel %vm1501, 0.0, %v1497
          %v1506 = vsel %vm1502, 0.0, %v1498
          %v1507 = vsel %vm1503, 0.0, %v1499
          %vm1508 = vcmp.eq.f32.partialorder %v1504, inf
          %vm1509 = vcmp.eq.f32.partialorder %v1505, inf
          %vm1510 = vcmp.eq.f32.partialorder %v1506, inf
          %vm1511 = vcmp.eq.f32.partialorder %v1507, inf
          %v1512 = vsel %vm1508, 3.4028235e+38, %v1504
          %v1513 = vsel %vm1509, 3.4028235e+38, %v1505
          %v1514 = vsel %vm1510, 3.4028235e+38, %v1506
          %v1515 = vsel %vm1511, 3.4028235e+38, %v1507
          %vm1516 = vcmp.eq.f32.partialorder %v1512, -inf
          %vm1517 = vcmp.eq.f32.partialorder %v1513, -inf
          %vm1518 = vcmp.eq.f32.partialorder %v1514, -inf
          %vm1519 = vcmp.eq.f32.partialorder %v1515, -inf
          %v1520 = vsel %vm1516, -3.4028235e+38, %v1512
          %v1521 = vsel %vm1517, -3.4028235e+38, %v1513
          %v1522 = vsel %vm1518, -3.4028235e+38, %v1514
          %v1523 = vsel %vm1519, -3.4028235e+38, %v1515
          %1524 = vst [vmem:[%s327] sm:$0xff] %v1520
          %1525 = vst [vmem:[%s327 + $0x10] sm:$0xff] %v1521
          %1526 = vst [vmem:[%s327 + $0x20] sm:$0xff] %v1522
          %1527 = vst [vmem:[%s327 + $0x30] sm:$0xff] %v1523
          %s1528 = scalar_lea.vmem [#allocation2], 32
          %v1529 = vld [vmem:[%s1528] sm:$0xff]
          %v1530 = vld [vmem:[%s1528 + $0x8] sm:$0xff]
          %v1531 = vld [vmem:[%s1528 + $0x10] sm:$0xff]
          %v1532 = vld [vmem:[%s1528 + $0x18] sm:$0xff]
          %vm1533 = vcmp.ne.f32.partialorder %v1529, %v1529
          %vm1534 = vcmp.ne.f32.partialorder %v1530, %v1530
          %vm1535 = vcmp.ne.f32.partialorder %v1531, %v1531
          %vm1536 = vcmp.ne.f32.partialorder %v1532, %v1532
          %v1537 = vsel %vm1533, 0.0, %v1529
          %v1538 = vsel %vm1534, 0.0, %v1530
          %v1539 = vsel %vm1535, 0.0, %v1531
          %v1540 = vsel %vm1536, 0.0, %v1532
          %vm1541 = vcmp.eq.f32.partialorder %v1537, inf
          %vm1542 = vcmp.eq.f32.partialorder %v1538, inf
          %vm1543 = vcmp.eq.f32.partialorder %v1539, inf
          %vm1544 = vcmp.eq.f32.partialorder %v1540, inf
          %v1545 = vsel %vm1541, 3.4028235e+38, %v1537
          %v1546 = vsel %vm1542, 3.4028235e+38, %v1538
          %v1547 = vsel %vm1543, 3.4028235e+38, %v1539
          %v1548 = vsel %vm1544, 3.4028235e+38, %v1540
          %vm1549 = vcmp.eq.f32.partialorder %v1545, -inf
          %vm1550 = vcmp.eq.f32.partialorder %v1546, -inf
          %vm1551 = vcmp.eq.f32.partialorder %v1547, -inf
          %vm1552 = vcmp.eq.f32.partialorder %v1548, -inf
          %v1553 = vsel %vm1549, -3.4028235e+38, %v1545
          %v1554 = vsel %vm1550, -3.4028235e+38, %v1546
          %v1555 = vsel %vm1551, -3.4028235e+38, %v1547
          %v1556 = vsel %vm1552, -3.4028235e+38, %v1548
          %1557 = vst [vmem:[%s327 + $0x8] sm:$0xff] %v1553
          %1558 = vst [vmem:[%s327 + $0x18] sm:$0xff] %v1554
          %1559 = vst [vmem:[%s327 + $0x28] sm:$0xff] %v1555
          %1560 = vst [vmem:[%s327 + $0x38] sm:$0xff] %v1556
        $region67: #{detr3d_cross_attn.5} parent=50 // pred_fallthru
          _
        %p1561 = scmp.lt.s32.totalorder %s35, 1
        %s1562 = scalar_select %p1561, %s35, 1
        %s1563 = smul.addr %s1562, 8
        %s1564 = smul.addr %s1563, 8
        %s1565 = scalar_lea.vmem %s5, %s1564
        // Predicated region
        $region68: #{detr3d_cross_attn.5} parent=50 // pred_check
          %p1566 = pneg %p161
        $region69: #{detr3d_cross_attn.5} parent=50 // pred_check_branch
          %1568 = sbr.rel (%p1566) target = $region71
        $region70: #{detr3d_cross_attn.5} parent=50 // pred_region
          _
        $region71: #{detr3d_cross_attn.5} parent=50 // pred_fallthru
          _
      $region51: #{detr3d_cross_attn.5} parent=5 // pred_fallthru
        _
      %p1569 = scmp.le.s32.totalorder 2, %s24
      // Predicated region
      $region72: #{detr3d_cross_attn.5} parent=5 // pred_check
        %p1570 = pneg %p1569
      $region73: #{detr3d_cross_attn.5} parent=5 // pred_check_branch
        %1572 = sbr.rel (%p1570) target = $region75
      $region74: #{detr3d_cross_attn.5} parent=5 // pred_region
        %s1573 = ssub.s32 %s24, 2
        // Predicated region
        $region76: #{detr3d_cross_attn.5} parent=74 // pred_check
          %p1574 = pneg %p167
        $region77: #{detr3d_cross_attn.5} parent=74 // pred_check_branch
          %1576 = sbr.rel (%p1574) target = $region79
        $region78: #{detr3d_cross_attn.5} parent=74 // pred_region
          %p1577 = scmp.lt.s32.totalorder %s39, 1
          %s1578 = scalar_select %p1577, %s39, 1
          %s1579 = smul.addr %s1578, 8
          %s1580 = smul.addr %s1579, 8
          %s1581 = scalar_lea.vmem %s5, %s1580
        $region79: #{detr3d_cross_attn.5} parent=74 // pred_fallthru
          _
      $region75: #{detr3d_cross_attn.5} parent=5 // pred_fallthru
        _
    $region6: #{detr3d_cross_attn.5} parent=1 // loop_footer
      %s28 = sadd.s32 1, %s24
    $region7: #{detr3d_cross_attn.5} parent=1 // loop_footer_branch
      %23 = sbr.rel target = $region3
    $region8: #{detr3d_cross_attn.5} parent=1 // loop_exit
      _

// kernel: detr3d_cross_attn.6
$region0: #{detr3d_cross_attn.6}
  #allocation0 [shape = 'u32[]', space=smem, size = 0x4, offset = 0x4, fixed_abs, tag = 'smem constant byte address 0x4 - core index']
  #allocation1 [shape = 'u32[72,128]{1,0:T(1,128)}', space=vmem, size = 0x9000, scoped, tag = 'internal scratch']
  #allocation2 [shape = 'f32[2,32,128]{2,1,0:T(8,128)}', space=vmem, size = 0x8000, scoped, tag = 'scratch operand']
  #allocation3 [shape = 's32[1]{0}', space=sflag, size = 0x4, scoped, tag = 'scoped memory for detr3d_cross_attn.6']
  #allocation4 [shape = 'u8[512]{0}', space=smem, size = 0x200, scoped, tag = 'prefetched SMEM operand 0']
  #allocation5 [shape = 'u8[512]{0}', space=smem, size = 0x200, scoped, tag = 'prefetched SMEM operand 1']
  %s0 = inlined_call_operand.vmem [shape: f32[72], index: 0, kind: input, shape index: {}]
  %s1 = inlined_call_operand.vmem [shape: s32[12], index: 1, kind: input, shape index: {}]
  %s2 = inlined_call_operand.vmem [shape: f32[2,32,256], index: 2, kind: input, shape index: {}]
  %s3 = inlined_call_operand.vmem [shape: f32[2,3,1,256], index: 3, kind: input, shape index: {}]
  %s4 = inlined_call_operand.vmem [shape: f32[2,3,256], index: 4, kind: input, shape index: {}]
  %s5 = inlined_call_operand.vmem [shape: bf16[2,3,32,256], index: 5, kind: input, shape index: {}]
  %s6 = inlined_call_operand.vmem [shape: f32[2,32,256], index: 6, kind: output, shape index: {}]
  %s7 = sld [smem:[#allocation0]]
  $region61: #{detr3d_cross_attn.6} parent=0
    _
  %s9 = ssub.s32 1, %s7
  %s10 = scalar_select 0, %s9, %s7
  %s12 = sshll.u32 %s0, 4
  %s13 = int_to_ptr.vmem [resolvable:$true] %s12
  %15 = dma.vmem_to_smem %s13, 16, [#allocation4], [#allocation3]
  %s17 = sshll.u32 %s1, 4
  %s18 = int_to_ptr.vmem [resolvable:$true] %s17
  %20 = dma.vmem_to_smem %s18, 16, [#allocation5], [#allocation3]
  %22 = dma.done [#allocation3], 32
  %23 = sfence
  loop: start=0, step=1, limit=14
  $region2: #{detr3d_cross_attn.6} parent=0 // loop_pre_header
    _
  $region3: #{detr3d_cross_attn.6} parent=0 // loop_header
    %s25 = sphi 0, %s29
    %p26 = scmp.ge.s32.totalorder %s25, 14
    %s32 = sphi 0, %s58
    %s33 = sphi 0, %s54
    %s34 = sphi 0, %s50
    %s35 = sphi 0, %s46
    %s36 = sphi 0, %s32
    %s37 = sphi 0, %s33
    %s38 = sphi 0, %s34
    %s39 = sphi 0, %s35
    %s40 = sphi 0, %s36
    %s41 = sphi 0, %s37
    %s42 = sphi 0, %s38
    %s43 = sphi 0, %s39
    %s61 = sphi 0, %s63
    %s64 = sphi 0, %s61
    %s65 = sphi 0, %s64
    %s81 = sphi 0, %s65
    %s91 = sphi 0, %s93
    %s94 = sphi 0, %s91
    %s95 = sphi 0, %s94
    %s111 = sphi 0, %s95
    %s119 = sphi 0, %s121
    %s122 = sphi 0, %s119
    %s123 = sphi 0, %s122
    %s139 = sphi 0, %s123
    %s149 = sphi 0, %s151
    %s152 = sphi 0, %s149
    %s153 = sphi 0, %s152
    %s169 = sphi 0, %s153
    %s175 = sphi 0, %s177
    %s178 = sphi 0, %s175
    %s179 = sphi 0, %s178
    %s195 = sphi 0, %s179
  $region4: #{detr3d_cross_attn.6} parent=0 // loop_header_branch
    %28 = sbr.rel (%p26) target = $region8
  $region5: #{detr3d_cross_attn.6} parent=0 // loop_body
    %s30 = ssub.s32 %s25, 1
    %s31 = ssub.s32 %s25, 2
    %s44 = sadd.s32 1, %s35
    %p45 = scmp.ge.s32.totalorder %s44, 2
    %s46 = scalar_select %p45, 0, %s44
    %s47 = sadd.s32 1, %s34
    %s48 = scalar_select %p45, %s47, %s34
    %p49 = scmp.ge.s32.totalorder %s48, 1
    %s50 = scalar_select %p49, 0, %s48
    %s51 = sadd.s32 1, %s33
    %s52 = scalar_select %p49, %s51, %s33
    %p53 = scmp.ge.s32.totalorder %s52, 3
    %s54 = scalar_select %p53, 0, %s52
    %s55 = sadd.s32 1, %s32
    %s56 = scalar_select %p53, %s55, %s32
    %p57 = scmp.ge.s32.totalorder %s56, 2
    %s58 = scalar_select %p57, 0, %s56
    %s59 = ssub.s32 %s32, %s58
    %p60 = scmp.eq.s32.totalorder %s59, 0
    %s62 = sadd.s32 %s61, 1
    %s63 = scalar_select %p60, %s61, %s62
    %p66 = pneg %p60
    %p67 = scmp.eq.s32.totalorder %s25, 11
    %p68 = por %p66, %p67
    %p69 = scmp.ne.s32.totalorder %s61, %s64
    %p70 = scmp.eq.s32.totalorder %s25, 0
    %p71 = por %p69, %p70
    %p72 = scmp.ne.s32.totalorder %s61, %s64
    %p73 = scmp.eq.s32.totalorder %s30, 11
    %p74 = por %p72, %p73
    %p75 = scmp.ne.s32.totalorder %s64, %s65
    %p76 = scmp.eq.s32.totalorder %s30, 0
    %p77 = por %p75, %p76
    %p78 = scmp.ne.s32.totalorder %s64, %s65
    %p79 = scmp.eq.s32.totalorder %s31, 11
    %p80 = por %p78, %p79
    %p82 = scmp.ne.s32.totalorder %s65, %s81
    %p83 = scmp.eq.s32.totalorder %s31, 0
    %p84 = por %p82, %p83
    %s85 = ssub.s32 %s32, %s58
    %s86 = ssub.s32 %s33, %s54
    %s87 = sor.u32 %s85, %s86
    %s88 = ssub.s32 %s35, %s46
    %s89 = sor.u32 %s87, %s88
    %p90 = scmp.eq.s32.totalorder %s89, 0
    %s92 = sadd.s32 %s91, 1
    %s93 = scalar_select %p90, %s91, %s92
    %p96 = pneg %p90
    %p97 = scmp.eq.s32.totalorder %s25, 11
    %p98 = por %p96, %p97
    %p99 = scmp.ne.s32.totalorder %s91, %s94
    %p100 = scmp.eq.s32.totalorder %s25, 0
    %p101 = por %p99, %p100
    %p102 = scmp.ne.s32.totalorder %s91, %s94
    %p103 = scmp.eq.s32.totalorder %s30, 11
    %p104 = por %p102, %p103
    %p105 = scmp.ne.s32.totalorder %s94, %s95
    %p106 = scmp.eq.s32.totalorder %s30, 0
    %p107 = por %p105, %p106
    %p108 = scmp.ne.s32.totalorder %s94, %s95
    %p109 = scmp.eq.s32.totalorder %s31, 11
    %p110 = por %p108, %p109
    %p112 = scmp.ne.s32.totalorder %s95, %s111
    %p113 = scmp.eq.s32.totalorder %s31, 0
    %p114 = por %p112, %p113
    %s115 = ssub.s32 %s32, %s58
    %s116 = ssub.s32 %s35, %s46
    %s117 = sor.u32 %s115, %s116
    %p118 = scmp.eq.s32.totalorder %s117, 0
    %s120 = sadd.s32 %s119, 1
    %s121 = scalar_select %p118, %s119, %s120
    %p124 = pneg %p118
    %p125 = scmp.eq.s32.totalorder %s25, 11
    %p126 = por %p124, %p125
    %p127 = scmp.ne.s32.totalorder %s119, %s122
    %p128 = scmp.eq.s32.totalorder %s25, 0
    %p129 = por %p127, %p128
    %p130 = scmp.ne.s32.totalorder %s119, %s122
    %p131 = scmp.eq.s32.totalorder %s30, 11
    %p132 = por %p130, %p131
    %p133 = scmp.ne.s32.totalorder %s122, %s123
    %p134 = scmp.eq.s32.totalorder %s30, 0
    %p135 = por %p133, %p134
    %p136 = scmp.ne.s32.totalorder %s122, %s123
    %p137 = scmp.eq.s32.totalorder %s31, 11
    %p138 = por %p136, %p137
    %p140 = scmp.ne.s32.totalorder %s123, %s139
    %p141 = scmp.eq.s32.totalorder %s31, 0
    %p142 = por %p140, %p141
    %s143 = ssub.s32 %s32, %s58
    %s144 = ssub.s32 %s33, %s54
    %s145 = sor.u32 %s143, %s144
    %s146 = ssub.s32 %s34, %s50
    %s147 = sor.u32 %s145, %s146
    %p148 = scmp.eq.s32.totalorder %s147, 0
    %s150 = sadd.s32 %s149, 1
    %s151 = scalar_select %p148, %s149, %s150
    %p154 = pneg %p148
    %p155 = scmp.eq.s32.totalorder %s25, 11
    %p156 = por %p154, %p155
    %p157 = scmp.ne.s32.totalorder %s149, %s152
    %p158 = scmp.eq.s32.totalorder %s25, 0
    %p159 = por %p157, %p158
    %p160 = scmp.ne.s32.totalorder %s149, %s152
    %p161 = scmp.eq.s32.totalorder %s30, 11
    %p162 = por %p160, %p161
    %p163 = scmp.ne.s32.totalorder %s152, %s153
    %p164 = scmp.eq.s32.totalorder %s30, 0
    %p165 = por %p163, %p164
    %p166 = scmp.ne.s32.totalorder %s152, %s153
    %p167 = scmp.eq.s32.totalorder %s31, 11
    %p168 = por %p166, %p167
    %p170 = scmp.ne.s32.totalorder %s153, %s169
    %p171 = scmp.eq.s32.totalorder %s31, 0
    %p172 = por %p170, %p171
    %s173 = ssub.s32 %s32, %s58
    %p174 = scmp.eq.s32.totalorder %s173, 0
    %s176 = sadd.s32 %s175, 1
    %s177 = scalar_select %p174, %s175, %s176
    %p180 = pneg %p174
    %p181 = scmp.eq.s32.totalorder %s25, 11
    %p182 = por %p180, %p181
    %p183 = scmp.ne.s32.totalorder %s175, %s178
    %p184 = scmp.eq.s32.totalorder %s25, 0
    %p185 = por %p183, %p184
    %p186 = scmp.ne.s32.totalorder %s175, %s178
    %p187 = scmp.eq.s32.totalorder %s30, 11
    %p188 = por %p186, %p187
    %p189 = scmp.ne.s32.totalorder %s178, %s179
    %p190 = scmp.eq.s32.totalorder %s30, 0
    %p191 = por %p189, %p190
    %p192 = scmp.ne.s32.totalorder %s178, %s179
    %p193 = scmp.eq.s32.totalorder %s31, 11
    %p194 = por %p192, %p193
    %p196 = scmp.ne.s32.totalorder %s179, %s195
    %p197 = scmp.eq.s32.totalorder %s31, 0
    %p198 = por %p196, %p197
    %p199 = scmp.le.s32.totalorder 1, %s25
    %p200 = scmp.lt.s32.totalorder %s25, 13
    %p201 = pnand %p199, %p200
    %p202 = pneg %p201
    // Predicated region
    $region9: #{detr3d_cross_attn.6} parent=5 // pred_check
      _
    $region10: #{detr3d_cross_attn.6} parent=5 // pred_check_branch
      %204 = sbr.rel (%p201) target = $region12
    $region11: #{detr3d_cross_attn.6} parent=5 // pred_region
      %s205 = ssub.s32 %s25, 1
    $region12: #{detr3d_cross_attn.6} parent=5 // pred_fallthru
      _
    %p206 = scmp.lt.s32.totalorder %s25, 12
    // Predicated region
    $region13: #{detr3d_cross_attn.6} parent=5 // pred_check
      %p207 = pneg %p206
    $region14: #{detr3d_cross_attn.6} parent=5 // pred_check_branch
      %209 = sbr.rel (%p207) target = $region16
    $region15: #{detr3d_cross_attn.6} parent=5 // pred_region
      // Predicated region
      $region17: #{detr3d_cross_attn.6} parent=15 // pred_check
        %p210 = pneg %p71
      $region18: #{detr3d_cross_attn.6} parent=15 // pred_check_branch
        %212 = sbr.rel (%p210) target = $region20
      $region19: #{detr3d_cross_attn.6} parent=15 // pred_region
        %p213 = scmp.lt.s32.totalorder %s32, 1
        %s214 = scalar_select %p213, %s32, 1
        %s215 = smul.addr %s214, 8
        %s216 = smul.addr %s215, 8
        %s217 = scalar_lea.vmem %s2, %s216
      $region20: #{detr3d_cross_attn.6} parent=15 // pred_fallthru
        _
      // Predicated region
      $region21: #{detr3d_cross_attn.6} parent=15 // pred_check
        %p218 = pneg %p101
      $region22: #{detr3d_cross_attn.6} parent=15 // pred_check_branch
        %220 = sbr.rel (%p218) target = $region24
      $region23: #{detr3d_cross_attn.6} parent=15 // pred_region
        %p221 = scmp.lt.s32.totalorder %s32, 1
        %s222 = scalar_select %p221, %s32, 1
        %p223 = scmp.lt.s32.totalorder %s33, 2
        %s224 = scalar_select %p223, %s33, 2
        %p225 = scmp.lt.s32.totalorder %s35, 1
        %s226 = scalar_select %p225, %s35, 1
        %s227 = smul.addr %s224, 2
        %s228 = sadd.s32 %s226, %s227
        %s229 = smul.addr %s222, 6
        %s230 = sadd.s32 %s228, %s229
        %s231 = scalar_lea.vmem %s3, %s230
      $region24: #{detr3d_cross_attn.6} parent=15 // pred_fallthru
        _
      // Predicated region
      $region25: #{detr3d_cross_attn.6} parent=15 // pred_check
        %p232 = pneg %p129
      $region26: #{detr3d_cross_attn.6} parent=15 // pred_check_branch
        %234 = sbr.rel (%p232) target = $region28
      $region27: #{detr3d_cross_attn.6} parent=15 // pred_region
        %p235 = scmp.lt.s32.totalorder %s32, 1
        %s236 = scalar_select %p235, %s32, 1
        %p237 = scmp.lt.s32.totalorder %s35, 1
        %s238 = scalar_select %p237, %s35, 1
        %s239 = smul.addr %s236, 2
        %s240 = sadd.s32 %s238, %s239
        %s241 = smul.addr %s240, 4
        %s242 = scalar_lea.vmem %s4, %s241
      $region28: #{detr3d_cross_attn.6} parent=15 // pred_fallthru
        _
      // Predicated region
      $region29: #{detr3d_cross_attn.6} parent=15 // pred_check
        %p243 = pneg %p159
      $region30: #{detr3d_cross_attn.6} parent=15 // pred_check_branch
        %245 = sbr.rel (%p243) target = $region32
      $region31: #{detr3d_cross_attn.6} parent=15 // pred_region
        %s246 = smul.u32 2, %s34
        %p247 = scmp.lt.s32.totalorder %s32, 1
        %s248 = scalar_select %p247, %s32, 1
        %p249 = scmp.lt.s32.totalorder %s33, 2
        %s250 = scalar_select %p249, %s33, 2
        %p251 = scmp.lt.s32.totalorder %s246, 1
        %s252 = scalar_select %p251, %s246, 1
        %s253 = smul.addr %s250, 8
        %s254 = sadd.s32 %s252, %s253
        %s255 = smul.addr %s248, 24
        %s256 = sadd.s32 %s254, %s255
        %s257 = smul.addr %s256, 4
        %s258 = scalar_lea.vmem %s5, %s257
        %s259 = smul.u32 2, %s34
      $region32: #{detr3d_cross_attn.6} parent=15 // pred_fallthru
        _
    $region16: #{detr3d_cross_attn.6} parent=5 // pred_fallthru
      _
    %p260 = scmp.le.s32.totalorder 1, %s25
    %p261 = scmp.lt.s32.totalorder %s25, 13
    %p262 = pnand %p260, %p261
    %p263 = pneg %p262
    // Predicated region
    $region33: #{detr3d_cross_attn.6} parent=5 // pred_check
      _
    $region34: #{detr3d_cross_attn.6} parent=5 // pred_check_branch
      %265 = sbr.rel (%p262) target = $region36
    $region35: #{detr3d_cross_attn.6} parent=5 // pred_region
      %s266 = ssub.s32 %s25, 1
      %p267 = scmp.lt.s32.totalorder %s36, 1
      %s268 = scalar_select %p267, %s36, 1
      %s269 = smul.addr %s268, 8
      %s270 = smul.addr %s269, 8
      %s271 = scalar_lea.vmem %s2, %s270
      %p272 = pneg %p77
      %p273 = pneg %p74
      %p274 = scmp.lt.s32.totalorder %s36, 1
      %s275 = scalar_select %p274, %s36, 1
      %p276 = scmp.lt.s32.totalorder %s37, 2
      %s277 = scalar_select %p276, %s37, 2
      %p278 = scmp.lt.s32.totalorder %s39, 1
      %s279 = scalar_select %p278, %s39, 1
      %s280 = smul.addr %s277, 2
      %s281 = sadd.s32 %s279, %s280
      %s282 = smul.addr %s275, 6
      %s283 = sadd.s32 %s281, %s282
      %s284 = scalar_lea.vmem %s3, %s283
      %p285 = pneg %p107
      %p286 = pneg %p104
      %p287 = scmp.lt.s32.totalorder %s36, 1
      %s288 = scalar_select %p287, %s36, 1
      %p289 = scmp.lt.s32.totalorder %s39, 1
      %s290 = scalar_select %p289, %s39, 1
      %s291 = smul.addr %s288, 2
      %s292 = sadd.s32 %s290, %s291
      %s293 = smul.addr %s292, 4
      %s294 = scalar_lea.vmem %s4, %s293
      %p295 = pneg %p135
      %p296 = pneg %p132
      %s297 = smul.u32 2, %s38
      %p298 = scmp.lt.s32.totalorder %s36, 1
      %s299 = scalar_select %p298, %s36, 1
      %p300 = scmp.lt.s32.totalorder %s37, 2
      %s301 = scalar_select %p300, %s37, 2
      %p302 = scmp.lt.s32.totalorder %s297, 1
      %s303 = scalar_select %p302, %s297, 1
      %s304 = smul.addr %s301, 8
      %s305 = sadd.s32 %s303, %s304
      %s306 = smul.addr %s299, 24
      %s307 = sadd.s32 %s305, %s306
      %s308 = smul.addr %s307, 4
      %s309 = scalar_lea.vmem %s5, %s308
      %p310 = pneg %p165
      %p311 = pneg %p162
      %p312 = pneg %p191
      %p313 = pneg %p188
      %p314 = scmp.lt.s32.totalorder %s36, 1
      %s315 = scalar_select %p314, %s36, 1
      %s316 = smul.addr %s315, 8
      %s317 = smul.addr %s316, 8
      %s318 = scalar_lea.vmem %s6, %s317
      %p319 = scmp.lt.s32.totalorder %s36, 1
      %s320 = scalar_select %p319, %s36, 1
      %s321 = smul.addr %s320, 8
      %s322 = smul.addr %s321, 8
      %s323 = scalar_lea.vmem %s2, %s322
      %p324 = scmp.lt.s32.totalorder %s36, 1
      %s325 = scalar_select %p324, %s36, 1
      %p326 = scmp.lt.s32.totalorder %s37, 2
      %s327 = scalar_select %p326, %s37, 2
      %p328 = scmp.lt.s32.totalorder %s39, 1
      %s329 = scalar_select %p328, %s39, 1
      %s330 = smul.addr %s327, 2
      %s331 = sadd.s32 %s329, %s330
      %s332 = smul.addr %s325, 6
      %s333 = sadd.s32 %s331, %s332
      %s334 = scalar_lea.vmem %s3, %s333
      %p335 = scmp.lt.s32.totalorder %s36, 1
      %s336 = scalar_select %p335, %s36, 1
      %p337 = scmp.lt.s32.totalorder %s39, 1
      %s338 = scalar_select %p337, %s39, 1
      %s339 = smul.addr %s336, 2
      %s340 = sadd.s32 %s338, %s339
      %s341 = smul.addr %s340, 4
      %s342 = scalar_lea.vmem %s4, %s341
      %s343 = smul.u32 2, %s38
      %p344 = scmp.lt.s32.totalorder %s36, 1
      %s345 = scalar_select %p344, %s36, 1
      %p346 = scmp.lt.s32.totalorder %s37, 2
      %s347 = scalar_select %p346, %s37, 2
      %p348 = scmp.lt.s32.totalorder %s343, 1
      %s349 = scalar_select %p348, %s343, 1
      %s350 = smul.addr %s347, 8
      %s351 = sadd.s32 %s349, %s350
      %s352 = smul.addr %s345, 24
      %s353 = sadd.s32 %s351, %s352
      %s354 = smul.addr %s353, 4
      %s355 = scalar_lea.vmem %s5, %s354
      %s356 = smul.u32 2, %s38
      %p357 = scmp.lt.s32.totalorder %s36, 1
      %s358 = scalar_select %p357, %s36, 1
      %s359 = smul.addr %s358, 8
      %s360 = smul.addr %s359, 8
      %s361 = scalar_lea.vmem %s6, %s360
      %p362 = scmp.eq.s32.totalorder %s37, 0
      %p363 = scmp.eq.s32.totalorder %s38, 0
      %p364 = pnand %p362, %p363
      %p365 = pneg %p364
      %p366 = scmp.eq.s32.totalorder %s39, 0
      %p367 = pnand %p365, %p366
      %p368 = pneg %p367
      // Predicated region
      $region37: #{detr3d_cross_attn.6} parent=35 // pred_check
        _
      $region38: #{detr3d_cross_attn.6} parent=35 // pred_check_branch
        %370 = sbr.rel (%p367) target = $region40
      $region39: #{detr3d_cross_attn.6} parent=35 // pred_region
        %371 = vst [vmem:[#allocation2] sm:$0xff] 0.0
        %372 = vst [vmem:[#allocation2 + $0x8] sm:$0xff] 0.0
        %373 = vst [vmem:[#allocation2 + $0x10] sm:$0xff] 0.0
        %374 = vst [vmem:[#allocation2 + $0x18] sm:$0xff] 0.0
        %375 = vst [vmem:[#allocation2 + $0x20] sm:$0xff] 0.0
        %376 = vst [vmem:[#allocation2 + $0x28] sm:$0xff] 0.0
        %377 = vst [vmem:[#allocation2 + $0x30] sm:$0xff] 0.0
        %378 = vst [vmem:[#allocation2 + $0x38] sm:$0xff] 0.0
      $region40: #{detr3d_cross_attn.6} parent=35 // pred_fallthru
        _
      %s379 = smul.u32 %s36, 3
      %s380 = sadd.s32 %s379, %s37
      %s381 = sadd.s32 %s380, %s38
      %s382 = smul.u32 %s381, 2
      %s383 = sadd.s32 %s382, %s39
      %s384 = sld [smem:[#allocation5 + %s383]]
      %p385 = scmp.ne.s32.totalorder %s384, 0
      // Predicated region
      $region41: #{detr3d_cross_attn.6} parent=35 // pred_check
        %p386 = pneg %p385
      $region42: #{detr3d_cross_attn.6} parent=35 // pred_check_branch
        %388 = sbr.rel (%p386) target = $region44
      $region43: #{detr3d_cross_attn.6} parent=35 // pred_region
        %v389 = vld [vmem:[%s342] sm:$0x1]
        %v390 = vld [vmem:[%s342 + $0x1] sm:$0x1]
        %v391 = vld [vmem:[%s342 + $0x2] sm:$0x1]
        %s392 = smul.u32 %s380, 12
        %s393 = sld [smem:[#allocation4 + %s392]]
        %s394 = sadd.s32 %s392, 1
        %s395 = sld [smem:[#allocation4 + %s394]]
        %s396 = sadd.s32 %s392, 2
        %s397 = sld [smem:[#allocation4 + %s396]]
        %s398 = sadd.s32 %s392, 3
        %s399 = sld [smem:[#allocation4 + %s398]]
        %s400 = sadd.s32 %s392, 4
        %s401 = sld [smem:[#allocation4 + %s400]]
        %s402 = sadd.s32 %s392, 5
        %s403 = sld [smem:[#allocation4 + %s402]]
        %s404 = sadd.s32 %s392, 6
        %s405 = sld [smem:[#allocation4 + %s404]]
        %s406 = sadd.s32 %s392, 7
        %s407 = sld [smem:[#allocation4 + %s406]]
        %s408 = sadd.s32 %s392, 8
        %s409 = sld [smem:[#allocation4 + %s408]]
        %s410 = sadd.s32 %s392, 9
        %s411 = sld [smem:[#allocation4 + %s410]]
        %s412 = sadd.s32 %s392, 10
        %s413 = sld [smem:[#allocation4 + %s412]]
        %s414 = sadd.s32 %s392, 11
        %s415 = sld [smem:[#allocation4 + %s414]]
        %v416 = vstv %s393
        %v417 = vmul.f32 %v389, %v416
        %v418 = vstv %s395
        %v419 = vmul.f32 %v390, %v418
        %v420 = vadd.f32 %v417, %v419
        %v421 = vstv %s397
        %v422 = vmul.f32 %v391, %v421
        %v423 = vadd.f32 %v420, %v422
        %v424 = vstv %s399
        %v425 = vadd.f32 %v423, %v424
        %v426 = vstv %s401
        %v427 = vmul.f32 %v389, %v426
        %v428 = vstv %s403
        %v429 = vmul.f32 %v390, %v428
        %v430 = vadd.f32 %v427, %v429
        %v431 = vstv %s405
        %v432 = vmul.f32 %v391, %v431
        %v433 = vadd.f32 %v430, %v432
        %v434 = vstv %s407
        %v435 = vadd.f32 %v433, %v434
        %v436 = vstv %s409
        %v437 = vmul.f32 %v389, %v436
        %v438 = vstv %s411
        %v439 = vmul.f32 %v390, %v438
        %v440 = vadd.f32 %v437, %v439
        %v441 = vstv %s413
        %v442 = vmul.f32 %v391, %v441
        %v443 = vadd.f32 %v440, %v442
        %v444 = vstv %s415
        %v445 = vadd.f32 %v443, %v444
        %vm446 = vcmp.ge.f32.partialorder %v445, 1e-05
        %v447 = vmax.f32 %v445, 1e-05
        %v448 = vrcp.pop %v447
        %v449 = vmul.f32 %v425, %v448
        %v450 = vmul.f32 %v435, %v448
        %vm451 = vcmp.gt.f32.partialorder %v449, 0.0
        %vm452 = vmand %vm446, %vm451
        %vm453 = vcmp.lt.f32.partialorder %v449, 1.0
        %vm454 = vmand %vm452, %vm453
        %vm455 = vcmp.gt.f32.partialorder %v450, 0.0
        %vm456 = vmand %vm454, %vm455
        %vm457 = vcmp.lt.f32.partialorder %v450, 1.0
        %vm458 = vmand %vm456, %vm457
        %v459 = vmul.f32 %v449, 16.0
        %v460 = vsub.f32 %v459, 0.5
        %v461 = vmax.f32 %v460, -2.0
        %v462 = vmin.f32 %v461, 18.0
        %v463 = vmul.f32 %v450, 16.0
        %v464 = vsub.f32 %v463, 0.5
        %v465 = vmax.f32 %v464, -2.0
        %v466 = vmin.f32 %v465, 18.0
        %v467 = vfloor.f32 %v462
        %v468 = vfloor.f32 %v466
        %v469 = vsub.f32 %v462, %v467
        %v470 = vsub.f32 %v466, %v468
        %v471 = vcvt.f32.s32.to.zero.pseudo %v467
        %v472 = vcvt.f32.s32.to.zero.pseudo %v468
        %v473 = vsel %vm458, 1, 0
        %v474 = vcvt.s32.f32 %v473
        %v475 = vld [vmem:[%s334] sm:$0x1]
        %v476 = vmul.f32 %v474, %v475
        %vm477 = vcmp.ge.s32.totalorder %v471, 0
        %vm478 = vcmp.lt.s32.totalorder %v471, 16
        %vm479 = vmand %vm477, %vm478
        %vm480 = vcmp.ge.s32.totalorder %v471, 4294967295
        %vm481 = vcmp.lt.s32.totalorder %v471, 15
        %vm482 = vmand %vm480, %vm481
        %vm483 = vcmp.ge.s32.totalorder %v472, 0
        %vm484 = vcmp.lt.s32.totalorder %v472, 16
        %vm485 = vmand %vm483, %vm484
        %vm486 = vcmp.ge.s32.totalorder %v472, 4294967295
        %vm487 = vcmp.lt.s32.totalorder %v472, 15
        %vm488 = vmand %vm486, %vm487
        %vm489 = vmand %vm485, %vm479
        %v490 = vsub.f32 1.0, %v470
        %v491 = vsub.f32 1.0, %v469
        %v492 = vmul.f32 %v490, %v491
        %v493 = vsel %vm489, %v492, 0.0
        %v494 = vmul.f32 %v493, %v476
        %vm495 = vmand %vm485, %vm482
        %v496 = vmul.f32 %v490, %v469
        %v497 = vsel %vm495, %v496, 0.0
        %v498 = vmul.f32 %v497, %v476
        %vm499 = vmand %vm488, %vm479
        %v500 = vmul.f32 %v470, %v491
        %v501 = vsel %vm499, %v500, 0.0
        %v502 = vmul.f32 %v501, %v476
        %vm503 = vmand %vm488, %vm482
        %v504 = vmul.f32 %v470, %v469
        %v505 = vsel %vm503, %v504, 0.0
        %v506 = vmul.f32 %v505, %v476
        %v507 = vmul.u32 %v472, 16
        %v508 = vadd.s32 %v507, %v471
        %s509 = smul.u32 %s38, 256
        %v510 = vstv %s509
        %v511 = vsub.s32 %v508, %v510
        %v512 = vlaneseq
        %v513 = vshrl.u32 %v512, 7
        %v514 = vadd.s32 %v513, 8
        %v515 = vadd.s32 %v513, 16
        %v516 = vadd.s32 %v513, 24
        %v517 = vadd.s32 %v513, 32
        %v518 = vadd.s32 %v513, 40
        %v519 = vadd.s32 %v513, 48
        %v520 = vadd.s32 %v513, 56
        %v521 = vadd.s32 %v513, 64
        %v522 = vadd.s32 %v513, 72
        %v523 = vadd.s32 %v513, 80
        %v524 = vadd.s32 %v513, 88
        %v525 = vadd.s32 %v513, 96
        %v526 = vadd.s32 %v513, 104
        %v527 = vadd.s32 %v513, 112
        %v528 = vadd.s32 %v513, 120
        %v529 = vadd.s32 %v513, 128
        %v530 = vadd.s32 %v513, 136
        %v531 = vadd.s32 %v513, 144
        %v532 = vadd.s32 %v513, 152
        %v533 = vadd.s32 %v513, 160
        %v534 = vadd.s32 %v513, 168
        %v535 = vadd.s32 %v513, 176
        %v536 = vadd.s32 %v513, 184
        %v537 = vadd.s32 %v513, 192
        %v538 = vadd.s32 %v513, 200
        %v539 = vadd.s32 %v513, 208
        %v540 = vadd.s32 %v513, 216
        %v541 = vadd.s32 %v513, 224
        %v542 = vadd.s32 %v513, 232
        %v543 = vadd.s32 %v513, 240
        %v544 = vadd.s32 %v513, 248
        %v545 = vperm.slane %v511, 0
        %v546 = vsub.s32 %v513, %v545
        %v547 = vsub.s32 %v514, %v545
        %v548 = vsub.s32 %v515, %v545
        %v549 = vsub.s32 %v516, %v545
        %v550 = vsub.s32 %v517, %v545
        %v551 = vsub.s32 %v518, %v545
        %v552 = vsub.s32 %v519, %v545
        %v553 = vsub.s32 %v520, %v545
        %v554 = vsub.s32 %v521, %v545
        %v555 = vsub.s32 %v522, %v545
        %v556 = vsub.s32 %v523, %v545
        %v557 = vsub.s32 %v524, %v545
        %v558 = vsub.s32 %v525, %v545
        %v559 = vsub.s32 %v526, %v545
        %v560 = vsub.s32 %v527, %v545
        %v561 = vsub.s32 %v528, %v545
        %v562 = vsub.s32 %v529, %v545
        %v563 = vsub.s32 %v530, %v545
        %v564 = vsub.s32 %v531, %v545
        %v565 = vsub.s32 %v532, %v545
        %v566 = vsub.s32 %v533, %v545
        %v567 = vsub.s32 %v534, %v545
        %v568 = vsub.s32 %v535, %v545
        %v569 = vsub.s32 %v536, %v545
        %v570 = vsub.s32 %v537, %v545
        %v571 = vsub.s32 %v538, %v545
        %v572 = vsub.s32 %v539, %v545
        %v573 = vsub.s32 %v540, %v545
        %v574 = vsub.s32 %v541, %v545
        %v575 = vsub.s32 %v542, %v545
        %v576 = vsub.s32 %v543, %v545
        %v577 = vsub.s32 %v544, %v545
        %vm578 = vcmp.eq.s32.totalorder %v546, 0
        %vm579 = vcmp.eq.s32.totalorder %v547, 0
        %vm580 = vcmp.eq.s32.totalorder %v548, 0
        %vm581 = vcmp.eq.s32.totalorder %v549, 0
        %vm582 = vcmp.eq.s32.totalorder %v550, 0
        %vm583 = vcmp.eq.s32.totalorder %v551, 0
        %vm584 = vcmp.eq.s32.totalorder %v552, 0
        %vm585 = vcmp.eq.s32.totalorder %v553, 0
        %vm586 = vcmp.eq.s32.totalorder %v554, 0
        %vm587 = vcmp.eq.s32.totalorder %v555, 0
        %vm588 = vcmp.eq.s32.totalorder %v556, 0
        %vm589 = vcmp.eq.s32.totalorder %v557, 0
        %vm590 = vcmp.eq.s32.totalorder %v558, 0
        %vm591 = vcmp.eq.s32.totalorder %v559, 0
        %vm592 = vcmp.eq.s32.totalorder %v560, 0
        %vm593 = vcmp.eq.s32.totalorder %v561, 0
        %vm594 = vcmp.eq.s32.totalorder %v562, 0
        %vm595 = vcmp.eq.s32.totalorder %v563, 0
        %vm596 = vcmp.eq.s32.totalorder %v564, 0
        %vm597 = vcmp.eq.s32.totalorder %v565, 0
        %vm598 = vcmp.eq.s32.totalorder %v566, 0
        %vm599 = vcmp.eq.s32.totalorder %v567, 0
        %vm600 = vcmp.eq.s32.totalorder %v568, 0
        %vm601 = vcmp.eq.s32.totalorder %v569, 0
        %vm602 = vcmp.eq.s32.totalorder %v570, 0
        %vm603 = vcmp.eq.s32.totalorder %v571, 0
        %vm604 = vcmp.eq.s32.totalorder %v572, 0
        %vm605 = vcmp.eq.s32.totalorder %v573, 0
        %vm606 = vcmp.eq.s32.totalorder %v574, 0
        %vm607 = vcmp.eq.s32.totalorder %v575, 0
        %vm608 = vcmp.eq.s32.totalorder %v576, 0
        %vm609 = vcmp.eq.s32.totalorder %v577, 0
        %v610 = vperm.slane %v494, 0
        %v611 = vsel %vm578, %v610, 0.0
        %v612 = vsel %vm579, %v610, 0.0
        %v613 = vsel %vm580, %v610, 0.0
        %v614 = vsel %vm581, %v610, 0.0
        %v615 = vsel %vm582, %v610, 0.0
        %v616 = vsel %vm583, %v610, 0.0
        %v617 = vsel %vm584, %v610, 0.0
        %v618 = vsel %vm585, %v610, 0.0
        %v619 = vsel %vm586, %v610, 0.0
        %v620 = vsel %vm587, %v610, 0.0
        %v621 = vsel %vm588, %v610, 0.0
        %v622 = vsel %vm589, %v610, 0.0
        %v623 = vsel %vm590, %v610, 0.0
        %v624 = vsel %vm591, %v610, 0.0
        %v625 = vsel %vm592, %v610, 0.0
        %v626 = vsel %vm593, %v610, 0.0
        %v627 = vsel %vm594, %v610, 0.0
        %v628 = vsel %vm595, %v610, 0.0
        %v629 = vsel %vm596, %v610, 0.0
        %v630 = vsel %vm597, %v610, 0.0
        %v631 = vsel %vm598, %v610, 0.0
        %v632 = vsel %vm599, %v610, 0.0
        %v633 = vsel %vm600, %v610, 0.0
        %v634 = vsel %vm601, %v610, 0.0
        %v635 = vsel %vm602, %v610, 0.0
        %v636 = vsel %vm603, %v610, 0.0
        %v637 = vsel %vm604, %v610, 0.0
        %v638 = vsel %vm605, %v610, 0.0
        %v639 = vsel %vm606, %v610, 0.0
        %v640 = vsel %vm607, %v610, 0.0
        %v641 = vsel %vm608, %v610, 0.0
        %v642 = vsel %vm609, %v610, 0.0
        %vm643 = vcmp.eq.s32.totalorder %v546, 1
        %vm644 = vcmp.eq.s32.totalorder %v547, 1
        %vm645 = vcmp.eq.s32.totalorder %v548, 1
        %vm646 = vcmp.eq.s32.totalorder %v549, 1
        %vm647 = vcmp.eq.s32.totalorder %v550, 1
        %vm648 = vcmp.eq.s32.totalorder %v551, 1
        %vm649 = vcmp.eq.s32.totalorder %v552, 1
        %vm650 = vcmp.eq.s32.totalorder %v553, 1
        %vm651 = vcmp.eq.s32.totalorder %v554, 1
        %vm652 = vcmp.eq.s32.totalorder %v555, 1
        %vm653 = vcmp.eq.s32.totalorder %v556, 1
        %vm654 = vcmp.eq.s32.totalorder %v557, 1
        %vm655 = vcmp.eq.s32.totalorder %v558, 1
        %vm656 = vcmp.eq.s32.totalorder %v559, 1
        %vm657 = vcmp.eq.s32.totalorder %v560, 1
        %vm658 = vcmp.eq.s32.totalorder %v561, 1
        %vm659 = vcmp.eq.s32.totalorder %v562, 1
        %vm660 = vcmp.eq.s32.totalorder %v563, 1
        %vm661 = vcmp.eq.s32.totalorder %v564, 1
        %vm662 = vcmp.eq.s32.totalorder %v565, 1
        %vm663 = vcmp.eq.s32.totalorder %v566, 1
        %vm664 = vcmp.eq.s32.totalorder %v567, 1
        %vm665 = vcmp.eq.s32.totalorder %v568, 1
        %vm666 = vcmp.eq.s32.totalorder %v569, 1
        %vm667 = vcmp.eq.s32.totalorder %v570, 1
        %vm668 = vcmp.eq.s32.totalorder %v571, 1
        %vm669 = vcmp.eq.s32.totalorder %v572, 1
        %vm670 = vcmp.eq.s32.totalorder %v573, 1
        %vm671 = vcmp.eq.s32.totalorder %v574, 1
        %vm672 = vcmp.eq.s32.totalorder %v575, 1
        %vm673 = vcmp.eq.s32.totalorder %v576, 1
        %vm674 = vcmp.eq.s32.totalorder %v577, 1
        %v675 = vperm.slane %v498, 0
        %v676 = vsel %vm643, %v675, 0.0
        %v677 = vsel %vm644, %v675, 0.0
        %v678 = vsel %vm645, %v675, 0.0
        %v679 = vsel %vm646, %v675, 0.0
        %v680 = vsel %vm647, %v675, 0.0
        %v681 = vsel %vm648, %v675, 0.0
        %v682 = vsel %vm649, %v675, 0.0
        %v683 = vsel %vm650, %v675, 0.0
        %v684 = vsel %vm651, %v675, 0.0
        %v685 = vsel %vm652, %v675, 0.0
        %v686 = vsel %vm653, %v675, 0.0
        %v687 = vsel %vm654, %v675, 0.0
        %v688 = vsel %vm655, %v675, 0.0
        %v689 = vsel %vm656, %v675, 0.0
        %v690 = vsel %vm657, %v675, 0.0
        %v691 = vsel %vm658, %v675, 0.0
        %v692 = vsel %vm659, %v675, 0.0
        %v693 = vsel %vm660, %v675, 0.0
        %v694 = vsel %vm661, %v675, 0.0
        %v695 = vsel %vm662, %v675, 0.0
        %v696 = vsel %vm663, %v675, 0.0
        %v697 = vsel %vm664, %v675, 0.0
        %v698 = vsel %vm665, %v675, 0.0
        %v699 = vsel %vm666, %v675, 0.0
        %v700 = vsel %vm667, %v675, 0.0
        %v701 = vsel %vm668, %v675, 0.0
        %v702 = vsel %vm669, %v675, 0.0
        %v703 = vsel %vm670, %v675, 0.0
        %v704 = vsel %vm671, %v675, 0.0
        %v705 = vsel %vm672, %v675, 0.0
        %v706 = vsel %vm673, %v675, 0.0
        %v707 = vsel %vm674, %v675, 0.0
        %v708 = vadd.f32 %v611, %v676
        %v709 = vadd.f32 %v612, %v677
        %v710 = vadd.f32 %v613, %v678
        %v711 = vadd.f32 %v614, %v679
        %v712 = vadd.f32 %v615, %v680
        %v713 = vadd.f32 %v616, %v681
        %v714 = vadd.f32 %v617, %v682
        %v715 = vadd.f32 %v618, %v683
        %v716 = vadd.f32 %v619, %v684
        %v717 = vadd.f32 %v620, %v685
        %v718 = vadd.f32 %v621, %v686
        %v719 = vadd.f32 %v622, %v687
        %v720 = vadd.f32 %v623, %v688
        %v721 = vadd.f32 %v624, %v689
        %v722 = vadd.f32 %v625, %v690
        %v723 = vadd.f32 %v626, %v691
        %v724 = vadd.f32 %v627, %v692
        %v725 = vadd.f32 %v628, %v693
        %v726 = vadd.f32 %v629, %v694
        %v727 = vadd.f32 %v630, %v695
        %v728 = vadd.f32 %v631, %v696
        %v729 = vadd.f32 %v632, %v697
        %v730 = vadd.f32 %v633, %v698
        %v731 = vadd.f32 %v634, %v699
        %v732 = vadd.f32 %v635, %v700
        %v733 = vadd.f32 %v636, %v701
        %v734 = vadd.f32 %v637, %v702
        %v735 = vadd.f32 %v638, %v703
        %v736 = vadd.f32 %v639, %v704
        %v737 = vadd.f32 %v640, %v705
        %v738 = vadd.f32 %v641, %v706
        %v739 = vadd.f32 %v642, %v707
        %vm740 = vcmp.eq.s32.totalorder %v546, 16
        %vm741 = vcmp.eq.s32.totalorder %v547, 16
        %vm742 = vcmp.eq.s32.totalorder %v548, 16
        %vm743 = vcmp.eq.s32.totalorder %v549, 16
        %vm744 = vcmp.eq.s32.totalorder %v550, 16
        %vm745 = vcmp.eq.s32.totalorder %v551, 16
        %vm746 = vcmp.eq.s32.totalorder %v552, 16
        %vm747 = vcmp.eq.s32.totalorder %v553, 16
        %vm748 = vcmp.eq.s32.totalorder %v554, 16
        %vm749 = vcmp.eq.s32.totalorder %v555, 16
        %vm750 = vcmp.eq.s32.totalorder %v556, 16
        %vm751 = vcmp.eq.s32.totalorder %v557, 16
        %vm752 = vcmp.eq.s32.totalorder %v558, 16
        %vm753 = vcmp.eq.s32.totalorder %v559, 16
        %vm754 = vcmp.eq.s32.totalorder %v560, 16
        %vm755 = vcmp.eq.s32.totalorder %v561, 16
        %vm756 = vcmp.eq.s32.totalorder %v562, 16
        %vm757 = vcmp.eq.s32.totalorder %v563, 16
        %vm758 = vcmp.eq.s32.totalorder %v564, 16
        %vm759 = vcmp.eq.s32.totalorder %v565, 16
        %vm760 = vcmp.eq.s32.totalorder %v566, 16
        %vm761 = vcmp.eq.s32.totalorder %v567, 16
        %vm762 = vcmp.eq.s32.totalorder %v568, 16
        %vm763 = vcmp.eq.s32.totalorder %v569, 16
        %vm764 = vcmp.eq.s32.totalorder %v570, 16
        %vm765 = vcmp.eq.s32.totalorder %v571, 16
        %vm766 = vcmp.eq.s32.totalorder %v572, 16
        %vm767 = vcmp.eq.s32.totalorder %v573, 16
        %vm768 = vcmp.eq.s32.totalorder %v574, 16
        %vm769 = vcmp.eq.s32.totalorder %v575, 16
        %vm770 = vcmp.eq.s32.totalorder %v576, 16
        %vm771 = vcmp.eq.s32.totalorder %v577, 16
        %v772 = vperm.slane %v502, 0
        %v773 = vsel %vm740, %v772, 0.0
        %v774 = vsel %vm741, %v772, 0.0
        %v775 = vsel %vm742, %v772, 0.0
        %v776 = vsel %vm743, %v772, 0.0
        %v777 = vsel %vm744, %v772, 0.0
        %v778 = vsel %vm745, %v772, 0.0
        %v779 = vsel %vm746, %v772, 0.0
        %v780 = vsel %vm747, %v772, 0.0
        %v781 = vsel %vm748, %v772, 0.0
        %v782 = vsel %vm749, %v772, 0.0
        %v783 = vsel %vm750, %v772, 0.0
        %v784 = vsel %vm751, %v772, 0.0
        %v785 = vsel %vm752, %v772, 0.0
        %v786 = vsel %vm753, %v772, 0.0
        %v787 = vsel %vm754, %v772, 0.0
        %v788 = vsel %vm755, %v772, 0.0
        %v789 = vsel %vm756, %v772, 0.0
        %v790 = vsel %vm757, %v772, 0.0
        %v791 = vsel %vm758, %v772, 0.0
        %v792 = vsel %vm759, %v772, 0.0
        %v793 = vsel %vm760, %v772, 0.0
        %v794 = vsel %vm761, %v772, 0.0
        %v795 = vsel %vm762, %v772, 0.0
        %v796 = vsel %vm763, %v772, 0.0
        %v797 = vsel %vm764, %v772, 0.0
        %v798 = vsel %vm765, %v772, 0.0
        %v799 = vsel %vm766, %v772, 0.0
        %v800 = vsel %vm767, %v772, 0.0
        %v801 = vsel %vm768, %v772, 0.0
        %v802 = vsel %vm769, %v772, 0.0
        %v803 = vsel %vm770, %v772, 0.0
        %v804 = vsel %vm771, %v772, 0.0
        %v805 = vadd.f32 %v708, %v773
        %v806 = vadd.f32 %v709, %v774
        %v807 = vadd.f32 %v710, %v775
        %v808 = vadd.f32 %v711, %v776
        %v809 = vadd.f32 %v712, %v777
        %v810 = vadd.f32 %v713, %v778
        %v811 = vadd.f32 %v714, %v779
        %v812 = vadd.f32 %v715, %v780
        %v813 = vadd.f32 %v716, %v781
        %v814 = vadd.f32 %v717, %v782
        %v815 = vadd.f32 %v718, %v783
        %v816 = vadd.f32 %v719, %v784
        %v817 = vadd.f32 %v720, %v785
        %v818 = vadd.f32 %v721, %v786
        %v819 = vadd.f32 %v722, %v787
        %v820 = vadd.f32 %v723, %v788
        %v821 = vadd.f32 %v724, %v789
        %v822 = vadd.f32 %v725, %v790
        %v823 = vadd.f32 %v726, %v791
        %v824 = vadd.f32 %v727, %v792
        %v825 = vadd.f32 %v728, %v793
        %v826 = vadd.f32 %v729, %v794
        %v827 = vadd.f32 %v730, %v795
        %v828 = vadd.f32 %v731, %v796
        %v829 = vadd.f32 %v732, %v797
        %v830 = vadd.f32 %v733, %v798
        %v831 = vadd.f32 %v734, %v799
        %v832 = vadd.f32 %v735, %v800
        %v833 = vadd.f32 %v736, %v801
        %v834 = vadd.f32 %v737, %v802
        %v835 = vadd.f32 %v738, %v803
        %v836 = vadd.f32 %v739, %v804
        %vm837 = vcmp.eq.s32.totalorder %v546, 17
        %vm838 = vcmp.eq.s32.totalorder %v547, 17
        %vm839 = vcmp.eq.s32.totalorder %v548, 17
        %vm840 = vcmp.eq.s32.totalorder %v549, 17
        %vm841 = vcmp.eq.s32.totalorder %v550, 17
        %vm842 = vcmp.eq.s32.totalorder %v551, 17
        %vm843 = vcmp.eq.s32.totalorder %v552, 17
        %vm844 = vcmp.eq.s32.totalorder %v553, 17
        %vm845 = vcmp.eq.s32.totalorder %v554, 17
        %vm846 = vcmp.eq.s32.totalorder %v555, 17
        %vm847 = vcmp.eq.s32.totalorder %v556, 17
        %vm848 = vcmp.eq.s32.totalorder %v557, 17
        %vm849 = vcmp.eq.s32.totalorder %v558, 17
        %vm850 = vcmp.eq.s32.totalorder %v559, 17
        %vm851 = vcmp.eq.s32.totalorder %v560, 17
        %vm852 = vcmp.eq.s32.totalorder %v561, 17
        %vm853 = vcmp.eq.s32.totalorder %v562, 17
        %vm854 = vcmp.eq.s32.totalorder %v563, 17
        %vm855 = vcmp.eq.s32.totalorder %v564, 17
        %vm856 = vcmp.eq.s32.totalorder %v565, 17
        %vm857 = vcmp.eq.s32.totalorder %v566, 17
        %vm858 = vcmp.eq.s32.totalorder %v567, 17
        %vm859 = vcmp.eq.s32.totalorder %v568, 17
        %vm860 = vcmp.eq.s32.totalorder %v569, 17
        %vm861 = vcmp.eq.s32.totalorder %v570, 17
        %vm862 = vcmp.eq.s32.totalorder %v571, 17
        %vm863 = vcmp.eq.s32.totalorder %v572, 17
        %vm864 = vcmp.eq.s32.totalorder %v573, 17
        %vm865 = vcmp.eq.s32.totalorder %v574, 17
        %vm866 = vcmp.eq.s32.totalorder %v575, 17
        %vm867 = vcmp.eq.s32.totalorder %v576, 17
        %vm868 = vcmp.eq.s32.totalorder %v577, 17
        %v869 = vperm.slane %v506, 0
        %v870 = vsel %vm837, %v869, 0.0
        %v871 = vsel %vm838, %v869, 0.0
        %v872 = vsel %vm839, %v869, 0.0
        %v873 = vsel %vm840, %v869, 0.0
        %v874 = vsel %vm841, %v869, 0.0
        %v875 = vsel %vm842, %v869, 0.0
        %v876 = vsel %vm843, %v869, 0.0
        %v877 = vsel %vm844, %v869, 0.0
        %v878 = vsel %vm845, %v869, 0.0
        %v879 = vsel %vm846, %v869, 0.0
        %v880 = vsel %vm847, %v869, 0.0
        %v881 = vsel %vm848, %v869, 0.0
        %v882 = vsel %vm849, %v869, 0.0
        %v883 = vsel %vm850, %v869, 0.0
        %v884 = vsel %vm851, %v869, 0.0
        %v885 = vsel %vm852, %v869, 0.0
        %v886 = vsel %vm853, %v869, 0.0
        %v887 = vsel %vm854, %v869, 0.0
        %v888 = vsel %vm855, %v869, 0.0
        %v889 = vsel %vm856, %v869, 0.0
        %v890 = vsel %vm857, %v869, 0.0
        %v891 = vsel %vm858, %v869, 0.0
        %v892 = vsel %vm859, %v869, 0.0
        %v893 = vsel %vm860, %v869, 0.0
        %v894 = vsel %vm861, %v869, 0.0
        %v895 = vsel %vm862, %v869, 0.0
        %v896 = vsel %vm863, %v869, 0.0
        %v897 = vsel %vm864, %v869, 0.0
        %v898 = vsel %vm865, %v869, 0.0
        %v899 = vsel %vm866, %v869, 0.0
        %v900 = vsel %vm867, %v869, 0.0
        %v901 = vsel %vm868, %v869, 0.0
        %v902 = vadd.f32 %v805, %v870
        %v903 = vadd.f32 %v806, %v871
        %v904 = vadd.f32 %v807, %v872
        %v905 = vadd.f32 %v808, %v873
        %v906 = vadd.f32 %v809, %v874
        %v907 = vadd.f32 %v810, %v875
        %v908 = vadd.f32 %v811, %v876
        %v909 = vadd.f32 %v812, %v877
        %v910 = vadd.f32 %v813, %v878
        %v911 = vadd.f32 %v814, %v879
        %v912 = vadd.f32 %v815, %v880
        %v913 = vadd.f32 %v816, %v881
        %v914 = vadd.f32 %v817, %v882
        %v915 = vadd.f32 %v818, %v883
        %v916 = vadd.f32 %v819, %v884
        %v917 = vadd.f32 %v820, %v885
        %v918 = vadd.f32 %v821, %v886
        %v919 = vadd.f32 %v822, %v887
        %v920 = vadd.f32 %v823, %v888
        %v921 = vadd.f32 %v824, %v889
        %v922 = vadd.f32 %v825, %v890
        %v923 = vadd.f32 %v826, %v891
        %v924 = vadd.f32 %v827, %v892
        %v925 = vadd.f32 %v828, %v893
        %v926 = vadd.f32 %v829, %v894
        %v927 = vadd.f32 %v830, %v895
        %v928 = vadd.f32 %v831, %v896
        %v929 = vadd.f32 %v832, %v897
        %v930 = vadd.f32 %v833, %v898
        %v931 = vadd.f32 %v834, %v899
        %v932 = vadd.f32 %v835, %v900
        %v933 = vadd.f32 %v836, %v901
        %s934 = smul.u32 %s39, 32
        %s935 = scalar_lea.vmem [#allocation2], %s934
        %v936 = vld [vmem:[%s935] sm:$0xff]
        %v937 = vld [vmem:[%s935 + $0x8] sm:$0xff]
        %v938 = vld [vmem:[%s935 + $0x10] sm:$0xff]
        %v939 = vld [vmem:[%s935 + $0x18] sm:$0xff]
        %v940 = vld [vmem:[%s355] sm:$0xff]
        %v941 = vld [vmem:[%s355 + $0x8] sm:$0xff]
        %v942 = vld [vmem:[%s355 + $0x10] sm:$0xff]
        %v943 = vld [vmem:[%s355 + $0x18] sm:$0xff]
        %v944 = vpack.c.bf16 %v903, %v902
        %v945 = vpack.c.bf16 %v905, %v904
        %v946 = vpack.c.bf16 %v907, %v906
        %v947 = vpack.c.bf16 %v909, %v908
        %v948 = vpack.c.bf16 %v911, %v910
        %v949 = vpack.c.bf16 %v913, %v912
        %v950 = vpack.c.bf16 %v915, %v914
        %v951 = vpack.c.bf16 %v917, %v916
        %v952 = vpack.c.bf16 %v919, %v918
        %v953 = vpack.c.bf16 %v921, %v920
        %v954 = vpack.c.bf16 %v923, %v922
        %v955 = vpack.c.bf16 %v925, %v924
        %v956 = vpack.c.bf16 %v927, %v926
        %v957 = vpack.c.bf16 %v929, %v928
        %v958 = vpack.c.bf16 %v931, %v930
        %v959 = vpack.c.bf16 %v933, %v932
        %v964 = vunpack.c.l.b16 %v940
        %v965 = vunpack.c.h.b16 %v940
        %v966 = vunpack.c.l.b16 %v941
        %v967 = vunpack.c.h.b16 %v941
        %v968 = vunpack.c.l.b16 %v942
        %v969 = vunpack.c.h.b16 %v942
        %v970 = vunpack.c.l.b16 %v943
        %v971 = vunpack.c.h.b16 %v943
        %v972 = vpack.c.b16 %v966, %v964
        %v973 = vpack.c.b16 %v967, %v965
        %v974 = vpack.c.b16 %v970, %v968
        %v975 = vpack.c.b16 %v971, %v969
        %980 = vmatpush.bf16.msra.mxu0 %v951
        %981 = vmatpush.bf16.msra.mxu0 %v950
        %982 = vmatpush.bf16.msra.mxu0 %v949
        %983 = vmatpush.bf16.msra.mxu0 %v948
        %984 = vmatpush.bf16.msra.mxu0 %v947
        %985 = vmatpush.bf16.msra.mxu0 %v946
        %986 = vmatpush.bf16.msra.mxu0 %v945
        %987 = vmatpush.bf16.msra.mxu0 %v944
        %988 = vmatmul.bf16.gmra.mxu0 %v972
        %v989 = vpop.f32.mrf.mxu0
        %v990 = vadd.f32 0.0, %v989
        %v991 = vpop.f32.mrf.mxu0
        %v992 = vadd.f32 0.0, %v991
        %993 = vmatmul.bf16.gmra.mxu0 %v974
        %v994 = vpop.f32.mrf.mxu0
        %v995 = vadd.f32 0.0, %v994
        %v996 = vpop.f32.mrf.mxu0
        %v997 = vadd.f32 0.0, %v996
        %998 = vdwg.mxu0
        %999 = vmatpush.bf16.msra.mxu0 %v959
        %1000 = vmatpush.bf16.msra.mxu0 %v958
        %1001 = vmatpush.bf16.msra.mxu0 %v957
        %1002 = vmatpush.bf16.msra.mxu0 %v956
        %1003 = vmatpush.bf16.msra.mxu0 %v955
        %1004 = vmatpush.bf16.msra.mxu0 %v954
        %1005 = vmatpush.bf16.msra.mxu0 %v953
        %1006 = vmatpush.bf16.msra.mxu0 %v952
        %1007 = vmatmul.bf16.gmra.mxu0 %v973
        %v1008 = vpop.f32.mrf.mxu0
        %v1009 = vadd.f32 %v990, %v1008
        %v1010 = vpop.f32.mrf.mxu0
        %v1011 = vadd.f32 %v992, %v1010
        %1012 = vmatmul.bf16.gmra.mxu0 %v975
        %v1013 = vpop.f32.mrf.mxu0
        %v1014 = vadd.f32 %v995, %v1013
        %v1015 = vpop.f32.mrf.mxu0
        %v1016 = vadd.f32 %v997, %v1015
        %1017 = vdwg.mxu0
        %v1018 = vadd.f32 %v936, %v1009
        %v1019 = vadd.f32 %v937, %v1011
        %v1020 = vadd.f32 %v938, %v1014
        %v1021 = vadd.f32 %v939, %v1016
        %1022 = vst [vmem:[%s935] sm:$0xff] %v1018
        %1023 = vst [vmem:[%s935 + $0x8] sm:$0xff] %v1019
        %1024 = vst [vmem:[%s935 + $0x10] sm:$0xff] %v1020
        %1025 = vst [vmem:[%s935 + $0x18] sm:$0xff] %v1021
      $region44: #{detr3d_cross_attn.6} parent=35 // pred_fallthru
        _
      %p1026 = scmp.eq.s32.totalorder %s37, 2
      %p1027 = pnand %p1026, %p363
      %p1028 = pneg %p1027
      %p1029 = scmp.eq.s32.totalorder %s39, 1
      %p1030 = pnand %p1028, %p1029
      %p1031 = pneg %p1030
      // Predicated region
      $region45: #{detr3d_cross_attn.6} parent=35 // pred_check
        _
      $region46: #{detr3d_cross_attn.6} parent=35 // pred_check_branch
        %1033 = sbr.rel (%p1030) target = $region48
      $region47: #{detr3d_cross_attn.6} parent=35 // pred_region
        %v1034 = vld [vmem:[#allocation2] sm:$0xff]
        %v1035 = vld [vmem:[#allocation2 + $0x8] sm:$0xff]
        %v1036 = vld [vmem:[#allocation2 + $0x10] sm:$0xff]
        %v1037 = vld [vmem:[#allocation2 + $0x18] sm:$0xff]
        %vm1038 = vcmp.ne.f32.partialorder %v1034, %v1034
        %vm1039 = vcmp.ne.f32.partialorder %v1035, %v1035
        %vm1040 = vcmp.ne.f32.partialorder %v1036, %v1036
        %vm1041 = vcmp.ne.f32.partialorder %v1037, %v1037
        %v1042 = vsel %vm1038, 0.0, %v1034
        %v1043 = vsel %vm1039, 0.0, %v1035
        %v1044 = vsel %vm1040, 0.0, %v1036
        %v1045 = vsel %vm1041, 0.0, %v1037
        %vm1046 = vcmp.eq.f32.partialorder %v1042, inf
        %vm1047 = vcmp.eq.f32.partialorder %v1043, inf
        %vm1048 = vcmp.eq.f32.partialorder %v1044, inf
        %vm1049 = vcmp.eq.f32.partialorder %v1045, inf
        %v1050 = vsel %vm1046, 3.4028235e+38, %v1042
        %v1051 = vsel %vm1047, 3.4028235e+38, %v1043
        %v1052 = vsel %vm1048, 3.4028235e+38, %v1044
        %v1053 = vsel %vm1049, 3.4028235e+38, %v1045
        %vm1054 = vcmp.eq.f32.partialorder %v1050, -inf
        %vm1055 = vcmp.eq.f32.partialorder %v1051, -inf
        %vm1056 = vcmp.eq.f32.partialorder %v1052, -inf
        %vm1057 = vcmp.eq.f32.partialorder %v1053, -inf
        %v1058 = vsel %vm1054, -3.4028235e+38, %v1050
        %v1059 = vsel %vm1055, -3.4028235e+38, %v1051
        %v1060 = vsel %vm1056, -3.4028235e+38, %v1052
        %v1061 = vsel %vm1057, -3.4028235e+38, %v1053
        %v1062 = vld [vmem:[%s323] sm:$0xff]
        %v1063 = vld [vmem:[%s323 + $0x10] sm:$0xff]
        %v1064 = vld [vmem:[%s323 + $0x20] sm:$0xff]
        %v1065 = vld [vmem:[%s323 + $0x30] sm:$0xff]
        %v1066 = vadd.f32 %v1058, %v1062
        %v1067 = vadd.f32 %v1059, %v1063
        %v1068 = vadd.f32 %v1060, %v1064
        %v1069 = vadd.f32 %v1061, %v1065
        %1070 = vst [vmem:[%s361] sm:$0xff] %v1066
        %1071 = vst [vmem:[%s361 + $0x10] sm:$0xff] %v1067
        %1072 = vst [vmem:[%s361 + $0x20] sm:$0xff] %v1068
        %1073 = vst [vmem:[%s361 + $0x30] sm:$0xff] %v1069
        %s1074 = scalar_lea.vmem [#allocation2], 32
        %v1075 = vld [vmem:[%s1074] sm:$0xff]
        %v1076 = vld [vmem:[%s1074 + $0x8] sm:$0xff]
        %v1077 = vld [vmem:[%s1074 + $0x10] sm:$0xff]
        %v1078 = vld [vmem:[%s1074 + $0x18] sm:$0xff]
        %vm1079 = vcmp.ne.f32.partialorder %v1075, %v1075
        %vm1080 = vcmp.ne.f32.partialorder %v1076, %v1076
        %vm1081 = vcmp.ne.f32.partialorder %v1077, %v1077
        %vm1082 = vcmp.ne.f32.partialorder %v1078, %v1078
        %v1083 = vsel %vm1079, 0.0, %v1075
        %v1084 = vsel %vm1080, 0.0, %v1076
        %v1085 = vsel %vm1081, 0.0, %v1077
        %v1086 = vsel %vm1082, 0.0, %v1078
        %vm1087 = vcmp.eq.f32.partialorder %v1083, inf
        %vm1088 = vcmp.eq.f32.partialorder %v1084, inf
        %vm1089 = vcmp.eq.f32.partialorder %v1085, inf
        %vm1090 = vcmp.eq.f32.partialorder %v1086, inf
        %v1091 = vsel %vm1087, 3.4028235e+38, %v1083
        %v1092 = vsel %vm1088, 3.4028235e+38, %v1084
        %v1093 = vsel %vm1089, 3.4028235e+38, %v1085
        %v1094 = vsel %vm1090, 3.4028235e+38, %v1086
        %vm1095 = vcmp.eq.f32.partialorder %v1091, -inf
        %vm1096 = vcmp.eq.f32.partialorder %v1092, -inf
        %vm1097 = vcmp.eq.f32.partialorder %v1093, -inf
        %vm1098 = vcmp.eq.f32.partialorder %v1094, -inf
        %v1099 = vsel %vm1095, -3.4028235e+38, %v1091
        %v1100 = vsel %vm1096, -3.4028235e+38, %v1092
        %v1101 = vsel %vm1097, -3.4028235e+38, %v1093
        %v1102 = vsel %vm1098, -3.4028235e+38, %v1094
        %v1103 = vld [vmem:[%s323 + $0x8] sm:$0xff]
        %v1104 = vld [vmem:[%s323 + $0x18] sm:$0xff]
        %v1105 = vld [vmem:[%s323 + $0x28] sm:$0xff]
        %v1106 = vld [vmem:[%s323 + $0x38] sm:$0xff]
        %v1107 = vadd.f32 %v1099, %v1103
        %v1108 = vadd.f32 %v1100, %v1104
        %v1109 = vadd.f32 %v1101, %v1105
        %v1110 = vadd.f32 %v1102, %v1106
        %1111 = vst [vmem:[%s361 + $0x8] sm:$0xff] %v1107
        %1112 = vst [vmem:[%s361 + $0x18] sm:$0xff] %v1108
        %1113 = vst [vmem:[%s361 + $0x28] sm:$0xff] %v1109
        %1114 = vst [vmem:[%s361 + $0x38] sm:$0xff] %v1110
      $region48: #{detr3d_cross_attn.6} parent=35 // pred_fallthru
        _
      %p1115 = scmp.lt.s32.totalorder %s36, 1
      %s1116 = scalar_select %p1115, %s36, 1
      %s1117 = smul.addr %s1116, 8
      %s1118 = smul.addr %s1117, 8
      %s1119 = scalar_lea.vmem %s6, %s1118
      // Predicated region
      $region49: #{detr3d_cross_attn.6} parent=35 // pred_check
        %p1120 = pneg %p188
      $region50: #{detr3d_cross_attn.6} parent=35 // pred_check_branch
        %1122 = sbr.rel (%p1120) target = $region52
      $region51: #{detr3d_cross_attn.6} parent=35 // pred_region
        _
      $region52: #{detr3d_cross_attn.6} parent=35 // pred_fallthru
        _
    $region36: #{detr3d_cross_attn.6} parent=5 // pred_fallthru
      _
    %p1123 = scmp.le.s32.totalorder 2, %s25
    // Predicated region
    $region53: #{detr3d_cross_attn.6} parent=5 // pred_check
      %p1124 = pneg %p1123
    $region54: #{detr3d_cross_attn.6} parent=5 // pred_check_branch
      %1126 = sbr.rel (%p1124) target = $region56
    $region55: #{detr3d_cross_attn.6} parent=5 // pred_region
      %s1127 = ssub.s32 %s25, 2
      // Predicated region
      $region57: #{detr3d_cross_attn.6} parent=55 // pred_check
        %p1128 = pneg %p194
      $region58: #{detr3d_cross_attn.6} parent=55 // pred_check_branch
        %1130 = sbr.rel (%p1128) target = $region60
      $region59: #{detr3d_cross_attn.6} parent=55 // pred_region
        %p1131 = scmp.lt.s32.totalorder %s40, 1
        %s1132 = scalar_select %p1131, %s40, 1
        %s1133 = smul.addr %s1132, 8
        %s1134 = smul.addr %s1133, 8
        %s1135 = scalar_lea.vmem %s6, %s1134
      $region60: #{detr3d_cross_attn.6} parent=55 // pred_fallthru
        _
    $region56: #{detr3d_cross_attn.6} parent=5 // pred_fallthru
      _
  $region6: #{detr3d_cross_attn.6} parent=0 // loop_footer
    %s29 = sadd.s32 1, %s25
  $region7: #{detr3d_cross_attn.6} parent=0 // loop_footer_branch
    %24 = sbr.rel target = $region3
  $region8: #{detr3d_cross_attn.6} parent=0 // loop_exit
    _

// kernel: detr3d_cross_attn.7
$region0: #{detr3d_cross_attn.7}
  #allocation0 [shape = 'u32[]', space=smem, size = 0x4, offset = 0x4, fixed_abs, tag = 'smem constant byte address 0x4 - core index']
  #allocation1 [shape = 'u32[72,128]{1,0:T(1,128)}', space=vmem, size = 0x9000, scoped, tag = 'internal scratch']
  %s0 = inlined_call_operand.vmem [shape: f32[2,256,32], index: 0, kind: input, shape index: {}]
  %s1 = inlined_call_operand.vmem [shape: f32[2,256,3], index: 1, kind: input, shape index: {}]
  %s2 = inlined_call_operand.vmem [shape: f32[32,32], index: 2, kind: input, shape index: {}]
  %s3 = inlined_call_operand.vmem [shape: f32[1,32], index: 3, kind: input, shape index: {}]
  %s4 = inlined_call_operand.vmem [shape: f32[3,32], index: 4, kind: input, shape index: {}]
  %s5 = inlined_call_operand.vmem [shape: f32[1,32], index: 5, kind: input, shape index: {}]
  %s6 = inlined_call_operand.vmem [shape: f32[1,32], index: 6, kind: input, shape index: {}]
  %s7 = inlined_call_operand.vmem [shape: f32[1,32], index: 7, kind: input, shape index: {}]
  %s8 = inlined_call_operand.vmem [shape: f32[32,32], index: 8, kind: input, shape index: {}]
  %s9 = inlined_call_operand.vmem [shape: f32[1,32], index: 9, kind: input, shape index: {}]
  %s10 = inlined_call_operand.vmem [shape: f32[1,32], index: 10, kind: input, shape index: {}]
  %s11 = inlined_call_operand.vmem [shape: f32[1,32], index: 11, kind: input, shape index: {}]
  %s12 = inlined_call_operand.vmem [shape: f32[2,256,32], index: 12, kind: output, shape index: {}]
  %s13 = sld [smem:[#allocation0]]
  $region81: #{detr3d_cross_attn.7} parent=0
    _
  %s15 = ssub.s32 1, %s13
  %s16 = scalar_select 0, %s15, %s13
  loop: start=0, step=1, limit=6
  $region2: #{detr3d_cross_attn.7} parent=0 // loop_pre_header
    _
  $region3: #{detr3d_cross_attn.7} parent=0 // loop_header
    %s18 = sphi 0, %s22
    %p19 = scmp.ge.s32.totalorder %s18, 6
    %s25 = sphi 0, %s37
    %s26 = sphi 0, %s33
    %s27 = sphi 0, %s25
    %s28 = sphi 0, %s26
    %s29 = sphi 0, %s27
    %s30 = sphi 0, %s28
    %s42 = sphi 0, %s44
    %s45 = sphi 0, %s42
    %s46 = sphi 0, %s45
    %s62 = sphi 0, %s46
    %s70 = sphi 0, %s72
    %s73 = sphi 0, %s70
    %s74 = sphi 0, %s73
    %s90 = sphi 0, %s74
    %s94 = sphi 0, %s94
    %s96 = sphi 0, %s94
    %s97 = sphi 0, %s96
    %s111 = sphi 0, %s97
    %s115 = sphi 0, %s115
    %s117 = sphi 0, %s115
    %s118 = sphi 0, %s117
    %s132 = sphi 0, %s118
    %s136 = sphi 0, %s136
    %s138 = sphi 0, %s136
    %s139 = sphi 0, %s138
    %s153 = sphi 0, %s139
    %s157 = sphi 0, %s157
    %s159 = sphi 0, %s157
    %s160 = sphi 0, %s159
    %s174 = sphi 0, %s160
    %s178 = sphi 0, %s178
    %s180 = sphi 0, %s178
    %s181 = sphi 0, %s180
    %s195 = sphi 0, %s181
    %s199 = sphi 0, %s199
    %s201 = sphi 0, %s199
    %s202 = sphi 0, %s201
    %s216 = sphi 0, %s202
    %s220 = sphi 0, %s220
    %s222 = sphi 0, %s220
    %s223 = sphi 0, %s222
    %s237 = sphi 0, %s223
    %s241 = sphi 0, %s241
    %s243 = sphi 0, %s241
    %s244 = sphi 0, %s243
    %s258 = sphi 0, %s244
    %s262 = sphi 0, %s262
    %s264 = sphi 0, %s262
    %s265 = sphi 0, %s264
    %s279 = sphi 0, %s265
    %s283 = sphi 0, %s283
    %s285 = sphi 0, %s283
    %s286 = sphi 0, %s285
    %s300 = sphi 0, %s286
    %s308 = sphi 0, %s310
    %s311 = sphi 0, %s308
    %s312 = sphi 0, %s311
    %s328 = sphi 0, %s312
  $region4: #{detr3d_cross_attn.7} parent=0 // loop_header_branch
    %21 = sbr.rel (%p19) target = $region8
  $region5: #{detr3d_cross_attn.7} parent=0 // loop_body
    %s23 = ssub.s32 %s18, 1
    %s24 = ssub.s32 %s18, 2
    %s31 = sadd.s32 1, %s26
    %p32 = scmp.ge.s32.totalorder %s31, 2
    %s33 = scalar_select %p32, 0, %s31
    %s34 = sadd.s32 1, %s25
    %s35 = scalar_select %p32, %s34, %s25
    %p36 = scmp.ge.s32.totalorder %s35, 2
    %s37 = scalar_select %p36, 0, %s35
    %s38 = ssub.s32 %s25, %s37
    %s39 = ssub.s32 %s26, %s33
    %s40 = sor.u32 %s38, %s39
    %p41 = scmp.eq.s32.totalorder %s40, 0
    %s43 = sadd.s32 %s42, 1
    %s44 = scalar_select %p41, %s42, %s43
    %p47 = pneg %p41
    %p48 = scmp.eq.s32.totalorder %s18, 3
    %p49 = por %p47, %p48
    %p50 = scmp.ne.s32.totalorder %s42, %s45
    %p51 = scmp.eq.s32.totalorder %s18, 0
    %p52 = por %p50, %p51
    %p53 = scmp.ne.s32.totalorder %s42, %s45
    %p54 = scmp.eq.s32.totalorder %s23, 3
    %p55 = por %p53, %p54
    %p56 = scmp.ne.s32.totalorder %s45, %s46
    %p57 = scmp.eq.s32.totalorder %s23, 0
    %p58 = por %p56, %p57
    %p59 = scmp.ne.s32.totalorder %s45, %s46
    %p60 = scmp.eq.s32.totalorder %s24, 3
    %p61 = por %p59, %p60
    %p63 = scmp.ne.s32.totalorder %s46, %s62
    %p64 = scmp.eq.s32.totalorder %s24, 0
    %p65 = por %p63, %p64
    %s66 = ssub.s32 %s25, %s37
    %s67 = ssub.s32 %s26, %s33
    %s68 = sor.u32 %s66, %s67
    %p69 = scmp.eq.s32.totalorder %s68, 0
    %s71 = sadd.s32 %s70, 1
    %s72 = scalar_select %p69, %s70, %s71
    %p75 = pneg %p69
    %p76 = scmp.eq.s32.totalorder %s18, 3
    %p77 = por %p75, %p76
    %p78 = scmp.ne.s32.totalorder %s70, %s73
    %p79 = scmp.eq.s32.totalorder %s18, 0
    %p80 = por %p78, %p79
    %p81 = scmp.ne.s32.totalorder %s70, %s73
    %p82 = scmp.eq.s32.totalorder %s23, 3
    %p83 = por %p81, %p82
    %p84 = scmp.ne.s32.totalorder %s73, %s74
    %p85 = scmp.eq.s32.totalorder %s23, 0
    %p86 = por %p84, %p85
    %p87 = scmp.ne.s32.totalorder %s73, %s74
    %p88 = scmp.eq.s32.totalorder %s24, 3
    %p89 = por %p87, %p88
    %p91 = scmp.ne.s32.totalorder %s74, %s90
    %p92 = scmp.eq.s32.totalorder %s24, 0
    %p93 = por %p91, %p92
    %s95 = sadd.s32 %s94, 1
    %p98 = scmp.eq.s32.totalorder %s18, 3
    %p99 = scmp.ne.s32.totalorder %s94, %s96
    %p100 = scmp.eq.s32.totalorder %s18, 0
    %p101 = por %p99, %p100
    %p102 = scmp.ne.s32.totalorder %s94, %s96
    %p103 = scmp.eq.s32.totalorder %s23, 3
    %p104 = por %p102, %p103
    %p105 = scmp.ne.s32.totalorder %s96, %s97
    %p106 = scmp.eq.s32.totalorder %s23, 0
    %p107 = por %p105, %p106
    %p108 = scmp.ne.s32.totalorder %s96, %s97
    %p109 = scmp.eq.s32.totalorder %s24, 3
    %p110 = por %p108, %p109
    %p112 = scmp.ne.s32.totalorder %s97, %s111
    %p113 = scmp.eq.s32.totalorder %s24, 0
    %p114 = por %p112, %p113
    %s116 = sadd.s32 %s115, 1
    %p119 = scmp.eq.s32.totalorder %s18, 3
    %p120 = scmp.ne.s32.totalorder %s115, %s117
    %p121 = scmp.eq.s32.totalorder %s18, 0
    %p122 = por %p120, %p121
    %p123 = scmp.ne.s32.totalorder %s115, %s117
    %p124 = scmp.eq.s32.totalorder %s23, 3
    %p125 = por %p123, %p124
    %p126 = scmp.ne.s32.totalorder %s117, %s118
    %p127 = scmp.eq.s32.totalorder %s23, 0
    %p128 = por %p126, %p127
    %p129 = scmp.ne.s32.totalorder %s117, %s118
    %p130 = scmp.eq.s32.totalorder %s24, 3
    %p131 = por %p129, %p130
    %p133 = scmp.ne.s32.totalorder %s118, %s132
    %p134 = scmp.eq.s32.totalorder %s24, 0
    %p135 = por %p133, %p134
    %s137 = sadd.s32 %s136, 1
    %p140 = scmp.eq.s32.totalorder %s18, 3
    %p141 = scmp.ne.s32.totalorder %s136, %s138
    %p142 = scmp.eq.s32.totalorder %s18, 0
    %p143 = por %p141, %p142
    %p144 = scmp.ne.s32.totalorder %s136, %s138
    %p145 = scmp.eq.s32.totalorder %s23, 3
    %p146 = por %p144, %p145
    %p147 = scmp.ne.s32.totalorder %s138, %s139
    %p148 = scmp.eq.s32.totalorder %s23, 0
    %p149 = por %p147, %p148
    %p150 = scmp.ne.s32.totalorder %s138, %s139
    %p151 = scmp.eq.s32.totalorder %s24, 3
    %p152 = por %p150, %p151
    %p154 = scmp.ne.s32.totalorder %s139, %s153
    %p155 = scmp.eq.s32.totalorder %s24, 0
    %p156 = por %p154, %p155
    %s158 = sadd.s32 %s157, 1
    %p161 = scmp.eq.s32.totalorder %s18, 3
    %p162 = scmp.ne.s32.totalorder %s157, %s159
    %p163 = scmp.eq.s32.totalorder %s18, 0
    %p164 = por %p162, %p163
    %p165 = scmp.ne.s32.totalorder %s157, %s159
    %p166 = scmp.eq.s32.totalorder %s23, 3
    %p167 = por %p165, %p166
    %p168 = scmp.ne.s32.totalorder %s159, %s160
    %p169 = scmp.eq.s32.totalorder %s23, 0
    %p170 = por %p168, %p169
    %p171 = scmp.ne.s32.totalorder %s159, %s160
    %p172 = scmp.eq.s32.totalorder %s24, 3
    %p173 = por %p171, %p172
    %p175 = scmp.ne.s32.totalorder %s160, %s174
    %p176 = scmp.eq.s32.totalorder %s24, 0
    %p177 = por %p175, %p176
    %s179 = sadd.s32 %s178, 1
    %p182 = scmp.eq.s32.totalorder %s18, 3
    %p183 = scmp.ne.s32.totalorder %s178, %s180
    %p184 = scmp.eq.s32.totalorder %s18, 0
    %p185 = por %p183, %p184
    %p186 = scmp.ne.s32.totalorder %s178, %s180
    %p187 = scmp.eq.s32.totalorder %s23, 3
    %p188 = por %p186, %p187
    %p189 = scmp.ne.s32.totalorder %s180, %s181
    %p190 = scmp.eq.s32.totalorder %s23, 0
    %p191 = por %p189, %p190
    %p192 = scmp.ne.s32.totalorder %s180, %s181
    %p193 = scmp.eq.s32.totalorder %s24, 3
    %p194 = por %p192, %p193
    %p196 = scmp.ne.s32.totalorder %s181, %s195
    %p197 = scmp.eq.s32.totalorder %s24, 0
    %p198 = por %p196, %p197
    %s200 = sadd.s32 %s199, 1
    %p203 = scmp.eq.s32.totalorder %s18, 3
    %p204 = scmp.ne.s32.totalorder %s199, %s201
    %p205 = scmp.eq.s32.totalorder %s18, 0
    %p206 = por %p204, %p205
    %p207 = scmp.ne.s32.totalorder %s199, %s201
    %p208 = scmp.eq.s32.totalorder %s23, 3
    %p209 = por %p207, %p208
    %p210 = scmp.ne.s32.totalorder %s201, %s202
    %p211 = scmp.eq.s32.totalorder %s23, 0
    %p212 = por %p210, %p211
    %p213 = scmp.ne.s32.totalorder %s201, %s202
    %p214 = scmp.eq.s32.totalorder %s24, 3
    %p215 = por %p213, %p214
    %p217 = scmp.ne.s32.totalorder %s202, %s216
    %p218 = scmp.eq.s32.totalorder %s24, 0
    %p219 = por %p217, %p218
    %s221 = sadd.s32 %s220, 1
    %p224 = scmp.eq.s32.totalorder %s18, 3
    %p225 = scmp.ne.s32.totalorder %s220, %s222
    %p226 = scmp.eq.s32.totalorder %s18, 0
    %p227 = por %p225, %p226
    %p228 = scmp.ne.s32.totalorder %s220, %s222
    %p229 = scmp.eq.s32.totalorder %s23, 3
    %p230 = por %p228, %p229
    %p231 = scmp.ne.s32.totalorder %s222, %s223
    %p232 = scmp.eq.s32.totalorder %s23, 0
    %p233 = por %p231, %p232
    %p234 = scmp.ne.s32.totalorder %s222, %s223
    %p235 = scmp.eq.s32.totalorder %s24, 3
    %p236 = por %p234, %p235
    %p238 = scmp.ne.s32.totalorder %s223, %s237
    %p239 = scmp.eq.s32.totalorder %s24, 0
    %p240 = por %p238, %p239
    %s242 = sadd.s32 %s241, 1
    %p245 = scmp.eq.s32.totalorder %s18, 3
    %p246 = scmp.ne.s32.totalorder %s241, %s243
    %p247 = scmp.eq.s32.totalorder %s18, 0
    %p248 = por %p246, %p247
    %p249 = scmp.ne.s32.totalorder %s241, %s243
    %p250 = scmp.eq.s32.totalorder %s23, 3
    %p251 = por %p249, %p250
    %p252 = scmp.ne.s32.totalorder %s243, %s244
    %p253 = scmp.eq.s32.totalorder %s23, 0
    %p254 = por %p252, %p253
    %p255 = scmp.ne.s32.totalorder %s243, %s244
    %p256 = scmp.eq.s32.totalorder %s24, 3
    %p257 = por %p255, %p256
    %p259 = scmp.ne.s32.totalorder %s244, %s258
    %p260 = scmp.eq.s32.totalorder %s24, 0
    %p261 = por %p259, %p260
    %s263 = sadd.s32 %s262, 1
    %p266 = scmp.eq.s32.totalorder %s18, 3
    %p267 = scmp.ne.s32.totalorder %s262, %s264
    %p268 = scmp.eq.s32.totalorder %s18, 0
    %p269 = por %p267, %p268
    %p270 = scmp.ne.s32.totalorder %s262, %s264
    %p271 = scmp.eq.s32.totalorder %s23, 3
    %p272 = por %p270, %p271
    %p273 = scmp.ne.s32.totalorder %s264, %s265
    %p274 = scmp.eq.s32.totalorder %s23, 0
    %p275 = por %p273, %p274
    %p276 = scmp.ne.s32.totalorder %s264, %s265
    %p277 = scmp.eq.s32.totalorder %s24, 3
    %p278 = por %p276, %p277
    %p280 = scmp.ne.s32.totalorder %s265, %s279
    %p281 = scmp.eq.s32.totalorder %s24, 0
    %p282 = por %p280, %p281
    %s284 = sadd.s32 %s283, 1
    %p287 = scmp.eq.s32.totalorder %s18, 3
    %p288 = scmp.ne.s32.totalorder %s283, %s285
    %p289 = scmp.eq.s32.totalorder %s18, 0
    %p290 = por %p288, %p289
    %p291 = scmp.ne.s32.totalorder %s283, %s285
    %p292 = scmp.eq.s32.totalorder %s23, 3
    %p293 = por %p291, %p292
    %p294 = scmp.ne.s32.totalorder %s285, %s286
    %p295 = scmp.eq.s32.totalorder %s23, 0
    %p296 = por %p294, %p295
    %p297 = scmp.ne.s32.totalorder %s285, %s286
    %p298 = scmp.eq.s32.totalorder %s24, 3
    %p299 = por %p297, %p298
    %p301 = scmp.ne.s32.totalorder %s286, %s300
    %p302 = scmp.eq.s32.totalorder %s24, 0
    %p303 = por %p301, %p302
    %s304 = ssub.s32 %s25, %s37
    %s305 = ssub.s32 %s26, %s33
    %s306 = sor.u32 %s304, %s305
    %p307 = scmp.eq.s32.totalorder %s306, 0
    %s309 = sadd.s32 %s308, 1
    %s310 = scalar_select %p307, %s308, %s309
    %p313 = pneg %p307
    %p314 = scmp.eq.s32.totalorder %s18, 3
    %p315 = por %p313, %p314
    %p316 = scmp.ne.s32.totalorder %s308, %s311
    %p317 = scmp.eq.s32.totalorder %s18, 0
    %p318 = por %p316, %p317
    %p319 = scmp.ne.s32.totalorder %s308, %s311
    %p320 = scmp.eq.s32.totalorder %s23, 3
    %p321 = por %p319, %p320
    %p322 = scmp.ne.s32.totalorder %s311, %s312
    %p323 = scmp.eq.s32.totalorder %s23, 0
    %p324 = por %p322, %p323
    %p325 = scmp.ne.s32.totalorder %s311, %s312
    %p326 = scmp.eq.s32.totalorder %s24, 3
    %p327 = por %p325, %p326
    %p329 = scmp.ne.s32.totalorder %s312, %s328
    %p330 = scmp.eq.s32.totalorder %s24, 0
    %p331 = por %p329, %p330
    %p332 = scmp.le.s32.totalorder 1, %s18
    %p333 = scmp.lt.s32.totalorder %s18, 5
    %p334 = pnand %p332, %p333
    %p335 = pneg %p334
    // Predicated region
    $region9: #{detr3d_cross_attn.7} parent=5 // pred_check
      _
    $region10: #{detr3d_cross_attn.7} parent=5 // pred_check_branch
      %337 = sbr.rel (%p334) target = $region12
    $region11: #{detr3d_cross_attn.7} parent=5 // pred_region
      %s338 = ssub.s32 %s18, 1
      // Predicated region
      $region13: #{detr3d_cross_attn.7} parent=11 // pred_check
        %p339 = pneg %p107
      $region14: #{detr3d_cross_attn.7} parent=11 // pred_check_branch
        %341 = sbr.rel (%p339) target = $region16
      $region15: #{detr3d_cross_attn.7} parent=11 // pred_region
        _
      $region16: #{detr3d_cross_attn.7} parent=11 // pred_fallthru
        _
      // Predicated region
      $region17: #{detr3d_cross_attn.7} parent=11 // pred_check
        %p342 = pneg %p128
      $region18: #{detr3d_cross_attn.7} parent=11 // pred_check_branch
        %344 = sbr.rel (%p342) target = $region20
      $region19: #{detr3d_cross_attn.7} parent=11 // pred_region
        _
      $region20: #{detr3d_cross_attn.7} parent=11 // pred_fallthru
        _
      // Predicated region
      $region21: #{detr3d_cross_attn.7} parent=11 // pred_check
        %p345 = pneg %p149
      $region22: #{detr3d_cross_attn.7} parent=11 // pred_check_branch
        %347 = sbr.rel (%p345) target = $region24
      $region23: #{detr3d_cross_attn.7} parent=11 // pred_region
        _
      $region24: #{detr3d_cross_attn.7} parent=11 // pred_fallthru
        _
      // Predicated region
      $region25: #{detr3d_cross_attn.7} parent=11 // pred_check
        %p348 = pneg %p170
      $region26: #{detr3d_cross_attn.7} parent=11 // pred_check_branch
        %350 = sbr.rel (%p348) target = $region28
      $region27: #{detr3d_cross_attn.7} parent=11 // pred_region
        _
      $region28: #{detr3d_cross_attn.7} parent=11 // pred_fallthru
        _
      // Predicated region
      $region29: #{detr3d_cross_attn.7} parent=11 // pred_check
        %p351 = pneg %p191
      $region30: #{detr3d_cross_attn.7} parent=11 // pred_check_branch
        %353 = sbr.rel (%p351) target = $region32
      $region31: #{detr3d_cross_attn.7} parent=11 // pred_region
        _
      $region32: #{detr3d_cross_attn.7} parent=11 // pred_fallthru
        _
      // Predicated region
      $region33: #{detr3d_cross_attn.7} parent=11 // pred_check
        %p354 = pneg %p212
      $region34: #{detr3d_cross_attn.7} parent=11 // pred_check_branch
        %356 = sbr.rel (%p354) target = $region36
      $region35: #{detr3d_cross_attn.7} parent=11 // pred_region
        _
      $region36: #{detr3d_cross_attn.7} parent=11 // pred_fallthru
        _
      // Predicated region
      $region37: #{detr3d_cross_attn.7} parent=11 // pred_check
        %p357 = pneg %p233
      $region38: #{detr3d_cross_attn.7} parent=11 // pred_check_branch
        %359 = sbr.rel (%p357) target = $region40
      $region39: #{detr3d_cross_attn.7} parent=11 // pred_region
        _
      $region40: #{detr3d_cross_attn.7} parent=11 // pred_fallthru
        _
      // Predicated region
      $region41: #{detr3d_cross_attn.7} parent=11 // pred_check
        %p360 = pneg %p254
      $region42: #{detr3d_cross_attn.7} parent=11 // pred_check_branch
        %362 = sbr.rel (%p360) target = $region44
      $region43: #{detr3d_cross_attn.7} parent=11 // pred_region
        _
      $region44: #{detr3d_cross_attn.7} parent=11 // pred_fallthru
        _
      // Predicated region
      $region45: #{detr3d_cross_attn.7} parent=11 // pred_check
        %p363 = pneg %p275
      $region46: #{detr3d_cross_attn.7} parent=11 // pred_check_branch
        %365 = sbr.rel (%p363) target = $region48
      $region47: #{detr3d_cross_attn.7} parent=11 // pred_region
        _
      $region48: #{detr3d_cross_attn.7} parent=11 // pred_fallthru
        _
      // Predicated region
      $region49: #{detr3d_cross_attn.7} parent=11 // pred_check
        %p366 = pneg %p296
      $region50: #{detr3d_cross_attn.7} parent=11 // pred_check_branch
        %368 = sbr.rel (%p366) target = $region52
      $region51: #{detr3d_cross_attn.7} parent=11 // pred_region
        _
      $region52: #{detr3d_cross_attn.7} parent=11 // pred_fallthru
        _
    $region12: #{detr3d_cross_attn.7} parent=5 // pred_fallthru
      _
    %p369 = scmp.lt.s32.totalorder %s18, 4
    // Predicated region
    $region53: #{detr3d_cross_attn.7} parent=5 // pred_check
      %p370 = pneg %p369
    $region54: #{detr3d_cross_attn.7} parent=5 // pred_check_branch
      %372 = sbr.rel (%p370) target = $region56
    $region55: #{detr3d_cross_attn.7} parent=5 // pred_region
      // Predicated region
      $region57: #{detr3d_cross_attn.7} parent=55 // pred_check
        %p373 = pneg %p52
      $region58: #{detr3d_cross_attn.7} parent=55 // pred_check_branch
        %375 = sbr.rel (%p373) target = $region60
      $region59: #{detr3d_cross_attn.7} parent=55 // pred_region
        %s376 = smul.u32 16, %s26
        %p377 = scmp.lt.s32.totalorder %s25, 1
        %s378 = scalar_select %p377, %s25, 1
        %p379 = scmp.lt.s32.totalorder %s376, 31
        %s380 = scalar_select %p379, %s376, 31
        %s381 = smul.addr %s378, 32
        %s382 = sadd.s32 %s380, %s381
        %s383 = smul.addr %s382, 8
        %s384 = scalar_lea.vmem %s0, %s383
        %s385 = smul.u32 16, %s26
      $region60: #{detr3d_cross_attn.7} parent=55 // pred_fallthru
        _
      // Predicated region
      $region61: #{detr3d_cross_attn.7} parent=55 // pred_check
        %p386 = pneg %p80
      $region62: #{detr3d_cross_attn.7} parent=55 // pred_check_branch
        %388 = sbr.rel (%p386) target = $region64
      $region63: #{detr3d_cross_attn.7} parent=55 // pred_region
        %s389 = smul.u32 16, %s26
        %p390 = scmp.lt.s32.totalorder %s25, 1
        %s391 = scalar_select %p390, %s25, 1
        %p392 = scmp.lt.s32.totalorder %s389, 31
        %s393 = scalar_select %p392, %s389, 31
        %s394 = smul.addr %s391, 32
        %s395 = sadd.s32 %s393, %s394
        %s396 = smul.addr %s395, 8
        %s397 = scalar_lea.vmem %s1, %s396
        %s398 = smul.u32 16, %s26
      $region64: #{detr3d_cross_attn.7} parent=55 // pred_fallthru
        _
    $region56: #{detr3d_cross_attn.7} parent=5 // pred_fallthru
      _
    %p399 = scmp.le.s32.totalorder 1, %s18
    %p400 = scmp.lt.s32.totalorder %s18, 5
    %p401 = pnand %p399, %p400
    %p402 = pneg %p401
    // Predicated region
    $region65: #{detr3d_cross_attn.7} parent=5 // pred_check
      _
    $region66: #{detr3d_cross_attn.7} parent=5 // pred_check_branch
      %404 = sbr.rel (%p401) target = $region68
    $region67: #{detr3d_cross_attn.7} parent=5 // pred_region
      %s405 = ssub.s32 %s18, 1
      %s406 = smul.u32 16, %s28
      %p407 = scmp.lt.s32.totalorder %s27, 1
      %s408 = scalar_select %p407, %s27, 1
      %p409 = scmp.lt.s32.totalorder %s406, 31
      %s410 = scalar_select %p409, %s406, 31
      %s411 = smul.addr %s408, 32
      %s412 = sadd.s32 %s410, %s411
      %s413 = smul.addr %s412, 8
      %s414 = scalar_lea.vmem %s0, %s413
      %p415 = pneg %p58
      %p416 = pneg %p55
      %s417 = smul.u32 16, %s28
      %p418 = scmp.lt.s32.totalorder %s27, 1
      %s419 = scalar_select %p418, %s27, 1
      %p420 = scmp.lt.s32.totalorder %s417, 31
      %s421 = scalar_select %p420, %s417, 31
      %s422 = smul.addr %s419, 32
      %s423 = sadd.s32 %s421, %s422
      %s424 = smul.addr %s423, 8
      %s425 = scalar_lea.vmem %s1, %s424
      %p426 = pneg %p86
      %p427 = pneg %p83
      %p428 = pneg %p107
      %p429 = pneg %p104
      %p430 = pneg %p128
      %p431 = pneg %p125
      %p432 = pneg %p149
      %p433 = pneg %p146
      %p434 = pneg %p170
      %p435 = pneg %p167
      %p436 = pneg %p191
      %p437 = pneg %p188
      %p438 = pneg %p212
      %p439 = pneg %p209
      %p440 = pneg %p233
      %p441 = pneg %p230
      %p442 = pneg %p254
      %p443 = pneg %p251
      %p444 = pneg %p275
      %p445 = pneg %p272
      %p446 = pneg %p296
      %p447 = pneg %p293
      %p448 = pneg %p324
      %p449 = pneg %p321
      %s450 = smul.u32 16, %s28
      %p451 = scmp.lt.s32.totalorder %s27, 1
      %s452 = scalar_select %p451, %s27, 1
      %p453 = scmp.lt.s32.totalorder %s450, 31
      %s454 = scalar_select %p453, %s450, 31
      %s455 = smul.addr %s452, 32
      %s456 = sadd.s32 %s454, %s455
      %s457 = smul.addr %s456, 8
      %s458 = scalar_lea.vmem %s12, %s457
      %s459 = smul.u32 16, %s28
      %p460 = scmp.lt.s32.totalorder %s27, 1
      %s461 = scalar_select %p460, %s27, 1
      %p462 = scmp.lt.s32.totalorder %s459, 31
      %s463 = scalar_select %p462, %s459, 31
      %s464 = smul.addr %s461, 32
      %s465 = sadd.s32 %s463, %s464
      %s466 = smul.addr %s465, 8
      %s467 = scalar_lea.vmem %s0, %s466
      %s468 = smul.u32 16, %s28
      %s469 = smul.u32 16, %s28
      %p470 = scmp.lt.s32.totalorder %s27, 1
      %s471 = scalar_select %p470, %s27, 1
      %p472 = scmp.lt.s32.totalorder %s469, 31
      %s473 = scalar_select %p472, %s469, 31
      %s474 = smul.addr %s471, 32
      %s475 = sadd.s32 %s473, %s474
      %s476 = smul.addr %s475, 8
      %s477 = scalar_lea.vmem %s1, %s476
      %s478 = smul.u32 16, %s28
      %s479 = smul.u32 16, %s28
      %p480 = scmp.lt.s32.totalorder %s27, 1
      %s481 = scalar_select %p480, %s27, 1
      %p482 = scmp.lt.s32.totalorder %s479, 31
      %s483 = scalar_select %p482, %s479, 31
      %s484 = smul.addr %s481, 32
      %s485 = sadd.s32 %s483, %s484
      %s486 = smul.addr %s485, 8
      %s487 = scalar_lea.vmem %s12, %s486
      %s488 = smul.u32 16, %s28
      %v489 = vld [vmem:[%s467] sm:$0xff]
      %v490 = vld [vmem:[%s467 + $0x8] sm:$0xff]
      %v491 = vld [vmem:[%s467 + $0x10] sm:$0xff]
      %v492 = vld [vmem:[%s467 + $0x18] sm:$0xff]
      %v493 = vld [vmem:[%s467 + $0x20] sm:$0xff]
      %v494 = vld [vmem:[%s467 + $0x28] sm:$0xff]
      %v495 = vld [vmem:[%s467 + $0x30] sm:$0xff]
      %v496 = vld [vmem:[%s467 + $0x38] sm:$0xff]
      %v497 = vld [vmem:[%s467 + $0x40] sm:$0xff]
      %v498 = vld [vmem:[%s467 + $0x48] sm:$0xff]
      %v499 = vld [vmem:[%s467 + $0x50] sm:$0xff]
      %v500 = vld [vmem:[%s467 + $0x58] sm:$0xff]
      %v501 = vld [vmem:[%s467 + $0x60] sm:$0xff]
      %v502 = vld [vmem:[%s467 + $0x68] sm:$0xff]
      %v503 = vld [vmem:[%s467 + $0x70] sm:$0xff]
      %v504 = vld [vmem:[%s467 + $0x78] sm:$0xff]
      %v505 = vld [vmem:[%s2] sm:$0xff]
      %v506 = vld [vmem:[%s2 + $0x8] sm:$0xff]
      %v507 = vld [vmem:[%s2 + $0x10] sm:$0xff]
      %v508 = vld [vmem:[%s2 + $0x18] sm:$0xff]
      %v509 = vld [vmem:[%s3] sm:$0x1]
      %v511 = vperm.slane %v509, 0
      %vm513 = vcmask 261120
      %v515 = vsel %vm513, %v489, 0
      %v518 = vsel %vm513, %v490, 0
      %v521 = vsel %vm513, %v491, 0
      %v524 = vsel %vm513, %v492, 0
      %v527 = vsel %vm513, %v493, 0
      %v530 = vsel %vm513, %v494, 0
      %v533 = vsel %vm513, %v495, 0
      %v536 = vsel %vm513, %v496, 0
      %v539 = vsel %vm513, %v497, 0
      %v542 = vsel %vm513, %v498, 0
      %v545 = vsel %vm513, %v499, 0
      %v548 = vsel %vm513, %v500, 0
      %v551 = vsel %vm513, %v501, 0
      %v554 = vsel %vm513, %v502, 0
      %v557 = vsel %vm513, %v503, 0
      %v560 = vsel %vm513, %v504, 0
      %562 = vmatpush.msra.mxu0 0.0
      %563 = vmatpush.msra.mxu0 0.0
      %564 = vmatpush.msra.mxu0 0.0
      %565 = vmatpush.msra.mxu0 0.0
      %566 = vmatpush.msra.mxu0 0.0
      %567 = vmatpush.msra.mxu0 0.0
      %568 = vmatpush.msra.mxu0 0.0
      %569 = vmatpush.msra.mxu0 0.0
      %570 = vmatpush.msra.mxu0 0.0
      %571 = vmatpush.msra.mxu0 0.0
      %572 = vmatpush.msra.mxu0 0.0
      %573 = vmatpush.msra.mxu0 0.0
      %574 = vmatpush.msra.mxu0 %v508
      %575 = vmatpush.msra.mxu0 %v507
      %576 = vmatpush.msra.mxu0 %v506
      %577 = vmatpush.msra.mxu0 %v505
      %578 = vmatmul.f32.gmra.mxu0 %v515
      %v579 = vpop.f32.mrf.mxu0
      %v580 = vadd.f32 %v511, %v579
      %581 = vmatmul.f32.gmra.mxu0 %v518
      %v582 = vpop.f32.mrf.mxu0
      %v583 = vadd.f32 %v511, %v582
      %584 = vmatmul.f32.gmra.mxu0 %v521
      %v585 = vpop.f32.mrf.mxu0
      %v586 = vadd.f32 %v511, %v585
      %587 = vmatmul.f32.gmra.mxu0 %v524
      %v588 = vpop.f32.mrf.mxu0
      %v589 = vadd.f32 %v511, %v588
      %590 = vmatmul.f32.gmra.mxu0 %v527
      %v591 = vpop.f32.mrf.mxu0
      %v592 = vadd.f32 %v511, %v591
      %593 = vmatmul.f32.gmra.mxu0 %v530
      %v594 = vpop.f32.mrf.mxu0
      %v595 = vadd.f32 %v511, %v594
      %596 = vmatmul.f32.gmra.mxu0 %v533
      %v597 = vpop.f32.mrf.mxu0
      %v598 = vadd.f32 %v511, %v597
      %599 = vmatmul.f32.gmra.mxu0 %v536
      %v600 = vpop.f32.mrf.mxu0
      %v601 = vadd.f32 %v511, %v600
      %602 = vmatmul.f32.gmra.mxu0 %v539
      %v603 = vpop.f32.mrf.mxu0
      %v604 = vadd.f32 %v511, %v603
      %605 = vmatmul.f32.gmra.mxu0 %v542
      %v606 = vpop.f32.mrf.mxu0
      %v607 = vadd.f32 %v511, %v606
      %608 = vmatmul.f32.gmra.mxu0 %v545
      %v609 = vpop.f32.mrf.mxu0
      %v610 = vadd.f32 %v511, %v609
      %611 = vmatmul.f32.gmra.mxu0 %v548
      %v612 = vpop.f32.mrf.mxu0
      %v613 = vadd.f32 %v511, %v612
      %614 = vmatmul.f32.gmra.mxu0 %v551
      %v615 = vpop.f32.mrf.mxu0
      %v616 = vadd.f32 %v511, %v615
      %617 = vmatmul.f32.gmra.mxu0 %v554
      %v618 = vpop.f32.mrf.mxu0
      %v619 = vadd.f32 %v511, %v618
      %620 = vmatmul.f32.gmra.mxu0 %v557
      %v621 = vpop.f32.mrf.mxu0
      %v622 = vadd.f32 %v511, %v621
      %623 = vmatmul.f32.gmra.mxu0 %v560
      %v624 = vpop.f32.mrf.mxu0
      %v625 = vadd.f32 %v511, %v624
      %626 = vdwg.mxu0
      %v627 = vld [vmem:[%s477] sm:$0xff]
      %v628 = vld [vmem:[%s477 + $0x8] sm:$0xff]
      %v629 = vld [vmem:[%s477 + $0x10] sm:$0xff]
      %v630 = vld [vmem:[%s477 + $0x18] sm:$0xff]
      %v631 = vld [vmem:[%s477 + $0x20] sm:$0xff]
      %v632 = vld [vmem:[%s477 + $0x28] sm:$0xff]
      %v633 = vld [vmem:[%s477 + $0x30] sm:$0xff]
      %v634 = vld [vmem:[%s477 + $0x38] sm:$0xff]
      %v635 = vld [vmem:[%s477 + $0x40] sm:$0xff]
      %v636 = vld [vmem:[%s477 + $0x48] sm:$0xff]
      %v637 = vld [vmem:[%s477 + $0x50] sm:$0xff]
      %v638 = vld [vmem:[%s477 + $0x58] sm:$0xff]
      %v639 = vld [vmem:[%s477 + $0x60] sm:$0xff]
      %v640 = vld [vmem:[%s477 + $0x68] sm:$0xff]
      %v641 = vld [vmem:[%s477 + $0x70] sm:$0xff]
      %v642 = vld [vmem:[%s477 + $0x78] sm:$0xff]
      %v643 = vld [vmem:[%s4] sm:$0x7]
      %645 = vset.pattern.permute.xlu0 0
      %646 = vperm.xlu0 %645, %v627
      %v647 = vpop.permute.xlu0 %646
      %650 = vset.pattern.permute.xlu0 0
      %651 = vperm.xlu0 %650, %v628
      %v652 = vpop.permute.xlu0 %651
      %655 = vset.pattern.permute.xlu0 0
      %656 = vperm.xlu0 %655, %v629
      %v657 = vpop.permute.xlu0 %656
      %660 = vset.pattern.permute.xlu0 0
      %661 = vperm.xlu0 %660, %v630
      %v662 = vpop.permute.xlu0 %661
      %665 = vset.pattern.permute.xlu0 0
      %666 = vperm.xlu0 %665, %v631
      %v667 = vpop.permute.xlu0 %666
      %670 = vset.pattern.permute.xlu0 0
      %671 = vperm.xlu0 %670, %v632
      %v672 = vpop.permute.xlu0 %671
      %675 = vset.pattern.permute.xlu0 0
      %676 = vperm.xlu0 %675, %v633
      %v677 = vpop.permute.xlu0 %676
      %680 = vset.pattern.permute.xlu0 0
      %681 = vperm.xlu0 %680, %v634
      %v682 = vpop.permute.xlu0 %681
      %685 = vset.pattern.permute.xlu0 0
      %686 = vperm.xlu0 %685, %v635
      %v687 = vpop.permute.xlu0 %686
      %690 = vset.pattern.permute.xlu0 0
      %691 = vperm.xlu0 %690, %v636
      %v692 = vpop.permute.xlu0 %691
      %695 = vset.pattern.permute.xlu0 0
      %696 = vperm.xlu0 %695, %v637
      %v697 = vpop.permute.xlu0 %696
      %700 = vset.pattern.permute.xlu0 0
      %701 = vperm.xlu0 %700, %v638
      %v702 = vpop.permute.xlu0 %701
      %705 = vset.pattern.permute.xlu0 0
      %706 = vperm.xlu0 %705, %v639
      %v707 = vpop.permute.xlu0 %706
      %710 = vset.pattern.permute.xlu0 0
      %711 = vperm.xlu0 %710, %v640
      %v712 = vpop.permute.xlu0 %711
      %715 = vset.pattern.permute.xlu0 0
      %716 = vperm.xlu0 %715, %v641
      %v717 = vpop.permute.xlu0 %716
      %720 = vset.pattern.permute.xlu0 0
      %721 = vperm.xlu0 %720, %v642
      %v722 = vpop.permute.xlu0 %721
      %v724 = vperm.slane %v643, 0
      %v725 = vmul.f32 %v647, %v724
      %v726 = vmul.f32 %v652, %v724
      %v727 = vmul.f32 %v657, %v724
      %v728 = vmul.f32 %v662, %v724
      %v729 = vmul.f32 %v667, %v724
      %v730 = vmul.f32 %v672, %v724
      %v731 = vmul.f32 %v677, %v724
      %v732 = vmul.f32 %v682, %v724
      %v733 = vmul.f32 %v687, %v724
      %v734 = vmul.f32 %v692, %v724
      %v735 = vmul.f32 %v697, %v724
      %v736 = vmul.f32 %v702, %v724
      %v737 = vmul.f32 %v707, %v724
      %v738 = vmul.f32 %v712, %v724
      %v739 = vmul.f32 %v717, %v724
      %v740 = vmul.f32 %v722, %v724
      %741 = vset.pattern.permute.xlu0 1
      %742 = vperm.xlu0 %741, %v627
      %v743 = vpop.permute.xlu0 %742
      %745 = vset.pattern.permute.xlu0 1
      %746 = vperm.xlu0 %745, %v628
      %v747 = vpop.permute.xlu0 %746
      %749 = vset.pattern.permute.xlu0 1
      %750 = vperm.xlu0 %749, %v629
      %v751 = vpop.permute.xlu0 %750
      %753 = vset.pattern.permute.xlu0 1
      %754 = vperm.xlu0 %753, %v630
      %v755 = vpop.permute.xlu0 %754
      %757 = vset.pattern.permute.xlu0 1
      %758 = vperm.xlu0 %757, %v631
      %v759 = vpop.permute.xlu0 %758
      %761 = vset.pattern.permute.xlu0 1
      %762 = vperm.xlu0 %761, %v632
      %v763 = vpop.permute.xlu0 %762
      %765 = vset.pattern.permute.xlu0 1
      %766 = vperm.xlu0 %765, %v633
      %v767 = vpop.permute.xlu0 %766
      %769 = vset.pattern.permute.xlu0 1
      %770 = vperm.xlu0 %769, %v634
      %v771 = vpop.permute.xlu0 %770
      %773 = vset.pattern.permute.xlu0 1
      %774 = vperm.xlu0 %773, %v635
      %v775 = vpop.permute.xlu0 %774
      %777 = vset.pattern.permute.xlu0 1
      %778 = vperm.xlu0 %777, %v636
      %v779 = vpop.permute.xlu0 %778
      %781 = vset.pattern.permute.xlu0 1
      %782 = vperm.xlu0 %781, %v637
      %v783 = vpop.permute.xlu0 %782
      %785 = vset.pattern.permute.xlu0 1
      %786 = vperm.xlu0 %785, %v638
      %v787 = vpop.permute.xlu0 %786
      %789 = vset.pattern.permute.xlu0 1
      %790 = vperm.xlu0 %789, %v639
      %v791 = vpop.permute.xlu0 %790
      %793 = vset.pattern.permute.xlu0 1
      %794 = vperm.xlu0 %793, %v640
      %v795 = vpop.permute.xlu0 %794
      %797 = vset.pattern.permute.xlu0 1
      %798 = vperm.xlu0 %797, %v641
      %v799 = vpop.permute.xlu0 %798
      %801 = vset.pattern.permute.xlu0 1
      %802 = vperm.xlu0 %801, %v642
      %v803 = vpop.permute.xlu0 %802
      %v805 = vperm.slane %v643, 1
      %v806 = vmul.f32 %v743, %v805
      %v807 = vmul.f32 %v747, %v805
      %v808 = vmul.f32 %v751, %v805
      %v809 = vmul.f32 %v755, %v805
      %v810 = vmul.f32 %v759, %v805
      %v811 = vmul.f32 %v763, %v805
      %v812 = vmul.f32 %v767, %v805
      %v813 = vmul.f32 %v771, %v805
      %v814 = vmul.f32 %v775, %v805
      %v815 = vmul.f32 %v779, %v805
      %v816 = vmul.f32 %v783, %v805
      %v817 = vmul.f32 %v787, %v805
      %v818 = vmul.f32 %v791, %v805
      %v819 = vmul.f32 %v795, %v805
      %v820 = vmul.f32 %v799, %v805
      %v821 = vmul.f32 %v803, %v805
      %v822 = vadd.f32 %v725, %v806
      %v823 = vadd.f32 %v726, %v807
      %v824 = vadd.f32 %v727, %v808
      %v825 = vadd.f32 %v728, %v809
      %v826 = vadd.f32 %v729, %v810
      %v827 = vadd.f32 %v730, %v811
      %v828 = vadd.f32 %v731, %v812
      %v829 = vadd.f32 %v732, %v813
      %v830 = vadd.f32 %v733, %v814
      %v831 = vadd.f32 %v734, %v815
      %v832 = vadd.f32 %v735, %v816
      %v833 = vadd.f32 %v736, %v817
      %v834 = vadd.f32 %v737, %v818
      %v835 = vadd.f32 %v738, %v819
      %v836 = vadd.f32 %v739, %v820
      %v837 = vadd.f32 %v740, %v821
      %838 = vset.pattern.permute.xlu0 2
      %839 = vperm.xlu0 %838, %v627
      %v840 = vpop.permute.xlu0 %839
      %842 = vset.pattern.permute.xlu0 2
      %843 = vperm.xlu0 %842, %v628
      %v844 = vpop.permute.xlu0 %843
      %846 = vset.pattern.permute.xlu0 2
      %847 = vperm.xlu0 %846, %v629
      %v848 = vpop.permute.xlu0 %847
      %850 = vset.pattern.permute.xlu0 2
      %851 = vperm.xlu0 %850, %v630
      %v852 = vpop.permute.xlu0 %851
      %854 = vset.pattern.permute.xlu0 2
      %855 = vperm.xlu0 %854, %v631
      %v856 = vpop.permute.xlu0 %855
      %858 = vset.pattern.permute.xlu0 2
      %859 = vperm.xlu0 %858, %v632
      %v860 = vpop.permute.xlu0 %859
      %862 = vset.pattern.permute.xlu0 2
      %863 = vperm.xlu0 %862, %v633
      %v864 = vpop.permute.xlu0 %863
      %866 = vset.pattern.permute.xlu0 2
      %867 = vperm.xlu0 %866, %v634
      %v868 = vpop.permute.xlu0 %867
      %870 = vset.pattern.permute.xlu0 2
      %871 = vperm.xlu0 %870, %v635
      %v872 = vpop.permute.xlu0 %871
      %874 = vset.pattern.permute.xlu0 2
      %875 = vperm.xlu0 %874, %v636
      %v876 = vpop.permute.xlu0 %875
      %878 = vset.pattern.permute.xlu0 2
      %879 = vperm.xlu0 %878, %v637
      %v880 = vpop.permute.xlu0 %879
      %882 = vset.pattern.permute.xlu0 2
      %883 = vperm.xlu0 %882, %v638
      %v884 = vpop.permute.xlu0 %883
      %886 = vset.pattern.permute.xlu0 2
      %887 = vperm.xlu0 %886, %v639
      %v888 = vpop.permute.xlu0 %887
      %890 = vset.pattern.permute.xlu0 2
      %891 = vperm.xlu0 %890, %v640
      %v892 = vpop.permute.xlu0 %891
      %894 = vset.pattern.permute.xlu0 2
      %895 = vperm.xlu0 %894, %v641
      %v896 = vpop.permute.xlu0 %895
      %898 = vset.pattern.permute.xlu0 2
      %899 = vperm.xlu0 %898, %v642
      %v900 = vpop.permute.xlu0 %899
      %v902 = vperm.slane %v643, 2
      %v903 = vmul.f32 %v840, %v902
      %v904 = vmul.f32 %v844, %v902
      %v905 = vmul.f32 %v848, %v902
      %v906 = vmul.f32 %v852, %v902
      %v907 = vmul.f32 %v856, %v902
      %v908 = vmul.f32 %v860, %v902
      %v909 = vmul.f32 %v864, %v902
      %v910 = vmul.f32 %v868, %v902
      %v911 = vmul.f32 %v872, %v902
      %v912 = vmul.f32 %v876, %v902
      %v913 = vmul.f32 %v880, %v902
      %v914 = vmul.f32 %v884, %v902
      %v915 = vmul.f32 %v888, %v902
      %v916 = vmul.f32 %v892, %v902
      %v917 = vmul.f32 %v896, %v902
      %v918 = vmul.f32 %v900, %v902
      %v919 = vadd.f32 %v822, %v903
      %v920 = vadd.f32 %v823, %v904
      %v921 = vadd.f32 %v824, %v905
      %v922 = vadd.f32 %v825, %v906
      %v923 = vadd.f32 %v826, %v907
      %v924 = vadd.f32 %v827, %v908
      %v925 = vadd.f32 %v828, %v909
      %v926 = vadd.f32 %v829, %v910
      %v927 = vadd.f32 %v830, %v911
      %v928 = vadd.f32 %v831, %v912
      %v929 = vadd.f32 %v832, %v913
      %v930 = vadd.f32 %v833, %v914
      %v931 = vadd.f32 %v834, %v915
      %v932 = vadd.f32 %v835, %v916
      %v933 = vadd.f32 %v836, %v917
      %v934 = vadd.f32 %v837, %v918
      %v935 = vld [vmem:[%s5] sm:$0x1]
      %v937 = vperm.slane %v935, 0
      %v939 = vadd.f32 %v919, %v937
      %v940 = vadd.f32 %v920, %v937
      %v941 = vadd.f32 %v921, %v937
      %v942 = vadd.f32 %v922, %v937
      %v943 = vadd.f32 %v923, %v937
      %v944 = vadd.f32 %v924, %v937
      %v945 = vadd.f32 %v925, %v937
      %v946 = vadd.f32 %v926, %v937
      %v947 = vadd.f32 %v927, %v937
      %v948 = vadd.f32 %v928, %v937
      %v949 = vadd.f32 %v929, %v937
      %v950 = vadd.f32 %v930, %v937
      %v951 = vadd.f32 %v931, %v937
      %v952 = vadd.f32 %v932, %v937
      %v953 = vadd.f32 %v933, %v937
      %v954 = vadd.f32 %v934, %v937
      %v955 = vld [vmem:[%s6] sm:$0x1]
      %v956 = vld [vmem:[%s7] sm:$0x1]
      %v957 = vsel %vm513, %v939, 0.0
      %958 = vadd.xlane.f32.xlu0 %v957
      %v959 = vpop.xlane.xlu0 %958
      %v960 = vsel %vm513, %v940, 0.0
      %961 = vadd.xlane.f32.xlu0 %v960
      %v962 = vpop.xlane.xlu0 %961
      %v963 = vsel %vm513, %v941, 0.0
      %964 = vadd.xlane.f32.xlu0 %v963
      %v965 = vpop.xlane.xlu0 %964
      %v966 = vsel %vm513, %v942, 0.0
      %967 = vadd.xlane.f32.xlu0 %v966
      %v968 = vpop.xlane.xlu0 %967
      %v969 = vsel %vm513, %v943, 0.0
      %970 = vadd.xlane.f32.xlu0 %v969
      %v971 = vpop.xlane.xlu0 %970
      %v972 = vsel %vm513, %v944, 0.0
      %973 = vadd.xlane.f32.xlu0 %v972
      %v974 = vpop.xlane.xlu0 %973
      %v975 = vsel %vm513, %v945, 0.0
      %976 = vadd.xlane.f32.xlu0 %v975
      %v977 = vpop.xlane.xlu0 %976
      %v978 = vsel %vm513, %v946, 0.0
      %979 = vadd.xlane.f32.xlu0 %v978
      %v980 = vpop.xlane.xlu0 %979
      %v981 = vsel %vm513, %v947, 0.0
      %982 = vadd.xlane.f32.xlu0 %v981
      %v983 = vpop.xlane.xlu0 %982
      %v984 = vsel %vm513, %v948, 0.0
      %985 = vadd.xlane.f32.xlu0 %v984
      %v986 = vpop.xlane.xlu0 %985
      %v987 = vsel %vm513, %v949, 0.0
      %988 = vadd.xlane.f32.xlu0 %v987
      %v989 = vpop.xlane.xlu0 %988
      %v990 = vsel %vm513, %v950, 0.0
      %991 = vadd.xlane.f32.xlu0 %v990
      %v992 = vpop.xlane.xlu0 %991
      %v993 = vsel %vm513, %v951, 0.0
      %994 = vadd.xlane.f32.xlu0 %v993
      %v995 = vpop.xlane.xlu0 %994
      %v996 = vsel %vm513, %v952, 0.0
      %997 = vadd.xlane.f32.xlu0 %v996
      %v998 = vpop.xlane.xlu0 %997
      %v999 = vsel %vm513, %v953, 0.0
      %1000 = vadd.xlane.f32.xlu0 %v999
      %v1001 = vpop.xlane.xlu0 %1000
      %v1002 = vsel %vm513, %v954, 0.0
      %1003 = vadd.xlane.f32.xlu0 %v1002
      %v1004 = vpop.xlane.xlu0 %1003
      %v1005 = vrcp.pop 32.0
      %v1006 = vmul.f32 32.0, %v1005
      %v1007 = vsub.f32 1.0, %v1006
      %v1008 = vmul.f32 %v1005, %v1007
      %v1009 = vadd.f32 %v1005, %v1008
      %vm1010 = vweird.f32 %v1005
      %v1011 = vsel %vm1010, %v1005, %v1009
      %v1012 = vmul.f32 %v959, %v1011
      %v1013 = vmul.f32 %v962, %v1011
      %v1014 = vmul.f32 %v965, %v1011
      %v1015 = vmul.f32 %v968, %v1011
      %v1016 = vmul.f32 %v971, %v1011
      %v1017 = vmul.f32 %v974, %v1011
      %v1018 = vmul.f32 %v977, %v1011
      %v1019 = vmul.f32 %v980, %v1011
      %v1020 = vmul.f32 %v983, %v1011
      %v1021 = vmul.f32 %v986, %v1011
      %v1022 = vmul.f32 %v989, %v1011
      %v1023 = vmul.f32 %v992, %v1011
      %v1024 = vmul.f32 %v995, %v1011
      %v1025 = vmul.f32 %v998, %v1011
      %v1026 = vmul.f32 %v1001, %v1011
      %v1027 = vmul.f32 %v1004, %v1011
      %v1028 = vsub.f32 %v939, %v1012
      %v1029 = vsub.f32 %v940, %v1013
      %v1030 = vsub.f32 %v941, %v1014
      %v1031 = vsub.f32 %v942, %v1015
      %v1032 = vsub.f32 %v943, %v1016
      %v1033 = vsub.f32 %v944, %v1017
      %v1034 = vsub.f32 %v945, %v1018
      %v1035 = vsub.f32 %v946, %v1019
      %v1036 = vsub.f32 %v947, %v1020
      %v1037 = vsub.f32 %v948, %v1021
      %v1038 = vsub.f32 %v949, %v1022
      %v1039 = vsub.f32 %v950, %v1023
      %v1040 = vsub.f32 %v951, %v1024
      %v1041 = vsub.f32 %v952, %v1025
      %v1042 = vsub.f32 %v953, %v1026
      %v1043 = vsub.f32 %v954, %v1027
      %v1044 = vmul.f32 %v1028, %v1028
      %v1045 = vmul.f32 %v1029, %v1029
      %v1046 = vmul.f32 %v1030, %v1030
      %v1047 = vmul.f32 %v1031, %v1031
      %v1048 = vmul.f32 %v1032, %v1032
      %v1049 = vmul.f32 %v1033, %v1033
      %v1050 = vmul.f32 %v1034, %v1034
      %v1051 = vmul.f32 %v1035, %v1035
      %v1052 = vmul.f32 %v1036, %v1036
      %v1053 = vmul.f32 %v1037, %v1037
      %v1054 = vmul.f32 %v1038, %v1038
      %v1055 = vmul.f32 %v1039, %v1039
      %v1056 = vmul.f32 %v1040, %v1040
      %v1057 = vmul.f32 %v1041, %v1041
      %v1058 = vmul.f32 %v1042, %v1042
      %v1059 = vmul.f32 %v1043, %v1043
      %v1060 = vsel %vm513, %v1044, 0.0
      %1061 = vadd.xlane.f32.xlu0 %v1060
      %v1062 = vpop.xlane.xlu0 %1061
      %v1063 = vsel %vm513, %v1045, 0.0
      %1064 = vadd.xlane.f32.xlu0 %v1063
      %v1065 = vpop.xlane.xlu0 %1064
      %v1066 = vsel %vm513, %v1046, 0.0
      %1067 = vadd.xlane.f32.xlu0 %v1066
      %v1068 = vpop.xlane.xlu0 %1067
      %v1069 = vsel %vm513, %v1047, 0.0
      %1070 = vadd.xlane.f32.xlu0 %v1069
      %v1071 = vpop.xlane.xlu0 %1070
      %v1072 = vsel %vm513, %v1048, 0.0
      %1073 = vadd.xlane.f32.xlu0 %v1072
      %v1074 = vpop.xlane.xlu0 %1073
      %v1075 = vsel %vm513, %v1049, 0.0
      %1076 = vadd.xlane.f32.xlu0 %v1075
      %v1077 = vpop.xlane.xlu0 %1076
      %v1078 = vsel %vm513, %v1050, 0.0
      %1079 = vadd.xlane.f32.xlu0 %v1078
      %v1080 = vpop.xlane.xlu0 %1079
      %v1081 = vsel %vm513, %v1051, 0.0
      %1082 = vadd.xlane.f32.xlu0 %v1081
      %v1083 = vpop.xlane.xlu0 %1082
      %v1084 = vsel %vm513, %v1052, 0.0
      %1085 = vadd.xlane.f32.xlu0 %v1084
      %v1086 = vpop.xlane.xlu0 %1085
      %v1087 = vsel %vm513, %v1053, 0.0
      %1088 = vadd.xlane.f32.xlu0 %v1087
      %v1089 = vpop.xlane.xlu0 %1088
      %v1090 = vsel %vm513, %v1054, 0.0
      %1091 = vadd.xlane.f32.xlu0 %v1090
      %v1092 = vpop.xlane.xlu0 %1091
      %v1093 = vsel %vm513, %v1055, 0.0
      %1094 = vadd.xlane.f32.xlu0 %v1093
      %v1095 = vpop.xlane.xlu0 %1094
      %v1096 = vsel %vm513, %v1056, 0.0
      %1097 = vadd.xlane.f32.xlu0 %v1096
      %v1098 = vpop.xlane.xlu0 %1097
      %v1099 = vsel %vm513, %v1057, 0.0
      %1100 = vadd.xlane.f32.xlu0 %v1099
      %v1101 = vpop.xlane.xlu0 %1100
      %v1102 = vsel %vm513, %v1058, 0.0
      %1103 = vadd.xlane.f32.xlu0 %v1102
      %v1104 = vpop.xlane.xlu0 %1103
      %v1105 = vsel %vm513, %v1059, 0.0
      %1106 = vadd.xlane.f32.xlu0 %v1105
      %v1107 = vpop.xlane.xlu0 %1106
      %v1108 = vmul.f32 %v1062, %v1011
      %v1109 = vmul.f32 %v1065, %v1011
      %v1110 = vmul.f32 %v1068, %v1011
      %v1111 = vmul.f32 %v1071, %v1011
      %v1112 = vmul.f32 %v1074, %v1011
      %v1113 = vmul.f32 %v1077, %v1011
      %v1114 = vmul.f32 %v1080, %v1011
      %v1115 = vmul.f32 %v1083, %v1011
      %v1116 = vmul.f32 %v1086, %v1011
      %v1117 = vmul.f32 %v1089, %v1011
      %v1118 = vmul.f32 %v1092, %v1011
      %v1119 = vmul.f32 %v1095, %v1011
      %v1120 = vmul.f32 %v1098, %v1011
      %v1121 = vmul.f32 %v1101, %v1011
      %v1122 = vmul.f32 %v1104, %v1011
      %v1123 = vmul.f32 %v1107, %v1011
      %v1124 = vadd.f32 %v1108, 1e-05
      %v1125 = vadd.f32 %v1109, 1e-05
      %v1126 = vadd.f32 %v1110, 1e-05
      %v1127 = vadd.f32 %v1111, 1e-05
      %v1128 = vadd.f32 %v1112, 1e-05
      %v1129 = vadd.f32 %v1113, 1e-05
      %v1130 = vadd.f32 %v1114, 1e-05
      %v1131 = vadd.f32 %v1115, 1e-05
      %v1132 = vadd.f32 %v1116, 1e-05
      %v1133 = vadd.f32 %v1117, 1e-05
      %v1134 = vadd.f32 %v1118, 1e-05
      %v1135 = vadd.f32 %v1119, 1e-05
      %v1136 = vadd.f32 %v1120, 1e-05
      %v1137 = vadd.f32 %v1121, 1e-05
      %v1138 = vadd.f32 %v1122, 1e-05
      %v1139 = vadd.f32 %v1123, 1e-05
      %v1140 = vrsqrt.pop %v1124
      %v1141 = vmul.f32 %v1140, %v1124
      %v1142 = vmul.f32 %v1141, %v1140
      %v1143 = vmul.f32 0.5, %v1142
      %v1144 = vsub.f32 1.5, %v1143
      %v1145 = vmul.f32 %v1140, %v1144
      %vm1146 = vweird.f32 %v1124
      %vm1147 = vweird.f32 %v1140
      %vm1148 = vmor %vm1146, %vm1147
      %v1149 = vsel %vm1148, %v1140, %v1145
      %v1150 = vrsqrt.pop %v1125
      %v1151 = vmul.f32 %v1150, %v1125
      %v1152 = vmul.f32 %v1151, %v1150
      %v1153 = vmul.f32 0.5, %v1152
      %v1154 = vsub.f32 1.5, %v1153
      %v1155 = vmul.f32 %v1150, %v1154
      %vm1156 = vweird.f32 %v1125
      %vm1157 = vweird.f32 %v1150
      %vm1158 = vmor %vm1156, %vm1157
      %v1159 = vsel %vm1158, %v1150, %v1155
      %v1160 = vrsqrt.pop %v1126
      %v1161 = vmul.f32 %v1160, %v1126
      %v1162 = vmul.f32 %v1161, %v1160
      %v1163 = vmul.f32 0.5, %v1162
      %v1164 = vsub.f32 1.5, %v1163
      %v1165 = vmul.f32 %v1160, %v1164
      %vm1166 = vweird.f32 %v1126
      %vm1167 = vweird.f32 %v1160
      %vm1168 = vmor %vm1166, %vm1167
      %v1169 = vsel %vm1168, %v1160, %v1165
      %v1170 = vrsqrt.pop %v1127
      %v1171 = vmul.f32 %v1170, %v1127
      %v1172 = vmul.f32 %v1171, %v1170
      %v1173 = vmul.f32 0.5, %v1172
      %v1174 = vsub.f32 1.5, %v1173
      %v1175 = vmul.f32 %v1170, %v1174
      %vm1176 = vweird.f32 %v1127
      %vm1177 = vweird.f32 %v1170
      %vm1178 = vmor %vm1176, %vm1177
      %v1179 = vsel %vm1178, %v1170, %v1175
      %v1180 = vrsqrt.pop %v1128
      %v1181 = vmul.f32 %v1180, %v1128
      %v1182 = vmul.f32 %v1181, %v1180
      %v1183 = vmul.f32 0.5, %v1182
      %v1184 = vsub.f32 1.5, %v1183
      %v1185 = vmul.f32 %v1180, %v1184
      %vm1186 = vweird.f32 %v1128
      %vm1187 = vweird.f32 %v1180
      %vm1188 = vmor %vm1186, %vm1187
      %v1189 = vsel %vm1188, %v1180, %v1185
      %v1190 = vrsqrt.pop %v1129
      %v1191 = vmul.f32 %v1190, %v1129
      %v1192 = vmul.f32 %v1191, %v1190
      %v1193 = vmul.f32 0.5, %v1192
      %v1194 = vsub.f32 1.5, %v1193
      %v1195 = vmul.f32 %v1190, %v1194
      %vm1196 = vweird.f32 %v1129
      %vm1197 = vweird.f32 %v1190
      %vm1198 = vmor %vm1196, %vm1197
      %v1199 = vsel %vm1198, %v1190, %v1195
      %v1200 = vrsqrt.pop %v1130
      %v1201 = vmul.f32 %v1200, %v1130
      %v1202 = vmul.f32 %v1201, %v1200
      %v1203 = vmul.f32 0.5, %v1202
      %v1204 = vsub.f32 1.5, %v1203
      %v1205 = vmul.f32 %v1200, %v1204
      %vm1206 = vweird.f32 %v1130
      %vm1207 = vweird.f32 %v1200
      %vm1208 = vmor %vm1206, %vm1207
      %v1209 = vsel %vm1208, %v1200, %v1205
      %v1210 = vrsqrt.pop %v1131
      %v1211 = vmul.f32 %v1210, %v1131
      %v1212 = vmul.f32 %v1211, %v1210
      %v1213 = vmul.f32 0.5, %v1212
      %v1214 = vsub.f32 1.5, %v1213
      %v1215 = vmul.f32 %v1210, %v1214
      %vm1216 = vweird.f32 %v1131
      %vm1217 = vweird.f32 %v1210
      %vm1218 = vmor %vm1216, %vm1217
      %v1219 = vsel %vm1218, %v1210, %v1215
      %v1220 = vrsqrt.pop %v1132
      %v1221 = vmul.f32 %v1220, %v1132
      %v1222 = vmul.f32 %v1221, %v1220
      %v1223 = vmul.f32 0.5, %v1222
      %v1224 = vsub.f32 1.5, %v1223
      %v1225 = vmul.f32 %v1220, %v1224
      %vm1226 = vweird.f32 %v1132
      %vm1227 = vweird.f32 %v1220
      %vm1228 = vmor %vm1226, %vm1227
      %v1229 = vsel %vm1228, %v1220, %v1225
      %v1230 = vrsqrt.pop %v1133
      %v1231 = vmul.f32 %v1230, %v1133
      %v1232 = vmul.f32 %v1231, %v1230
      %v1233 = vmul.f32 0.5, %v1232
      %v1234 = vsub.f32 1.5, %v1233
      %v1235 = vmul.f32 %v1230, %v1234
      %vm1236 = vweird.f32 %v1133
      %vm1237 = vweird.f32 %v1230
      %vm1238 = vmor %vm1236, %vm1237
      %v1239 = vsel %vm1238, %v1230, %v1235
      %v1240 = vrsqrt.pop %v1134
      %v1241 = vmul.f32 %v1240, %v1134
      %v1242 = vmul.f32 %v1241, %v1240
      %v1243 = vmul.f32 0.5, %v1242
      %v1244 = vsub.f32 1.5, %v1243
      %v1245 = vmul.f32 %v1240, %v1244
      %vm1246 = vweird.f32 %v1134
      %vm1247 = vweird.f32 %v1240
      %vm1248 = vmor %vm1246, %vm1247
      %v1249 = vsel %vm1248, %v1240, %v1245
      %v1250 = vrsqrt.pop %v1135
      %v1251 = vmul.f32 %v1250, %v1135
      %v1252 = vmul.f32 %v1251, %v1250
      %v1253 = vmul.f32 0.5, %v1252
      %v1254 = vsub.f32 1.5, %v1253
      %v1255 = vmul.f32 %v1250, %v1254
      %vm1256 = vweird.f32 %v1135
      %vm1257 = vweird.f32 %v1250
      %vm1258 = vmor %vm1256, %vm1257
      %v1259 = vsel %vm1258, %v1250, %v1255
      %v1260 = vrsqrt.pop %v1136
      %v1261 = vmul.f32 %v1260, %v1136
      %v1262 = vmul.f32 %v1261, %v1260
      %v1263 = vmul.f32 0.5, %v1262
      %v1264 = vsub.f32 1.5, %v1263
      %v1265 = vmul.f32 %v1260, %v1264
      %vm1266 = vweird.f32 %v1136
      %vm1267 = vweird.f32 %v1260
      %vm1268 = vmor %vm1266, %vm1267
      %v1269 = vsel %vm1268, %v1260, %v1265
      %v1270 = vrsqrt.pop %v1137
      %v1271 = vmul.f32 %v1270, %v1137
      %v1272 = vmul.f32 %v1271, %v1270
      %v1273 = vmul.f32 0.5, %v1272
      %v1274 = vsub.f32 1.5, %v1273
      %v1275 = vmul.f32 %v1270, %v1274
      %vm1276 = vweird.f32 %v1137
      %vm1277 = vweird.f32 %v1270
      %vm1278 = vmor %vm1276, %vm1277
      %v1279 = vsel %vm1278, %v1270, %v1275
      %v1280 = vrsqrt.pop %v1138
      %v1281 = vmul.f32 %v1280, %v1138
      %v1282 = vmul.f32 %v1281, %v1280
      %v1283 = vmul.f32 0.5, %v1282
      %v1284 = vsub.f32 1.5, %v1283
      %v1285 = vmul.f32 %v1280, %v1284
      %vm1286 = vweird.f32 %v1138
      %vm1287 = vweird.f32 %v1280
      %vm1288 = vmor %vm1286, %vm1287
      %v1289 = vsel %vm1288, %v1280, %v1285
      %v1290 = vrsqrt.pop %v1139
      %v1291 = vmul.f32 %v1290, %v1139
      %v1292 = vmul.f32 %v1291, %v1290
      %v1293 = vmul.f32 0.5, %v1292
      %v1294 = vsub.f32 1.5, %v1293
      %v1295 = vmul.f32 %v1290, %v1294
      %vm1296 = vweird.f32 %v1139
      %vm1297 = vweird.f32 %v1290
      %vm1298 = vmor %vm1296, %vm1297
      %v1299 = vsel %vm1298, %v1290, %v1295
      %v1300 = vmul.f32 %v1028, %v1149
      %v1301 = vmul.f32 %v1029, %v1159
      %v1302 = vmul.f32 %v1030, %v1169
      %v1303 = vmul.f32 %v1031, %v1179
      %v1304 = vmul.f32 %v1032, %v1189
      %v1305 = vmul.f32 %v1033, %v1199
      %v1306 = vmul.f32 %v1034, %v1209
      %v1307 = vmul.f32 %v1035, %v1219
      %v1308 = vmul.f32 %v1036, %v1229
      %v1309 = vmul.f32 %v1037, %v1239
      %v1310 = vmul.f32 %v1038, %v1249
      %v1311 = vmul.f32 %v1039, %v1259
      %v1312 = vmul.f32 %v1040, %v1269
      %v1313 = vmul.f32 %v1041, %v1279
      %v1314 = vmul.f32 %v1042, %v1289
      %v1315 = vmul.f32 %v1043, %v1299
      %v1317 = vperm.slane %v955, 0
      %v1319 = vmul.f32 %v1300, %v1317
      %v1320 = vmul.f32 %v1301, %v1317
      %v1321 = vmul.f32 %v1302, %v1317
      %v1322 = vmul.f32 %v1303, %v1317
      %v1323 = vmul.f32 %v1304, %v1317
      %v1324 = vmul.f32 %v1305, %v1317
      %v1325 = vmul.f32 %v1306, %v1317
      %v1326 = vmul.f32 %v1307, %v1317
      %v1327 = vmul.f32 %v1308, %v1317
      %v1328 = vmul.f32 %v1309, %v1317
      %v1329 = vmul.f32 %v1310, %v1317
      %v1330 = vmul.f32 %v1311, %v1317
      %v1331 = vmul.f32 %v1312, %v1317
      %v1332 = vmul.f32 %v1313, %v1317
      %v1333 = vmul.f32 %v1314, %v1317
      %v1334 = vmul.f32 %v1315, %v1317
      %v1336 = vperm.slane %v956, 0
      %v1338 = vadd.f32 %v1319, %v1336
      %v1339 = vadd.f32 %v1320, %v1336
      %v1340 = vadd.f32 %v1321, %v1336
      %v1341 = vadd.f32 %v1322, %v1336
      %v1342 = vadd.f32 %v1323, %v1336
      %v1343 = vadd.f32 %v1324, %v1336
      %v1344 = vadd.f32 %v1325, %v1336
      %v1345 = vadd.f32 %v1326, %v1336
      %v1346 = vadd.f32 %v1327, %v1336
      %v1347 = vadd.f32 %v1328, %v1336
      %v1348 = vadd.f32 %v1329, %v1336
      %v1349 = vadd.f32 %v1330, %v1336
      %v1350 = vadd.f32 %v1331, %v1336
      %v1351 = vadd.f32 %v1332, %v1336
      %v1352 = vadd.f32 %v1333, %v1336
      %v1353 = vadd.f32 %v1334, %v1336
      %v1354 = vmax.f32 %v1338, 0.0
      %v1355 = vmax.f32 %v1339, 0.0
      %v1356 = vmax.f32 %v1340, 0.0
      %v1357 = vmax.f32 %v1341, 0.0
      %v1358 = vmax.f32 %v1342, 0.0
      %v1359 = vmax.f32 %v1343, 0.0
      %v1360 = vmax.f32 %v1344, 0.0
      %v1361 = vmax.f32 %v1345, 0.0
      %v1362 = vmax.f32 %v1346, 0.0
      %v1363 = vmax.f32 %v1347, 0.0
      %v1364 = vmax.f32 %v1348, 0.0
      %v1365 = vmax.f32 %v1349, 0.0
      %v1366 = vmax.f32 %v1350, 0.0
      %v1367 = vmax.f32 %v1351, 0.0
      %v1368 = vmax.f32 %v1352, 0.0
      %v1369 = vmax.f32 %v1353, 0.0
      %v1370 = vld [vmem:[%s8] sm:$0xff]
      %v1371 = vld [vmem:[%s8 + $0x8] sm:$0xff]
      %v1372 = vld [vmem:[%s8 + $0x10] sm:$0xff]
      %v1373 = vld [vmem:[%s8 + $0x18] sm:$0xff]
      %v1374 = vld [vmem:[%s9] sm:$0x1]
      %v1376 = vperm.slane %v1374, 0
      %v1379 = vsel %vm513, %v1354, 0
      %v1382 = vsel %vm513, %v1355, 0
      %v1385 = vsel %vm513, %v1356, 0
      %v1388 = vsel %vm513, %v1357, 0
      %v1391 = vsel %vm513, %v1358, 0
      %v1394 = vsel %vm513, %v1359, 0
      %v1397 = vsel %vm513, %v1360, 0
      %v1400 = vsel %vm513, %v1361, 0
      %v1403 = vsel %vm513, %v1362, 0
      %v1406 = vsel %vm513, %v1363, 0
      %v1409 = vsel %vm513, %v1364, 0
      %v1412 = vsel %vm513, %v1365, 0
      %v1415 = vsel %vm513, %v1366, 0
      %v1418 = vsel %vm513, %v1367, 0
      %v1421 = vsel %vm513, %v1368, 0
      %v1424 = vsel %vm513, %v1369, 0
      %1426 = vmatpush.msra.mxu0 0.0
      %1427 = vmatpush.msra.mxu0 0.0
      %1428 = vmatpush.msra.mxu0 0.0
      %1429 = vmatpush.msra.mxu0 0.0
      %1430 = vmatpush.msra.mxu0 0.0
      %1431 = vmatpush.msra.mxu0 0.0
      %1432 = vmatpush.msra.mxu0 0.0
      %1433 = vmatpush.msra.mxu0 0.0
      %1434 = vmatpush.msra.mxu0 0.0
      %1435 = vmatpush.msra.mxu0 0.0
      %1436 = vmatpush.msra.mxu0 0.0
      %1437 = vmatpush.msra.mxu0 0.0
      %1438 = vmatpush.msra.mxu0 %v1373
      %1439 = vmatpush.msra.mxu0 %v1372
      %1440 = vmatpush.msra.mxu0 %v1371
      %1441 = vmatpush.msra.mxu0 %v1370
      %1442 = vmatmul.f32.gmra.mxu0 %v1379
      %v1443 = vpop.f32.mrf.mxu0
      %v1444 = vadd.f32 %v1376, %v1443
      %1445 = vmatmul.f32.gmra.mxu0 %v1382
      %v1446 = vpop.f32.mrf.mxu0
      %v1447 = vadd.f32 %v1376, %v1446
      %1448 = vmatmul.f32.gmra.mxu0 %v1385
      %v1449 = vpop.f32.mrf.mxu0
      %v1450 = vadd.f32 %v1376, %v1449
      %1451 = vmatmul.f32.gmra.mxu0 %v1388
      %v1452 = vpop.f32.mrf.mxu0
      %v1453 = vadd.f32 %v1376, %v1452
      %1454 = vmatmul.f32.gmra.mxu0 %v1391
      %v1455 = vpop.f32.mrf.mxu0
      %v1456 = vadd.f32 %v1376, %v1455
      %1457 = vmatmul.f32.gmra.mxu0 %v1394
      %v1458 = vpop.f32.mrf.mxu0
      %v1459 = vadd.f32 %v1376, %v1458
      %1460 = vmatmul.f32.gmra.mxu0 %v1397
      %v1461 = vpop.f32.mrf.mxu0
      %v1462 = vadd.f32 %v1376, %v1461
      %1463 = vmatmul.f32.gmra.mxu0 %v1400
      %v1464 = vpop.f32.mrf.mxu0
      %v1465 = vadd.f32 %v1376, %v1464
      %1466 = vmatmul.f32.gmra.mxu0 %v1403
      %v1467 = vpop.f32.mrf.mxu0
      %v1468 = vadd.f32 %v1376, %v1467
      %1469 = vmatmul.f32.gmra.mxu0 %v1406
      %v1470 = vpop.f32.mrf.mxu0
      %v1471 = vadd.f32 %v1376, %v1470
      %1472 = vmatmul.f32.gmra.mxu0 %v1409
      %v1473 = vpop.f32.mrf.mxu0
      %v1474 = vadd.f32 %v1376, %v1473
      %1475 = vmatmul.f32.gmra.mxu0 %v1412
      %v1476 = vpop.f32.mrf.mxu0
      %v1477 = vadd.f32 %v1376, %v1476
      %1478 = vmatmul.f32.gmra.mxu0 %v1415
      %v1479 = vpop.f32.mrf.mxu0
      %v1480 = vadd.f32 %v1376, %v1479
      %1481 = vmatmul.f32.gmra.mxu0 %v1418
      %v1482 = vpop.f32.mrf.mxu0
      %v1483 = vadd.f32 %v1376, %v1482
      %1484 = vmatmul.f32.gmra.mxu0 %v1421
      %v1485 = vpop.f32.mrf.mxu0
      %v1486 = vadd.f32 %v1376, %v1485
      %1487 = vmatmul.f32.gmra.mxu0 %v1424
      %v1488 = vpop.f32.mrf.mxu0
      %v1489 = vadd.f32 %v1376, %v1488
      %1490 = vdwg.mxu0
      %v1491 = vld [vmem:[%s10] sm:$0x1]
      %v1492 = vld [vmem:[%s11] sm:$0x1]
      %v1493 = vsel %vm513, %v1444, 0.0
      %1494 = vadd.xlane.f32.xlu0 %v1493
      %v1495 = vpop.xlane.xlu0 %1494
      %v1496 = vsel %vm513, %v1447, 0.0
      %1497 = vadd.xlane.f32.xlu0 %v1496
      %v1498 = vpop.xlane.xlu0 %1497
      %v1499 = vsel %vm513, %v1450, 0.0
      %1500 = vadd.xlane.f32.xlu0 %v1499
      %v1501 = vpop.xlane.xlu0 %1500
      %v1502 = vsel %vm513, %v1453, 0.0
      %1503 = vadd.xlane.f32.xlu0 %v1502
      %v1504 = vpop.xlane.xlu0 %1503
      %v1505 = vsel %vm513, %v1456, 0.0
      %1506 = vadd.xlane.f32.xlu0 %v1505
      %v1507 = vpop.xlane.xlu0 %1506
      %v1508 = vsel %vm513, %v1459, 0.0
      %1509 = vadd.xlane.f32.xlu0 %v1508
      %v1510 = vpop.xlane.xlu0 %1509
      %v1511 = vsel %vm513, %v1462, 0.0
      %1512 = vadd.xlane.f32.xlu0 %v1511
      %v1513 = vpop.xlane.xlu0 %1512
      %v1514 = vsel %vm513, %v1465, 0.0
      %1515 = vadd.xlane.f32.xlu0 %v1514
      %v1516 = vpop.xlane.xlu0 %1515
      %v1517 = vsel %vm513, %v1468, 0.0
      %1518 = vadd.xlane.f32.xlu0 %v1517
      %v1519 = vpop.xlane.xlu0 %1518
      %v1520 = vsel %vm513, %v1471, 0.0
      %1521 = vadd.xlane.f32.xlu0 %v1520
      %v1522 = vpop.xlane.xlu0 %1521
      %v1523 = vsel %vm513, %v1474, 0.0
      %1524 = vadd.xlane.f32.xlu0 %v1523
      %v1525 = vpop.xlane.xlu0 %1524
      %v1526 = vsel %vm513, %v1477, 0.0
      %1527 = vadd.xlane.f32.xlu0 %v1526
      %v1528 = vpop.xlane.xlu0 %1527
      %v1529 = vsel %vm513, %v1480, 0.0
      %1530 = vadd.xlane.f32.xlu0 %v1529
      %v1531 = vpop.xlane.xlu0 %1530
      %v1532 = vsel %vm513, %v1483, 0.0
      %1533 = vadd.xlane.f32.xlu0 %v1532
      %v1534 = vpop.xlane.xlu0 %1533
      %v1535 = vsel %vm513, %v1486, 0.0
      %1536 = vadd.xlane.f32.xlu0 %v1535
      %v1537 = vpop.xlane.xlu0 %1536
      %v1538 = vsel %vm513, %v1489, 0.0
      %1539 = vadd.xlane.f32.xlu0 %v1538
      %v1540 = vpop.xlane.xlu0 %1539
      %v1541 = vmul.f32 %v1495, %v1011
      %v1542 = vmul.f32 %v1498, %v1011
      %v1543 = vmul.f32 %v1501, %v1011
      %v1544 = vmul.f32 %v1504, %v1011
      %v1545 = vmul.f32 %v1507, %v1011
      %v1546 = vmul.f32 %v1510, %v1011
      %v1547 = vmul.f32 %v1513, %v1011
      %v1548 = vmul.f32 %v1516, %v1011
      %v1549 = vmul.f32 %v1519, %v1011
      %v1550 = vmul.f32 %v1522, %v1011
      %v1551 = vmul.f32 %v1525, %v1011
      %v1552 = vmul.f32 %v1528, %v1011
      %v1553 = vmul.f32 %v1531, %v1011
      %v1554 = vmul.f32 %v1534, %v1011
      %v1555 = vmul.f32 %v1537, %v1011
      %v1556 = vmul.f32 %v1540, %v1011
      %v1557 = vsub.f32 %v1444, %v1541
      %v1558 = vsub.f32 %v1447, %v1542
      %v1559 = vsub.f32 %v1450, %v1543
      %v1560 = vsub.f32 %v1453, %v1544
      %v1561 = vsub.f32 %v1456, %v1545
      %v1562 = vsub.f32 %v1459, %v1546
      %v1563 = vsub.f32 %v1462, %v1547
      %v1564 = vsub.f32 %v1465, %v1548
      %v1565 = vsub.f32 %v1468, %v1549
      %v1566 = vsub.f32 %v1471, %v1550
      %v1567 = vsub.f32 %v1474, %v1551
      %v1568 = vsub.f32 %v1477, %v1552
      %v1569 = vsub.f32 %v1480, %v1553
      %v1570 = vsub.f32 %v1483, %v1554
      %v1571 = vsub.f32 %v1486, %v1555
      %v1572 = vsub.f32 %v1489, %v1556
      %v1573 = vmul.f32 %v1557, %v1557
      %v1574 = vmul.f32 %v1558, %v1558
      %v1575 = vmul.f32 %v1559, %v1559
      %v1576 = vmul.f32 %v1560, %v1560
      %v1577 = vmul.f32 %v1561, %v1561
      %v1578 = vmul.f32 %v1562, %v1562
      %v1579 = vmul.f32 %v1563, %v1563
      %v1580 = vmul.f32 %v1564, %v1564
      %v1581 = vmul.f32 %v1565, %v1565
      %v1582 = vmul.f32 %v1566, %v1566
      %v1583 = vmul.f32 %v1567, %v1567
      %v1584 = vmul.f32 %v1568, %v1568
      %v1585 = vmul.f32 %v1569, %v1569
      %v1586 = vmul.f32 %v1570, %v1570
      %v1587 = vmul.f32 %v1571, %v1571
      %v1588 = vmul.f32 %v1572, %v1572
      %v1589 = vsel %vm513, %v1573, 0.0
      %1590 = vadd.xlane.f32.xlu0 %v1589
      %v1591 = vpop.xlane.xlu0 %1590
      %v1592 = vsel %vm513, %v1574, 0.0
      %1593 = vadd.xlane.f32.xlu0 %v1592
      %v1594 = vpop.xlane.xlu0 %1593
      %v1595 = vsel %vm513, %v1575, 0.0
      %1596 = vadd.xlane.f32.xlu0 %v1595
      %v1597 = vpop.xlane.xlu0 %1596
      %v1598 = vsel %vm513, %v1576, 0.0
      %1599 = vadd.xlane.f32.xlu0 %v1598
      %v1600 = vpop.xlane.xlu0 %1599
      %v1601 = vsel %vm513, %v1577, 0.0
      %1602 = vadd.xlane.f32.xlu0 %v1601
      %v1603 = vpop.xlane.xlu0 %1602
      %v1604 = vsel %vm513, %v1578, 0.0
      %1605 = vadd.xlane.f32.xlu0 %v1604
      %v1606 = vpop.xlane.xlu0 %1605
      %v1607 = vsel %vm513, %v1579, 0.0
      %1608 = vadd.xlane.f32.xlu0 %v1607
      %v1609 = vpop.xlane.xlu0 %1608
      %v1610 = vsel %vm513, %v1580, 0.0
      %1611 = vadd.xlane.f32.xlu0 %v1610
      %v1612 = vpop.xlane.xlu0 %1611
      %v1613 = vsel %vm513, %v1581, 0.0
      %1614 = vadd.xlane.f32.xlu0 %v1613
      %v1615 = vpop.xlane.xlu0 %1614
      %v1616 = vsel %vm513, %v1582, 0.0
      %1617 = vadd.xlane.f32.xlu0 %v1616
      %v1618 = vpop.xlane.xlu0 %1617
      %v1619 = vsel %vm513, %v1583, 0.0
      %1620 = vadd.xlane.f32.xlu0 %v1619
      %v1621 = vpop.xlane.xlu0 %1620
      %v1622 = vsel %vm513, %v1584, 0.0
      %1623 = vadd.xlane.f32.xlu0 %v1622
      %v1624 = vpop.xlane.xlu0 %1623
      %v1625 = vsel %vm513, %v1585, 0.0
      %1626 = vadd.xlane.f32.xlu0 %v1625
      %v1627 = vpop.xlane.xlu0 %1626
      %v1628 = vsel %vm513, %v1586, 0.0
      %1629 = vadd.xlane.f32.xlu0 %v1628
      %v1630 = vpop.xlane.xlu0 %1629
      %v1631 = vsel %vm513, %v1587, 0.0
      %1632 = vadd.xlane.f32.xlu0 %v1631
      %v1633 = vpop.xlane.xlu0 %1632
      %v1634 = vsel %vm513, %v1588, 0.0
      %1635 = vadd.xlane.f32.xlu0 %v1634
      %v1636 = vpop.xlane.xlu0 %1635
      %v1637 = vmul.f32 %v1591, %v1011
      %v1638 = vmul.f32 %v1594, %v1011
      %v1639 = vmul.f32 %v1597, %v1011
      %v1640 = vmul.f32 %v1600, %v1011
      %v1641 = vmul.f32 %v1603, %v1011
      %v1642 = vmul.f32 %v1606, %v1011
      %v1643 = vmul.f32 %v1609, %v1011
      %v1644 = vmul.f32 %v1612, %v1011
      %v1645 = vmul.f32 %v1615, %v1011
      %v1646 = vmul.f32 %v1618, %v1011
      %v1647 = vmul.f32 %v1621, %v1011
      %v1648 = vmul.f32 %v1624, %v1011
      %v1649 = vmul.f32 %v1627, %v1011
      %v1650 = vmul.f32 %v1630, %v1011
      %v1651 = vmul.f32 %v1633, %v1011
      %v1652 = vmul.f32 %v1636, %v1011
      %v1653 = vadd.f32 %v1637, 1e-05
      %v1654 = vadd.f32 %v1638, 1e-05
      %v1655 = vadd.f32 %v1639, 1e-05
      %v1656 = vadd.f32 %v1640, 1e-05
      %v1657 = vadd.f32 %v1641, 1e-05
      %v1658 = vadd.f32 %v1642, 1e-05
      %v1659 = vadd.f32 %v1643, 1e-05
      %v1660 = vadd.f32 %v1644, 1e-05
      %v1661 = vadd.f32 %v1645, 1e-05
      %v1662 = vadd.f32 %v1646, 1e-05
      %v1663 = vadd.f32 %v1647, 1e-05
      %v1664 = vadd.f32 %v1648, 1e-05
      %v1665 = vadd.f32 %v1649, 1e-05
      %v1666 = vadd.f32 %v1650, 1e-05
      %v1667 = vadd.f32 %v1651, 1e-05
      %v1668 = vadd.f32 %v1652, 1e-05
      %v1669 = vrsqrt.pop %v1653
      %v1670 = vmul.f32 %v1669, %v1653
      %v1671 = vmul.f32 %v1670, %v1669
      %v1672 = vmul.f32 0.5, %v1671
      %v1673 = vsub.f32 1.5, %v1672
      %v1674 = vmul.f32 %v1669, %v1673
      %vm1675 = vweird.f32 %v1653
      %vm1676 = vweird.f32 %v1669
      %vm1677 = vmor %vm1675, %vm1676
      %v1678 = vsel %vm1677, %v1669, %v1674
      %v1679 = vrsqrt.pop %v1654
      %v1680 = vmul.f32 %v1679, %v1654
      %v1681 = vmul.f32 %v1680, %v1679
      %v1682 = vmul.f32 0.5, %v1681
      %v1683 = vsub.f32 1.5, %v1682
      %v1684 = vmul.f32 %v1679, %v1683
      %vm1685 = vweird.f32 %v1654
      %vm1686 = vweird.f32 %v1679
      %vm1687 = vmor %vm1685, %vm1686
      %v1688 = vsel %vm1687, %v1679, %v1684
      %v1689 = vrsqrt.pop %v1655
      %v1690 = vmul.f32 %v1689, %v1655
      %v1691 = vmul.f32 %v1690, %v1689
      %v1692 = vmul.f32 0.5, %v1691
      %v1693 = vsub.f32 1.5, %v1692
      %v1694 = vmul.f32 %v1689, %v1693
      %vm1695 = vweird.f32 %v1655
      %vm1696 = vweird.f32 %v1689
      %vm1697 = vmor %vm1695, %vm1696
      %v1698 = vsel %vm1697, %v1689, %v1694
      %v1699 = vrsqrt.pop %v1656
      %v1700 = vmul.f32 %v1699, %v1656
      %v1701 = vmul.f32 %v1700, %v1699
      %v1702 = vmul.f32 0.5, %v1701
      %v1703 = vsub.f32 1.5, %v1702
      %v1704 = vmul.f32 %v1699, %v1703
      %vm1705 = vweird.f32 %v1656
      %vm1706 = vweird.f32 %v1699
      %vm1707 = vmor %vm1705, %vm1706
      %v1708 = vsel %vm1707, %v1699, %v1704
      %v1709 = vrsqrt.pop %v1657
      %v1710 = vmul.f32 %v1709, %v1657
      %v1711 = vmul.f32 %v1710, %v1709
      %v1712 = vmul.f32 0.5, %v1711
      %v1713 = vsub.f32 1.5, %v1712
      %v1714 = vmul.f32 %v1709, %v1713
      %vm1715 = vweird.f32 %v1657
      %vm1716 = vweird.f32 %v1709
      %vm1717 = vmor %vm1715, %vm1716
      %v1718 = vsel %vm1717, %v1709, %v1714
      %v1719 = vrsqrt.pop %v1658
      %v1720 = vmul.f32 %v1719, %v1658
      %v1721 = vmul.f32 %v1720, %v1719
      %v1722 = vmul.f32 0.5, %v1721
      %v1723 = vsub.f32 1.5, %v1722
      %v1724 = vmul.f32 %v1719, %v1723
      %vm1725 = vweird.f32 %v1658
      %vm1726 = vweird.f32 %v1719
      %vm1727 = vmor %vm1725, %vm1726
      %v1728 = vsel %vm1727, %v1719, %v1724
      %v1729 = vrsqrt.pop %v1659
      %v1730 = vmul.f32 %v1729, %v1659
      %v1731 = vmul.f32 %v1730, %v1729
      %v1732 = vmul.f32 0.5, %v1731
      %v1733 = vsub.f32 1.5, %v1732
      %v1734 = vmul.f32 %v1729, %v1733
      %vm1735 = vweird.f32 %v1659
      %vm1736 = vweird.f32 %v1729
      %vm1737 = vmor %vm1735, %vm1736
      %v1738 = vsel %vm1737, %v1729, %v1734
      %v1739 = vrsqrt.pop %v1660
      %v1740 = vmul.f32 %v1739, %v1660
      %v1741 = vmul.f32 %v1740, %v1739
      %v1742 = vmul.f32 0.5, %v1741
      %v1743 = vsub.f32 1.5, %v1742
      %v1744 = vmul.f32 %v1739, %v1743
      %vm1745 = vweird.f32 %v1660
      %vm1746 = vweird.f32 %v1739
      %vm1747 = vmor %vm1745, %vm1746
      %v1748 = vsel %vm1747, %v1739, %v1744
      %v1749 = vrsqrt.pop %v1661
      %v1750 = vmul.f32 %v1749, %v1661
      %v1751 = vmul.f32 %v1750, %v1749
      %v1752 = vmul.f32 0.5, %v1751
      %v1753 = vsub.f32 1.5, %v1752
      %v1754 = vmul.f32 %v1749, %v1753
      %vm1755 = vweird.f32 %v1661
      %vm1756 = vweird.f32 %v1749
      %vm1757 = vmor %vm1755, %vm1756
      %v1758 = vsel %vm1757, %v1749, %v1754
      %v1759 = vrsqrt.pop %v1662
      %v1760 = vmul.f32 %v1759, %v1662
      %v1761 = vmul.f32 %v1760, %v1759
      %v1762 = vmul.f32 0.5, %v1761
      %v1763 = vsub.f32 1.5, %v1762
      %v1764 = vmul.f32 %v1759, %v1763
      %vm1765 = vweird.f32 %v1662
      %vm1766 = vweird.f32 %v1759
      %vm1767 = vmor %vm1765, %vm1766
      %v1768 = vsel %vm1767, %v1759, %v1764
      %v1769 = vrsqrt.pop %v1663
      %v1770 = vmul.f32 %v1769, %v1663
      %v1771 = vmul.f32 %v1770, %v1769
      %v1772 = vmul.f32 0.5, %v1771
      %v1773 = vsub.f32 1.5, %v1772
      %v1774 = vmul.f32 %v1769, %v1773
      %vm1775 = vweird.f32 %v1663
      %vm1776 = vweird.f32 %v1769
      %vm1777 = vmor %vm1775, %vm1776
      %v1778 = vsel %vm1777, %v1769, %v1774
      %v1779 = vrsqrt.pop %v1664
      %v1780 = vmul.f32 %v1779, %v1664
      %v1781 = vmul.f32 %v1780, %v1779
      %v1782 = vmul.f32 0.5, %v1781
      %v1783 = vsub.f32 1.5, %v1782
      %v1784 = vmul.f32 %v1779, %v1783
      %vm1785 = vweird.f32 %v1664
      %vm1786 = vweird.f32 %v1779
      %vm1787 = vmor %vm1785, %vm1786
      %v1788 = vsel %vm1787, %v1779, %v1784
      %v1789 = vrsqrt.pop %v1665
      %v1790 = vmul.f32 %v1789, %v1665
      %v1791 = vmul.f32 %v1790, %v1789
      %v1792 = vmul.f32 0.5, %v1791
      %v1793 = vsub.f32 1.5, %v1792
      %v1794 = vmul.f32 %v1789, %v1793
      %vm1795 = vweird.f32 %v1665
      %vm1796 = vweird.f32 %v1789
      %vm1797 = vmor %vm1795, %vm1796
      %v1798 = vsel %vm1797, %v1789, %v1794
      %v1799 = vrsqrt.pop %v1666
      %v1800 = vmul.f32 %v1799, %v1666
      %v1801 = vmul.f32 %v1800, %v1799
      %v1802 = vmul.f32 0.5, %v1801
      %v1803 = vsub.f32 1.5, %v1802
      %v1804 = vmul.f32 %v1799, %v1803
      %vm1805 = vweird.f32 %v1666
      %vm1806 = vweird.f32 %v1799
      %vm1807 = vmor %vm1805, %vm1806
      %v1808 = vsel %vm1807, %v1799, %v1804
      %v1809 = vrsqrt.pop %v1667
      %v1810 = vmul.f32 %v1809, %v1667
      %v1811 = vmul.f32 %v1810, %v1809
      %v1812 = vmul.f32 0.5, %v1811
      %v1813 = vsub.f32 1.5, %v1812
      %v1814 = vmul.f32 %v1809, %v1813
      %vm1815 = vweird.f32 %v1667
      %vm1816 = vweird.f32 %v1809
      %vm1817 = vmor %vm1815, %vm1816
      %v1818 = vsel %vm1817, %v1809, %v1814
      %v1819 = vrsqrt.pop %v1668
      %v1820 = vmul.f32 %v1819, %v1668
      %v1821 = vmul.f32 %v1820, %v1819
      %v1822 = vmul.f32 0.5, %v1821
      %v1823 = vsub.f32 1.5, %v1822
      %v1824 = vmul.f32 %v1819, %v1823
      %vm1825 = vweird.f32 %v1668
      %vm1826 = vweird.f32 %v1819
      %vm1827 = vmor %vm1825, %vm1826
      %v1828 = vsel %vm1827, %v1819, %v1824
      %v1829 = vmul.f32 %v1557, %v1678
      %v1830 = vmul.f32 %v1558, %v1688
      %v1831 = vmul.f32 %v1559, %v1698
      %v1832 = vmul.f32 %v1560, %v1708
      %v1833 = vmul.f32 %v1561, %v1718
      %v1834 = vmul.f32 %v1562, %v1728
      %v1835 = vmul.f32 %v1563, %v1738
      %v1836 = vmul.f32 %v1564, %v1748
      %v1837 = vmul.f32 %v1565, %v1758
      %v1838 = vmul.f32 %v1566, %v1768
      %v1839 = vmul.f32 %v1567, %v1778
      %v1840 = vmul.f32 %v1568, %v1788
      %v1841 = vmul.f32 %v1569, %v1798
      %v1842 = vmul.f32 %v1570, %v1808
      %v1843 = vmul.f32 %v1571, %v1818
      %v1844 = vmul.f32 %v1572, %v1828
      %v1846 = vperm.slane %v1491, 0
      %v1848 = vmul.f32 %v1829, %v1846
      %v1849 = vmul.f32 %v1830, %v1846
      %v1850 = vmul.f32 %v1831, %v1846
      %v1851 = vmul.f32 %v1832, %v1846
      %v1852 = vmul.f32 %v1833, %v1846
      %v1853 = vmul.f32 %v1834, %v1846
      %v1854 = vmul.f32 %v1835, %v1846
      %v1855 = vmul.f32 %v1836, %v1846
      %v1856 = vmul.f32 %v1837, %v1846
      %v1857 = vmul.f32 %v1838, %v1846
      %v1858 = vmul.f32 %v1839, %v1846
      %v1859 = vmul.f32 %v1840, %v1846
      %v1860 = vmul.f32 %v1841, %v1846
      %v1861 = vmul.f32 %v1842, %v1846
      %v1862 = vmul.f32 %v1843, %v1846
      %v1863 = vmul.f32 %v1844, %v1846
      %v1865 = vperm.slane %v1492, 0
      %v1867 = vadd.f32 %v1848, %v1865
      %v1868 = vadd.f32 %v1849, %v1865
      %v1869 = vadd.f32 %v1850, %v1865
      %v1870 = vadd.f32 %v1851, %v1865
      %v1871 = vadd.f32 %v1852, %v1865
      %v1872 = vadd.f32 %v1853, %v1865
      %v1873 = vadd.f32 %v1854, %v1865
      %v1874 = vadd.f32 %v1855, %v1865
      %v1875 = vadd.f32 %v1856, %v1865
      %v1876 = vadd.f32 %v1857, %v1865
      %v1877 = vadd.f32 %v1858, %v1865
      %v1878 = vadd.f32 %v1859, %v1865
      %v1879 = vadd.f32 %v1860, %v1865
      %v1880 = vadd.f32 %v1861, %v1865
      %v1881 = vadd.f32 %v1862, %v1865
      %v1882 = vadd.f32 %v1863, %v1865
      %v1883 = vmax.f32 %v1867, 0.0
      %v1884 = vmax.f32 %v1868, 0.0
      %v1885 = vmax.f32 %v1869, 0.0
      %v1886 = vmax.f32 %v1870, 0.0
      %v1887 = vmax.f32 %v1871, 0.0
      %v1888 = vmax.f32 %v1872, 0.0
      %v1889 = vmax.f32 %v1873, 0.0
      %v1890 = vmax.f32 %v1874, 0.0
      %v1891 = vmax.f32 %v1875, 0.0
      %v1892 = vmax.f32 %v1876, 0.0
      %v1893 = vmax.f32 %v1877, 0.0
      %v1894 = vmax.f32 %v1878, 0.0
      %v1895 = vmax.f32 %v1879, 0.0
      %v1896 = vmax.f32 %v1880, 0.0
      %v1897 = vmax.f32 %v1881, 0.0
      %v1898 = vmax.f32 %v1882, 0.0
      %v1899 = vadd.f32 %v580, %v1883
      %v1900 = vadd.f32 %v583, %v1884
      %v1901 = vadd.f32 %v586, %v1885
      %v1902 = vadd.f32 %v589, %v1886
      %v1903 = vadd.f32 %v592, %v1887
      %v1904 = vadd.f32 %v595, %v1888
      %v1905 = vadd.f32 %v598, %v1889
      %v1906 = vadd.f32 %v601, %v1890
      %v1907 = vadd.f32 %v604, %v1891
      %v1908 = vadd.f32 %v607, %v1892
      %v1909 = vadd.f32 %v610, %v1893
      %v1910 = vadd.f32 %v613, %v1894
      %v1911 = vadd.f32 %v616, %v1895
      %v1912 = vadd.f32 %v619, %v1896
      %v1913 = vadd.f32 %v622, %v1897
      %v1914 = vadd.f32 %v625, %v1898
      %1915 = vst.msk [vmem:[%s487] sm:$0xff] %vm513, %v1899
      %1916 = vst.msk [vmem:[%s487 + $0x8] sm:$0xff] %vm513, %v1900
      %1917 = vst.msk [vmem:[%s487 + $0x10] sm:$0xff] %vm513, %v1901
      %1918 = vst.msk [vmem:[%s487 + $0x18] sm:$0xff] %vm513, %v1902
      %1919 = vst.msk [vmem:[%s487 + $0x20] sm:$0xff] %vm513, %v1903
      %1920 = vst.msk [vmem:[%s487 + $0x28] sm:$0xff] %vm513, %v1904
      %1921 = vst.msk [vmem:[%s487 + $0x30] sm:$0xff] %vm513, %v1905
      %1922 = vst.msk [vmem:[%s487 + $0x38] sm:$0xff] %vm513, %v1906
      %1923 = vst.msk [vmem:[%s487 + $0x40] sm:$0xff] %vm513, %v1907
      %1924 = vst.msk [vmem:[%s487 + $0x48] sm:$0xff] %vm513, %v1908
      %1925 = vst.msk [vmem:[%s487 + $0x50] sm:$0xff] %vm513, %v1909
      %1926 = vst.msk [vmem:[%s487 + $0x58] sm:$0xff] %vm513, %v1910
      %1927 = vst.msk [vmem:[%s487 + $0x60] sm:$0xff] %vm513, %v1911
      %1928 = vst.msk [vmem:[%s487 + $0x68] sm:$0xff] %vm513, %v1912
      %1929 = vst.msk [vmem:[%s487 + $0x70] sm:$0xff] %vm513, %v1913
      %1930 = vst.msk [vmem:[%s487 + $0x78] sm:$0xff] %vm513, %v1914
      %s1931 = smul.u32 16, %s28
      %p1932 = scmp.lt.s32.totalorder %s27, 1
      %s1933 = scalar_select %p1932, %s27, 1
      %p1934 = scmp.lt.s32.totalorder %s1931, 31
      %s1935 = scalar_select %p1934, %s1931, 31
      %s1936 = smul.addr %s1933, 32
      %s1937 = sadd.s32 %s1935, %s1936
      %s1938 = smul.addr %s1937, 8
      %s1939 = scalar_lea.vmem %s12, %s1938
      // Predicated region
      $region69: #{detr3d_cross_attn.7} parent=67 // pred_check
        %p1940 = pneg %p321
      $region70: #{detr3d_cross_attn.7} parent=67 // pred_check_branch
        %1942 = sbr.rel (%p1940) target = $region72
      $region71: #{detr3d_cross_attn.7} parent=67 // pred_region
        %s1943 = smul.u32 16, %s28
      $region72: #{detr3d_cross_attn.7} parent=67 // pred_fallthru
        _
    $region68: #{detr3d_cross_attn.7} parent=5 // pred_fallthru
      _
    %p1944 = scmp.le.s32.totalorder 2, %s18
    // Predicated region
    $region73: #{detr3d_cross_attn.7} parent=5 // pred_check
      %p1945 = pneg %p1944
    $region74: #{detr3d_cross_attn.7} parent=5 // pred_check_branch
      %1947 = sbr.rel (%p1945) target = $region76
    $region75: #{detr3d_cross_attn.7} parent=5 // pred_region
      %s1948 = ssub.s32 %s18, 2
      // Predicated region
      $region77: #{detr3d_cross_attn.7} parent=75 // pred_check
        %p1949 = pneg %p327
      $region78: #{detr3d_cross_attn.7} parent=75 // pred_check_branch
        %1951 = sbr.rel (%p1949) target = $region80
      $region79: #{detr3d_cross_attn.7} parent=75 // pred_region
        %s1952 = smul.u32 16, %s30
        %p1953 = scmp.lt.s32.totalorder %s29, 1
        %s1954 = scalar_select %p1953, %s29, 1
        %p1955 = scmp.lt.s32.totalorder %s1952, 31
        %s1956 = scalar_select %p1955, %s1952, 31
        %s1957 = smul.addr %s1954, 32
        %s1958 = sadd.s32 %s1956, %s1957
        %s1959 = smul.addr %s1958, 8
        %s1960 = scalar_lea.vmem %s12, %s1959
      $region80: #{detr3d_cross_attn.7} parent=75 // pred_fallthru
        _
    $region76: #{detr3d_cross_attn.7} parent=5 // pred_fallthru
      _
  $region6: #{detr3d_cross_attn.7} parent=0 // loop_footer
    %s22 = sadd.s32 1, %s18
  $region7: #{detr3d_cross_attn.7} parent=0 // loop_footer_branch
    %17 = sbr.rel target = $region3
  $region8: #{detr3d_cross_attn.7} parent=0 // loop_exit
    _

</llo_original>
